<compile_context>
chip_gen: v7x
topology: tpu7x:2x2x1
jax: 0.10.0
libtpu: 0.0.40
codegen_flags: <defaults>
</compile_context>

<pallas_src>
import jax
import jax.numpy as jnp
from jax.experimental import pallas as pl
from jax.experimental.pallas import tpu as pltpu

# Padded channel sizes (lane-friendly).
C1P = 32     # conv1 out channels 10 -> 32  (stage-1 lane width 12*32 = 384)
C2P = 32     # conv2 out channels 20 -> 32  (stage-2 lane width 4*32  = 128)
F1P = 128    # fc1   out features 50 -> 128
F2P = 128    # fc2   out features 10 -> 128 (sliced back to 10 in the wrapper)
K = 5        # conv kernel size
TB = 8       # batch tile; grid iterates over batch tiles

N1 = 12 * C1P   # lanes of pooled conv1 activation: (ow_pooled=12, c)
N2 = 4 * C2P    # lanes of pooled conv2 activation: (ow_pooled=4,  c)


# ---------------------------------------------------------------------------
# Fused kernel: conv1+ReLU+pool -> conv2+ReLU+pool -> flatten -> fc1+ReLU -> fc2
# ---------------------------------------------------------------------------
def _fused_cnn_kernel(x_ref, c1m_ref, c1b_ref, c2m_ref, c2b_ref,
                      f1w_ref, f1b_ref, f2w_ref, f2b_ref, o_ref):
    f32 = jnp.float32
    tb = x_ref.shape[0]

    # ---- stage 1: conv1(5x5, Cin=1) + bias + ReLU + 2x2 max-pool ----------
    OH1 = 24
    ya = jnp.zeros((tb * OH1, N1), f32)   # conv columns ow = 2j   (even)
    yb = jnp.zeros((tb * OH1, N1), f32)   # conv columns ow = 2j+1 (odd)
    for kh in range(K):
        xk = x_ref[:, pl.ds(kh, OH1), :].reshape(tb * OH1, 28)
        ya = ya + jnp.dot(xk, c1m_ref[0, kh], preferred_element_type=f32)
        yb = yb + jnp.dot(xk, c1m_ref[1, kh], preferred_element_type=f32)
    h1 = jnp.maximum(ya, yb)                          # pool over ow pairs
    h1 = jnp.maximum(h1 + c1b_ref[...], 0.0)          # bias + ReLU
    h1 = h1.reshape(tb, OH1, N1)
    # pool over oh pairs (static row slices only).
    h1p = jnp.concatenate(
        [jnp.maximum(h1[:, 2 * i:2 * i + 1, :], h1[:, 2 * i + 1:2 * i + 2, :])
         for i in range(12)], axis=1)                 # (tb, 12, N1)

    # ---- stage 2: conv2(5x5, Cin=10) + bias + ReLU + 2x2 max-pool ---------
    OH2 = 8
    za = jnp.zeros((tb * OH2, N2), f32)
    zb = jnp.zeros((tb * OH2, N2), f32)
    for kh in range(K):
        hk = h1p[:, kh:kh + OH2, :].reshape(tb * OH2, N1)
        za = za + jnp.dot(hk, c2m_ref[0, kh], preferred_element_type=f32)
        zb = zb + jnp.dot(hk, c2m_ref[1, kh], preferred_element_type=f32)
    h2 = jnp.maximum(za, zb)
    h2 = jnp.maximum(h2 + c2b_ref[...], 0.0)
    h2 = h2.reshape(tb, OH2, N2)

    # ---- stage 3: pool rows + channel-major flatten folded into fc1 -------
    acc = jnp.zeros((tb, F1P), f32)
    for i2 in range(4):
        p = jnp.maximum(h2[:, 2 * i2, :], h2[:, 2 * i2 + 1, :])   # (tb, N2)
        acc = acc + jnp.dot(p, f1w_ref[i2], preferred_element_type=f32)
    fc1 = jnp.maximum(acc + f1b_ref[...], 0.0)                    # (tb, F1P)
    out = jnp.dot(fc1, f2w_ref[...], preferred_element_type=f32) + f2b_ref[...]
    o_ref[...] = out.astype(o_ref.dtype)


# ---------------------------------------------------------------------------
# One-time weight repacking (PyTorch layout -> matmul-ready banded matrices)
# ---------------------------------------------------------------------------
def prepare_params(params):
    f32 = jnp.float32
    w1 = params["conv1_w"].astype(f32)    # (10, 1, 5, 5)
    b1 = params["conv1_b"].astype(f32)    # (10,)
    w2 = params["conv2_w"].astype(f32)    # (20, 10, 5, 5)
    b2 = params["conv2_b"].astype(f32)    # (20,)
    fw1 = params["fc1_w"].astype(f32)     # (50, 320)
    fb1 = params["fc1_b"].astype(f32)     # (50,)
    fw2 = params["fc2_w"].astype(f32)     # (10, 50)
    fb2 = params["fc2_b"].astype(f32)     # (10,)

    kw = jnp.arange(K)

    # conv1 banded matrices: c1m[pw, kh, w, j*C1P + c] = w1[c,0,kh, w-(2j+pw)]
    tgt1 = (2 * jnp.arange(12)[None, None, :, None]
            + jnp.arange(2)[None, :, None, None]
            + kw[:, None, None, None])                              # (5,2,12,1)
    s1 = (jnp.arange(28)[None, None, None, :] == tgt1).astype(f32)  # (5,2,12,28)
    c1m = jnp.einsum("kpjw,chk->phwjc", s1, w1[:, 0])               # (2,5,28,12,10)
    c1m = jnp.pad(c1m, ((0, 0),) * 4 + ((0, C1P - 10),)).reshape(2, K, 28, N1)
    c1b = jnp.tile(jnp.pad(b1, (0, C1P - 10)), 12).reshape(1, N1)

    # conv2 banded matrices: c2m[pw, kh, ow1*C1P + c, j2*C2P + d]
    tgt2 = (2 * jnp.arange(4)[None, None, :, None]
            + jnp.arange(2)[None, :, None, None]
            + kw[:, None, None, None])                              # (5,2,4,1)
    s2 = (jnp.arange(12)[None, None, None, :] == tgt2).astype(f32)  # (5,2,4,12)
    c2m = jnp.einsum("kpjw,dchk->phwcjd", s2, w2)                   # (2,5,12,10,4,20)
    c2m = jnp.pad(c2m, ((0, 0),) * 3 + ((0, C1P - 10), (0, 0), (0, C2P - 20)))
    c2m = c2m.reshape(2, K, N1, N2)
    c2b = jnp.tile(jnp.pad(b2, (0, C2P - 20)), 4).reshape(1, N2)

    # fc1: fold PyTorch channel-major flatten (idx = c*16 + h*4 + w) into the
    # packed per-row matrices f1w[h][w*C2P + c, f].
    f1w = fw1.reshape(50, 20, 4, 4)                 # (f, c, h, w)
    f1w = jnp.transpose(f1w, (2, 3, 1, 0))          # (h, w, c, f)
    f1w = jnp.pad(f1w, ((0, 0), (0, 0), (0, C2P - 20), (0, F1P - 50)))
    f1w = f1w.reshape(4, N2, F1P)
    f1b = jnp.pad(fb1, (0, F1P - 50)).reshape(1, F1P)

    f2w = jnp.zeros((F1P, F2P), f32).at[:50, :10].set(fw2.T)
    f2b = jnp.pad(fb2, (0, F2P - 10)).reshape(1, F2P)

    return (c1m, c1b, c2m, c2b, f1w, f1b, f2w, f2b)


# ---------------------------------------------------------------------------
# Forward wrapper
# ---------------------------------------------------------------------------
def cnn_forward(x_nchw, packed):
    B = x_nchw.shape[0]
    x = x_nchw.reshape(B, 28, 28).astype(jnp.float32)
    Bp = ((B + TB - 1) // TB) * TB
    if Bp != B:
        x = jnp.pad(x, ((0, Bp - B), (0, 0), (0, 0)))
    c1m, c1b, c2m, c2b, f1w, f1b, f2w, f2b = packed

    def full(a):
        nd = a.ndim
        return pl.BlockSpec(a.shape, lambda i, _n=nd: (0,) * _n)

    out = pl.pallas_call(
        _fused_cnn_kernel,
        out_shape=jax.ShapeDtypeStruct((Bp, F2P), jnp.float32),
        grid=(Bp // TB,),
        in_specs=[pl.BlockSpec((TB, 28, 28), lambda i: (i, 0, 0)),
                  full(c1m), full(c1b), full(c2m), full(c2b),
                  full(f1w), full(f1b), full(f2w), full(f2b)],
        out_specs=pl.BlockSpec((TB, F2P), lambda i: (i, 0)),
        compiler_params=pltpu.CompilerParams(
            dimension_semantics=("parallel",),
            vmem_limit_bytes=32 * 1024 * 1024),
    )(x, c1m, c1b, c2m, c2b, f1w, f1b, f2w, f2b)
    return out[:B, :10]


# ---------------------------------------------------------------------------
# Params (PyTorch-shaped) and a pure-JAX reference for validation
# ---------------------------------------------------------------------------
def init_params(key):
    ks = jax.random.split(key, 8)
    scale = 0.1
    return {
        "conv1_w": scale * jax.random.normal(ks[0], (10, 1, 5, 5), jnp.float32),
        "conv1_b": scale * jax.random.normal(ks[1], (10,), jnp.float32),
        "conv2_w": scale * jax.random.normal(ks[2], (20, 10, 5, 5), jnp.float32),
        "conv2_b": scale * jax.random.normal(ks[3], (20,), jnp.float32),
        "fc1_w": scale * jax.random.normal(ks[4], (50, 320), jnp.float32),
        "fc1_b": scale * jax.random.normal(ks[5], (50,), jnp.float32),
        "fc2_w": scale * jax.random.normal(ks[6], (10, 50), jnp.float32),
        "fc2_b": scale * jax.random.normal(ks[7], (10,), jnp.float32),
    }


def cnn_reference(x, params):
    def conv(x, w, b):
        y = jax.lax.conv_general_dilated(
            x, w, (1, 1), "VALID", dimension_numbers=("NCHW", "OIHW", "NCHW"))
        return y + b[None, :, None, None]

    def pool(x):
        return jax.lax.reduce_window(x, -jnp.inf, jax.lax.max,
                                     (1, 1, 2, 2), (1, 1, 2, 2), "VALID")

    x = pool(jax.nn.relu(conv(x, params["conv1_w"], params["conv1_b"])))
    x = pool(jax.nn.relu(conv(x, params["conv2_w"], params["conv2_b"])))
    x = x.reshape(x.shape[0], -1)
    x = jax.nn.relu(x @ params["fc1_w"].T + params["fc1_b"])
    return x @ params["fc2_w"].T + params["fc2_b"]


if __name__ == "__main__":
    key = jax.random.PRNGKey(0)
    kx, kp = jax.random.split(key)
    params = init_params(kp)
    # 28x28 input so the flattened conv features == 320 (Linear(320, .)).
    x = jax.random.normal(kx, (16, 1, 28, 28), jnp.float32)

    packed = prepare_params(params)
    out = jax.jit(cnn_forward)(x, packed)
    out = jax.block_until_ready(out)
    assert out.shape == (16, 10), out.shape

    ref = cnn_reference(x, params)
    assert jnp.allclose(out, ref, rtol=3e-2, atol=3e-2), \
        float(jnp.max(jnp.abs(out - ref)))
    print("KERNEL_OK")
</pallas_src>

<mosaic_0001>
module attributes {stable_mosaic.version = 11 : i64} {
  func.func @_fused_cnn_kernel(%arg0: i32, %arg1: memref<8x28x28xf32, #tpu.memory_space<vmem>>, %arg2: memref<2x5x28x384xf32, #tpu.memory_space<vmem>>, %arg3: memref<1x384xf32, #tpu.memory_space<vmem>>, %arg4: memref<2x5x384x128xf32, #tpu.memory_space<vmem>>, %arg5: memref<1x128xf32, #tpu.memory_space<vmem>>, %arg6: memref<4x128x128xf32, #tpu.memory_space<vmem>>, %arg7: memref<1x128xf32, #tpu.memory_space<vmem>>, %arg8: memref<128x128xf32, #tpu.memory_space<vmem>>, %arg9: memref<1x128xf32, #tpu.memory_space<vmem>>, %arg10: memref<8x128xf32, #tpu.memory_space<vmem>>) attributes {dimension_semantics = [#tpu.dimension_semantics<parallel>], iteration_bounds = array<i64: 2>, scalar_prefetch = 0 : i64, scratch_operands = 0 : i64, tpu.core_type = #tpu.core_type<tc>, window_params = [{transform_indices = @transform_0, window_bounds = array<i64: 8, 28, 28>}, {pipeline_mode = #tpu.pipeline_mode<synchronous>, transform_indices = @transform_1, window_bounds = array<i64: 2, 5, 28, 384>}, {pipeline_mode = #tpu.pipeline_mode<synchronous>, transform_indices = @transform_2, window_bounds = array<i64: 1, 384>}, {pipeline_mode = #tpu.pipeline_mode<synchronous>, transform_indices = @transform_3, window_bounds = array<i64: 2, 5, 384, 128>}, {pipeline_mode = #tpu.pipeline_mode<synchronous>, transform_indices = @transform_4, window_bounds = array<i64: 1, 128>}, {pipeline_mode = #tpu.pipeline_mode<synchronous>, transform_indices = @transform_5, window_bounds = array<i64: 4, 128, 128>}, {pipeline_mode = #tpu.pipeline_mode<synchronous>, transform_indices = @transform_6, window_bounds = array<i64: 1, 128>}, {pipeline_mode = #tpu.pipeline_mode<synchronous>, transform_indices = @transform_7, window_bounds = array<i64: 128, 128>}, {pipeline_mode = #tpu.pipeline_mode<synchronous>, transform_indices = @transform_8, window_bounds = array<i64: 1, 128>}, {transform_indices = @transform_9, window_bounds = array<i64: 8, 128>}]} {
    %cst = arith.constant 0.000000e+00 : f32
    %0 = vector.broadcast %cst : f32 to vector<192x384xf32>
    %cst_0 = arith.constant 0.000000e+00 : f32
    %1 = vector.broadcast %cst_0 : f32 to vector<192x384xf32>
    %c0 = arith.constant 0 : index
    %c0_1 = arith.constant 0 : index
    %c0_2 = arith.constant 0 : index
    %2 = vector.load %arg1[%c0, %c0_1, %c0_2] : memref<8x28x28xf32, #tpu.memory_space<vmem>>, vector<8x24x28xf32>
    %3 = vector.shape_cast %2 : vector<8x24x28xf32> to vector<192x28xf32>
    %c0_3 = arith.constant 0 : index
    %c0_4 = arith.constant 0 : index
    %c0_5 = arith.constant 0 : index
    %c0_6 = arith.constant 0 : index
    %4 = vector.load %arg2[%c0_3, %c0_4, %c0_5, %c0_6] : memref<2x5x28x384xf32, #tpu.memory_space<vmem>>, vector<1x1x28x384xf32>
    %5 = vector.shape_cast %4 : vector<1x1x28x384xf32> to vector<28x384xf32>
    %cst_7 = arith.constant dense<0.000000e+00> : vector<192x384xf32>
    %6 = tpu.matmul %3, %5, %cst_7 {dimension_numbers = #tpu.dot_dimension_numbers<[1], [0], [0], [1], [0, 0, 1, 1], [], []>} : vector<192x28xf32>, vector<28x384xf32>, vector<192x384xf32> -> vector<192x384xf32>
    %7 = arith.addf %0, %6 : vector<192x384xf32>
    %c1 = arith.constant 1 : index
    %c0_8 = arith.constant 0 : index
    %c0_9 = arith.constant 0 : index
    %c0_10 = arith.constant 0 : index
    %8 = vector.load %arg2[%c1, %c0_8, %c0_9, %c0_10] : memref<2x5x28x384xf32, #tpu.memory_space<vmem>>, vector<1x1x28x384xf32>
    %9 = vector.shape_cast %8 : vector<1x1x28x384xf32> to vector<28x384xf32>
    %cst_11 = arith.constant dense<0.000000e+00> : vector<192x384xf32>
    %10 = tpu.matmul %3, %9, %cst_11 {dimension_numbers = #tpu.dot_dimension_numbers<[1], [0], [0], [1], [0, 0, 1, 1], [], []>} : vector<192x28xf32>, vector<28x384xf32>, vector<192x384xf32> -> vector<192x384xf32>
    %11 = arith.addf %1, %10 : vector<192x384xf32>
    %c0_12 = arith.constant 0 : index
    %c1_13 = arith.constant 1 : index
    %c0_14 = arith.constant 0 : index
    %12 = vector.load %arg1[%c0_12, %c1_13, %c0_14] : memref<8x28x28xf32, #tpu.memory_space<vmem>>, vector<8x24x28xf32>
    %13 = vector.shape_cast %12 : vector<8x24x28xf32> to vector<192x28xf32>
    %c0_15 = arith.constant 0 : index
    %c1_16 = arith.constant 1 : index
    %c0_17 = arith.constant 0 : index
    %c0_18 = arith.constant 0 : index
    %14 = vector.load %arg2[%c0_15, %c1_16, %c0_17, %c0_18] : memref<2x5x28x384xf32, #tpu.memory_space<vmem>>, vector<1x1x28x384xf32>
    %15 = vector.shape_cast %14 : vector<1x1x28x384xf32> to vector<28x384xf32>
    %cst_19 = arith.constant dense<0.000000e+00> : vector<192x384xf32>
    %16 = tpu.matmul %13, %15, %cst_19 {dimension_numbers = #tpu.dot_dimension_numbers<[1], [0], [0], [1], [0, 0, 1, 1], [], []>} : vector<192x28xf32>, vector<28x384xf32>, vector<192x384xf32> -> vector<192x384xf32>
    %17 = arith.addf %7, %16 : vector<192x384xf32>
    %c1_20 = arith.constant 1 : index
    %c1_21 = arith.constant 1 : index
    %c0_22 = arith.constant 0 : index
    %c0_23 = arith.constant 0 : index
    %18 = vector.load %arg2[%c1_20, %c1_21, %c0_22, %c0_23] : memref<2x5x28x384xf32, #tpu.memory_space<vmem>>, vector<1x1x28x384xf32>
    %19 = vector.shape_cast %18 : vector<1x1x28x384xf32> to vector<28x384xf32>
    %cst_24 = arith.constant dense<0.000000e+00> : vector<192x384xf32>
    %20 = tpu.matmul %13, %19, %cst_24 {dimension_numbers = #tpu.dot_dimension_numbers<[1], [0], [0], [1], [0, 0, 1, 1], [], []>} : vector<192x28xf32>, vector<28x384xf32>, vector<192x384xf32> -> vector<192x384xf32>
    %21 = arith.addf %11, %20 : vector<192x384xf32>
    %c0_25 = arith.constant 0 : index
    %c2 = arith.constant 2 : index
    %c0_26 = arith.constant 0 : index
    %22 = vector.load %arg1[%c0_25, %c2, %c0_26] : memref<8x28x28xf32, #tpu.memory_space<vmem>>, vector<8x24x28xf32>
    %23 = vector.shape_cast %22 : vector<8x24x28xf32> to vector<192x28xf32>
    %c0_27 = arith.constant 0 : index
    %c2_28 = arith.constant 2 : index
    %c0_29 = arith.constant 0 : index
    %c0_30 = arith.constant 0 : index
    %24 = vector.load %arg2[%c0_27, %c2_28, %c0_29, %c0_30] : memref<2x5x28x384xf32, #tpu.memory_space<vmem>>, vector<1x1x28x384xf32>
    %25 = vector.shape_cast %24 : vector<1x1x28x384xf32> to vector<28x384xf32>
    %cst_31 = arith.constant dense<0.000000e+00> : vector<192x384xf32>
    %26 = tpu.matmul %23, %25, %cst_31 {dimension_numbers = #tpu.dot_dimension_numbers<[1], [0], [0], [1], [0, 0, 1, 1], [], []>} : vector<192x28xf32>, vector<28x384xf32>, vector<192x384xf32> -> vector<192x384xf32>
    %27 = arith.addf %17, %26 : vector<192x384xf32>
    %c1_32 = arith.constant 1 : index
    %c2_33 = arith.constant 2 : index
    %c0_34 = arith.constant 0 : index
    %c0_35 = arith.constant 0 : index
    %28 = vector.load %arg2[%c1_32, %c2_33, %c0_34, %c0_35] : memref<2x5x28x384xf32, #tpu.memory_space<vmem>>, vector<1x1x28x384xf32>
    %29 = vector.shape_cast %28 : vector<1x1x28x384xf32> to vector<28x384xf32>
    %cst_36 = arith.constant dense<0.000000e+00> : vector<192x384xf32>
    %30 = tpu.matmul %23, %29, %cst_36 {dimension_numbers = #tpu.dot_dimension_numbers<[1], [0], [0], [1], [0, 0, 1, 1], [], []>} : vector<192x28xf32>, vector<28x384xf32>, vector<192x384xf32> -> vector<192x384xf32>
    %31 = arith.addf %21, %30 : vector<192x384xf32>
    %c0_37 = arith.constant 0 : index
    %c3 = arith.constant 3 : index
    %c0_38 = arith.constant 0 : index
    %32 = vector.load %arg1[%c0_37, %c3, %c0_38] : memref<8x28x28xf32, #tpu.memory_space<vmem>>, vector<8x24x28xf32>
    %33 = vector.shape_cast %32 : vector<8x24x28xf32> to vector<192x28xf32>
    %c0_39 = arith.constant 0 : index
    %c3_40 = arith.constant 3 : index
    %c0_41 = arith.constant 0 : index
    %c0_42 = arith.constant 0 : index
    %34 = vector.load %arg2[%c0_39, %c3_40, %c0_41, %c0_42] : memref<2x5x28x384xf32, #tpu.memory_space<vmem>>, vector<1x1x28x384xf32>
    %35 = vector.shape_cast %34 : vector<1x1x28x384xf32> to vector<28x384xf32>
    %cst_43 = arith.constant dense<0.000000e+00> : vector<192x384xf32>
    %36 = tpu.matmul %33, %35, %cst_43 {dimension_numbers = #tpu.dot_dimension_numbers<[1], [0], [0], [1], [0, 0, 1, 1], [], []>} : vector<192x28xf32>, vector<28x384xf32>, vector<192x384xf32> -> vector<192x384xf32>
    %37 = arith.addf %27, %36 : vector<192x384xf32>
    %c1_44 = arith.constant 1 : index
    %c3_45 = arith.constant 3 : index
    %c0_46 = arith.constant 0 : index
    %c0_47 = arith.constant 0 : index
    %38 = vector.load %arg2[%c1_44, %c3_45, %c0_46, %c0_47] : memref<2x5x28x384xf32, #tpu.memory_space<vmem>>, vector<1x1x28x384xf32>
    %39 = vector.shape_cast %38 : vector<1x1x28x384xf32> to vector<28x384xf32>
    %cst_48 = arith.constant dense<0.000000e+00> : vector<192x384xf32>
    %40 = tpu.matmul %33, %39, %cst_48 {dimension_numbers = #tpu.dot_dimension_numbers<[1], [0], [0], [1], [0, 0, 1, 1], [], []>} : vector<192x28xf32>, vector<28x384xf32>, vector<192x384xf32> -> vector<192x384xf32>
    %41 = arith.addf %31, %40 : vector<192x384xf32>
    %c0_49 = arith.constant 0 : index
    %c4 = arith.constant 4 : index
    %c0_50 = arith.constant 0 : index
    %42 = vector.load %arg1[%c0_49, %c4, %c0_50] : memref<8x28x28xf32, #tpu.memory_space<vmem>>, vector<8x24x28xf32>
    %43 = vector.shape_cast %42 : vector<8x24x28xf32> to vector<192x28xf32>
    %c0_51 = arith.constant 0 : index
    %c4_52 = arith.constant 4 : index
    %c0_53 = arith.constant 0 : index
    %c0_54 = arith.constant 0 : index
    %44 = vector.load %arg2[%c0_51, %c4_52, %c0_53, %c0_54] : memref<2x5x28x384xf32, #tpu.memory_space<vmem>>, vector<1x1x28x384xf32>
    %45 = vector.shape_cast %44 : vector<1x1x28x384xf32> to vector<28x384xf32>
    %cst_55 = arith.constant dense<0.000000e+00> : vector<192x384xf32>
    %46 = tpu.matmul %43, %45, %cst_55 {dimension_numbers = #tpu.dot_dimension_numbers<[1], [0], [0], [1], [0, 0, 1, 1], [], []>} : vector<192x28xf32>, vector<28x384xf32>, vector<192x384xf32> -> vector<192x384xf32>
    %47 = arith.addf %37, %46 : vector<192x384xf32>
    %c1_56 = arith.constant 1 : index
    %c4_57 = arith.constant 4 : index
    %c0_58 = arith.constant 0 : index
    %c0_59 = arith.constant 0 : index
    %48 = vector.load %arg2[%c1_56, %c4_57, %c0_58, %c0_59] : memref<2x5x28x384xf32, #tpu.memory_space<vmem>>, vector<1x1x28x384xf32>
    %49 = vector.shape_cast %48 : vector<1x1x28x384xf32> to vector<28x384xf32>
    %cst_60 = arith.constant dense<0.000000e+00> : vector<192x384xf32>
    %50 = tpu.matmul %43, %49, %cst_60 {dimension_numbers = #tpu.dot_dimension_numbers<[1], [0], [0], [1], [0, 0, 1, 1], [], []>} : vector<192x28xf32>, vector<28x384xf32>, vector<192x384xf32> -> vector<192x384xf32>
    %51 = arith.addf %41, %50 : vector<192x384xf32>
    %52 = arith.maximumf %47, %51 : vector<192x384xf32>
    %c0_61 = arith.constant 0 : index
    %c0_62 = arith.constant 0 : index
    %53 = vector.load %arg3[%c0_61, %c0_62] : memref<1x384xf32, #tpu.memory_space<vmem>>, vector<1x384xf32>
    %54 = vector.broadcast %53 : vector<1x384xf32> to vector<192x384xf32>
    %55 = arith.addf %52, %54 : vector<192x384xf32>
    %cst_63 = arith.constant 0.000000e+00 : f32
    %56 = vector.broadcast %cst_63 : f32 to vector<192x384xf32>
    %57 = arith.maximumf %55, %56 : vector<192x384xf32>
    %58 = vector.shape_cast %57 : vector<192x384xf32> to vector<8x24x384xf32>
    %59 = vector.extract_strided_slice %58 {offsets = [0, 0, 0], sizes = [8, 1, 384], strides = [1, 1, 1]} : vector<8x24x384xf32> to vector<8x1x384xf32>
    %60 = vector.extract_strided_slice %58 {offsets = [0, 1, 0], sizes = [8, 1, 384], strides = [1, 1, 1]} : vector<8x24x384xf32> to vector<8x1x384xf32>
    %61 = arith.maximumf %59, %60 : vector<8x1x384xf32>
    %62 = vector.extract_strided_slice %58 {offsets = [0, 2, 0], sizes = [8, 1, 384], strides = [1, 1, 1]} : vector<8x24x384xf32> to vector<8x1x384xf32>
    %63 = vector.extract_strided_slice %58 {offsets = [0, 3, 0], sizes = [8, 1, 384], strides = [1, 1, 1]} : vector<8x24x384xf32> to vector<8x1x384xf32>
    %64 = arith.maximumf %62, %63 : vector<8x1x384xf32>
    %65 = vector.extract_strided_slice %58 {offsets = [0, 4, 0], sizes = [8, 1, 384], strides = [1, 1, 1]} : vector<8x24x384xf32> to vector<8x1x384xf32>
    %66 = vector.extract_strided_slice %58 {offsets = [0, 5, 0], sizes = [8, 1, 384], strides = [1, 1, 1]} : vector<8x24x384xf32> to vector<8x1x384xf32>
    %67 = arith.maximumf %65, %66 : vector<8x1x384xf32>
    %68 = vector.extract_strided_slice %58 {offsets = [0, 6, 0], sizes = [8, 1, 384], strides = [1, 1, 1]} : vector<8x24x384xf32> to vector<8x1x384xf32>
    %69 = vector.extract_strided_slice %58 {offsets = [0, 7, 0], sizes = [8, 1, 384], strides = [1, 1, 1]} : vector<8x24x384xf32> to vector<8x1x384xf32>
    %70 = arith.maximumf %68, %69 : vector<8x1x384xf32>
    %71 = vector.extract_strided_slice %58 {offsets = [0, 8, 0], sizes = [8, 1, 384], strides = [1, 1, 1]} : vector<8x24x384xf32> to vector<8x1x384xf32>
    %72 = vector.extract_strided_slice %58 {offsets = [0, 9, 0], sizes = [8, 1, 384], strides = [1, 1, 1]} : vector<8x24x384xf32> to vector<8x1x384xf32>
    %73 = arith.maximumf %71, %72 : vector<8x1x384xf32>
    %74 = vector.extract_strided_slice %58 {offsets = [0, 10, 0], sizes = [8, 1, 384], strides = [1, 1, 1]} : vector<8x24x384xf32> to vector<8x1x384xf32>
    %75 = vector.extract_strided_slice %58 {offsets = [0, 11, 0], sizes = [8, 1, 384], strides = [1, 1, 1]} : vector<8x24x384xf32> to vector<8x1x384xf32>
    %76 = arith.maximumf %74, %75 : vector<8x1x384xf32>
    %77 = vector.extract_strided_slice %58 {offsets = [0, 12, 0], sizes = [8, 1, 384], strides = [1, 1, 1]} : vector<8x24x384xf32> to vector<8x1x384xf32>
    %78 = vector.extract_strided_slice %58 {offsets = [0, 13, 0], sizes = [8, 1, 384], strides = [1, 1, 1]} : vector<8x24x384xf32> to vector<8x1x384xf32>
    %79 = arith.maximumf %77, %78 : vector<8x1x384xf32>
    %80 = vector.extract_strided_slice %58 {offsets = [0, 14, 0], sizes = [8, 1, 384], strides = [1, 1, 1]} : vector<8x24x384xf32> to vector<8x1x384xf32>
    %81 = vector.extract_strided_slice %58 {offsets = [0, 15, 0], sizes = [8, 1, 384], strides = [1, 1, 1]} : vector<8x24x384xf32> to vector<8x1x384xf32>
    %82 = arith.maximumf %80, %81 : vector<8x1x384xf32>
    %83 = vector.extract_strided_slice %58 {offsets = [0, 16, 0], sizes = [8, 1, 384], strides = [1, 1, 1]} : vector<8x24x384xf32> to vector<8x1x384xf32>
    %84 = vector.extract_strided_slice %58 {offsets = [0, 17, 0], sizes = [8, 1, 384], strides = [1, 1, 1]} : vector<8x24x384xf32> to vector<8x1x384xf32>
    %85 = arith.maximumf %83, %84 : vector<8x1x384xf32>
    %86 = vector.extract_strided_slice %58 {offsets = [0, 18, 0], sizes = [8, 1, 384], strides = [1, 1, 1]} : vector<8x24x384xf32> to vector<8x1x384xf32>
    %87 = vector.extract_strided_slice %58 {offsets = [0, 19, 0], sizes = [8, 1, 384], strides = [1, 1, 1]} : vector<8x24x384xf32> to vector<8x1x384xf32>
    %88 = arith.maximumf %86, %87 : vector<8x1x384xf32>
    %89 = vector.extract_strided_slice %58 {offsets = [0, 20, 0], sizes = [8, 1, 384], strides = [1, 1, 1]} : vector<8x24x384xf32> to vector<8x1x384xf32>
    %90 = vector.extract_strided_slice %58 {offsets = [0, 21, 0], sizes = [8, 1, 384], strides = [1, 1, 1]} : vector<8x24x384xf32> to vector<8x1x384xf32>
    %91 = arith.maximumf %89, %90 : vector<8x1x384xf32>
    %92 = vector.extract_strided_slice %58 {offsets = [0, 22, 0], sizes = [8, 1, 384], strides = [1, 1, 1]} : vector<8x24x384xf32> to vector<8x1x384xf32>
    %93 = vector.extract_strided_slice %58 {offsets = [0, 23, 0], sizes = [8, 1, 384], strides = [1, 1, 1]} : vector<8x24x384xf32> to vector<8x1x384xf32>
    %94 = arith.maximumf %92, %93 : vector<8x1x384xf32>
    %95 = tpu.concatenate %61, %64, %67, %70, %73, %76, %79, %82, %85, %88, %91, %94 in 1 : vector<8x1x384xf32>, vector<8x1x384xf32>, vector<8x1x384xf32>, vector<8x1x384xf32>, vector<8x1x384xf32>, vector<8x1x384xf32>, vector<8x1x384xf32>, vector<8x1x384xf32>, vector<8x1x384xf32>, vector<8x1x384xf32>, vector<8x1x384xf32>, vector<8x1x384xf32> -> vector<8x12x384xf32>
    %cst_64 = arith.constant 0.000000e+00 : f32
    %96 = vector.broadcast %cst_64 : f32 to vector<64x128xf32>
    %cst_65 = arith.constant 0.000000e+00 : f32
    %97 = vector.broadcast %cst_65 : f32 to vector<64x128xf32>
    %98 = vector.extract_strided_slice %95 {offsets = [0, 0, 0], sizes = [8, 8, 384], strides = [1, 1, 1]} : vector<8x12x384xf32> to vector<8x8x384xf32>
    %99 = vector.shape_cast %98 : vector<8x8x384xf32> to vector<64x384xf32>
    %c0_66 = arith.constant 0 : index
    %c0_67 = arith.constant 0 : index
    %c0_68 = arith.constant 0 : index
    %c0_69 = arith.constant 0 : index
    %100 = vector.load %arg4[%c0_66, %c0_67, %c0_68, %c0_69] : memref<2x5x384x128xf32, #tpu.memory_space<vmem>>, vector<1x1x384x128xf32>
    %101 = vector.shape_cast %100 : vector<1x1x384x128xf32> to vector<384x128xf32>
    %cst_70 = arith.constant dense<0.000000e+00> : vector<64x128xf32>
    %102 = tpu.matmul %99, %101, %cst_70 {dimension_numbers = #tpu.dot_dimension_numbers<[1], [0], [0], [1], [0, 0, 1, 1], [], []>} : vector<64x384xf32>, vector<384x128xf32>, vector<64x128xf32> -> vector<64x128xf32>
    %103 = arith.addf %96, %102 : vector<64x128xf32>
    %c1_71 = arith.constant 1 : index
    %c0_72 = arith.constant 0 : index
    %c0_73 = arith.constant 0 : index
    %c0_74 = arith.constant 0 : index
    %104 = vector.load %arg4[%c1_71, %c0_72, %c0_73, %c0_74] : memref<2x5x384x128xf32, #tpu.memory_space<vmem>>, vector<1x1x384x128xf32>
    %105 = vector.shape_cast %104 : vector<1x1x384x128xf32> to vector<384x128xf32>
    %cst_75 = arith.constant dense<0.000000e+00> : vector<64x128xf32>
    %106 = tpu.matmul %99, %105, %cst_75 {dimension_numbers = #tpu.dot_dimension_numbers<[1], [0], [0], [1], [0, 0, 1, 1], [], []>} : vector<64x384xf32>, vector<384x128xf32>, vector<64x128xf32> -> vector<64x128xf32>
    %107 = arith.addf %97, %106 : vector<64x128xf32>
    %108 = vector.extract_strided_slice %95 {offsets = [0, 1, 0], sizes = [8, 8, 384], strides = [1, 1, 1]} : vector<8x12x384xf32> to vector<8x8x384xf32>
    %109 = vector.shape_cast %108 : vector<8x8x384xf32> to vector<64x384xf32>
    %c0_76 = arith.constant 0 : index
    %c1_77 = arith.constant 1 : index
    %c0_78 = arith.constant 0 : index
    %c0_79 = arith.constant 0 : index
    %110 = vector.load %arg4[%c0_76, %c1_77, %c0_78, %c0_79] : memref<2x5x384x128xf32, #tpu.memory_space<vmem>>, vector<1x1x384x128xf32>
    %111 = vector.shape_cast %110 : vector<1x1x384x128xf32> to vector<384x128xf32>
    %cst_80 = arith.constant dense<0.000000e+00> : vector<64x128xf32>
    %112 = tpu.matmul %109, %111, %cst_80 {dimension_numbers = #tpu.dot_dimension_numbers<[1], [0], [0], [1], [0, 0, 1, 1], [], []>} : vector<64x384xf32>, vector<384x128xf32>, vector<64x128xf32> -> vector<64x128xf32>
    %113 = arith.addf %103, %112 : vector<64x128xf32>
    %c1_81 = arith.constant 1 : index
    %c1_82 = arith.constant 1 : index
    %c0_83 = arith.constant 0 : index
    %c0_84 = arith.constant 0 : index
    %114 = vector.load %arg4[%c1_81, %c1_82, %c0_83, %c0_84] : memref<2x5x384x128xf32, #tpu.memory_space<vmem>>, vector<1x1x384x128xf32>
    %115 = vector.shape_cast %114 : vector<1x1x384x128xf32> to vector<384x128xf32>
    %cst_85 = arith.constant dense<0.000000e+00> : vector<64x128xf32>
    %116 = tpu.matmul %109, %115, %cst_85 {dimension_numbers = #tpu.dot_dimension_numbers<[1], [0], [0], [1], [0, 0, 1, 1], [], []>} : vector<64x384xf32>, vector<384x128xf32>, vector<64x128xf32> -> vector<64x128xf32>
    %117 = arith.addf %107, %116 : vector<64x128xf32>
    %118 = vector.extract_strided_slice %95 {offsets = [0, 2, 0], sizes = [8, 8, 384], strides = [1, 1, 1]} : vector<8x12x384xf32> to vector<8x8x384xf32>
    %119 = vector.shape_cast %118 : vector<8x8x384xf32> to vector<64x384xf32>
    %c0_86 = arith.constant 0 : index
    %c2_87 = arith.constant 2 : index
    %c0_88 = arith.constant 0 : index
    %c0_89 = arith.constant 0 : index
    %120 = vector.load %arg4[%c0_86, %c2_87, %c0_88, %c0_89] : memref<2x5x384x128xf32, #tpu.memory_space<vmem>>, vector<1x1x384x128xf32>
    %121 = vector.shape_cast %120 : vector<1x1x384x128xf32> to vector<384x128xf32>
    %cst_90 = arith.constant dense<0.000000e+00> : vector<64x128xf32>
    %122 = tpu.matmul %119, %121, %cst_90 {dimension_numbers = #tpu.dot_dimension_numbers<[1], [0], [0], [1], [0, 0, 1, 1], [], []>} : vector<64x384xf32>, vector<384x128xf32>, vector<64x128xf32> -> vector<64x128xf32>
    %123 = arith.addf %113, %122 : vector<64x128xf32>
    %c1_91 = arith.constant 1 : index
    %c2_92 = arith.constant 2 : index
    %c0_93 = arith.constant 0 : index
    %c0_94 = arith.constant 0 : index
    %124 = vector.load %arg4[%c1_91, %c2_92, %c0_93, %c0_94] : memref<2x5x384x128xf32, #tpu.memory_space<vmem>>, vector<1x1x384x128xf32>
    %125 = vector.shape_cast %124 : vector<1x1x384x128xf32> to vector<384x128xf32>
    %cst_95 = arith.constant dense<0.000000e+00> : vector<64x128xf32>
    %126 = tpu.matmul %119, %125, %cst_95 {dimension_numbers = #tpu.dot_dimension_numbers<[1], [0], [0], [1], [0, 0, 1, 1], [], []>} : vector<64x384xf32>, vector<384x128xf32>, vector<64x128xf32> -> vector<64x128xf32>
    %127 = arith.addf %117, %126 : vector<64x128xf32>
    %128 = vector.extract_strided_slice %95 {offsets = [0, 3, 0], sizes = [8, 8, 384], strides = [1, 1, 1]} : vector<8x12x384xf32> to vector<8x8x384xf32>
    %129 = vector.shape_cast %128 : vector<8x8x384xf32> to vector<64x384xf32>
    %c0_96 = arith.constant 0 : index
    %c3_97 = arith.constant 3 : index
    %c0_98 = arith.constant 0 : index
    %c0_99 = arith.constant 0 : index
    %130 = vector.load %arg4[%c0_96, %c3_97, %c0_98, %c0_99] : memref<2x5x384x128xf32, #tpu.memory_space<vmem>>, vector<1x1x384x128xf32>
    %131 = vector.shape_cast %130 : vector<1x1x384x128xf32> to vector<384x128xf32>
    %cst_100 = arith.constant dense<0.000000e+00> : vector<64x128xf32>
    %132 = tpu.matmul %129, %131, %cst_100 {dimension_numbers = #tpu.dot_dimension_numbers<[1], [0], [0], [1], [0, 0, 1, 1], [], []>} : vector<64x384xf32>, vector<384x128xf32>, vector<64x128xf32> -> vector<64x128xf32>
    %133 = arith.addf %123, %132 : vector<64x128xf32>
    %c1_101 = arith.constant 1 : index
    %c3_102 = arith.constant 3 : index
    %c0_103 = arith.constant 0 : index
    %c0_104 = arith.constant 0 : index
    %134 = vector.load %arg4[%c1_101, %c3_102, %c0_103, %c0_104] : memref<2x5x384x128xf32, #tpu.memory_space<vmem>>, vector<1x1x384x128xf32>
    %135 = vector.shape_cast %134 : vector<1x1x384x128xf32> to vector<384x128xf32>
    %cst_105 = arith.constant dense<0.000000e+00> : vector<64x128xf32>
    %136 = tpu.matmul %129, %135, %cst_105 {dimension_numbers = #tpu.dot_dimension_numbers<[1], [0], [0], [1], [0, 0, 1, 1], [], []>} : vector<64x384xf32>, vector<384x128xf32>, vector<64x128xf32> -> vector<64x128xf32>
    %137 = arith.addf %127, %136 : vector<64x128xf32>
    %138 = vector.extract_strided_slice %95 {offsets = [0, 4, 0], sizes = [8, 8, 384], strides = [1, 1, 1]} : vector<8x12x384xf32> to vector<8x8x384xf32>
    %139 = vector.shape_cast %138 : vector<8x8x384xf32> to vector<64x384xf32>
    %c0_106 = arith.constant 0 : index
    %c4_107 = arith.constant 4 : index
    %c0_108 = arith.constant 0 : index
    %c0_109 = arith.constant 0 : index
    %140 = vector.load %arg4[%c0_106, %c4_107, %c0_108, %c0_109] : memref<2x5x384x128xf32, #tpu.memory_space<vmem>>, vector<1x1x384x128xf32>
    %141 = vector.shape_cast %140 : vector<1x1x384x128xf32> to vector<384x128xf32>
    %cst_110 = arith.constant dense<0.000000e+00> : vector<64x128xf32>
    %142 = tpu.matmul %139, %141, %cst_110 {dimension_numbers = #tpu.dot_dimension_numbers<[1], [0], [0], [1], [0, 0, 1, 1], [], []>} : vector<64x384xf32>, vector<384x128xf32>, vector<64x128xf32> -> vector<64x128xf32>
    %143 = arith.addf %133, %142 : vector<64x128xf32>
    %c1_111 = arith.constant 1 : index
    %c4_112 = arith.constant 4 : index
    %c0_113 = arith.constant 0 : index
    %c0_114 = arith.constant 0 : index
    %144 = vector.load %arg4[%c1_111, %c4_112, %c0_113, %c0_114] : memref<2x5x384x128xf32, #tpu.memory_space<vmem>>, vector<1x1x384x128xf32>
    %145 = vector.shape_cast %144 : vector<1x1x384x128xf32> to vector<384x128xf32>
    %cst_115 = arith.constant dense<0.000000e+00> : vector<64x128xf32>
    %146 = tpu.matmul %139, %145, %cst_115 {dimension_numbers = #tpu.dot_dimension_numbers<[1], [0], [0], [1], [0, 0, 1, 1], [], []>} : vector<64x384xf32>, vector<384x128xf32>, vector<64x128xf32> -> vector<64x128xf32>
    %147 = arith.addf %137, %146 : vector<64x128xf32>
    %148 = arith.maximumf %143, %147 : vector<64x128xf32>
    %c0_116 = arith.constant 0 : index
    %c0_117 = arith.constant 0 : index
    %149 = vector.load %arg5[%c0_116, %c0_117] : memref<1x128xf32, #tpu.memory_space<vmem>>, vector<1x128xf32>
    %150 = vector.broadcast %149 : vector<1x128xf32> to vector<64x128xf32>
    %151 = arith.addf %148, %150 : vector<64x128xf32>
    %cst_118 = arith.constant 0.000000e+00 : f32
    %152 = vector.broadcast %cst_118 : f32 to vector<64x128xf32>
    %153 = arith.maximumf %151, %152 : vector<64x128xf32>
    %154 = vector.shape_cast %153 : vector<64x128xf32> to vector<8x8x128xf32>
    %cst_119 = arith.constant 0.000000e+00 : f32
    %155 = vector.broadcast %cst_119 : f32 to vector<8x128xf32>
    %156 = vector.extract_strided_slice %154 {offsets = [0, 0, 0], sizes = [8, 1, 128], strides = [1, 1, 1]} : vector<8x8x128xf32> to vector<8x1x128xf32>
    %157 = vector.shape_cast %156 : vector<8x1x128xf32> to vector<8x128xf32>
    %158 = vector.extract_strided_slice %154 {offsets = [0, 1, 0], sizes = [8, 1, 128], strides = [1, 1, 1]} : vector<8x8x128xf32> to vector<8x1x128xf32>
    %159 = vector.shape_cast %158 : vector<8x1x128xf32> to vector<8x128xf32>
    %160 = arith.maximumf %157, %159 : vector<8x128xf32>
    %c0_120 = arith.constant 0 : index
    %c0_121 = arith.constant 0 : index
    %c0_122 = arith.constant 0 : index
    %161 = vector.load %arg6[%c0_120, %c0_121, %c0_122] : memref<4x128x128xf32, #tpu.memory_space<vmem>>, vector<1x128x128xf32>
    %162 = vector.shape_cast %161 : vector<1x128x128xf32> to vector<128x128xf32>
    %cst_123 = arith.constant dense<0.000000e+00> : vector<8x128xf32>
    %163 = tpu.matmul %160, %162, %cst_123 {dimension_numbers = #tpu.dot_dimension_numbers<[1], [0], [0], [1], [0, 0, 1, 1], [], []>} : vector<8x128xf32>, vector<128x128xf32>, vector<8x128xf32> -> vector<8x128xf32>
    %164 = arith.addf %155, %163 : vector<8x128xf32>
    %165 = vector.extract_strided_slice %154 {offsets = [0, 2, 0], sizes = [8, 1, 128], strides = [1, 1, 1]} : vector<8x8x128xf32> to vector<8x1x128xf32>
    %166 = vector.shape_cast %165 : vector<8x1x128xf32> to vector<8x128xf32>
    %167 = vector.extract_strided_slice %154 {offsets = [0, 3, 0], sizes = [8, 1, 128], strides = [1, 1, 1]} : vector<8x8x128xf32> to vector<8x1x128xf32>
    %168 = vector.shape_cast %167 : vector<8x1x128xf32> to vector<8x128xf32>
    %169 = arith.maximumf %166, %168 : vector<8x128xf32>
    %c1_124 = arith.constant 1 : index
    %c0_125 = arith.constant 0 : index
    %c0_126 = arith.constant 0 : index
    %170 = vector.load %arg6[%c1_124, %c0_125, %c0_126] : memref<4x128x128xf32, #tpu.memory_space<vmem>>, vector<1x128x128xf32>
    %171 = vector.shape_cast %170 : vector<1x128x128xf32> to vector<128x128xf32>
    %cst_127 = arith.constant dense<0.000000e+00> : vector<8x128xf32>
    %172 = tpu.matmul %169, %171, %cst_127 {dimension_numbers = #tpu.dot_dimension_numbers<[1], [0], [0], [1], [0, 0, 1, 1], [], []>} : vector<8x128xf32>, vector<128x128xf32>, vector<8x128xf32> -> vector<8x128xf32>
    %173 = arith.addf %164, %172 : vector<8x128xf32>
    %174 = vector.extract_strided_slice %154 {offsets = [0, 4, 0], sizes = [8, 1, 128], strides = [1, 1, 1]} : vector<8x8x128xf32> to vector<8x1x128xf32>
    %175 = vector.shape_cast %174 : vector<8x1x128xf32> to vector<8x128xf32>
    %176 = vector.extract_strided_slice %154 {offsets = [0, 5, 0], sizes = [8, 1, 128], strides = [1, 1, 1]} : vector<8x8x128xf32> to vector<8x1x128xf32>
    %177 = vector.shape_cast %176 : vector<8x1x128xf32> to vector<8x128xf32>
    %178 = arith.maximumf %175, %177 : vector<8x128xf32>
    %c2_128 = arith.constant 2 : index
    %c0_129 = arith.constant 0 : index
    %c0_130 = arith.constant 0 : index
    %179 = vector.load %arg6[%c2_128, %c0_129, %c0_130] : memref<4x128x128xf32, #tpu.memory_space<vmem>>, vector<1x128x128xf32>
    %180 = vector.shape_cast %179 : vector<1x128x128xf32> to vector<128x128xf32>
    %cst_131 = arith.constant dense<0.000000e+00> : vector<8x128xf32>
    %181 = tpu.matmul %178, %180, %cst_131 {dimension_numbers = #tpu.dot_dimension_numbers<[1], [0], [0], [1], [0, 0, 1, 1], [], []>} : vector<8x128xf32>, vector<128x128xf32>, vector<8x128xf32> -> vector<8x128xf32>
    %182 = arith.addf %173, %181 : vector<8x128xf32>
    %183 = vector.extract_strided_slice %154 {offsets = [0, 6, 0], sizes = [8, 1, 128], strides = [1, 1, 1]} : vector<8x8x128xf32> to vector<8x1x128xf32>
    %184 = vector.shape_cast %183 : vector<8x1x128xf32> to vector<8x128xf32>
    %185 = vector.extract_strided_slice %154 {offsets = [0, 7, 0], sizes = [8, 1, 128], strides = [1, 1, 1]} : vector<8x8x128xf32> to vector<8x1x128xf32>
    %186 = vector.shape_cast %185 : vector<8x1x128xf32> to vector<8x128xf32>
    %187 = arith.maximumf %184, %186 : vector<8x128xf32>
    %c3_132 = arith.constant 3 : index
    %c0_133 = arith.constant 0 : index
    %c0_134 = arith.constant 0 : index
    %188 = vector.load %arg6[%c3_132, %c0_133, %c0_134] : memref<4x128x128xf32, #tpu.memory_space<vmem>>, vector<1x128x128xf32>
    %189 = vector.shape_cast %188 : vector<1x128x128xf32> to vector<128x128xf32>
    %cst_135 = arith.constant dense<0.000000e+00> : vector<8x128xf32>
    %190 = tpu.matmul %187, %189, %cst_135 {dimension_numbers = #tpu.dot_dimension_numbers<[1], [0], [0], [1], [0, 0, 1, 1], [], []>} : vector<8x128xf32>, vector<128x128xf32>, vector<8x128xf32> -> vector<8x128xf32>
    %191 = arith.addf %182, %190 : vector<8x128xf32>
    %c0_136 = arith.constant 0 : index
    %c0_137 = arith.constant 0 : index
    %192 = vector.load %arg7[%c0_136, %c0_137] : memref<1x128xf32, #tpu.memory_space<vmem>>, vector<1x128xf32>
    %193 = vector.broadcast %192 : vector<1x128xf32> to vector<8x128xf32>
    %194 = arith.addf %191, %193 : vector<8x128xf32>
    %cst_138 = arith.constant 0.000000e+00 : f32
    %195 = vector.broadcast %cst_138 : f32 to vector<8x128xf32>
    %196 = arith.maximumf %194, %195 : vector<8x128xf32>
    %c0_139 = arith.constant 0 : index
    %c0_140 = arith.constant 0 : index
    %197 = vector.load %arg8[%c0_139, %c0_140] : memref<128x128xf32, #tpu.memory_space<vmem>>, vector<128x128xf32>
    %cst_141 = arith.constant dense<0.000000e+00> : vector<8x128xf32>
    %198 = tpu.matmul %196, %197, %cst_141 {dimension_numbers = #tpu.dot_dimension_numbers<[1], [0], [0], [1], [0, 0, 1, 1], [], []>} : vector<8x128xf32>, vector<128x128xf32>, vector<8x128xf32> -> vector<8x128xf32>
    %c0_142 = arith.constant 0 : index
    %c0_143 = arith.constant 0 : index
    %199 = vector.load %arg9[%c0_142, %c0_143] : memref<1x128xf32, #tpu.memory_space<vmem>>, vector<1x128xf32>
    %200 = vector.broadcast %199 : vector<1x128xf32> to vector<8x128xf32>
    %201 = arith.addf %198, %200 : vector<8x128xf32>
    %c0_144 = arith.constant 0 : index
    %c0_145 = arith.constant 0 : index
    %202 = vector.load %arg10[%c0_144, %c0_145] : memref<8x128xf32, #tpu.memory_space<vmem>>, vector<8x128xf32>
    tpu.vector_store %arg10[%c0_144, %c0_145], %201 {strides = array<i32>} : memref<8x128xf32, #tpu.memory_space<vmem>>, vector<8x128xf32>,
    return
  }
  func.func @transform_0(%arg0: i32) -> (i32, i32, i32) {
    %c0_i32 = arith.constant 0 : i32
    %c0_i32_0 = arith.constant 0 : i32
    %c0_i32_1 = arith.constant 0 : i32
    return %arg0, %c0_i32, %c0_i32_0 : i32, i32, i32
  }
  func.func @transform_1(%arg0: i32) -> (i32, i32, i32, i32) {
    %c0_i32 = arith.constant 0 : i32
    %c0_i32_0 = arith.constant 0 : i32
    %c0_i32_1 = arith.constant 0 : i32
    %c0_i32_2 = arith.constant 0 : i32
    %c0_i32_3 = arith.constant 0 : i32
    return %c0_i32, %c0_i32_0, %c0_i32_1, %c0_i32_2 : i32, i32, i32, i32
  }
  func.func @transform_2(%arg0: i32) -> (i32, i32) {
    %c0_i32 = arith.constant 0 : i32
    %c0_i32_0 = arith.constant 0 : i32
    %c0_i32_1 = arith.constant 0 : i32
    return %c0_i32, %c0_i32_0 : i32, i32
  }
  func.func @transform_3(%arg0: i32) -> (i32, i32, i32, i32) {
    %c0_i32 = arith.constant 0 : i32
    %c0_i32_0 = arith.constant 0 : i32
    %c0_i32_1 = arith.constant 0 : i32
    %c0_i32_2 = arith.constant 0 : i32
    %c0_i32_3 = arith.constant 0 : i32
    return %c0_i32, %c0_i32_0, %c0_i32_1, %c0_i32_2 : i32, i32, i32, i32
  }
  func.func @transform_4(%arg0: i32) -> (i32, i32) {
    %c0_i32 = arith.constant 0 : i32
    %c0_i32_0 = arith.constant 0 : i32
    %c0_i32_1 = arith.constant 0 : i32
    return %c0_i32, %c0_i32_0 : i32, i32
  }
  func.func @transform_5(%arg0: i32) -> (i32, i32, i32) {
    %c0_i32 = arith.constant 0 : i32
    %c0_i32_0 = arith.constant 0 : i32
    %c0_i32_1 = arith.constant 0 : i32
    %c0_i32_2 = arith.constant 0 : i32
    return %c0_i32, %c0_i32_0, %c0_i32_1 : i32, i32, i32
  }
  func.func @transform_6(%arg0: i32) -> (i32, i32) {
    %c0_i32 = arith.constant 0 : i32
    %c0_i32_0 = arith.constant 0 : i32
    %c0_i32_1 = arith.constant 0 : i32
    return %c0_i32, %c0_i32_0 : i32, i32
  }
  func.func @transform_7(%arg0: i32) -> (i32, i32) {
    %c0_i32 = arith.constant 0 : i32
    %c0_i32_0 = arith.constant 0 : i32
    %c0_i32_1 = arith.constant 0 : i32
    return %c0_i32, %c0_i32_0 : i32, i32
  }
  func.func @transform_8(%arg0: i32) -> (i32, i32) {
    %c0_i32 = arith.constant 0 : i32
    %c0_i32_0 = arith.constant 0 : i32
    %c0_i32_1 = arith.constant 0 : i32
    return %c0_i32, %c0_i32_0 : i32, i32
  }
  func.func @transform_9(%arg0: i32) -> (i32, i32) {
    %c0_i32 = arith.constant 0 : i32
    %c0_i32_0 = arith.constant 0 : i32
    return %arg0, %c0_i32 : i32, i32
  }
}

</mosaic_0001>

<llo_original>
// kernel: cnn_forward.1
$region0: #{cnn_forward.1}
  #allocation0 [shape = 'u32[]', space=smem, size = 0x4, offset = 0x4, fixed_abs, tag = 'smem constant byte address 0x4 - core index']
  #allocation1 [shape = 'u32[144,128]{1,0:T(1,128)}', space=vmem, size = 0x12000, scoped, tag = 'internal scratch']
  %s0 = inlined_call_operand.vmem [shape: f32[16,28,28], index: 0, kind: input, shape index: {}]
  %s1 = inlined_call_operand.vmem [shape: f32[2,5,28,384], index: 1, kind: input, shape index: {}]
  %s2 = inlined_call_operand.hbm [shape: f32[1,384], index: 2, kind: input, shape index: {}]
  %s3 = inlined_call_operand.hbm [shape: f32[2,5,384,128], index: 3, kind: input, shape index: {}]
  %s4 = inlined_call_operand.hbm [shape: f32[1,128], index: 4, kind: input, shape index: {}]
  %s5 = inlined_call_operand.hbm [shape: f32[4,128,128], index: 5, kind: input, shape index: {}]
  %s6 = inlined_call_operand.hbm [shape: f32[1,128], index: 6, kind: input, shape index: {}]
  %s7 = inlined_call_operand.hbm [shape: f32[128,128], index: 7, kind: input, shape index: {}]
  %s8 = inlined_call_operand.hbm [shape: f32[1,128], index: 8, kind: input, shape index: {}]
  %s9 = inlined_call_operand.hbm [shape: f32[16,128], index: 9, kind: output, shape index: {}]
  %s10 = sld [smem:[#allocation0]]
  $region97: #{cnn_forward.1} parent=0
    _
  %s12 = ssub.s32 1, %s10
  %s13 = scalar_select 0, %s12, %s10
  $region1: #{cnn_forward.1} parent=0
    #allocation2 [shape = 'u8[1536]{0}', space=vmem, size = 0x800, scoped, tag = 'input window, operand 2, single buffered']
    #allocation3 [shape = 's32[2]{0}', space=sflag, size = 0x8, scoped, tag = 'scoped memory for cnn_forward.1']
    #allocation4 [shape = 's32[2]{0}', space=sflag, size = 0x8, scoped, tag = 'scoped memory for cnn_forward.1']
    #allocation5 [shape = 'u8[1966080]{0}', space=vmem, size = 0x1e0000, scoped, tag = 'input window, operand 3, single buffered']
    #allocation6 [shape = 's32[1]{0}', space=sflag, size = 0x4, scoped, tag = 'scoped memory for cnn_forward.1']
    #allocation7 [shape = 'u8[512]{0}', space=vmem, size = 0x400, scoped, tag = 'input window, operand 4, single buffered']
    #allocation8 [shape = 'u8[262144]{0}', space=vmem, size = 0x40000, scoped, tag = 'input window, operand 5, single buffered']
    #allocation9 [shape = 's32[1]{0}', space=sflag, size = 0x4, scoped, tag = 'scoped memory for cnn_forward.1']
    #allocation10 [shape = 'u8[512]{0}', space=vmem, size = 0x400, scoped, tag = 'input window, operand 6, single buffered']
    #allocation11 [shape = 'u8[65536]{0}', space=vmem, size = 0x10000, scoped, tag = 'input window, operand 7, single buffered']
    #allocation12 [shape = 's32[1]{0}', space=sflag, size = 0x4, scoped, tag = 'scoped memory for cnn_forward.1']
    #allocation13 [shape = 'u8[512]{0}', space=vmem, size = 0x400, scoped, tag = 'input window, operand 8, single buffered']
    #allocation14 [shape = 'u8[8192]{0}', space=vmem, size = 0x2000, scoped, tag = 'output window, operand 0']
    %14 = vsyncpa [#allocation3], 0
    %15 = vsyncpa [#allocation6], 0
    %16 = vsyncpa [#allocation9], 0
    %17 = vsyncpa [#allocation12], 0
    %18 = vsyncpa [#allocation4], 0
    %s19 = scalar_lea.sflag [#allocation4], 1
    %20 = vsyncpa %s19, 0
    loop: start=0, step=1, limit=4
    $region2: #{cnn_forward.1} parent=1 // loop_pre_header
      _
    $region3: #{cnn_forward.1} parent=1 // loop_header
      %s22 = sphi 0, %s26
      %p23 = scmp.ge.s32.totalorder %s22, 4
      %s32 = sphi 0, %s34
      %s35 = sphi 0, %s32
      %s36 = sphi 0, %s35
      %s52 = sphi 0, %s36
      %s56 = sphi 0, %s56
      %s58 = sphi 0, %s56
      %s59 = sphi 0, %s58
      %s73 = sphi 0, %s59
      %s77 = sphi 0, %s77
      %s79 = sphi 0, %s77
      %s80 = sphi 0, %s79
      %s94 = sphi 0, %s80
      %s98 = sphi 0, %s98
      %s100 = sphi 0, %s98
      %s101 = sphi 0, %s100
      %s115 = sphi 0, %s101
      %s119 = sphi 0, %s119
      %s121 = sphi 0, %s119
      %s122 = sphi 0, %s121
      %s136 = sphi 0, %s122
      %s140 = sphi 0, %s140
      %s142 = sphi 0, %s140
      %s143 = sphi 0, %s142
      %s157 = sphi 0, %s143
      %s161 = sphi 0, %s161
      %s163 = sphi 0, %s161
      %s164 = sphi 0, %s163
      %s178 = sphi 0, %s164
      %s182 = sphi 0, %s182
      %s184 = sphi 0, %s182
      %s185 = sphi 0, %s184
      %s199 = sphi 0, %s185
      %s203 = sphi 0, %s203
      %s205 = sphi 0, %s203
      %s206 = sphi 0, %s205
      %s220 = sphi 0, %s206
      %s226 = sphi 0, %s228
      %s229 = sphi 0, %s226
      %s230 = sphi 0, %s229
      %s246 = sphi 0, %s230
    $region4: #{cnn_forward.1} parent=1 // loop_header_branch
      %25 = sbr.rel (%p23) target = $region8
    $region5: #{cnn_forward.1} parent=1 // loop_body
      %s27 = ssub.s32 %s22, 1
      %s28 = ssub.s32 %s22, 2
      %s29 = sadd.s32 %s22, 1
      %s30 = ssub.s32 %s22, %s29
      %p31 = scmp.eq.s32.totalorder %s30, 0
      %s33 = sadd.s32 %s32, 1
      %s34 = scalar_select %p31, %s32, %s33
      %p37 = pneg %p31
      %p38 = scmp.eq.s32.totalorder %s22, 1
      %p39 = por %p37, %p38
      %p40 = scmp.ne.s32.totalorder %s32, %s35
      %p41 = scmp.eq.s32.totalorder %s22, 0
      %p42 = por %p40, %p41
      %p43 = scmp.ne.s32.totalorder %s32, %s35
      %p44 = scmp.eq.s32.totalorder %s27, 1
      %p45 = por %p43, %p44
      %p46 = scmp.ne.s32.totalorder %s35, %s36
      %p47 = scmp.eq.s32.totalorder %s27, 0
      %p48 = por %p46, %p47
      %p49 = scmp.ne.s32.totalorder %s35, %s36
      %p50 = scmp.eq.s32.totalorder %s28, 1
      %p51 = por %p49, %p50
      %p53 = scmp.ne.s32.totalorder %s36, %s52
      %p54 = scmp.eq.s32.totalorder %s28, 0
      %p55 = por %p53, %p54
      %s57 = sadd.s32 %s56, 1
      %p60 = scmp.eq.s32.totalorder %s22, 1
      %p61 = scmp.ne.s32.totalorder %s56, %s58
      %p62 = scmp.eq.s32.totalorder %s22, 0
      %p63 = por %p61, %p62
      %p64 = scmp.ne.s32.totalorder %s56, %s58
      %p65 = scmp.eq.s32.totalorder %s27, 1
      %p66 = por %p64, %p65
      %p67 = scmp.ne.s32.totalorder %s58, %s59
      %p68 = scmp.eq.s32.totalorder %s27, 0
      %p69 = por %p67, %p68
      %p70 = scmp.ne.s32.totalorder %s58, %s59
      %p71 = scmp.eq.s32.totalorder %s28, 1
      %p72 = por %p70, %p71
      %p74 = scmp.ne.s32.totalorder %s59, %s73
      %p75 = scmp.eq.s32.totalorder %s28, 0
      %p76 = por %p74, %p75
      %s78 = sadd.s32 %s77, 1
      %p81 = scmp.eq.s32.totalorder %s22, 1
      %p82 = scmp.ne.s32.totalorder %s77, %s79
      %p83 = scmp.eq.s32.totalorder %s22, 0
      %p84 = por %p82, %p83
      %p85 = scmp.ne.s32.totalorder %s77, %s79
      %p86 = scmp.eq.s32.totalorder %s27, 1
      %p87 = por %p85, %p86
      %p88 = scmp.ne.s32.totalorder %s79, %s80
      %p89 = scmp.eq.s32.totalorder %s27, 0
      %p90 = por %p88, %p89
      %p91 = scmp.ne.s32.totalorder %s79, %s80
      %p92 = scmp.eq.s32.totalorder %s28, 1
      %p93 = por %p91, %p92
      %p95 = scmp.ne.s32.totalorder %s80, %s94
      %p96 = scmp.eq.s32.totalorder %s28, 0
      %p97 = por %p95, %p96
      %s99 = sadd.s32 %s98, 1
      %p102 = scmp.eq.s32.totalorder %s22, 1
      %p103 = scmp.ne.s32.totalorder %s98, %s100
      %p104 = scmp.eq.s32.totalorder %s22, 0
      %p105 = por %p103, %p104
      %p106 = scmp.ne.s32.totalorder %s98, %s100
      %p107 = scmp.eq.s32.totalorder %s27, 1
      %p108 = por %p106, %p107
      %p109 = scmp.ne.s32.totalorder %s100, %s101
      %p110 = scmp.eq.s32.totalorder %s27, 0
      %p111 = por %p109, %p110
      %p112 = scmp.ne.s32.totalorder %s100, %s101
      %p113 = scmp.eq.s32.totalorder %s28, 1
      %p114 = por %p112, %p113
      %p116 = scmp.ne.s32.totalorder %s101, %s115
      %p117 = scmp.eq.s32.totalorder %s28, 0
      %p118 = por %p116, %p117
      %s120 = sadd.s32 %s119, 1
      %p123 = scmp.eq.s32.totalorder %s22, 1
      %p124 = scmp.ne.s32.totalorder %s119, %s121
      %p125 = scmp.eq.s32.totalorder %s22, 0
      %p126 = por %p124, %p125
      %p127 = scmp.ne.s32.totalorder %s119, %s121
      %p128 = scmp.eq.s32.totalorder %s27, 1
      %p129 = por %p127, %p128
      %p130 = scmp.ne.s32.totalorder %s121, %s122
      %p131 = scmp.eq.s32.totalorder %s27, 0
      %p132 = por %p130, %p131
      %p133 = scmp.ne.s32.totalorder %s121, %s122
      %p134 = scmp.eq.s32.totalorder %s28, 1
      %p135 = por %p133, %p134
      %p137 = scmp.ne.s32.totalorder %s122, %s136
      %p138 = scmp.eq.s32.totalorder %s28, 0
      %p139 = por %p137, %p138
      %s141 = sadd.s32 %s140, 1
      %p144 = scmp.eq.s32.totalorder %s22, 1
      %p145 = scmp.ne.s32.totalorder %s140, %s142
      %p146 = scmp.eq.s32.totalorder %s22, 0
      %p147 = por %p145, %p146
      %p148 = scmp.ne.s32.totalorder %s140, %s142
      %p149 = scmp.eq.s32.totalorder %s27, 1
      %p150 = por %p148, %p149
      %p151 = scmp.ne.s32.totalorder %s142, %s143
      %p152 = scmp.eq.s32.totalorder %s27, 0
      %p153 = por %p151, %p152
      %p154 = scmp.ne.s32.totalorder %s142, %s143
      %p155 = scmp.eq.s32.totalorder %s28, 1
      %p156 = por %p154, %p155
      %p158 = scmp.ne.s32.totalorder %s143, %s157
      %p159 = scmp.eq.s32.totalorder %s28, 0
      %p160 = por %p158, %p159
      %s162 = sadd.s32 %s161, 1
      %p165 = scmp.eq.s32.totalorder %s22, 1
      %p166 = scmp.ne.s32.totalorder %s161, %s163
      %p167 = scmp.eq.s32.totalorder %s22, 0
      %p168 = por %p166, %p167
      %p169 = scmp.ne.s32.totalorder %s161, %s163
      %p170 = scmp.eq.s32.totalorder %s27, 1
      %p171 = por %p169, %p170
      %p172 = scmp.ne.s32.totalorder %s163, %s164
      %p173 = scmp.eq.s32.totalorder %s27, 0
      %p174 = por %p172, %p173
      %p175 = scmp.ne.s32.totalorder %s163, %s164
      %p176 = scmp.eq.s32.totalorder %s28, 1
      %p177 = por %p175, %p176
      %p179 = scmp.ne.s32.totalorder %s164, %s178
      %p180 = scmp.eq.s32.totalorder %s28, 0
      %p181 = por %p179, %p180
      %s183 = sadd.s32 %s182, 1
      %p186 = scmp.eq.s32.totalorder %s22, 1
      %p187 = scmp.ne.s32.totalorder %s182, %s184
      %p188 = scmp.eq.s32.totalorder %s22, 0
      %p189 = por %p187, %p188
      %p190 = scmp.ne.s32.totalorder %s182, %s184
      %p191 = scmp.eq.s32.totalorder %s27, 1
      %p192 = por %p190, %p191
      %p193 = scmp.ne.s32.totalorder %s184, %s185
      %p194 = scmp.eq.s32.totalorder %s27, 0
      %p195 = por %p193, %p194
      %p196 = scmp.ne.s32.totalorder %s184, %s185
      %p197 = scmp.eq.s32.totalorder %s28, 1
      %p198 = por %p196, %p197
      %p200 = scmp.ne.s32.totalorder %s185, %s199
      %p201 = scmp.eq.s32.totalorder %s28, 0
      %p202 = por %p200, %p201
      %s204 = sadd.s32 %s203, 1
      %p207 = scmp.eq.s32.totalorder %s22, 1
      %p208 = scmp.ne.s32.totalorder %s203, %s205
      %p209 = scmp.eq.s32.totalorder %s22, 0
      %p210 = por %p208, %p209
      %p211 = scmp.ne.s32.totalorder %s203, %s205
      %p212 = scmp.eq.s32.totalorder %s27, 1
      %p213 = por %p211, %p212
      %p214 = scmp.ne.s32.totalorder %s205, %s206
      %p215 = scmp.eq.s32.totalorder %s27, 0
      %p216 = por %p214, %p215
      %p217 = scmp.ne.s32.totalorder %s205, %s206
      %p218 = scmp.eq.s32.totalorder %s28, 1
      %p219 = por %p217, %p218
      %p221 = scmp.ne.s32.totalorder %s206, %s220
      %p222 = scmp.eq.s32.totalorder %s28, 0
      %p223 = por %p221, %p222
      %s224 = ssub.s32 %s22, %s29
      %p225 = scmp.eq.s32.totalorder %s224, 0
      %s227 = sadd.s32 %s226, 1
      %s228 = scalar_select %p225, %s226, %s227
      %p231 = pneg %p225
      %p232 = scmp.eq.s32.totalorder %s22, 1
      %p233 = por %p231, %p232
      %p234 = scmp.ne.s32.totalorder %s226, %s229
      %p235 = scmp.eq.s32.totalorder %s22, 0
      %p236 = por %p234, %p235
      %p237 = scmp.ne.s32.totalorder %s226, %s229
      %p238 = scmp.eq.s32.totalorder %s27, 1
      %p239 = por %p237, %p238
      %p240 = scmp.ne.s32.totalorder %s229, %s230
      %p241 = scmp.eq.s32.totalorder %s27, 0
      %p242 = por %p240, %p241
      %p243 = scmp.ne.s32.totalorder %s229, %s230
      %p244 = scmp.eq.s32.totalorder %s28, 1
      %p245 = por %p243, %p244
      %p247 = scmp.ne.s32.totalorder %s230, %s246
      %p248 = scmp.eq.s32.totalorder %s28, 0
      %p249 = por %p247, %p248
      %p250 = scmp.le.s32.totalorder 1, %s22
      %p251 = scmp.lt.s32.totalorder %s22, 3
      %p252 = pnand %p250, %p251
      %p253 = pneg %p252
      // Predicated region
      $region9: #{cnn_forward.1} parent=5 // pred_check
        _
      $region10: #{cnn_forward.1} parent=5 // pred_check_branch
        %255 = sbr.rel (%p252) target = $region12
      $region11: #{cnn_forward.1} parent=5 // pred_region
        %s256 = ssub.s32 %s22, 1
        // Predicated region
        $region13: #{cnn_forward.1} parent=11 // pred_check
          %p257 = pneg %p69
        $region14: #{cnn_forward.1} parent=11 // pred_check_branch
          %259 = sbr.rel (%p257) target = $region16
        $region15: #{cnn_forward.1} parent=11 // pred_region
          _
        $region16: #{cnn_forward.1} parent=11 // pred_fallthru
          _
        // Predicated region
        $region17: #{cnn_forward.1} parent=11 // pred_check
          %p260 = pneg %p90
        $region18: #{cnn_forward.1} parent=11 // pred_check_branch
          %262 = sbr.rel (%p260) target = $region20
        $region19: #{cnn_forward.1} parent=11 // pred_region
          %s264 = ssub.s32 48, 48
          %265 = vsyncadd [#allocation3], %s264
          %s267 = sshll.u32 [#allocation2], 4
          %s268 = int_to_ptr.vmem [resolvable:$true] %s267
          %270 = dma.hbm_to_vmem [thread:$0]  %s2, 48, %s268, [#allocation3]
        $region20: #{cnn_forward.1} parent=11 // pred_fallthru
          _
        // Predicated region
        $region21: #{cnn_forward.1} parent=11 // pred_check
          %p271 = pneg %p111
        $region22: #{cnn_forward.1} parent=11 // pred_check_branch
          %273 = sbr.rel (%p271) target = $region24
        $region23: #{cnn_forward.1} parent=11 // pred_region
          %s275 = ssub.s32 61440, 61440
          %276 = vsyncadd [#allocation6], %s275
          %s277 = sshll.u32 [#allocation5], 4
          %s278 = int_to_ptr.vmem [resolvable:$true] %s277
          %283 = dma.hbm_to_vmem [thread:$0]  %s3, 61440, %s278, [#allocation6], 128, 128, 8
        $region24: #{cnn_forward.1} parent=11 // pred_fallthru
          _
        // Predicated region
        $region25: #{cnn_forward.1} parent=11 // pred_check
          %p284 = pneg %p132
        $region26: #{cnn_forward.1} parent=11 // pred_check_branch
          %286 = sbr.rel (%p284) target = $region28
        $region27: #{cnn_forward.1} parent=11 // pred_region
          %s288 = ssub.s32 16, 16
          %289 = vsyncadd [#allocation6], %s288
          %s291 = sshll.u32 [#allocation7], 4
          %s292 = int_to_ptr.vmem [resolvable:$true] %s291
          %294 = dma.hbm_to_vmem [thread:$0]  %s4, 16, %s292, [#allocation6]
        $region28: #{cnn_forward.1} parent=11 // pred_fallthru
          _
        // Predicated region
        $region29: #{cnn_forward.1} parent=11 // pred_check
          %p295 = pneg %p153
        $region30: #{cnn_forward.1} parent=11 // pred_check_branch
          %297 = sbr.rel (%p295) target = $region32
        $region31: #{cnn_forward.1} parent=11 // pred_region
          %s299 = ssub.s32 8192, 8192
          %300 = vsyncadd [#allocation9], %s299
          %s301 = sshll.u32 [#allocation8], 4
          %s302 = int_to_ptr.vmem [resolvable:$true] %s301
          %307 = dma.hbm_to_vmem [thread:$0]  %s5, 8192, %s302, [#allocation9], 128, 128, 8
        $region32: #{cnn_forward.1} parent=11 // pred_fallthru
          _
        // Predicated region
        $region33: #{cnn_forward.1} parent=11 // pred_check
          %p308 = pneg %p174
        $region34: #{cnn_forward.1} parent=11 // pred_check_branch
          %310 = sbr.rel (%p308) target = $region36
        $region35: #{cnn_forward.1} parent=11 // pred_region
          %s312 = ssub.s32 16, 16
          %313 = vsyncadd [#allocation9], %s312
          %s315 = sshll.u32 [#allocation10], 4
          %s316 = int_to_ptr.vmem [resolvable:$true] %s315
          %318 = dma.hbm_to_vmem [thread:$0]  %s6, 16, %s316, [#allocation9]
        $region36: #{cnn_forward.1} parent=11 // pred_fallthru
          _
        // Predicated region
        $region37: #{cnn_forward.1} parent=11 // pred_check
          %p319 = pneg %p195
        $region38: #{cnn_forward.1} parent=11 // pred_check_branch
          %321 = sbr.rel (%p319) target = $region40
        $region39: #{cnn_forward.1} parent=11 // pred_region
          %s323 = ssub.s32 2048, 2048
          %324 = vsyncadd [#allocation12], %s323
          %s325 = sshll.u32 [#allocation11], 4
          %s326 = int_to_ptr.vmem [resolvable:$true] %s325
          %331 = dma.hbm_to_vmem [thread:$0]  %s7, 2048, %s326, [#allocation12], 128, 128, 8
        $region40: #{cnn_forward.1} parent=11 // pred_fallthru
          _
        // Predicated region
        $region41: #{cnn_forward.1} parent=11 // pred_check
          %p332 = pneg %p216
        $region42: #{cnn_forward.1} parent=11 // pred_check_branch
          %334 = sbr.rel (%p332) target = $region44
        $region43: #{cnn_forward.1} parent=11 // pred_region
          %s336 = ssub.s32 16, 16
          %337 = vsyncadd [#allocation12], %s336
          %s339 = sshll.u32 [#allocation13], 4
          %s340 = int_to_ptr.vmem [resolvable:$true] %s339
          %342 = dma.hbm_to_vmem [thread:$0]  %s8, 16, %s340, [#allocation12]
        $region44: #{cnn_forward.1} parent=11 // pred_fallthru
          _
      $region12: #{cnn_forward.1} parent=5 // pred_fallthru
        _
      %p343 = scmp.lt.s32.totalorder %s22, 2
      // Predicated region
      $region45: #{cnn_forward.1} parent=5 // pred_check
        %p344 = pneg %p343
      $region46: #{cnn_forward.1} parent=5 // pred_check_branch
        %346 = sbr.rel (%p344) target = $region48
      $region47: #{cnn_forward.1} parent=5 // pred_region
        // Predicated region
        $region49: #{cnn_forward.1} parent=47 // pred_check
          %p347 = pneg %p42
        $region50: #{cnn_forward.1} parent=47 // pred_check_branch
          %349 = sbr.rel (%p347) target = $region52
        $region51: #{cnn_forward.1} parent=47 // pred_region
          %s350 = smul.u32 8, %s22
          %p351 = scmp.lt.s32.totalorder %s350, 15
          %s352 = scalar_select %p351, %s350, 15
          %s353 = smul.addr %s352, 4
          %s354 = smul.addr %s353, 8
          %s355 = scalar_lea.vmem %s0, %s354
          %s356 = smul.u32 8, %s22
        $region52: #{cnn_forward.1} parent=47 // pred_fallthru
          _
      $region48: #{cnn_forward.1} parent=5 // pred_fallthru
        _
      %p357 = scmp.le.s32.totalorder 1, %s22
      %p358 = scmp.lt.s32.totalorder %s22, 3
      %p359 = pnand %p357, %p358
      %p360 = pneg %p359
      // Predicated region
      $region53: #{cnn_forward.1} parent=5 // pred_check
        _
      $region54: #{cnn_forward.1} parent=5 // pred_check_branch
        %362 = sbr.rel (%p359) target = $region56
      $region55: #{cnn_forward.1} parent=5 // pred_region
        %s363 = ssub.s32 %s22, 1
        // Predicated region
        $region57: #{cnn_forward.1} parent=55 // pred_check
          %p364 = pneg %p90
        $region58: #{cnn_forward.1} parent=55 // pred_check_branch
          %366 = sbr.rel (%p364) target = $region60
        $region59: #{cnn_forward.1} parent=55 // pred_region
          %367 = dma.done [#allocation3], 48
        $region60: #{cnn_forward.1} parent=55 // pred_fallthru
          _
        // Predicated region
        $region61: #{cnn_forward.1} parent=55 // pred_check
          %p368 = pneg %p111
        $region62: #{cnn_forward.1} parent=55 // pred_check_branch
          %370 = sbr.rel (%p368) target = $region64
        $region63: #{cnn_forward.1} parent=55 // pred_region
          %371 = dma.done [#allocation6], 61440
        $region64: #{cnn_forward.1} parent=55 // pred_fallthru
          _
        // Predicated region
        $region65: #{cnn_forward.1} parent=55 // pred_check
          %p372 = pneg %p132
        $region66: #{cnn_forward.1} parent=55 // pred_check_branch
          %374 = sbr.rel (%p372) target = $region68
        $region67: #{cnn_forward.1} parent=55 // pred_region
          %375 = dma.done [#allocation6], 16
        $region68: #{cnn_forward.1} parent=55 // pred_fallthru
          _
        // Predicated region
        $region69: #{cnn_forward.1} parent=55 // pred_check
          %p376 = pneg %p153
        $region70: #{cnn_forward.1} parent=55 // pred_check_branch
          %378 = sbr.rel (%p376) target = $region72
        $region71: #{cnn_forward.1} parent=55 // pred_region
          %379 = dma.done [#allocation9], 8192
        $region72: #{cnn_forward.1} parent=55 // pred_fallthru
          _
        // Predicated region
        $region73: #{cnn_forward.1} parent=55 // pred_check
          %p380 = pneg %p174
        $region74: #{cnn_forward.1} parent=55 // pred_check_branch
          %382 = sbr.rel (%p380) target = $region76
        $region75: #{cnn_forward.1} parent=55 // pred_region
          %383 = dma.done [#allocation9], 16
        $region76: #{cnn_forward.1} parent=55 // pred_fallthru
          _
        // Predicated region
        $region77: #{cnn_forward.1} parent=55 // pred_check
          %p384 = pneg %p195
        $region78: #{cnn_forward.1} parent=55 // pred_check_branch
          %386 = sbr.rel (%p384) target = $region80
        $region79: #{cnn_forward.1} parent=55 // pred_region
          %387 = dma.done [#allocation12], 2048
        $region80: #{cnn_forward.1} parent=55 // pred_fallthru
          _
        // Predicated region
        $region81: #{cnn_forward.1} parent=55 // pred_check
          %p388 = pneg %p216
        $region82: #{cnn_forward.1} parent=55 // pred_check_branch
          %390 = sbr.rel (%p388) target = $region84
        $region83: #{cnn_forward.1} parent=55 // pred_region
          %391 = dma.done [#allocation12], 16
        $region84: #{cnn_forward.1} parent=55 // pred_fallthru
          _
        %s392 = smul.u32 8, %s27
        %p393 = scmp.lt.s32.totalorder %s392, 15
        %s394 = scalar_select %p393, %s392, 15
        %s395 = smul.addr %s394, 4
        %s396 = smul.addr %s395, 8
        %s397 = scalar_lea.vmem %s0, %s396
        %p398 = pneg %p48
        %p399 = pneg %p45
        %p400 = pneg %p69
        %p401 = pneg %p66
        %p402 = pneg %p90
        %p403 = pneg %p87
        %p404 = pneg %p111
        %p405 = pneg %p108
        %p406 = pneg %p132
        %p407 = pneg %p129
        %p408 = pneg %p153
        %p409 = pneg %p150
        %p410 = pneg %p174
        %p411 = pneg %p171
        %p412 = pneg %p195
        %p413 = pneg %p192
        %p414 = pneg %p216
        %p415 = pneg %p213
        %p416 = pneg %p242
        %p417 = pneg %p239
        %s418 = sand.u32 %s229, 1
        %s419 = scalar_lea.sflag [#allocation4], %s418
        %s420 = sand.u32 %s229, 1
        %s421 = smul.addr %s420, 8
        %s422 = scalar_lea.vmem [#allocation14], %s421
        %s423 = smul.u32 8, %s27
        %p424 = scmp.lt.s32.totalorder %s423, 15
        %s425 = scalar_select %p424, %s423, 15
        %s426 = smul.addr %s425, 4
        %s427 = smul.addr %s426, 8
        %s428 = scalar_lea.vmem %s0, %s427
        %s429 = smul.u32 8, %s27
        %v430 = vld [vmem:[%s428] sm:$0xff]
        %v431 = vld [vmem:[%s428 + $0x8] sm:$0xff]
        %v432 = vld [vmem:[%s428 + $0x10] sm:$0xff]
        %v433 = vld [vmem:[%s428 + $0x20] sm:$0xff]
        %v434 = vld [vmem:[%s428 + $0x28] sm:$0xff]
        %v435 = vld [vmem:[%s428 + $0x30] sm:$0xff]
        %v436 = vld [vmem:[%s428 + $0x40] sm:$0xff]
        %v437 = vld [vmem:[%s428 + $0x48] sm:$0xff]
        %v438 = vld [vmem:[%s428 + $0x50] sm:$0xff]
        %v439 = vld [vmem:[%s428 + $0x60] sm:$0xff]
        %v440 = vld [vmem:[%s428 + $0x68] sm:$0xff]
        %v441 = vld [vmem:[%s428 + $0x70] sm:$0xff]
        %v442 = vld [vmem:[%s428 + $0x80] sm:$0xff]
        %v443 = vld [vmem:[%s428 + $0x88] sm:$0xff]
        %v444 = vld [vmem:[%s428 + $0x90] sm:$0xff]
        %v445 = vld [vmem:[%s428 + $0xa0] sm:$0xff]
        %v446 = vld [vmem:[%s428 + $0xa8] sm:$0xff]
        %v447 = vld [vmem:[%s428 + $0xb0] sm:$0xff]
        %v448 = vld [vmem:[%s428 + $0xc0] sm:$0xff]
        %v449 = vld [vmem:[%s428 + $0xc8] sm:$0xff]
        %v450 = vld [vmem:[%s428 + $0xd0] sm:$0xff]
        %v451 = vld [vmem:[%s428 + $0xe0] sm:$0xff]
        %v452 = vld [vmem:[%s428 + $0xe8] sm:$0xff]
        %v453 = vld [vmem:[%s428 + $0xf0] sm:$0xff]
        %v454 = vld [vmem:[%s1] sm:$0xff]
        %v455 = vld [vmem:[%s1 + $0x8] sm:$0xff]
        %v456 = vld [vmem:[%s1 + $0x10] sm:$0xff]
        %v457 = vld [vmem:[%s1 + $0x18] sm:$0xff]
        %v458 = vld [vmem:[%s1 + $0x20] sm:$0xff]
        %v459 = vld [vmem:[%s1 + $0x28] sm:$0xff]
        %v460 = vld [vmem:[%s1 + $0x30] sm:$0xff]
        %v461 = vld [vmem:[%s1 + $0x38] sm:$0xff]
        %v462 = vld [vmem:[%s1 + $0x40] sm:$0xff]
        %v463 = vld [vmem:[%s1 + $0x48] sm:$0xf]
        %v464 = vld [vmem:[%s1 + $0x50] sm:$0xf]
        %v465 = vld [vmem:[%s1 + $0x58] sm:$0xf]
        %s466 = scalar_lea.vmem %s1, 480
        %v467 = vld [vmem:[%s466] sm:$0xff]
        %v468 = vld [vmem:[%s466 + $0x8] sm:$0xff]
        %v469 = vld [vmem:[%s466 + $0x10] sm:$0xff]
        %v470 = vld [vmem:[%s466 + $0x18] sm:$0xff]
        %v471 = vld [vmem:[%s466 + $0x20] sm:$0xff]
        %v472 = vld [vmem:[%s466 + $0x28] sm:$0xff]
        %v473 = vld [vmem:[%s466 + $0x30] sm:$0xff]
        %v474 = vld [vmem:[%s466 + $0x38] sm:$0xff]
        %v475 = vld [vmem:[%s466 + $0x40] sm:$0xff]
        %v476 = vld [vmem:[%s466 + $0x48] sm:$0xf]
        %v477 = vld [vmem:[%s466 + $0x50] sm:$0xf]
        %v478 = vld [vmem:[%s466 + $0x58] sm:$0xf]
        %v479 = vld [vmem:[%s428 + $0x1] sm:$0xff]
        %v480 = vld [vmem:[%s428 + $0x9] sm:$0xff]
        %v481 = vld [vmem:[%s428 + $0x11] sm:$0xff]
        %v482 = vld [vmem:[%s428 + $0x21] sm:$0xff]
        %v483 = vld [vmem:[%s428 + $0x29] sm:$0xff]
        %v484 = vld [vmem:[%s428 + $0x31] sm:$0xff]
        %v485 = vld [vmem:[%s428 + $0x41] sm:$0xff]
        %v486 = vld [vmem:[%s428 + $0x49] sm:$0xff]
        %v487 = vld [vmem:[%s428 + $0x51] sm:$0xff]
        %v488 = vld [vmem:[%s428 + $0x61] sm:$0xff]
        %v489 = vld [vmem:[%s428 + $0x69] sm:$0xff]
        %v490 = vld [vmem:[%s428 + $0x71] sm:$0xff]
        %v491 = vld [vmem:[%s428 + $0x81] sm:$0xff]
        %v492 = vld [vmem:[%s428 + $0x89] sm:$0xff]
        %v493 = vld [vmem:[%s428 + $0x91] sm:$0xff]
        %v494 = vld [vmem:[%s428 + $0xa1] sm:$0xff]
        %v495 = vld [vmem:[%s428 + $0xa9] sm:$0xff]
        %v496 = vld [vmem:[%s428 + $0xb1] sm:$0xff]
        %v497 = vld [vmem:[%s428 + $0xc1] sm:$0xff]
        %v498 = vld [vmem:[%s428 + $0xc9] sm:$0xff]
        %v499 = vld [vmem:[%s428 + $0xd1] sm:$0xff]
        %v500 = vld [vmem:[%s428 + $0xe1] sm:$0xff]
        %v501 = vld [vmem:[%s428 + $0xe9] sm:$0xff]
        %v502 = vld [vmem:[%s428 + $0xf1] sm:$0xff]
        %s503 = scalar_lea.vmem %s1, 96
        %v504 = vld [vmem:[%s503] sm:$0xff]
        %v505 = vld [vmem:[%s503 + $0x8] sm:$0xff]
        %v506 = vld [vmem:[%s503 + $0x10] sm:$0xff]
        %v507 = vld [vmem:[%s503 + $0x18] sm:$0xff]
        %v508 = vld [vmem:[%s503 + $0x20] sm:$0xff]
        %v509 = vld [vmem:[%s503 + $0x28] sm:$0xff]
        %v510 = vld [vmem:[%s503 + $0x30] sm:$0xff]
        %v511 = vld [vmem:[%s503 + $0x38] sm:$0xff]
        %v512 = vld [vmem:[%s503 + $0x40] sm:$0xff]
        %v513 = vld [vmem:[%s503 + $0x48] sm:$0xf]
        %v514 = vld [vmem:[%s503 + $0x50] sm:$0xf]
        %v515 = vld [vmem:[%s503 + $0x58] sm:$0xf]
        %vm516 = vcmask 228352
        %v518 = vsel %vm516, %v479, 0
        %v521 = vsel %vm516, %v480, 0
        %v524 = vsel %vm516, %v481, 0
        %v527 = vsel %vm516, %v482, 0
        %v530 = vsel %vm516, %v483, 0
        %v533 = vsel %vm516, %v484, 0
        %v536 = vsel %vm516, %v485, 0
        %v539 = vsel %vm516, %v486, 0
        %v542 = vsel %vm516, %v487, 0
        %v545 = vsel %vm516, %v488, 0
        %v548 = vsel %vm516, %v489, 0
        %v551 = vsel %vm516, %v490, 0
        %v554 = vsel %vm516, %v491, 0
        %v557 = vsel %vm516, %v492, 0
        %v560 = vsel %vm516, %v493, 0
        %v563 = vsel %vm516, %v494, 0
        %v566 = vsel %vm516, %v495, 0
        %v569 = vsel %vm516, %v496, 0
        %v572 = vsel %vm516, %v497, 0
        %v575 = vsel %vm516, %v498, 0
        %v578 = vsel %vm516, %v499, 0
        %v581 = vsel %vm516, %v500, 0
        %v584 = vsel %vm516, %v501, 0
        %v587 = vsel %vm516, %v502, 0
        %vm589 = vcmask 1043456
        %v591 = vsel %vm589, %v513, 0
        %v594 = vsel %vm589, %v514, 0
        %v597 = vsel %vm589, %v515, 0
        %599 = vmatprep.subr.mxu0 %v505
        %600 = vmatpush1.msra.mxu0 %v504
        %601 = vmatprep.subr.mxu0 %v508
        %602 = vmatpush1.msra.mxu0 %v507
        %603 = vmatprep.subr.mxu0 %v511
        %604 = vmatpush1.msra.mxu0 %v510
        %605 = vmatprep.subr.mxu0 %v594
        %606 = vmatpush1.msra.mxu0 %v591
        %607 = vmatprep.subr.mxu0 0.0
        %608 = vmatpush1.msra.mxu0 0.0
        %609 = vmatprep.subr.mxu0 0.0
        %610 = vmatpush1.msra.mxu0 0.0
        %611 = vmatprep.subr.mxu0 0.0
        %612 = vmatpush1.msra.mxu0 0.0
        %613 = vmatprep.subr.mxu0 0.0
        %614 = vmatpush1.msra.mxu0 0.0
        %615 = vmatprep.subr.mxu0 0.0
        %616 = vmatpush1.msra.mxu0 0.0
        %617 = vmatprep.subr.mxu0 0.0
        %618 = vmatpush1.msra.mxu0 0.0
        %619 = vmatprep.subr.mxu0 0.0
        %620 = vmatpush1.msra.mxu0 0.0
        %621 = vmatprep.subr.mxu0 0.0
        %622 = vmatpush1.msra.mxu0 0.0
        %623 = vmatprep.subr.mxu0 0.0
        %624 = vmatpush1.msra.mxu0 0.0
        %625 = vmatprep.subr.mxu0 0.0
        %626 = vmatpush1.msra.mxu0 0.0
        %627 = vmatprep.subr.mxu0 0.0
        %628 = vmatpush1.msra.mxu0 0.0
        %629 = vmatprep.subr.mxu0 0.0
        %630 = vmatpush1.msra.mxu0 0.0
        %631 = vmatprep.subr.mxu0 0.0
        %632 = vmatpush1.msra.mxu0 0.0
        %633 = vmatprep.subr.mxu0 0.0
        %634 = vmatpush1.msra.mxu0 0.0
        %635 = vmatprep.subr.mxu0 0.0
        %636 = vmatpush1.msra.mxu0 0.0
        %637 = vmatprep.subr.mxu0 0.0
        %638 = vmatpush1.msra.mxu0 0.0
        %639 = vmatprep.subr.mxu0 0.0
        %640 = vmatpush1.msra.mxu0 0.0
        %641 = vmatprep.subr.mxu0 0.0
        %642 = vmatpush1.msra.mxu0 0.0
        %643 = vmatprep.subr.mxu0 0.0
        %644 = vmatpush1.msra.mxu0 0.0
        %645 = vmatprep.subr.mxu0 0.0
        %646 = vmatpush1.msra.mxu0 0.0
        %647 = vmatprep.subr.mxu0 0.0
        %648 = vmatpush1.msra.mxu0 0.0
        %649 = vmatprep.subr.mxu0 0.0
        %650 = vmatpush1.msra.mxu0 0.0
        %651 = vmatprep.subr.mxu0 0.0
        %652 = vmatpush1.msra.mxu0 0.0
        %653 = vmatprep.subr.mxu0 0.0
        %654 = vmatpush1.msra.mxu0 0.0
        %655 = vmatprep.subr.mxu0 0.0
        %656 = vmatpush1.msra.mxu0 0.0
        %657 = vmatprep.subr.mxu0 0.0
        %658 = vmatpush1.msra.mxu0 0.0
        %659 = vmatprep.subr.mxu0 0.0
        %660 = vmatpush1.msra.mxu0 0.0
        %661 = vmatprep.subr.mxu0 0.0
        %662 = vmatpush1.msra.mxu0 0.0
        %663 = vmatprep.mubr.f32.mxu0 0.0
        %664 = vmatmul.mubr.f32.gmra.mrb[0].mxu0 %v518
        %v665 = vpop.f32.mrb[0].mxu0
        %v666 = vadd.f32 0.0, %v665
        %v667 = vpop.f32.mrb[0].mxu0
        %v668 = vadd.f32 0.0, %v667
        %669 = vmatprep.mubr.f32.mxu0 0.0
        %670 = vmatmul.mubr.f32.gmra.mrb[0].mxu0 %v521
        %v671 = vpop.f32.mrb[0].mxu0
        %v672 = vadd.f32 0.0, %v671
        %v673 = vpop.f32.mrb[0].mxu0
        %v674 = vadd.f32 0.0, %v673
        %675 = vmatprep.mubr.f32.mxu0 0.0
        %676 = vmatmul.mubr.f32.gmra.mrb[0].mxu0 %v524
        %v677 = vpop.f32.mrb[0].mxu0
        %v678 = vadd.f32 0.0, %v677
        %v679 = vpop.f32.mrb[0].mxu0
        %v680 = vadd.f32 0.0, %v679
        %681 = vmatprep.mubr.f32.mxu0 0.0
        %682 = vmatmul.mubr.f32.gmra.mrb[0].mxu0 %v527
        %v683 = vpop.f32.mrb[0].mxu0
        %v684 = vadd.f32 0.0, %v683
        %v685 = vpop.f32.mrb[0].mxu0
        %v686 = vadd.f32 0.0, %v685
        %687 = vmatprep.mubr.f32.mxu0 0.0
        %688 = vmatmul.mubr.f32.gmra.mrb[0].mxu0 %v530
        %v689 = vpop.f32.mrb[0].mxu0
        %v690 = vadd.f32 0.0, %v689
        %v691 = vpop.f32.mrb[0].mxu0
        %v692 = vadd.f32 0.0, %v691
        %693 = vmatprep.mubr.f32.mxu0 0.0
        %694 = vmatmul.mubr.f32.gmra.mrb[0].mxu0 %v533
        %v695 = vpop.f32.mrb[0].mxu0
        %v696 = vadd.f32 0.0, %v695
        %v697 = vpop.f32.mrb[0].mxu0
        %v698 = vadd.f32 0.0, %v697
        %699 = vmatprep.mubr.f32.mxu0 0.0
        %700 = vmatmul.mubr.f32.gmra.mrb[0].mxu0 %v536
        %v701 = vpop.f32.mrb[0].mxu0
        %v702 = vadd.f32 0.0, %v701
        %v703 = vpop.f32.mrb[0].mxu0
        %v704 = vadd.f32 0.0, %v703
        %705 = vmatprep.mubr.f32.mxu0 0.0
        %706 = vmatmul.mubr.f32.gmra.mrb[0].mxu0 %v539
        %v707 = vpop.f32.mrb[0].mxu0
        %v708 = vadd.f32 0.0, %v707
        %v709 = vpop.f32.mrb[0].mxu0
        %v710 = vadd.f32 0.0, %v709
        %711 = vmatprep.mubr.f32.mxu0 0.0
        %712 = vmatmul.mubr.f32.gmra.mrb[0].mxu0 %v542
        %v713 = vpop.f32.mrb[0].mxu0
        %v714 = vadd.f32 0.0, %v713
        %v715 = vpop.f32.mrb[0].mxu0
        %v716 = vadd.f32 0.0, %v715
        %717 = vmatprep.mubr.f32.mxu0 0.0
        %718 = vmatmul.mubr.f32.gmra.mrb[0].mxu0 %v545
        %v719 = vpop.f32.mrb[0].mxu0
        %v720 = vadd.f32 0.0, %v719
        %v721 = vpop.f32.mrb[0].mxu0
        %v722 = vadd.f32 0.0, %v721
        %723 = vmatprep.mubr.f32.mxu0 0.0
        %724 = vmatmul.mubr.f32.gmra.mrb[0].mxu0 %v548
        %v725 = vpop.f32.mrb[0].mxu0
        %v726 = vadd.f32 0.0, %v725
        %v727 = vpop.f32.mrb[0].mxu0
        %v728 = vadd.f32 0.0, %v727
        %729 = vmatprep.mubr.f32.mxu0 0.0
        %730 = vmatmul.mubr.f32.gmra.mrb[0].mxu0 %v551
        %v731 = vpop.f32.mrb[0].mxu0
        %v732 = vadd.f32 0.0, %v731
        %v733 = vpop.f32.mrb[0].mxu0
        %v734 = vadd.f32 0.0, %v733
        %735 = vmatprep.mubr.f32.mxu0 0.0
        %736 = vmatmul.mubr.f32.gmra.mrb[0].mxu0 %v554
        %v737 = vpop.f32.mrb[0].mxu0
        %v738 = vadd.f32 0.0, %v737
        %v739 = vpop.f32.mrb[0].mxu0
        %v740 = vadd.f32 0.0, %v739
        %741 = vmatprep.mubr.f32.mxu0 0.0
        %742 = vmatmul.mubr.f32.gmra.mrb[0].mxu0 %v557
        %v743 = vpop.f32.mrb[0].mxu0
        %v744 = vadd.f32 0.0, %v743
        %v745 = vpop.f32.mrb[0].mxu0
        %v746 = vadd.f32 0.0, %v745
        %747 = vmatprep.mubr.f32.mxu0 0.0
        %748 = vmatmul.mubr.f32.gmra.mrb[0].mxu0 %v560
        %v749 = vpop.f32.mrb[0].mxu0
        %v750 = vadd.f32 0.0, %v749
        %v751 = vpop.f32.mrb[0].mxu0
        %v752 = vadd.f32 0.0, %v751
        %753 = vmatprep.mubr.f32.mxu0 0.0
        %754 = vmatmul.mubr.f32.gmra.mrb[0].mxu0 %v563
        %v755 = vpop.f32.mrb[0].mxu0
        %v756 = vadd.f32 0.0, %v755
        %v757 = vpop.f32.mrb[0].mxu0
        %v758 = vadd.f32 0.0, %v757
        %759 = vmatprep.mubr.f32.mxu0 0.0
        %760 = vmatmul.mubr.f32.gmra.mrb[0].mxu0 %v566
        %v761 = vpop.f32.mrb[0].mxu0
        %v762 = vadd.f32 0.0, %v761
        %v763 = vpop.f32.mrb[0].mxu0
        %v764 = vadd.f32 0.0, %v763
        %765 = vmatprep.mubr.f32.mxu0 0.0
        %766 = vmatmul.mubr.f32.gmra.mrb[0].mxu0 %v569
        %v767 = vpop.f32.mrb[0].mxu0
        %v768 = vadd.f32 0.0, %v767
        %v769 = vpop.f32.mrb[0].mxu0
        %v770 = vadd.f32 0.0, %v769
        %771 = vmatprep.mubr.f32.mxu0 0.0
        %772 = vmatmul.mubr.f32.gmra.mrb[0].mxu0 %v572
        %v773 = vpop.f32.mrb[0].mxu0
        %v774 = vadd.f32 0.0, %v773
        %v775 = vpop.f32.mrb[0].mxu0
        %v776 = vadd.f32 0.0, %v775
        %777 = vmatprep.mubr.f32.mxu0 0.0
        %778 = vmatmul.mubr.f32.gmra.mrb[0].mxu0 %v575
        %v779 = vpop.f32.mrb[0].mxu0
        %v780 = vadd.f32 0.0, %v779
        %v781 = vpop.f32.mrb[0].mxu0
        %v782 = vadd.f32 0.0, %v781
        %783 = vmatprep.mubr.f32.mxu0 0.0
        %784 = vmatmul.mubr.f32.gmra.mrb[0].mxu0 %v578
        %v785 = vpop.f32.mrb[0].mxu0
        %v786 = vadd.f32 0.0, %v785
        %v787 = vpop.f32.mrb[0].mxu0
        %v788 = vadd.f32 0.0, %v787
        %789 = vmatprep.mubr.f32.mxu0 0.0
        %790 = vmatmul.mubr.f32.gmra.mrb[0].mxu0 %v581
        %v791 = vpop.f32.mrb[0].mxu0
        %v792 = vadd.f32 0.0, %v791
        %v793 = vpop.f32.mrb[0].mxu0
        %v794 = vadd.f32 0.0, %v793
        %795 = vmatprep.mubr.f32.mxu0 0.0
        %796 = vmatmul.mubr.f32.gmra.mrb[0].mxu0 %v584
        %v797 = vpop.f32.mrb[0].mxu0
        %v798 = vadd.f32 0.0, %v797
        %v799 = vpop.f32.mrb[0].mxu0
        %v800 = vadd.f32 0.0, %v799
        %801 = vmatprep.mubr.f32.mxu0 0.0
        %802 = vmatmul.mubr.f32.gmra.mrb[0].mxu0 %v587
        %v803 = vpop.f32.mrb[0].mxu0
        %v804 = vadd.f32 0.0, %v803
        %v805 = vpop.f32.mrb[0].mxu0
        %v806 = vadd.f32 0.0, %v805
        %807 = vdwg.mxu0
        %808 = vmatprep.subr.mxu0 0.0
        %809 = vmatpush1.msra.mxu0 %v506
        %810 = vmatprep.subr.mxu0 0.0
        %811 = vmatpush1.msra.mxu0 %v509
        %812 = vmatprep.subr.mxu0 0.0
        %813 = vmatpush1.msra.mxu0 %v512
        %814 = vmatprep.subr.mxu0 0.0
        %815 = vmatpush1.msra.mxu0 %v597
        %816 = vmatprep.subr.mxu0 0.0
        %817 = vmatpush1.msra.mxu0 0.0
        %818 = vmatprep.subr.mxu0 0.0
        %819 = vmatpush1.msra.mxu0 0.0
        %820 = vmatprep.subr.mxu0 0.0
        %821 = vmatpush1.msra.mxu0 0.0
        %822 = vmatprep.subr.mxu0 0.0
        %823 = vmatpush1.msra.mxu0 0.0
        %824 = vmatprep.subr.mxu0 0.0
        %825 = vmatpush1.msra.mxu0 0.0
        %826 = vmatprep.subr.mxu0 0.0
        %827 = vmatpush1.msra.mxu0 0.0
        %828 = vmatprep.subr.mxu0 0.0
        %829 = vmatpush1.msra.mxu0 0.0
        %830 = vmatprep.subr.mxu0 0.0
        %831 = vmatpush1.msra.mxu0 0.0
        %832 = vmatprep.subr.mxu0 0.0
        %833 = vmatpush1.msra.mxu0 0.0
        %834 = vmatprep.subr.mxu0 0.0
        %835 = vmatpush1.msra.mxu0 0.0
        %836 = vmatprep.subr.mxu0 0.0
        %837 = vmatpush1.msra.mxu0 0.0
        %838 = vmatprep.subr.mxu0 0.0
        %839 = vmatpush1.msra.mxu0 0.0
        %840 = vmatprep.subr.mxu0 0.0
        %841 = vmatpush1.msra.mxu0 0.0
        %842 = vmatprep.subr.mxu0 0.0
        %843 = vmatpush1.msra.mxu0 0.0
        %844 = vmatprep.subr.mxu0 0.0
        %845 = vmatpush1.msra.mxu0 0.0
        %846 = vmatprep.subr.mxu0 0.0
        %847 = vmatpush1.msra.mxu0 0.0
        %848 = vmatprep.subr.mxu0 0.0
        %849 = vmatpush1.msra.mxu0 0.0
        %850 = vmatprep.subr.mxu0 0.0
        %851 = vmatpush1.msra.mxu0 0.0
        %852 = vmatprep.subr.mxu0 0.0
        %853 = vmatpush1.msra.mxu0 0.0
        %854 = vmatprep.subr.mxu0 0.0
        %855 = vmatpush1.msra.mxu0 0.0
        %856 = vmatprep.subr.mxu0 0.0
        %857 = vmatpush1.msra.mxu0 0.0
        %858 = vmatprep.subr.mxu0 0.0
        %859 = vmatpush1.msra.mxu0 0.0
        %860 = vmatprep.subr.mxu0 0.0
        %861 = vmatpush1.msra.mxu0 0.0
        %862 = vmatprep.subr.mxu0 0.0
        %863 = vmatpush1.msra.mxu0 0.0
        %864 = vmatprep.subr.mxu0 0.0
        %865 = vmatpush1.msra.mxu0 0.0
        %866 = vmatprep.subr.mxu0 0.0
        %867 = vmatpush1.msra.mxu0 0.0
        %868 = vmatprep.subr.mxu0 0.0
        %869 = vmatpush1.msra.mxu0 0.0
        %870 = vmatprep.subr.mxu0 0.0
        %871 = vmatpush1.msra.mxu0 0.0
        %872 = vmatprep.mubr.f32.mxu0 0.0
        %873 = vmatmul.mubr.f32.gmra.mrb[0].mxu0 %v518
        %v874 = vpop.f32.mrb[0].mxu0
        %v875 = vadd.f32 0.0, %v874
        %v876 = vpop.f32.mrb[0].mxu0
        %877 = vmatprep.mubr.f32.mxu0 0.0
        %878 = vmatmul.mubr.f32.gmra.mrb[0].mxu0 %v521
        %v879 = vpop.f32.mrb[0].mxu0
        %v880 = vadd.f32 0.0, %v879
        %v881 = vpop.f32.mrb[0].mxu0
        %882 = vmatprep.mubr.f32.mxu0 0.0
        %883 = vmatmul.mubr.f32.gmra.mrb[0].mxu0 %v524
        %v884 = vpop.f32.mrb[0].mxu0
        %v885 = vadd.f32 0.0, %v884
        %v886 = vpop.f32.mrb[0].mxu0
        %887 = vmatprep.mubr.f32.mxu0 0.0
        %888 = vmatmul.mubr.f32.gmra.mrb[0].mxu0 %v527
        %v889 = vpop.f32.mrb[0].mxu0
        %v890 = vadd.f32 0.0, %v889
        %v891 = vpop.f32.mrb[0].mxu0
        %892 = vmatprep.mubr.f32.mxu0 0.0
        %893 = vmatmul.mubr.f32.gmra.mrb[0].mxu0 %v530
        %v894 = vpop.f32.mrb[0].mxu0
        %v895 = vadd.f32 0.0, %v894
        %v896 = vpop.f32.mrb[0].mxu0
        %897 = vmatprep.mubr.f32.mxu0 0.0
        %898 = vmatmul.mubr.f32.gmra.mrb[0].mxu0 %v533
        %v899 = vpop.f32.mrb[0].mxu0
        %v900 = vadd.f32 0.0, %v899
        %v901 = vpop.f32.mrb[0].mxu0
        %902 = vmatprep.mubr.f32.mxu0 0.0
        %903 = vmatmul.mubr.f32.gmra.mrb[0].mxu0 %v536
        %v904 = vpop.f32.mrb[0].mxu0
        %v905 = vadd.f32 0.0, %v904
        %v906 = vpop.f32.mrb[0].mxu0
        %907 = vmatprep.mubr.f32.mxu0 0.0
        %908 = vmatmul.mubr.f32.gmra.mrb[0].mxu0 %v539
        %v909 = vpop.f32.mrb[0].mxu0
        %v910 = vadd.f32 0.0, %v909
        %v911 = vpop.f32.mrb[0].mxu0
        %912 = vmatprep.mubr.f32.mxu0 0.0
        %913 = vmatmul.mubr.f32.gmra.mrb[0].mxu0 %v542
        %v914 = vpop.f32.mrb[0].mxu0
        %v915 = vadd.f32 0.0, %v914
        %v916 = vpop.f32.mrb[0].mxu0
        %917 = vmatprep.mubr.f32.mxu0 0.0
        %918 = vmatmul.mubr.f32.gmra.mrb[0].mxu0 %v545
        %v919 = vpop.f32.mrb[0].mxu0
        %v920 = vadd.f32 0.0, %v919
        %v921 = vpop.f32.mrb[0].mxu0
        %922 = vmatprep.mubr.f32.mxu0 0.0
        %923 = vmatmul.mubr.f32.gmra.mrb[0].mxu0 %v548
        %v924 = vpop.f32.mrb[0].mxu0
        %v925 = vadd.f32 0.0, %v924
        %v926 = vpop.f32.mrb[0].mxu0
        %927 = vmatprep.mubr.f32.mxu0 0.0
        %928 = vmatmul.mubr.f32.gmra.mrb[0].mxu0 %v551
        %v929 = vpop.f32.mrb[0].mxu0
        %v930 = vadd.f32 0.0, %v929
        %v931 = vpop.f32.mrb[0].mxu0
        %932 = vmatprep.mubr.f32.mxu0 0.0
        %933 = vmatmul.mubr.f32.gmra.mrb[0].mxu0 %v554
        %v934 = vpop.f32.mrb[0].mxu0
        %v935 = vadd.f32 0.0, %v934
        %v936 = vpop.f32.mrb[0].mxu0
        %937 = vmatprep.mubr.f32.mxu0 0.0
        %938 = vmatmul.mubr.f32.gmra.mrb[0].mxu0 %v557
        %v939 = vpop.f32.mrb[0].mxu0
        %v940 = vadd.f32 0.0, %v939
        %v941 = vpop.f32.mrb[0].mxu0
        %942 = vmatprep.mubr.f32.mxu0 0.0
        %943 = vmatmul.mubr.f32.gmra.mrb[0].mxu0 %v560
        %v944 = vpop.f32.mrb[0].mxu0
        %v945 = vadd.f32 0.0, %v944
        %v946 = vpop.f32.mrb[0].mxu0
        %947 = vmatprep.mubr.f32.mxu0 0.0
        %948 = vmatmul.mubr.f32.gmra.mrb[0].mxu0 %v563
        %v949 = vpop.f32.mrb[0].mxu0
        %v950 = vadd.f32 0.0, %v949
        %v951 = vpop.f32.mrb[0].mxu0
        %952 = vmatprep.mubr.f32.mxu0 0.0
        %953 = vmatmul.mubr.f32.gmra.mrb[0].mxu0 %v566
        %v954 = vpop.f32.mrb[0].mxu0
        %v955 = vadd.f32 0.0, %v954
        %v956 = vpop.f32.mrb[0].mxu0
        %957 = vmatprep.mubr.f32.mxu0 0.0
        %958 = vmatmul.mubr.f32.gmra.mrb[0].mxu0 %v569
        %v959 = vpop.f32.mrb[0].mxu0
        %v960 = vadd.f32 0.0, %v959
        %v961 = vpop.f32.mrb[0].mxu0
        %962 = vmatprep.mubr.f32.mxu0 0.0
        %963 = vmatmul.mubr.f32.gmra.mrb[0].mxu0 %v572
        %v964 = vpop.f32.mrb[0].mxu0
        %v965 = vadd.f32 0.0, %v964
        %v966 = vpop.f32.mrb[0].mxu0
        %967 = vmatprep.mubr.f32.mxu0 0.0
        %968 = vmatmul.mubr.f32.gmra.mrb[0].mxu0 %v575
        %v969 = vpop.f32.mrb[0].mxu0
        %v970 = vadd.f32 0.0, %v969
        %v971 = vpop.f32.mrb[0].mxu0
        %972 = vmatprep.mubr.f32.mxu0 0.0
        %973 = vmatmul.mubr.f32.gmra.mrb[0].mxu0 %v578
        %v974 = vpop.f32.mrb[0].mxu0
        %v975 = vadd.f32 0.0, %v974
        %v976 = vpop.f32.mrb[0].mxu0
        %977 = vmatprep.mubr.f32.mxu0 0.0
        %978 = vmatmul.mubr.f32.gmra.mrb[0].mxu0 %v581
        %v979 = vpop.f32.mrb[0].mxu0
        %v980 = vadd.f32 0.0, %v979
        %v981 = vpop.f32.mrb[0].mxu0
        %982 = vmatprep.mubr.f32.mxu0 0.0
        %983 = vmatmul.mubr.f32.gmra.mrb[0].mxu0 %v584
        %v984 = vpop.f32.mrb[0].mxu0
        %v985 = vadd.f32 0.0, %v984
        %v986 = vpop.f32.mrb[0].mxu0
        %987 = vmatprep.mubr.f32.mxu0 0.0
        %988 = vmatmul.mubr.f32.gmra.mrb[0].mxu0 %v587
        %v989 = vpop.f32.mrb[0].mxu0
        %v990 = vadd.f32 0.0, %v989
        %v991 = vpop.f32.mrb[0].mxu0
        %992 = vdwg.mxu0
        %v994 = vsel %vm516, %v430, 0
        %v997 = vsel %vm516, %v431, 0
        %v1000 = vsel %vm516, %v432, 0
        %v1003 = vsel %vm516, %v433, 0
        %v1006 = vsel %vm516, %v434, 0
        %v1009 = vsel %vm516, %v435, 0
        %v1012 = vsel %vm516, %v436, 0
        %v1015 = vsel %vm516, %v437, 0
        %v1018 = vsel %vm516, %v438, 0
        %v1021 = vsel %vm516, %v439, 0
        %v1024 = vsel %vm516, %v440, 0
        %v1027 = vsel %vm516, %v441, 0
        %v1030 = vsel %vm516, %v442, 0
        %v1033 = vsel %vm516, %v443, 0
        %v1036 = vsel %vm516, %v444, 0
        %v1039 = vsel %vm516, %v445, 0
        %v1042 = vsel %vm516, %v446, 0
        %v1045 = vsel %vm516, %v447, 0
        %v1048 = vsel %vm516, %v448, 0
        %v1051 = vsel %vm516, %v449, 0
        %v1054 = vsel %vm516, %v450, 0
        %v1057 = vsel %vm516, %v451, 0
        %v1060 = vsel %vm516, %v452, 0
        %v1063 = vsel %vm516, %v453, 0
        %v1066 = vsel %vm589, %v463, 0
        %v1069 = vsel %vm589, %v464, 0
        %v1072 = vsel %vm589, %v465, 0
        %1074 = vmatprep.subr.mxu0 %v455
        %1075 = vmatpush1.msra.mxu0 %v454
        %1076 = vmatprep.subr.mxu0 %v458
        %1077 = vmatpush1.msra.mxu0 %v457
        %1078 = vmatprep.subr.mxu0 %v461
        %1079 = vmatpush1.msra.mxu0 %v460
        %1080 = vmatprep.subr.mxu0 %v1069
        %1081 = vmatpush1.msra.mxu0 %v1066
        %1082 = vmatprep.subr.mxu0 0.0
        %1083 = vmatpush1.msra.mxu0 0.0
        %1084 = vmatprep.subr.mxu0 0.0
        %1085 = vmatpush1.msra.mxu0 0.0
        %1086 = vmatprep.subr.mxu0 0.0
        %1087 = vmatpush1.msra.mxu0 0.0
        %1088 = vmatprep.subr.mxu0 0.0
        %1089 = vmatpush1.msra.mxu0 0.0
        %1090 = vmatprep.subr.mxu0 0.0
        %1091 = vmatpush1.msra.mxu0 0.0
        %1092 = vmatprep.subr.mxu0 0.0
        %1093 = vmatpush1.msra.mxu0 0.0
        %1094 = vmatprep.subr.mxu0 0.0
        %1095 = vmatpush1.msra.mxu0 0.0
        %1096 = vmatprep.subr.mxu0 0.0
        %1097 = vmatpush1.msra.mxu0 0.0
        %1098 = vmatprep.subr.mxu0 0.0
        %1099 = vmatpush1.msra.mxu0 0.0
        %1100 = vmatprep.subr.mxu0 0.0
        %1101 = vmatpush1.msra.mxu0 0.0
        %1102 = vmatprep.subr.mxu0 0.0
        %1103 = vmatpush1.msra.mxu0 0.0
        %1104 = vmatprep.subr.mxu0 0.0
        %1105 = vmatpush1.msra.mxu0 0.0
        %1106 = vmatprep.subr.mxu0 0.0
        %1107 = vmatpush1.msra.mxu0 0.0
        %1108 = vmatprep.subr.mxu0 0.0
        %1109 = vmatpush1.msra.mxu0 0.0
        %1110 = vmatprep.subr.mxu0 0.0
        %1111 = vmatpush1.msra.mxu0 0.0
        %1112 = vmatprep.subr.mxu0 0.0
        %1113 = vmatpush1.msra.mxu0 0.0
        %1114 = vmatprep.subr.mxu0 0.0
        %1115 = vmatpush1.msra.mxu0 0.0
        %1116 = vmatprep.subr.mxu0 0.0
        %1117 = vmatpush1.msra.mxu0 0.0
        %1118 = vmatprep.subr.mxu0 0.0
        %1119 = vmatpush1.msra.mxu0 0.0
        %1120 = vmatprep.subr.mxu0 0.0
        %1121 = vmatpush1.msra.mxu0 0.0
        %1122 = vmatprep.subr.mxu0 0.0
        %1123 = vmatpush1.msra.mxu0 0.0
        %1124 = vmatprep.subr.mxu0 0.0
        %1125 = vmatpush1.msra.mxu0 0.0
        %1126 = vmatprep.subr.mxu0 0.0
        %1127 = vmatpush1.msra.mxu0 0.0
        %1128 = vmatprep.subr.mxu0 0.0
        %1129 = vmatpush1.msra.mxu0 0.0
        %1130 = vmatprep.subr.mxu0 0.0
        %1131 = vmatpush1.msra.mxu0 0.0
        %1132 = vmatprep.subr.mxu0 0.0
        %1133 = vmatpush1.msra.mxu0 0.0
        %1134 = vmatprep.subr.mxu0 0.0
        %1135 = vmatpush1.msra.mxu0 0.0
        %1136 = vmatprep.subr.mxu0 0.0
        %1137 = vmatpush1.msra.mxu0 0.0
        %1138 = vmatprep.mubr.f32.mxu0 0.0
        %1139 = vmatmul.mubr.f32.gmra.mrb[0].mxu0 %v994
        %v1140 = vpop.f32.mrb[0].mxu0
        %v1141 = vadd.f32 %v666, %v1140
        %v1142 = vpop.f32.mrb[0].mxu0
        %v1143 = vadd.f32 %v668, %v1142
        %1144 = vmatprep.mubr.f32.mxu0 0.0
        %1145 = vmatmul.mubr.f32.gmra.mrb[0].mxu0 %v997
        %v1146 = vpop.f32.mrb[0].mxu0
        %v1147 = vadd.f32 %v672, %v1146
        %v1148 = vpop.f32.mrb[0].mxu0
        %v1149 = vadd.f32 %v674, %v1148
        %1150 = vmatprep.mubr.f32.mxu0 0.0
        %1151 = vmatmul.mubr.f32.gmra.mrb[0].mxu0 %v1000
        %v1152 = vpop.f32.mrb[0].mxu0
        %v1153 = vadd.f32 %v678, %v1152
        %v1154 = vpop.f32.mrb[0].mxu0
        %v1155 = vadd.f32 %v680, %v1154
        %1156 = vmatprep.mubr.f32.mxu0 0.0
        %1157 = vmatmul.mubr.f32.gmra.mrb[0].mxu0 %v1003
        %v1158 = vpop.f32.mrb[0].mxu0
        %v1159 = vadd.f32 %v684, %v1158
        %v1160 = vpop.f32.mrb[0].mxu0
        %v1161 = vadd.f32 %v686, %v1160
        %1162 = vmatprep.mubr.f32.mxu0 0.0
        %1163 = vmatmul.mubr.f32.gmra.mrb[0].mxu0 %v1006
        %v1164 = vpop.f32.mrb[0].mxu0
        %v1165 = vadd.f32 %v690, %v1164
        %v1166 = vpop.f32.mrb[0].mxu0
        %v1167 = vadd.f32 %v692, %v1166
        %1168 = vmatprep.mubr.f32.mxu0 0.0
        %1169 = vmatmul.mubr.f32.gmra.mrb[0].mxu0 %v1009
        %v1170 = vpop.f32.mrb[0].mxu0
        %v1171 = vadd.f32 %v696, %v1170
        %v1172 = vpop.f32.mrb[0].mxu0
        %v1173 = vadd.f32 %v698, %v1172
        %1174 = vmatprep.mubr.f32.mxu0 0.0
        %1175 = vmatmul.mubr.f32.gmra.mrb[0].mxu0 %v1012
        %v1176 = vpop.f32.mrb[0].mxu0
        %v1177 = vadd.f32 %v702, %v1176
        %v1178 = vpop.f32.mrb[0].mxu0
        %v1179 = vadd.f32 %v704, %v1178
        %1180 = vmatprep.mubr.f32.mxu0 0.0
        %1181 = vmatmul.mubr.f32.gmra.mrb[0].mxu0 %v1015
        %v1182 = vpop.f32.mrb[0].mxu0
        %v1183 = vadd.f32 %v708, %v1182
        %v1184 = vpop.f32.mrb[0].mxu0
        %v1185 = vadd.f32 %v710, %v1184
        %1186 = vmatprep.mubr.f32.mxu0 0.0
        %1187 = vmatmul.mubr.f32.gmra.mrb[0].mxu0 %v1018
        %v1188 = vpop.f32.mrb[0].mxu0
        %v1189 = vadd.f32 %v714, %v1188
        %v1190 = vpop.f32.mrb[0].mxu0
        %v1191 = vadd.f32 %v716, %v1190
        %1192 = vmatprep.mubr.f32.mxu0 0.0
        %1193 = vmatmul.mubr.f32.gmra.mrb[0].mxu0 %v1021
        %v1194 = vpop.f32.mrb[0].mxu0
        %v1195 = vadd.f32 %v720, %v1194
        %v1196 = vpop.f32.mrb[0].mxu0
        %v1197 = vadd.f32 %v722, %v1196
        %1198 = vmatprep.mubr.f32.mxu0 0.0
        %1199 = vmatmul.mubr.f32.gmra.mrb[0].mxu0 %v1024
        %v1200 = vpop.f32.mrb[0].mxu0
        %v1201 = vadd.f32 %v726, %v1200
        %v1202 = vpop.f32.mrb[0].mxu0
        %v1203 = vadd.f32 %v728, %v1202
        %1204 = vmatprep.mubr.f32.mxu0 0.0
        %1205 = vmatmul.mubr.f32.gmra.mrb[0].mxu0 %v1027
        %v1206 = vpop.f32.mrb[0].mxu0
        %v1207 = vadd.f32 %v732, %v1206
        %v1208 = vpop.f32.mrb[0].mxu0
        %v1209 = vadd.f32 %v734, %v1208
        %1210 = vmatprep.mubr.f32.mxu0 0.0
        %1211 = vmatmul.mubr.f32.gmra.mrb[0].mxu0 %v1030
        %v1212 = vpop.f32.mrb[0].mxu0
        %v1213 = vadd.f32 %v738, %v1212
        %v1214 = vpop.f32.mrb[0].mxu0
        %v1215 = vadd.f32 %v740, %v1214
        %1216 = vmatprep.mubr.f32.mxu0 0.0
        %1217 = vmatmul.mubr.f32.gmra.mrb[0].mxu0 %v1033
        %v1218 = vpop.f32.mrb[0].mxu0
        %v1219 = vadd.f32 %v744, %v1218
        %v1220 = vpop.f32.mrb[0].mxu0
        %v1221 = vadd.f32 %v746, %v1220
        %1222 = vmatprep.mubr.f32.mxu0 0.0
        %1223 = vmatmul.mubr.f32.gmra.mrb[0].mxu0 %v1036
        %v1224 = vpop.f32.mrb[0].mxu0
        %v1225 = vadd.f32 %v750, %v1224
        %v1226 = vpop.f32.mrb[0].mxu0
        %v1227 = vadd.f32 %v752, %v1226
        %1228 = vmatprep.mubr.f32.mxu0 0.0
        %1229 = vmatmul.mubr.f32.gmra.mrb[0].mxu0 %v1039
        %v1230 = vpop.f32.mrb[0].mxu0
        %v1231 = vadd.f32 %v756, %v1230
        %v1232 = vpop.f32.mrb[0].mxu0
        %v1233 = vadd.f32 %v758, %v1232
        %1234 = vmatprep.mubr.f32.mxu0 0.0
        %1235 = vmatmul.mubr.f32.gmra.mrb[0].mxu0 %v1042
        %v1236 = vpop.f32.mrb[0].mxu0
        %v1237 = vadd.f32 %v762, %v1236
        %v1238 = vpop.f32.mrb[0].mxu0
        %v1239 = vadd.f32 %v764, %v1238
        %1240 = vmatprep.mubr.f32.mxu0 0.0
        %1241 = vmatmul.mubr.f32.gmra.mrb[0].mxu0 %v1045
        %v1242 = vpop.f32.mrb[0].mxu0
        %v1243 = vadd.f32 %v768, %v1242
        %v1244 = vpop.f32.mrb[0].mxu0
        %v1245 = vadd.f32 %v770, %v1244
        %1246 = vmatprep.mubr.f32.mxu0 0.0
        %1247 = vmatmul.mubr.f32.gmra.mrb[0].mxu0 %v1048
        %v1248 = vpop.f32.mrb[0].mxu0
        %v1249 = vadd.f32 %v774, %v1248
        %v1250 = vpop.f32.mrb[0].mxu0
        %v1251 = vadd.f32 %v776, %v1250
        %1252 = vmatprep.mubr.f32.mxu0 0.0
        %1253 = vmatmul.mubr.f32.gmra.mrb[0].mxu0 %v1051
        %v1254 = vpop.f32.mrb[0].mxu0
        %v1255 = vadd.f32 %v780, %v1254
        %v1256 = vpop.f32.mrb[0].mxu0
        %v1257 = vadd.f32 %v782, %v1256
        %1258 = vmatprep.mubr.f32.mxu0 0.0
        %1259 = vmatmul.mubr.f32.gmra.mrb[0].mxu0 %v1054
        %v1260 = vpop.f32.mrb[0].mxu0
        %v1261 = vadd.f32 %v786, %v1260
        %v1262 = vpop.f32.mrb[0].mxu0
        %v1263 = vadd.f32 %v788, %v1262
        %1264 = vmatprep.mubr.f32.mxu0 0.0
        %1265 = vmatmul.mubr.f32.gmra.mrb[0].mxu0 %v1057
        %v1266 = vpop.f32.mrb[0].mxu0
        %v1267 = vadd.f32 %v792, %v1266
        %v1268 = vpop.f32.mrb[0].mxu0
        %v1269 = vadd.f32 %v794, %v1268
        %1270 = vmatprep.mubr.f32.mxu0 0.0
        %1271 = vmatmul.mubr.f32.gmra.mrb[0].mxu0 %v1060
        %v1272 = vpop.f32.mrb[0].mxu0
        %v1273 = vadd.f32 %v798, %v1272
        %v1274 = vpop.f32.mrb[0].mxu0
        %v1275 = vadd.f32 %v800, %v1274
        %1276 = vmatprep.mubr.f32.mxu0 0.0
        %1277 = vmatmul.mubr.f32.gmra.mrb[0].mxu0 %v1063
        %v1278 = vpop.f32.mrb[0].mxu0
        %v1279 = vadd.f32 %v804, %v1278
        %v1280 = vpop.f32.mrb[0].mxu0
        %v1281 = vadd.f32 %v806, %v1280
        %1282 = vdwg.mxu0
        %1283 = vmatprep.subr.mxu0 0.0
        %1284 = vmatpush1.msra.mxu0 %v456
        %1285 = vmatprep.subr.mxu0 0.0
        %1286 = vmatpush1.msra.mxu0 %v459
        %1287 = vmatprep.subr.mxu0 0.0
        %1288 = vmatpush1.msra.mxu0 %v462
        %1289 = vmatprep.subr.mxu0 0.0
        %1290 = vmatpush1.msra.mxu0 %v1072
        %1291 = vmatprep.subr.mxu0 0.0
        %1292 = vmatpush1.msra.mxu0 0.0
        %1293 = vmatprep.subr.mxu0 0.0
        %1294 = vmatpush1.msra.mxu0 0.0
        %1295 = vmatprep.subr.mxu0 0.0
        %1296 = vmatpush1.msra.mxu0 0.0
        %1297 = vmatprep.subr.mxu0 0.0
        %1298 = vmatpush1.msra.mxu0 0.0
        %1299 = vmatprep.subr.mxu0 0.0
        %1300 = vmatpush1.msra.mxu0 0.0
        %1301 = vmatprep.subr.mxu0 0.0
        %1302 = vmatpush1.msra.mxu0 0.0
        %1303 = vmatprep.subr.mxu0 0.0
        %1304 = vmatpush1.msra.mxu0 0.0
        %1305 = vmatprep.subr.mxu0 0.0
        %1306 = vmatpush1.msra.mxu0 0.0
        %1307 = vmatprep.subr.mxu0 0.0
        %1308 = vmatpush1.msra.mxu0 0.0
        %1309 = vmatprep.subr.mxu0 0.0
        %1310 = vmatpush1.msra.mxu0 0.0
        %1311 = vmatprep.subr.mxu0 0.0
        %1312 = vmatpush1.msra.mxu0 0.0
        %1313 = vmatprep.subr.mxu0 0.0
        %1314 = vmatpush1.msra.mxu0 0.0
        %1315 = vmatprep.subr.mxu0 0.0
        %1316 = vmatpush1.msra.mxu0 0.0
        %1317 = vmatprep.subr.mxu0 0.0
        %1318 = vmatpush1.msra.mxu0 0.0
        %1319 = vmatprep.subr.mxu0 0.0
        %1320 = vmatpush1.msra.mxu0 0.0
        %1321 = vmatprep.subr.mxu0 0.0
        %1322 = vmatpush1.msra.mxu0 0.0
        %1323 = vmatprep.subr.mxu0 0.0
        %1324 = vmatpush1.msra.mxu0 0.0
        %1325 = vmatprep.subr.mxu0 0.0
        %1326 = vmatpush1.msra.mxu0 0.0
        %1327 = vmatprep.subr.mxu0 0.0
        %1328 = vmatpush1.msra.mxu0 0.0
        %1329 = vmatprep.subr.mxu0 0.0
        %1330 = vmatpush1.msra.mxu0 0.0
        %1331 = vmatprep.subr.mxu0 0.0
        %1332 = vmatpush1.msra.mxu0 0.0
        %1333 = vmatprep.subr.mxu0 0.0
        %1334 = vmatpush1.msra.mxu0 0.0
        %1335 = vmatprep.subr.mxu0 0.0
        %1336 = vmatpush1.msra.mxu0 0.0
        %1337 = vmatprep.subr.mxu0 0.0
        %1338 = vmatpush1.msra.mxu0 0.0
        %1339 = vmatprep.subr.mxu0 0.0
        %1340 = vmatpush1.msra.mxu0 0.0
        %1341 = vmatprep.subr.mxu0 0.0
        %1342 = vmatpush1.msra.mxu0 0.0
        %1343 = vmatprep.subr.mxu0 0.0
        %1344 = vmatpush1.msra.mxu0 0.0
        %1345 = vmatprep.subr.mxu0 0.0
        %1346 = vmatpush1.msra.mxu0 0.0
        %1347 = vmatprep.mubr.f32.mxu0 0.0
        %1348 = vmatmul.mubr.f32.gmra.mrb[0].mxu0 %v994
        %v1349 = vpop.f32.mrb[0].mxu0
        %v1350 = vadd.f32 %v875, %v1349
        %v1351 = vpop.f32.mrb[0].mxu0
        %1352 = vmatprep.mubr.f32.mxu0 0.0
        %1353 = vmatmul.mubr.f32.gmra.mrb[0].mxu0 %v997
        %v1354 = vpop.f32.mrb[0].mxu0
        %v1355 = vadd.f32 %v880, %v1354
        %v1356 = vpop.f32.mrb[0].mxu0
        %1357 = vmatprep.mubr.f32.mxu0 0.0
        %1358 = vmatmul.mubr.f32.gmra.mrb[0].mxu0 %v1000
        %v1359 = vpop.f32.mrb[0].mxu0
        %v1360 = vadd.f32 %v885, %v1359
        %v1361 = vpop.f32.mrb[0].mxu0
        %1362 = vmatprep.mubr.f32.mxu0 0.0
        %1363 = vmatmul.mubr.f32.gmra.mrb[0].mxu0 %v1003
        %v1364 = vpop.f32.mrb[0].mxu0
        %v1365 = vadd.f32 %v890, %v1364
        %v1366 = vpop.f32.mrb[0].mxu0
        %1367 = vmatprep.mubr.f32.mxu0 0.0
        %1368 = vmatmul.mubr.f32.gmra.mrb[0].mxu0 %v1006
        %v1369 = vpop.f32.mrb[0].mxu0
        %v1370 = vadd.f32 %v895, %v1369
        %v1371 = vpop.f32.mrb[0].mxu0
        %1372 = vmatprep.mubr.f32.mxu0 0.0
        %1373 = vmatmul.mubr.f32.gmra.mrb[0].mxu0 %v1009
        %v1374 = vpop.f32.mrb[0].mxu0
        %v1375 = vadd.f32 %v900, %v1374
        %v1376 = vpop.f32.mrb[0].mxu0
        %1377 = vmatprep.mubr.f32.mxu0 0.0
        %1378 = vmatmul.mubr.f32.gmra.mrb[0].mxu0 %v1012
        %v1379 = vpop.f32.mrb[0].mxu0
        %v1380 = vadd.f32 %v905, %v1379
        %v1381 = vpop.f32.mrb[0].mxu0
        %1382 = vmatprep.mubr.f32.mxu0 0.0
        %1383 = vmatmul.mubr.f32.gmra.mrb[0].mxu0 %v1015
        %v1384 = vpop.f32.mrb[0].mxu0
        %v1385 = vadd.f32 %v910, %v1384
        %v1386 = vpop.f32.mrb[0].mxu0
        %1387 = vmatprep.mubr.f32.mxu0 0.0
        %1388 = vmatmul.mubr.f32.gmra.mrb[0].mxu0 %v1018
        %v1389 = vpop.f32.mrb[0].mxu0
        %v1390 = vadd.f32 %v915, %v1389
        %v1391 = vpop.f32.mrb[0].mxu0
        %1392 = vmatprep.mubr.f32.mxu0 0.0
        %1393 = vmatmul.mubr.f32.gmra.mrb[0].mxu0 %v1021
        %v1394 = vpop.f32.mrb[0].mxu0
        %v1395 = vadd.f32 %v920, %v1394
        %v1396 = vpop.f32.mrb[0].mxu0
        %1397 = vmatprep.mubr.f32.mxu0 0.0
        %1398 = vmatmul.mubr.f32.gmra.mrb[0].mxu0 %v1024
        %v1399 = vpop.f32.mrb[0].mxu0
        %v1400 = vadd.f32 %v925, %v1399
        %v1401 = vpop.f32.mrb[0].mxu0
        %1402 = vmatprep.mubr.f32.mxu0 0.0
        %1403 = vmatmul.mubr.f32.gmra.mrb[0].mxu0 %v1027
        %v1404 = vpop.f32.mrb[0].mxu0
        %v1405 = vadd.f32 %v930, %v1404
        %v1406 = vpop.f32.mrb[0].mxu0
        %1407 = vmatprep.mubr.f32.mxu0 0.0
        %1408 = vmatmul.mubr.f32.gmra.mrb[0].mxu0 %v1030
        %v1409 = vpop.f32.mrb[0].mxu0
        %v1410 = vadd.f32 %v935, %v1409
        %v1411 = vpop.f32.mrb[0].mxu0
        %1412 = vmatprep.mubr.f32.mxu0 0.0
        %1413 = vmatmul.mubr.f32.gmra.mrb[0].mxu0 %v1033
        %v1414 = vpop.f32.mrb[0].mxu0
        %v1415 = vadd.f32 %v940, %v1414
        %v1416 = vpop.f32.mrb[0].mxu0
        %1417 = vmatprep.mubr.f32.mxu0 0.0
        %1418 = vmatmul.mubr.f32.gmra.mrb[0].mxu0 %v1036
        %v1419 = vpop.f32.mrb[0].mxu0
        %v1420 = vadd.f32 %v945, %v1419
        %v1421 = vpop.f32.mrb[0].mxu0
        %1422 = vmatprep.mubr.f32.mxu0 0.0
        %1423 = vmatmul.mubr.f32.gmra.mrb[0].mxu0 %v1039
        %v1424 = vpop.f32.mrb[0].mxu0
        %v1425 = vadd.f32 %v950, %v1424
        %v1426 = vpop.f32.mrb[0].mxu0
        %1427 = vmatprep.mubr.f32.mxu0 0.0
        %1428 = vmatmul.mubr.f32.gmra.mrb[0].mxu0 %v1042
        %v1429 = vpop.f32.mrb[0].mxu0
        %v1430 = vadd.f32 %v955, %v1429
        %v1431 = vpop.f32.mrb[0].mxu0
        %1432 = vmatprep.mubr.f32.mxu0 0.0
        %1433 = vmatmul.mubr.f32.gmra.mrb[0].mxu0 %v1045
        %v1434 = vpop.f32.mrb[0].mxu0
        %v1435 = vadd.f32 %v960, %v1434
        %v1436 = vpop.f32.mrb[0].mxu0
        %1437 = vmatprep.mubr.f32.mxu0 0.0
        %1438 = vmatmul.mubr.f32.gmra.mrb[0].mxu0 %v1048
        %v1439 = vpop.f32.mrb[0].mxu0
        %v1440 = vadd.f32 %v965, %v1439
        %v1441 = vpop.f32.mrb[0].mxu0
        %1442 = vmatprep.mubr.f32.mxu0 0.0
        %1443 = vmatmul.mubr.f32.gmra.mrb[0].mxu0 %v1051
        %v1444 = vpop.f32.mrb[0].mxu0
        %v1445 = vadd.f32 %v970, %v1444
        %v1446 = vpop.f32.mrb[0].mxu0
        %1447 = vmatprep.mubr.f32.mxu0 0.0
        %1448 = vmatmul.mubr.f32.gmra.mrb[0].mxu0 %v1054
        %v1449 = vpop.f32.mrb[0].mxu0
        %v1450 = vadd.f32 %v975, %v1449
        %v1451 = vpop.f32.mrb[0].mxu0
        %1452 = vmatprep.mubr.f32.mxu0 0.0
        %1453 = vmatmul.mubr.f32.gmra.mrb[0].mxu0 %v1057
        %v1454 = vpop.f32.mrb[0].mxu0
        %v1455 = vadd.f32 %v980, %v1454
        %v1456 = vpop.f32.mrb[0].mxu0
        %1457 = vmatprep.mubr.f32.mxu0 0.0
        %1458 = vmatmul.mubr.f32.gmra.mrb[0].mxu0 %v1060
        %v1459 = vpop.f32.mrb[0].mxu0
        %v1460 = vadd.f32 %v985, %v1459
        %v1461 = vpop.f32.mrb[0].mxu0
        %1462 = vmatprep.mubr.f32.mxu0 0.0
        %1463 = vmatmul.mubr.f32.gmra.mrb[0].mxu0 %v1063
        %v1464 = vpop.f32.mrb[0].mxu0
        %v1465 = vadd.f32 %v990, %v1464
        %v1466 = vpop.f32.mrb[0].mxu0
        %1467 = vdwg.mxu0
        %s1468 = scalar_lea.vmem %s1, 576
        %v1469 = vld [vmem:[%s1468] sm:$0xff]
        %v1470 = vld [vmem:[%s1468 + $0x8] sm:$0xff]
        %v1471 = vld [vmem:[%s1468 + $0x10] sm:$0xff]
        %v1472 = vld [vmem:[%s1468 + $0x18] sm:$0xff]
        %v1473 = vld [vmem:[%s1468 + $0x20] sm:$0xff]
        %v1474 = vld [vmem:[%s1468 + $0x28] sm:$0xff]
        %v1475 = vld [vmem:[%s1468 + $0x30] sm:$0xff]
        %v1476 = vld [vmem:[%s1468 + $0x38] sm:$0xff]
        %v1477 = vld [vmem:[%s1468 + $0x40] sm:$0xff]
        %v1478 = vld [vmem:[%s1468 + $0x48] sm:$0xf]
        %v1479 = vld [vmem:[%s1468 + $0x50] sm:$0xf]
        %v1480 = vld [vmem:[%s1468 + $0x58] sm:$0xf]
        %v1482 = vsel %vm589, %v1478, 0
        %v1485 = vsel %vm589, %v1479, 0
        %v1488 = vsel %vm589, %v1480, 0
        %1490 = vmatprep.subr.mxu0 %v1470
        %1491 = vmatpush1.msra.mxu0 %v1469
        %1492 = vmatprep.subr.mxu0 %v1473
        %1493 = vmatpush1.msra.mxu0 %v1472
        %1494 = vmatprep.subr.mxu0 %v1476
        %1495 = vmatpush1.msra.mxu0 %v1475
        %1496 = vmatprep.subr.mxu0 %v1485
        %1497 = vmatpush1.msra.mxu0 %v1482
        %1498 = vmatprep.subr.mxu0 0.0
        %1499 = vmatpush1.msra.mxu0 0.0
        %1500 = vmatprep.subr.mxu0 0.0
        %1501 = vmatpush1.msra.mxu0 0.0
        %1502 = vmatprep.subr.mxu0 0.0
        %1503 = vmatpush1.msra.mxu0 0.0
        %1504 = vmatprep.subr.mxu0 0.0
        %1505 = vmatpush1.msra.mxu0 0.0
        %1506 = vmatprep.subr.mxu0 0.0
        %1507 = vmatpush1.msra.mxu0 0.0
        %1508 = vmatprep.subr.mxu0 0.0
        %1509 = vmatpush1.msra.mxu0 0.0
        %1510 = vmatprep.subr.mxu0 0.0
        %1511 = vmatpush1.msra.mxu0 0.0
        %1512 = vmatprep.subr.mxu0 0.0
        %1513 = vmatpush1.msra.mxu0 0.0
        %1514 = vmatprep.subr.mxu0 0.0
        %1515 = vmatpush1.msra.mxu0 0.0
        %1516 = vmatprep.subr.mxu0 0.0
        %1517 = vmatpush1.msra.mxu0 0.0
        %1518 = vmatprep.subr.mxu0 0.0
        %1519 = vmatpush1.msra.mxu0 0.0
        %1520 = vmatprep.subr.mxu0 0.0
        %1521 = vmatpush1.msra.mxu0 0.0
        %1522 = vmatprep.subr.mxu0 0.0
        %1523 = vmatpush1.msra.mxu0 0.0
        %1524 = vmatprep.subr.mxu0 0.0
        %1525 = vmatpush1.msra.mxu0 0.0
        %1526 = vmatprep.subr.mxu0 0.0
        %1527 = vmatpush1.msra.mxu0 0.0
        %1528 = vmatprep.subr.mxu0 0.0
        %1529 = vmatpush1.msra.mxu0 0.0
        %1530 = vmatprep.subr.mxu0 0.0
        %1531 = vmatpush1.msra.mxu0 0.0
        %1532 = vmatprep.subr.mxu0 0.0
        %1533 = vmatpush1.msra.mxu0 0.0
        %1534 = vmatprep.subr.mxu0 0.0
        %1535 = vmatpush1.msra.mxu0 0.0
        %1536 = vmatprep.subr.mxu0 0.0
        %1537 = vmatpush1.msra.mxu0 0.0
        %1538 = vmatprep.subr.mxu0 0.0
        %1539 = vmatpush1.msra.mxu0 0.0
        %1540 = vmatprep.subr.mxu0 0.0
        %1541 = vmatpush1.msra.mxu0 0.0
        %1542 = vmatprep.subr.mxu0 0.0
        %1543 = vmatpush1.msra.mxu0 0.0
        %1544 = vmatprep.subr.mxu0 0.0
        %1545 = vmatpush1.msra.mxu0 0.0
        %1546 = vmatprep.subr.mxu0 0.0
        %1547 = vmatpush1.msra.mxu0 0.0
        %1548 = vmatprep.subr.mxu0 0.0
        %1549 = vmatpush1.msra.mxu0 0.0
        %1550 = vmatprep.subr.mxu0 0.0
        %1551 = vmatpush1.msra.mxu0 0.0
        %1552 = vmatprep.subr.mxu0 0.0
        %1553 = vmatpush1.msra.mxu0 0.0
        %1554 = vmatprep.mubr.f32.mxu0 0.0
        %1555 = vmatmul.mubr.f32.gmra.mrb[0].mxu0 %v518
        %v1556 = vpop.f32.mrb[0].mxu0
        %v1557 = vadd.f32 0.0, %v1556
        %v1558 = vpop.f32.mrb[0].mxu0
        %v1559 = vadd.f32 0.0, %v1558
        %1560 = vmatprep.mubr.f32.mxu0 0.0
        %1561 = vmatmul.mubr.f32.gmra.mrb[0].mxu0 %v521
        %v1562 = vpop.f32.mrb[0].mxu0
        %v1563 = vadd.f32 0.0, %v1562
        %v1564 = vpop.f32.mrb[0].mxu0
        %v1565 = vadd.f32 0.0, %v1564
        %1566 = vmatprep.mubr.f32.mxu0 0.0
        %1567 = vmatmul.mubr.f32.gmra.mrb[0].mxu0 %v524
        %v1568 = vpop.f32.mrb[0].mxu0
        %v1569 = vadd.f32 0.0, %v1568
        %v1570 = vpop.f32.mrb[0].mxu0
        %v1571 = vadd.f32 0.0, %v1570
        %1572 = vmatprep.mubr.f32.mxu0 0.0
        %1573 = vmatmul.mubr.f32.gmra.mrb[0].mxu0 %v527
        %v1574 = vpop.f32.mrb[0].mxu0
        %v1575 = vadd.f32 0.0, %v1574
        %v1576 = vpop.f32.mrb[0].mxu0
        %v1577 = vadd.f32 0.0, %v1576
        %1578 = vmatprep.mubr.f32.mxu0 0.0
        %1579 = vmatmul.mubr.f32.gmra.mrb[0].mxu0 %v530
        %v1580 = vpop.f32.mrb[0].mxu0
        %v1581 = vadd.f32 0.0, %v1580
        %v1582 = vpop.f32.mrb[0].mxu0
        %v1583 = vadd.f32 0.0, %v1582
        %1584 = vmatprep.mubr.f32.mxu0 0.0
        %1585 = vmatmul.mubr.f32.gmra.mrb[0].mxu0 %v533
        %v1586 = vpop.f32.mrb[0].mxu0
        %v1587 = vadd.f32 0.0, %v1586
        %v1588 = vpop.f32.mrb[0].mxu0
        %v1589 = vadd.f32 0.0, %v1588
        %1590 = vmatprep.mubr.f32.mxu0 0.0
        %1591 = vmatmul.mubr.f32.gmra.mrb[0].mxu0 %v536
        %v1592 = vpop.f32.mrb[0].mxu0
        %v1593 = vadd.f32 0.0, %v1592
        %v1594 = vpop.f32.mrb[0].mxu0
        %v1595 = vadd.f32 0.0, %v1594
        %1596 = vmatprep.mubr.f32.mxu0 0.0
        %1597 = vmatmul.mubr.f32.gmra.mrb[0].mxu0 %v539
        %v1598 = vpop.f32.mrb[0].mxu0
        %v1599 = vadd.f32 0.0, %v1598
        %v1600 = vpop.f32.mrb[0].mxu0
        %v1601 = vadd.f32 0.0, %v1600
        %1602 = vmatprep.mubr.f32.mxu0 0.0
        %1603 = vmatmul.mubr.f32.gmra.mrb[0].mxu0 %v542
        %v1604 = vpop.f32.mrb[0].mxu0
        %v1605 = vadd.f32 0.0, %v1604
        %v1606 = vpop.f32.mrb[0].mxu0
        %v1607 = vadd.f32 0.0, %v1606
        %1608 = vmatprep.mubr.f32.mxu0 0.0
        %1609 = vmatmul.mubr.f32.gmra.mrb[0].mxu0 %v545
        %v1610 = vpop.f32.mrb[0].mxu0
        %v1611 = vadd.f32 0.0, %v1610
        %v1612 = vpop.f32.mrb[0].mxu0
        %v1613 = vadd.f32 0.0, %v1612
        %1614 = vmatprep.mubr.f32.mxu0 0.0
        %1615 = vmatmul.mubr.f32.gmra.mrb[0].mxu0 %v548
        %v1616 = vpop.f32.mrb[0].mxu0
        %v1617 = vadd.f32 0.0, %v1616
        %v1618 = vpop.f32.mrb[0].mxu0
        %v1619 = vadd.f32 0.0, %v1618
        %1620 = vmatprep.mubr.f32.mxu0 0.0
        %1621 = vmatmul.mubr.f32.gmra.mrb[0].mxu0 %v551
        %v1622 = vpop.f32.mrb[0].mxu0
        %v1623 = vadd.f32 0.0, %v1622
        %v1624 = vpop.f32.mrb[0].mxu0
        %v1625 = vadd.f32 0.0, %v1624
        %1626 = vmatprep.mubr.f32.mxu0 0.0
        %1627 = vmatmul.mubr.f32.gmra.mrb[0].mxu0 %v554
        %v1628 = vpop.f32.mrb[0].mxu0
        %v1629 = vadd.f32 0.0, %v1628
        %v1630 = vpop.f32.mrb[0].mxu0
        %v1631 = vadd.f32 0.0, %v1630
        %1632 = vmatprep.mubr.f32.mxu0 0.0
        %1633 = vmatmul.mubr.f32.gmra.mrb[0].mxu0 %v557
        %v1634 = vpop.f32.mrb[0].mxu0
        %v1635 = vadd.f32 0.0, %v1634
        %v1636 = vpop.f32.mrb[0].mxu0
        %v1637 = vadd.f32 0.0, %v1636
        %1638 = vmatprep.mubr.f32.mxu0 0.0
        %1639 = vmatmul.mubr.f32.gmra.mrb[0].mxu0 %v560
        %v1640 = vpop.f32.mrb[0].mxu0
        %v1641 = vadd.f32 0.0, %v1640
        %v1642 = vpop.f32.mrb[0].mxu0
        %v1643 = vadd.f32 0.0, %v1642
        %1644 = vmatprep.mubr.f32.mxu0 0.0
        %1645 = vmatmul.mubr.f32.gmra.mrb[0].mxu0 %v563
        %v1646 = vpop.f32.mrb[0].mxu0
        %v1647 = vadd.f32 0.0, %v1646
        %v1648 = vpop.f32.mrb[0].mxu0
        %v1649 = vadd.f32 0.0, %v1648
        %1650 = vmatprep.mubr.f32.mxu0 0.0
        %1651 = vmatmul.mubr.f32.gmra.mrb[0].mxu0 %v566
        %v1652 = vpop.f32.mrb[0].mxu0
        %v1653 = vadd.f32 0.0, %v1652
        %v1654 = vpop.f32.mrb[0].mxu0
        %v1655 = vadd.f32 0.0, %v1654
        %1656 = vmatprep.mubr.f32.mxu0 0.0
        %1657 = vmatmul.mubr.f32.gmra.mrb[0].mxu0 %v569
        %v1658 = vpop.f32.mrb[0].mxu0
        %v1659 = vadd.f32 0.0, %v1658
        %v1660 = vpop.f32.mrb[0].mxu0
        %v1661 = vadd.f32 0.0, %v1660
        %1662 = vmatprep.mubr.f32.mxu0 0.0
        %1663 = vmatmul.mubr.f32.gmra.mrb[0].mxu0 %v572
        %v1664 = vpop.f32.mrb[0].mxu0
        %v1665 = vadd.f32 0.0, %v1664
        %v1666 = vpop.f32.mrb[0].mxu0
        %v1667 = vadd.f32 0.0, %v1666
        %1668 = vmatprep.mubr.f32.mxu0 0.0
        %1669 = vmatmul.mubr.f32.gmra.mrb[0].mxu0 %v575
        %v1670 = vpop.f32.mrb[0].mxu0
        %v1671 = vadd.f32 0.0, %v1670
        %v1672 = vpop.f32.mrb[0].mxu0
        %v1673 = vadd.f32 0.0, %v1672
        %1674 = vmatprep.mubr.f32.mxu0 0.0
        %1675 = vmatmul.mubr.f32.gmra.mrb[0].mxu0 %v578
        %v1676 = vpop.f32.mrb[0].mxu0
        %v1677 = vadd.f32 0.0, %v1676
        %v1678 = vpop.f32.mrb[0].mxu0
        %v1679 = vadd.f32 0.0, %v1678
        %1680 = vmatprep.mubr.f32.mxu0 0.0
        %1681 = vmatmul.mubr.f32.gmra.mrb[0].mxu0 %v581
        %v1682 = vpop.f32.mrb[0].mxu0
        %v1683 = vadd.f32 0.0, %v1682
        %v1684 = vpop.f32.mrb[0].mxu0
        %v1685 = vadd.f32 0.0, %v1684
        %1686 = vmatprep.mubr.f32.mxu0 0.0
        %1687 = vmatmul.mubr.f32.gmra.mrb[0].mxu0 %v584
        %v1688 = vpop.f32.mrb[0].mxu0
        %v1689 = vadd.f32 0.0, %v1688
        %v1690 = vpop.f32.mrb[0].mxu0
        %v1691 = vadd.f32 0.0, %v1690
        %1692 = vmatprep.mubr.f32.mxu0 0.0
        %1693 = vmatmul.mubr.f32.gmra.mrb[0].mxu0 %v587
        %v1694 = vpop.f32.mrb[0].mxu0
        %v1695 = vadd.f32 0.0, %v1694
        %v1696 = vpop.f32.mrb[0].mxu0
        %v1697 = vadd.f32 0.0, %v1696
        %1698 = vdwg.mxu0
        %1699 = vmatprep.subr.mxu0 0.0
        %1700 = vmatpush1.msra.mxu0 %v1471
        %1701 = vmatprep.subr.mxu0 0.0
        %1702 = vmatpush1.msra.mxu0 %v1474
        %1703 = vmatprep.subr.mxu0 0.0
        %1704 = vmatpush1.msra.mxu0 %v1477
        %1705 = vmatprep.subr.mxu0 0.0
        %1706 = vmatpush1.msra.mxu0 %v1488
        %1707 = vmatprep.subr.mxu0 0.0
        %1708 = vmatpush1.msra.mxu0 0.0
        %1709 = vmatprep.subr.mxu0 0.0
        %1710 = vmatpush1.msra.mxu0 0.0
        %1711 = vmatprep.subr.mxu0 0.0
        %1712 = vmatpush1.msra.mxu0 0.0
        %1713 = vmatprep.subr.mxu0 0.0
        %1714 = vmatpush1.msra.mxu0 0.0
        %1715 = vmatprep.subr.mxu0 0.0
        %1716 = vmatpush1.msra.mxu0 0.0
        %1717 = vmatprep.subr.mxu0 0.0
        %1718 = vmatpush1.msra.mxu0 0.0
        %1719 = vmatprep.subr.mxu0 0.0
        %1720 = vmatpush1.msra.mxu0 0.0
        %1721 = vmatprep.subr.mxu0 0.0
        %1722 = vmatpush1.msra.mxu0 0.0
        %1723 = vmatprep.subr.mxu0 0.0
        %1724 = vmatpush1.msra.mxu0 0.0
        %1725 = vmatprep.subr.mxu0 0.0
        %1726 = vmatpush1.msra.mxu0 0.0
        %1727 = vmatprep.subr.mxu0 0.0
        %1728 = vmatpush1.msra.mxu0 0.0
        %1729 = vmatprep.subr.mxu0 0.0
        %1730 = vmatpush1.msra.mxu0 0.0
        %1731 = vmatprep.subr.mxu0 0.0
        %1732 = vmatpush1.msra.mxu0 0.0
        %1733 = vmatprep.subr.mxu0 0.0
        %1734 = vmatpush1.msra.mxu0 0.0
        %1735 = vmatprep.subr.mxu0 0.0
        %1736 = vmatpush1.msra.mxu0 0.0
        %1737 = vmatprep.subr.mxu0 0.0
        %1738 = vmatpush1.msra.mxu0 0.0
        %1739 = vmatprep.subr.mxu0 0.0
        %1740 = vmatpush1.msra.mxu0 0.0
        %1741 = vmatprep.subr.mxu0 0.0
        %1742 = vmatpush1.msra.mxu0 0.0
        %1743 = vmatprep.subr.mxu0 0.0
        %1744 = vmatpush1.msra.mxu0 0.0
        %1745 = vmatprep.subr.mxu0 0.0
        %1746 = vmatpush1.msra.mxu0 0.0
        %1747 = vmatprep.subr.mxu0 0.0
        %1748 = vmatpush1.msra.mxu0 0.0
        %1749 = vmatprep.subr.mxu0 0.0
        %1750 = vmatpush1.msra.mxu0 0.0
        %1751 = vmatprep.subr.mxu0 0.0
        %1752 = vmatpush1.msra.mxu0 0.0
        %1753 = vmatprep.subr.mxu0 0.0
        %1754 = vmatpush1.msra.mxu0 0.0
        %1755 = vmatprep.subr.mxu0 0.0
        %1756 = vmatpush1.msra.mxu0 0.0
        %1757 = vmatprep.subr.mxu0 0.0
        %1758 = vmatpush1.msra.mxu0 0.0
        %1759 = vmatprep.subr.mxu0 0.0
        %1760 = vmatpush1.msra.mxu0 0.0
        %1761 = vmatprep.subr.mxu0 0.0
        %1762 = vmatpush1.msra.mxu0 0.0
        %1763 = vmatprep.mubr.f32.mxu0 0.0
        %1764 = vmatmul.mubr.f32.gmra.mrb[0].mxu0 %v518
        %v1765 = vpop.f32.mrb[0].mxu0
        %v1766 = vadd.f32 0.0, %v1765
        %v1767 = vpop.f32.mrb[0].mxu0
        %1768 = vmatprep.mubr.f32.mxu0 0.0
        %1769 = vmatmul.mubr.f32.gmra.mrb[0].mxu0 %v521
        %v1770 = vpop.f32.mrb[0].mxu0
        %v1771 = vadd.f32 0.0, %v1770
        %v1772 = vpop.f32.mrb[0].mxu0
        %1773 = vmatprep.mubr.f32.mxu0 0.0
        %1774 = vmatmul.mubr.f32.gmra.mrb[0].mxu0 %v524
        %v1775 = vpop.f32.mrb[0].mxu0
        %v1776 = vadd.f32 0.0, %v1775
        %v1777 = vpop.f32.mrb[0].mxu0
        %1778 = vmatprep.mubr.f32.mxu0 0.0
        %1779 = vmatmul.mubr.f32.gmra.mrb[0].mxu0 %v527
        %v1780 = vpop.f32.mrb[0].mxu0
        %v1781 = vadd.f32 0.0, %v1780
        %v1782 = vpop.f32.mrb[0].mxu0
        %1783 = vmatprep.mubr.f32.mxu0 0.0
        %1784 = vmatmul.mubr.f32.gmra.mrb[0].mxu0 %v530
        %v1785 = vpop.f32.mrb[0].mxu0
        %v1786 = vadd.f32 0.0, %v1785
        %v1787 = vpop.f32.mrb[0].mxu0
        %1788 = vmatprep.mubr.f32.mxu0 0.0
        %1789 = vmatmul.mubr.f32.gmra.mrb[0].mxu0 %v533
        %v1790 = vpop.f32.mrb[0].mxu0
        %v1791 = vadd.f32 0.0, %v1790
        %v1792 = vpop.f32.mrb[0].mxu0
        %1793 = vmatprep.mubr.f32.mxu0 0.0
        %1794 = vmatmul.mubr.f32.gmra.mrb[0].mxu0 %v536
        %v1795 = vpop.f32.mrb[0].mxu0
        %v1796 = vadd.f32 0.0, %v1795
        %v1797 = vpop.f32.mrb[0].mxu0
        %1798 = vmatprep.mubr.f32.mxu0 0.0
        %1799 = vmatmul.mubr.f32.gmra.mrb[0].mxu0 %v539
        %v1800 = vpop.f32.mrb[0].mxu0
        %v1801 = vadd.f32 0.0, %v1800
        %v1802 = vpop.f32.mrb[0].mxu0
        %1803 = vmatprep.mubr.f32.mxu0 0.0
        %1804 = vmatmul.mubr.f32.gmra.mrb[0].mxu0 %v542
        %v1805 = vpop.f32.mrb[0].mxu0
        %v1806 = vadd.f32 0.0, %v1805
        %v1807 = vpop.f32.mrb[0].mxu0
        %1808 = vmatprep.mubr.f32.mxu0 0.0
        %1809 = vmatmul.mubr.f32.gmra.mrb[0].mxu0 %v545
        %v1810 = vpop.f32.mrb[0].mxu0
        %v1811 = vadd.f32 0.0, %v1810
        %v1812 = vpop.f32.mrb[0].mxu0
        %1813 = vmatprep.mubr.f32.mxu0 0.0
        %1814 = vmatmul.mubr.f32.gmra.mrb[0].mxu0 %v548
        %v1815 = vpop.f32.mrb[0].mxu0
        %v1816 = vadd.f32 0.0, %v1815
        %v1817 = vpop.f32.mrb[0].mxu0
        %1818 = vmatprep.mubr.f32.mxu0 0.0
        %1819 = vmatmul.mubr.f32.gmra.mrb[0].mxu0 %v551
        %v1820 = vpop.f32.mrb[0].mxu0
        %v1821 = vadd.f32 0.0, %v1820
        %v1822 = vpop.f32.mrb[0].mxu0
        %1823 = vmatprep.mubr.f32.mxu0 0.0
        %1824 = vmatmul.mubr.f32.gmra.mrb[0].mxu0 %v554
        %v1825 = vpop.f32.mrb[0].mxu0
        %v1826 = vadd.f32 0.0, %v1825
        %v1827 = vpop.f32.mrb[0].mxu0
        %1828 = vmatprep.mubr.f32.mxu0 0.0
        %1829 = vmatmul.mubr.f32.gmra.mrb[0].mxu0 %v557
        %v1830 = vpop.f32.mrb[0].mxu0
        %v1831 = vadd.f32 0.0, %v1830
        %v1832 = vpop.f32.mrb[0].mxu0
        %1833 = vmatprep.mubr.f32.mxu0 0.0
        %1834 = vmatmul.mubr.f32.gmra.mrb[0].mxu0 %v560
        %v1835 = vpop.f32.mrb[0].mxu0
        %v1836 = vadd.f32 0.0, %v1835
        %v1837 = vpop.f32.mrb[0].mxu0
        %1838 = vmatprep.mubr.f32.mxu0 0.0
        %1839 = vmatmul.mubr.f32.gmra.mrb[0].mxu0 %v563
        %v1840 = vpop.f32.mrb[0].mxu0
        %v1841 = vadd.f32 0.0, %v1840
        %v1842 = vpop.f32.mrb[0].mxu0
        %1843 = vmatprep.mubr.f32.mxu0 0.0
        %1844 = vmatmul.mubr.f32.gmra.mrb[0].mxu0 %v566
        %v1845 = vpop.f32.mrb[0].mxu0
        %v1846 = vadd.f32 0.0, %v1845
        %v1847 = vpop.f32.mrb[0].mxu0
        %1848 = vmatprep.mubr.f32.mxu0 0.0
        %1849 = vmatmul.mubr.f32.gmra.mrb[0].mxu0 %v569
        %v1850 = vpop.f32.mrb[0].mxu0
        %v1851 = vadd.f32 0.0, %v1850
        %v1852 = vpop.f32.mrb[0].mxu0
        %1853 = vmatprep.mubr.f32.mxu0 0.0
        %1854 = vmatmul.mubr.f32.gmra.mrb[0].mxu0 %v572
        %v1855 = vpop.f32.mrb[0].mxu0
        %v1856 = vadd.f32 0.0, %v1855
        %v1857 = vpop.f32.mrb[0].mxu0
        %1858 = vmatprep.mubr.f32.mxu0 0.0
        %1859 = vmatmul.mubr.f32.gmra.mrb[0].mxu0 %v575
        %v1860 = vpop.f32.mrb[0].mxu0
        %v1861 = vadd.f32 0.0, %v1860
        %v1862 = vpop.f32.mrb[0].mxu0
        %1863 = vmatprep.mubr.f32.mxu0 0.0
        %1864 = vmatmul.mubr.f32.gmra.mrb[0].mxu0 %v578
        %v1865 = vpop.f32.mrb[0].mxu0
        %v1866 = vadd.f32 0.0, %v1865
        %v1867 = vpop.f32.mrb[0].mxu0
        %1868 = vmatprep.mubr.f32.mxu0 0.0
        %1869 = vmatmul.mubr.f32.gmra.mrb[0].mxu0 %v581
        %v1870 = vpop.f32.mrb[0].mxu0
        %v1871 = vadd.f32 0.0, %v1870
        %v1872 = vpop.f32.mrb[0].mxu0
        %1873 = vmatprep.mubr.f32.mxu0 0.0
        %1874 = vmatmul.mubr.f32.gmra.mrb[0].mxu0 %v584
        %v1875 = vpop.f32.mrb[0].mxu0
        %v1876 = vadd.f32 0.0, %v1875
        %v1877 = vpop.f32.mrb[0].mxu0
        %1878 = vmatprep.mubr.f32.mxu0 0.0
        %1879 = vmatmul.mubr.f32.gmra.mrb[0].mxu0 %v587
        %v1880 = vpop.f32.mrb[0].mxu0
        %v1881 = vadd.f32 0.0, %v1880
        %v1882 = vpop.f32.mrb[0].mxu0
        %1883 = vdwg.mxu0
        %v1885 = vsel %vm589, %v476, 0
        %v1888 = vsel %vm589, %v477, 0
        %v1891 = vsel %vm589, %v478, 0
        %1893 = vmatprep.subr.mxu0 %v468
        %1894 = vmatpush1.msra.mxu0 %v467
        %1895 = vmatprep.subr.mxu0 %v471
        %1896 = vmatpush1.msra.mxu0 %v470
        %1897 = vmatprep.subr.mxu0 %v474
        %1898 = vmatpush1.msra.mxu0 %v473
        %1899 = vmatprep.subr.mxu0 %v1888
        %1900 = vmatpush1.msra.mxu0 %v1885
        %1901 = vmatprep.subr.mxu0 0.0
        %1902 = vmatpush1.msra.mxu0 0.0
        %1903 = vmatprep.subr.mxu0 0.0
        %1904 = vmatpush1.msra.mxu0 0.0
        %1905 = vmatprep.subr.mxu0 0.0
        %1906 = vmatpush1.msra.mxu0 0.0
        %1907 = vmatprep.subr.mxu0 0.0
        %1908 = vmatpush1.msra.mxu0 0.0
        %1909 = vmatprep.subr.mxu0 0.0
        %1910 = vmatpush1.msra.mxu0 0.0
        %1911 = vmatprep.subr.mxu0 0.0
        %1912 = vmatpush1.msra.mxu0 0.0
        %1913 = vmatprep.subr.mxu0 0.0
        %1914 = vmatpush1.msra.mxu0 0.0
        %1915 = vmatprep.subr.mxu0 0.0
        %1916 = vmatpush1.msra.mxu0 0.0
        %1917 = vmatprep.subr.mxu0 0.0
        %1918 = vmatpush1.msra.mxu0 0.0
        %1919 = vmatprep.subr.mxu0 0.0
        %1920 = vmatpush1.msra.mxu0 0.0
        %1921 = vmatprep.subr.mxu0 0.0
        %1922 = vmatpush1.msra.mxu0 0.0
        %1923 = vmatprep.subr.mxu0 0.0
        %1924 = vmatpush1.msra.mxu0 0.0
        %1925 = vmatprep.subr.mxu0 0.0
        %1926 = vmatpush1.msra.mxu0 0.0
        %1927 = vmatprep.subr.mxu0 0.0
        %1928 = vmatpush1.msra.mxu0 0.0
        %1929 = vmatprep.subr.mxu0 0.0
        %1930 = vmatpush1.msra.mxu0 0.0
        %1931 = vmatprep.subr.mxu0 0.0
        %1932 = vmatpush1.msra.mxu0 0.0
        %1933 = vmatprep.subr.mxu0 0.0
        %1934 = vmatpush1.msra.mxu0 0.0
        %1935 = vmatprep.subr.mxu0 0.0
        %1936 = vmatpush1.msra.mxu0 0.0
        %1937 = vmatprep.subr.mxu0 0.0
        %1938 = vmatpush1.msra.mxu0 0.0
        %1939 = vmatprep.subr.mxu0 0.0
        %1940 = vmatpush1.msra.mxu0 0.0
        %1941 = vmatprep.subr.mxu0 0.0
        %1942 = vmatpush1.msra.mxu0 0.0
        %1943 = vmatprep.subr.mxu0 0.0
        %1944 = vmatpush1.msra.mxu0 0.0
        %1945 = vmatprep.subr.mxu0 0.0
        %1946 = vmatpush1.msra.mxu0 0.0
        %1947 = vmatprep.subr.mxu0 0.0
        %1948 = vmatpush1.msra.mxu0 0.0
        %1949 = vmatprep.subr.mxu0 0.0
        %1950 = vmatpush1.msra.mxu0 0.0
        %1951 = vmatprep.subr.mxu0 0.0
        %1952 = vmatpush1.msra.mxu0 0.0
        %1953 = vmatprep.subr.mxu0 0.0
        %1954 = vmatpush1.msra.mxu0 0.0
        %1955 = vmatprep.subr.mxu0 0.0
        %1956 = vmatpush1.msra.mxu0 0.0
        %1957 = vmatprep.mubr.f32.mxu0 0.0
        %1958 = vmatmul.mubr.f32.gmra.mrb[0].mxu0 %v994
        %v1959 = vpop.f32.mrb[0].mxu0
        %v1960 = vadd.f32 %v1557, %v1959
        %v1961 = vpop.f32.mrb[0].mxu0
        %v1962 = vadd.f32 %v1559, %v1961
        %1963 = vmatprep.mubr.f32.mxu0 0.0
        %1964 = vmatmul.mubr.f32.gmra.mrb[0].mxu0 %v997
        %v1965 = vpop.f32.mrb[0].mxu0
        %v1966 = vadd.f32 %v1563, %v1965
        %v1967 = vpop.f32.mrb[0].mxu0
        %v1968 = vadd.f32 %v1565, %v1967
        %1969 = vmatprep.mubr.f32.mxu0 0.0
        %1970 = vmatmul.mubr.f32.gmra.mrb[0].mxu0 %v1000
        %v1971 = vpop.f32.mrb[0].mxu0
        %v1972 = vadd.f32 %v1569, %v1971
        %v1973 = vpop.f32.mrb[0].mxu0
        %v1974 = vadd.f32 %v1571, %v1973
        %1975 = vmatprep.mubr.f32.mxu0 0.0
        %1976 = vmatmul.mubr.f32.gmra.mrb[0].mxu0 %v1003
        %v1977 = vpop.f32.mrb[0].mxu0
        %v1978 = vadd.f32 %v1575, %v1977
        %v1979 = vpop.f32.mrb[0].mxu0
        %v1980 = vadd.f32 %v1577, %v1979
        %1981 = vmatprep.mubr.f32.mxu0 0.0
        %1982 = vmatmul.mubr.f32.gmra.mrb[0].mxu0 %v1006
        %v1983 = vpop.f32.mrb[0].mxu0
        %v1984 = vadd.f32 %v1581, %v1983
        %v1985 = vpop.f32.mrb[0].mxu0
        %v1986 = vadd.f32 %v1583, %v1985
        %1987 = vmatprep.mubr.f32.mxu0 0.0
        %1988 = vmatmul.mubr.f32.gmra.mrb[0].mxu0 %v1009
        %v1989 = vpop.f32.mrb[0].mxu0
        %v1990 = vadd.f32 %v1587, %v1989
        %v1991 = vpop.f32.mrb[0].mxu0
        %v1992 = vadd.f32 %v1589, %v1991
        %1993 = vmatprep.mubr.f32.mxu0 0.0
        %1994 = vmatmul.mubr.f32.gmra.mrb[0].mxu0 %v1012
        %v1995 = vpop.f32.mrb[0].mxu0
        %v1996 = vadd.f32 %v1593, %v1995
        %v1997 = vpop.f32.mrb[0].mxu0
        %v1998 = vadd.f32 %v1595, %v1997
        %1999 = vmatprep.mubr.f32.mxu0 0.0
        %2000 = vmatmul.mubr.f32.gmra.mrb[0].mxu0 %v1015
        %v2001 = vpop.f32.mrb[0].mxu0
        %v2002 = vadd.f32 %v1599, %v2001
        %v2003 = vpop.f32.mrb[0].mxu0
        %v2004 = vadd.f32 %v1601, %v2003
        %2005 = vmatprep.mubr.f32.mxu0 0.0
        %2006 = vmatmul.mubr.f32.gmra.mrb[0].mxu0 %v1018
        %v2007 = vpop.f32.mrb[0].mxu0
        %v2008 = vadd.f32 %v1605, %v2007
        %v2009 = vpop.f32.mrb[0].mxu0
        %v2010 = vadd.f32 %v1607, %v2009
        %2011 = vmatprep.mubr.f32.mxu0 0.0
        %2012 = vmatmul.mubr.f32.gmra.mrb[0].mxu0 %v1021
        %v2013 = vpop.f32.mrb[0].mxu0
        %v2014 = vadd.f32 %v1611, %v2013
        %v2015 = vpop.f32.mrb[0].mxu0
        %v2016 = vadd.f32 %v1613, %v2015
        %2017 = vmatprep.mubr.f32.mxu0 0.0
        %2018 = vmatmul.mubr.f32.gmra.mrb[0].mxu0 %v1024
        %v2019 = vpop.f32.mrb[0].mxu0
        %v2020 = vadd.f32 %v1617, %v2019
        %v2021 = vpop.f32.mrb[0].mxu0
        %v2022 = vadd.f32 %v1619, %v2021
        %2023 = vmatprep.mubr.f32.mxu0 0.0
        %2024 = vmatmul.mubr.f32.gmra.mrb[0].mxu0 %v1027
        %v2025 = vpop.f32.mrb[0].mxu0
        %v2026 = vadd.f32 %v1623, %v2025
        %v2027 = vpop.f32.mrb[0].mxu0
        %v2028 = vadd.f32 %v1625, %v2027
        %2029 = vmatprep.mubr.f32.mxu0 0.0
        %2030 = vmatmul.mubr.f32.gmra.mrb[0].mxu0 %v1030
        %v2031 = vpop.f32.mrb[0].mxu0
        %v2032 = vadd.f32 %v1629, %v2031
        %v2033 = vpop.f32.mrb[0].mxu0
        %v2034 = vadd.f32 %v1631, %v2033
        %2035 = vmatprep.mubr.f32.mxu0 0.0
        %2036 = vmatmul.mubr.f32.gmra.mrb[0].mxu0 %v1033
        %v2037 = vpop.f32.mrb[0].mxu0
        %v2038 = vadd.f32 %v1635, %v2037
        %v2039 = vpop.f32.mrb[0].mxu0
        %v2040 = vadd.f32 %v1637, %v2039
        %2041 = vmatprep.mubr.f32.mxu0 0.0
        %2042 = vmatmul.mubr.f32.gmra.mrb[0].mxu0 %v1036
        %v2043 = vpop.f32.mrb[0].mxu0
        %v2044 = vadd.f32 %v1641, %v2043
        %v2045 = vpop.f32.mrb[0].mxu0
        %v2046 = vadd.f32 %v1643, %v2045
        %2047 = vmatprep.mubr.f32.mxu0 0.0
        %2048 = vmatmul.mubr.f32.gmra.mrb[0].mxu0 %v1039
        %v2049 = vpop.f32.mrb[0].mxu0
        %v2050 = vadd.f32 %v1647, %v2049
        %v2051 = vpop.f32.mrb[0].mxu0
        %v2052 = vadd.f32 %v1649, %v2051
        %2053 = vmatprep.mubr.f32.mxu0 0.0
        %2054 = vmatmul.mubr.f32.gmra.mrb[0].mxu0 %v1042
        %v2055 = vpop.f32.mrb[0].mxu0
        %v2056 = vadd.f32 %v1653, %v2055
        %v2057 = vpop.f32.mrb[0].mxu0
        %v2058 = vadd.f32 %v1655, %v2057
        %2059 = vmatprep.mubr.f32.mxu0 0.0
        %2060 = vmatmul.mubr.f32.gmra.mrb[0].mxu0 %v1045
        %v2061 = vpop.f32.mrb[0].mxu0
        %v2062 = vadd.f32 %v1659, %v2061
        %v2063 = vpop.f32.mrb[0].mxu0
        %v2064 = vadd.f32 %v1661, %v2063
        %2065 = vmatprep.mubr.f32.mxu0 0.0
        %2066 = vmatmul.mubr.f32.gmra.mrb[0].mxu0 %v1048
        %v2067 = vpop.f32.mrb[0].mxu0
        %v2068 = vadd.f32 %v1665, %v2067
        %v2069 = vpop.f32.mrb[0].mxu0
        %v2070 = vadd.f32 %v1667, %v2069
        %2071 = vmatprep.mubr.f32.mxu0 0.0
        %2072 = vmatmul.mubr.f32.gmra.mrb[0].mxu0 %v1051
        %v2073 = vpop.f32.mrb[0].mxu0
        %v2074 = vadd.f32 %v1671, %v2073
        %v2075 = vpop.f32.mrb[0].mxu0
        %v2076 = vadd.f32 %v1673, %v2075
        %2077 = vmatprep.mubr.f32.mxu0 0.0
        %2078 = vmatmul.mubr.f32.gmra.mrb[0].mxu0 %v1054
        %v2079 = vpop.f32.mrb[0].mxu0
        %v2080 = vadd.f32 %v1677, %v2079
        %v2081 = vpop.f32.mrb[0].mxu0
        %v2082 = vadd.f32 %v1679, %v2081
        %2083 = vmatprep.mubr.f32.mxu0 0.0
        %2084 = vmatmul.mubr.f32.gmra.mrb[0].mxu0 %v1057
        %v2085 = vpop.f32.mrb[0].mxu0
        %v2086 = vadd.f32 %v1683, %v2085
        %v2087 = vpop.f32.mrb[0].mxu0
        %v2088 = vadd.f32 %v1685, %v2087
        %2089 = vmatprep.mubr.f32.mxu0 0.0
        %2090 = vmatmul.mubr.f32.gmra.mrb[0].mxu0 %v1060
        %v2091 = vpop.f32.mrb[0].mxu0
        %v2092 = vadd.f32 %v1689, %v2091
        %v2093 = vpop.f32.mrb[0].mxu0
        %v2094 = vadd.f32 %v1691, %v2093
        %2095 = vmatprep.mubr.f32.mxu0 0.0
        %2096 = vmatmul.mubr.f32.gmra.mrb[0].mxu0 %v1063
        %v2097 = vpop.f32.mrb[0].mxu0
        %v2098 = vadd.f32 %v1695, %v2097
        %v2099 = vpop.f32.mrb[0].mxu0
        %v2100 = vadd.f32 %v1697, %v2099
        %2101 = vdwg.mxu0
        %2102 = vmatprep.subr.mxu0 0.0
        %2103 = vmatpush1.msra.mxu0 %v469
        %2104 = vmatprep.subr.mxu0 0.0
        %2105 = vmatpush1.msra.mxu0 %v472
        %2106 = vmatprep.subr.mxu0 0.0
        %2107 = vmatpush1.msra.mxu0 %v475
        %2108 = vmatprep.subr.mxu0 0.0
        %2109 = vmatpush1.msra.mxu0 %v1891
        %2110 = vmatprep.subr.mxu0 0.0
        %2111 = vmatpush1.msra.mxu0 0.0
        %2112 = vmatprep.subr.mxu0 0.0
        %2113 = vmatpush1.msra.mxu0 0.0
        %2114 = vmatprep.subr.mxu0 0.0
        %2115 = vmatpush1.msra.mxu0 0.0
        %2116 = vmatprep.subr.mxu0 0.0
        %2117 = vmatpush1.msra.mxu0 0.0
        %2118 = vmatprep.subr.mxu0 0.0
        %2119 = vmatpush1.msra.mxu0 0.0
        %2120 = vmatprep.subr.mxu0 0.0
        %2121 = vmatpush1.msra.mxu0 0.0
        %2122 = vmatprep.subr.mxu0 0.0
        %2123 = vmatpush1.msra.mxu0 0.0
        %2124 = vmatprep.subr.mxu0 0.0
        %2125 = vmatpush1.msra.mxu0 0.0
        %2126 = vmatprep.subr.mxu0 0.0
        %2127 = vmatpush1.msra.mxu0 0.0
        %2128 = vmatprep.subr.mxu0 0.0
        %2129 = vmatpush1.msra.mxu0 0.0
        %2130 = vmatprep.subr.mxu0 0.0
        %2131 = vmatpush1.msra.mxu0 0.0
        %2132 = vmatprep.subr.mxu0 0.0
        %2133 = vmatpush1.msra.mxu0 0.0
        %2134 = vmatprep.subr.mxu0 0.0
        %2135 = vmatpush1.msra.mxu0 0.0
        %2136 = vmatprep.subr.mxu0 0.0
        %2137 = vmatpush1.msra.mxu0 0.0
        %2138 = vmatprep.subr.mxu0 0.0
        %2139 = vmatpush1.msra.mxu0 0.0
        %2140 = vmatprep.subr.mxu0 0.0
        %2141 = vmatpush1.msra.mxu0 0.0
        %2142 = vmatprep.subr.mxu0 0.0
        %2143 = vmatpush1.msra.mxu0 0.0
        %2144 = vmatprep.subr.mxu0 0.0
        %2145 = vmatpush1.msra.mxu0 0.0
        %2146 = vmatprep.subr.mxu0 0.0
        %2147 = vmatpush1.msra.mxu0 0.0
        %2148 = vmatprep.subr.mxu0 0.0
        %2149 = vmatpush1.msra.mxu0 0.0
        %2150 = vmatprep.subr.mxu0 0.0
        %2151 = vmatpush1.msra.mxu0 0.0
        %2152 = vmatprep.subr.mxu0 0.0
        %2153 = vmatpush1.msra.mxu0 0.0
        %2154 = vmatprep.subr.mxu0 0.0
        %2155 = vmatpush1.msra.mxu0 0.0
        %2156 = vmatprep.subr.mxu0 0.0
        %2157 = vmatpush1.msra.mxu0 0.0
        %2158 = vmatprep.subr.mxu0 0.0
        %2159 = vmatpush1.msra.mxu0 0.0
        %2160 = vmatprep.subr.mxu0 0.0
        %2161 = vmatpush1.msra.mxu0 0.0
        %2162 = vmatprep.subr.mxu0 0.0
        %2163 = vmatpush1.msra.mxu0 0.0
        %2164 = vmatprep.subr.mxu0 0.0
        %2165 = vmatpush1.msra.mxu0 0.0
        %2166 = vmatprep.mubr.f32.mxu0 0.0
        %2167 = vmatmul.mubr.f32.gmra.mrb[0].mxu0 %v994
        %v2168 = vpop.f32.mrb[0].mxu0
        %v2169 = vadd.f32 %v1766, %v2168
        %v2170 = vpop.f32.mrb[0].mxu0
        %2171 = vmatprep.mubr.f32.mxu0 0.0
        %2172 = vmatmul.mubr.f32.gmra.mrb[0].mxu0 %v997
        %v2173 = vpop.f32.mrb[0].mxu0
        %v2174 = vadd.f32 %v1771, %v2173
        %v2175 = vpop.f32.mrb[0].mxu0
        %2176 = vmatprep.mubr.f32.mxu0 0.0
        %2177 = vmatmul.mubr.f32.gmra.mrb[0].mxu0 %v1000
        %v2178 = vpop.f32.mrb[0].mxu0
        %v2179 = vadd.f32 %v1776, %v2178
        %v2180 = vpop.f32.mrb[0].mxu0
        %2181 = vmatprep.mubr.f32.mxu0 0.0
        %2182 = vmatmul.mubr.f32.gmra.mrb[0].mxu0 %v1003
        %v2183 = vpop.f32.mrb[0].mxu0
        %v2184 = vadd.f32 %v1781, %v2183
        %v2185 = vpop.f32.mrb[0].mxu0
        %2186 = vmatprep.mubr.f32.mxu0 0.0
        %2187 = vmatmul.mubr.f32.gmra.mrb[0].mxu0 %v1006
        %v2188 = vpop.f32.mrb[0].mxu0
        %v2189 = vadd.f32 %v1786, %v2188
        %v2190 = vpop.f32.mrb[0].mxu0
        %2191 = vmatprep.mubr.f32.mxu0 0.0
        %2192 = vmatmul.mubr.f32.gmra.mrb[0].mxu0 %v1009
        %v2193 = vpop.f32.mrb[0].mxu0
        %v2194 = vadd.f32 %v1791, %v2193
        %v2195 = vpop.f32.mrb[0].mxu0
        %2196 = vmatprep.mubr.f32.mxu0 0.0
        %2197 = vmatmul.mubr.f32.gmra.mrb[0].mxu0 %v1012
        %v2198 = vpop.f32.mrb[0].mxu0
        %v2199 = vadd.f32 %v1796, %v2198
        %v2200 = vpop.f32.mrb[0].mxu0
        %2201 = vmatprep.mubr.f32.mxu0 0.0
        %2202 = vmatmul.mubr.f32.gmra.mrb[0].mxu0 %v1015
        %v2203 = vpop.f32.mrb[0].mxu0
        %v2204 = vadd.f32 %v1801, %v2203
        %v2205 = vpop.f32.mrb[0].mxu0
        %2206 = vmatprep.mubr.f32.mxu0 0.0
        %2207 = vmatmul.mubr.f32.gmra.mrb[0].mxu0 %v1018
        %v2208 = vpop.f32.mrb[0].mxu0
        %v2209 = vadd.f32 %v1806, %v2208
        %v2210 = vpop.f32.mrb[0].mxu0
        %2211 = vmatprep.mubr.f32.mxu0 0.0
        %2212 = vmatmul.mubr.f32.gmra.mrb[0].mxu0 %v1021
        %v2213 = vpop.f32.mrb[0].mxu0
        %v2214 = vadd.f32 %v1811, %v2213
        %v2215 = vpop.f32.mrb[0].mxu0
        %2216 = vmatprep.mubr.f32.mxu0 0.0
        %2217 = vmatmul.mubr.f32.gmra.mrb[0].mxu0 %v1024
        %v2218 = vpop.f32.mrb[0].mxu0
        %v2219 = vadd.f32 %v1816, %v2218
        %v2220 = vpop.f32.mrb[0].mxu0
        %2221 = vmatprep.mubr.f32.mxu0 0.0
        %2222 = vmatmul.mubr.f32.gmra.mrb[0].mxu0 %v1027
        %v2223 = vpop.f32.mrb[0].mxu0
        %v2224 = vadd.f32 %v1821, %v2223
        %v2225 = vpop.f32.mrb[0].mxu0
        %2226 = vmatprep.mubr.f32.mxu0 0.0
        %2227 = vmatmul.mubr.f32.gmra.mrb[0].mxu0 %v1030
        %v2228 = vpop.f32.mrb[0].mxu0
        %v2229 = vadd.f32 %v1826, %v2228
        %v2230 = vpop.f32.mrb[0].mxu0
        %2231 = vmatprep.mubr.f32.mxu0 0.0
        %2232 = vmatmul.mubr.f32.gmra.mrb[0].mxu0 %v1033
        %v2233 = vpop.f32.mrb[0].mxu0
        %v2234 = vadd.f32 %v1831, %v2233
        %v2235 = vpop.f32.mrb[0].mxu0
        %2236 = vmatprep.mubr.f32.mxu0 0.0
        %2237 = vmatmul.mubr.f32.gmra.mrb[0].mxu0 %v1036
        %v2238 = vpop.f32.mrb[0].mxu0
        %v2239 = vadd.f32 %v1836, %v2238
        %v2240 = vpop.f32.mrb[0].mxu0
        %2241 = vmatprep.mubr.f32.mxu0 0.0
        %2242 = vmatmul.mubr.f32.gmra.mrb[0].mxu0 %v1039
        %v2243 = vpop.f32.mrb[0].mxu0
        %v2244 = vadd.f32 %v1841, %v2243
        %v2245 = vpop.f32.mrb[0].mxu0
        %2246 = vmatprep.mubr.f32.mxu0 0.0
        %2247 = vmatmul.mubr.f32.gmra.mrb[0].mxu0 %v1042
        %v2248 = vpop.f32.mrb[0].mxu0
        %v2249 = vadd.f32 %v1846, %v2248
        %v2250 = vpop.f32.mrb[0].mxu0
        %2251 = vmatprep.mubr.f32.mxu0 0.0
        %2252 = vmatmul.mubr.f32.gmra.mrb[0].mxu0 %v1045
        %v2253 = vpop.f32.mrb[0].mxu0
        %v2254 = vadd.f32 %v1851, %v2253
        %v2255 = vpop.f32.mrb[0].mxu0
        %2256 = vmatprep.mubr.f32.mxu0 0.0
        %2257 = vmatmul.mubr.f32.gmra.mrb[0].mxu0 %v1048
        %v2258 = vpop.f32.mrb[0].mxu0
        %v2259 = vadd.f32 %v1856, %v2258
        %v2260 = vpop.f32.mrb[0].mxu0
        %2261 = vmatprep.mubr.f32.mxu0 0.0
        %2262 = vmatmul.mubr.f32.gmra.mrb[0].mxu0 %v1051
        %v2263 = vpop.f32.mrb[0].mxu0
        %v2264 = vadd.f32 %v1861, %v2263
        %v2265 = vpop.f32.mrb[0].mxu0
        %2266 = vmatprep.mubr.f32.mxu0 0.0
        %2267 = vmatmul.mubr.f32.gmra.mrb[0].mxu0 %v1054
        %v2268 = vpop.f32.mrb[0].mxu0
        %v2269 = vadd.f32 %v1866, %v2268
        %v2270 = vpop.f32.mrb[0].mxu0
        %2271 = vmatprep.mubr.f32.mxu0 0.0
        %2272 = vmatmul.mubr.f32.gmra.mrb[0].mxu0 %v1057
        %v2273 = vpop.f32.mrb[0].mxu0
        %v2274 = vadd.f32 %v1871, %v2273
        %v2275 = vpop.f32.mrb[0].mxu0
        %2276 = vmatprep.mubr.f32.mxu0 0.0
        %2277 = vmatmul.mubr.f32.gmra.mrb[0].mxu0 %v1060
        %v2278 = vpop.f32.mrb[0].mxu0
        %v2279 = vadd.f32 %v1876, %v2278
        %v2280 = vpop.f32.mrb[0].mxu0
        %2281 = vmatprep.mubr.f32.mxu0 0.0
        %2282 = vmatmul.mubr.f32.gmra.mrb[0].mxu0 %v1063
        %v2283 = vpop.f32.mrb[0].mxu0
        %v2284 = vadd.f32 %v1881, %v2283
        %v2285 = vpop.f32.mrb[0].mxu0
        %2286 = vdwg.mxu0
        %v2287 = vld [vmem:[%s428 + $0x2] sm:$0xff]
        %v2288 = vld [vmem:[%s428 + $0xa] sm:$0xff]
        %v2289 = vld [vmem:[%s428 + $0x12] sm:$0xff]
        %v2290 = vld [vmem:[%s428 + $0x22] sm:$0xff]
        %v2291 = vld [vmem:[%s428 + $0x2a] sm:$0xff]
        %v2292 = vld [vmem:[%s428 + $0x32] sm:$0xff]
        %v2293 = vld [vmem:[%s428 + $0x42] sm:$0xff]
        %v2294 = vld [vmem:[%s428 + $0x4a] sm:$0xff]
        %v2295 = vld [vmem:[%s428 + $0x52] sm:$0xff]
        %v2296 = vld [vmem:[%s428 + $0x62] sm:$0xff]
        %v2297 = vld [vmem:[%s428 + $0x6a] sm:$0xff]
        %v2298 = vld [vmem:[%s428 + $0x72] sm:$0xff]
        %v2299 = vld [vmem:[%s428 + $0x82] sm:$0xff]
        %v2300 = vld [vmem:[%s428 + $0x8a] sm:$0xff]
        %v2301 = vld [vmem:[%s428 + $0x92] sm:$0xff]
        %v2302 = vld [vmem:[%s428 + $0xa2] sm:$0xff]
        %v2303 = vld [vmem:[%s428 + $0xaa] sm:$0xff]
        %v2304 = vld [vmem:[%s428 + $0xb2] sm:$0xff]
        %v2305 = vld [vmem:[%s428 + $0xc2] sm:$0xff]
        %v2306 = vld [vmem:[%s428 + $0xca] sm:$0xff]
        %v2307 = vld [vmem:[%s428 + $0xd2] sm:$0xff]
        %v2308 = vld [vmem:[%s428 + $0xe2] sm:$0xff]
        %v2309 = vld [vmem:[%s428 + $0xea] sm:$0xff]
        %v2310 = vld [vmem:[%s428 + $0xf2] sm:$0xff]
        %s2311 = scalar_lea.vmem %s1, 192
        %v2312 = vld [vmem:[%s2311] sm:$0xff]
        %v2313 = vld [vmem:[%s2311 + $0x8] sm:$0xff]
        %v2314 = vld [vmem:[%s2311 + $0x10] sm:$0xff]
        %v2315 = vld [vmem:[%s2311 + $0x18] sm:$0xff]
        %v2316 = vld [vmem:[%s2311 + $0x20] sm:$0xff]
        %v2317 = vld [vmem:[%s2311 + $0x28] sm:$0xff]
        %v2318 = vld [vmem:[%s2311 + $0x30] sm:$0xff]
        %v2319 = vld [vmem:[%s2311 + $0x38] sm:$0xff]
        %v2320 = vld [vmem:[%s2311 + $0x40] sm:$0xff]
        %v2321 = vld [vmem:[%s2311 + $0x48] sm:$0xf]
        %v2322 = vld [vmem:[%s2311 + $0x50] sm:$0xf]
        %v2323 = vld [vmem:[%s2311 + $0x58] sm:$0xf]
        %v2325 = vsel %vm516, %v2287, 0
        %v2328 = vsel %vm516, %v2288, 0
        %v2331 = vsel %vm516, %v2289, 0
        %v2334 = vsel %vm516, %v2290, 0
        %v2337 = vsel %vm516, %v2291, 0
        %v2340 = vsel %vm516, %v2292, 0
        %v2343 = vsel %vm516, %v2293, 0
        %v2346 = vsel %vm516, %v2294, 0
        %v2349 = vsel %vm516, %v2295, 0
        %v2352 = vsel %vm516, %v2296, 0
        %v2355 = vsel %vm516, %v2297, 0
        %v2358 = vsel %vm516, %v2298, 0
        %v2361 = vsel %vm516, %v2299, 0
        %v2364 = vsel %vm516, %v2300, 0
        %v2367 = vsel %vm516, %v2301, 0
        %v2370 = vsel %vm516, %v2302, 0
        %v2373 = vsel %vm516, %v2303, 0
        %v2376 = vsel %vm516, %v2304, 0
        %v2379 = vsel %vm516, %v2305, 0
        %v2382 = vsel %vm516, %v2306, 0
        %v2385 = vsel %vm516, %v2307, 0
        %v2388 = vsel %vm516, %v2308, 0
        %v2391 = vsel %vm516, %v2309, 0
        %v2394 = vsel %vm516, %v2310, 0
        %v2397 = vsel %vm589, %v2321, 0
        %v2400 = vsel %vm589, %v2322, 0
        %v2403 = vsel %vm589, %v2323, 0
        %2405 = vmatprep.subr.mxu0 %v2313
        %2406 = vmatpush1.msra.mxu0 %v2312
        %2407 = vmatprep.subr.mxu0 %v2316
        %2408 = vmatpush1.msra.mxu0 %v2315
        %2409 = vmatprep.subr.mxu0 %v2319
        %2410 = vmatpush1.msra.mxu0 %v2318
        %2411 = vmatprep.subr.mxu0 %v2400
        %2412 = vmatpush1.msra.mxu0 %v2397
        %2413 = vmatprep.subr.mxu0 0.0
        %2414 = vmatpush1.msra.mxu0 0.0
        %2415 = vmatprep.subr.mxu0 0.0
        %2416 = vmatpush1.msra.mxu0 0.0
        %2417 = vmatprep.subr.mxu0 0.0
        %2418 = vmatpush1.msra.mxu0 0.0
        %2419 = vmatprep.subr.mxu0 0.0
        %2420 = vmatpush1.msra.mxu0 0.0
        %2421 = vmatprep.subr.mxu0 0.0
        %2422 = vmatpush1.msra.mxu0 0.0
        %2423 = vmatprep.subr.mxu0 0.0
        %2424 = vmatpush1.msra.mxu0 0.0
        %2425 = vmatprep.subr.mxu0 0.0
        %2426 = vmatpush1.msra.mxu0 0.0
        %2427 = vmatprep.subr.mxu0 0.0
        %2428 = vmatpush1.msra.mxu0 0.0
        %2429 = vmatprep.subr.mxu0 0.0
        %2430 = vmatpush1.msra.mxu0 0.0
        %2431 = vmatprep.subr.mxu0 0.0
        %2432 = vmatpush1.msra.mxu0 0.0
        %2433 = vmatprep.subr.mxu0 0.0
        %2434 = vmatpush1.msra.mxu0 0.0
        %2435 = vmatprep.subr.mxu0 0.0
        %2436 = vmatpush1.msra.mxu0 0.0
        %2437 = vmatprep.subr.mxu0 0.0
        %2438 = vmatpush1.msra.mxu0 0.0
        %2439 = vmatprep.subr.mxu0 0.0
        %2440 = vmatpush1.msra.mxu0 0.0
        %2441 = vmatprep.subr.mxu0 0.0
        %2442 = vmatpush1.msra.mxu0 0.0
        %2443 = vmatprep.subr.mxu0 0.0
        %2444 = vmatpush1.msra.mxu0 0.0
        %2445 = vmatprep.subr.mxu0 0.0
        %2446 = vmatpush1.msra.mxu0 0.0
        %2447 = vmatprep.subr.mxu0 0.0
        %2448 = vmatpush1.msra.mxu0 0.0
        %2449 = vmatprep.subr.mxu0 0.0
        %2450 = vmatpush1.msra.mxu0 0.0
        %2451 = vmatprep.subr.mxu0 0.0
        %2452 = vmatpush1.msra.mxu0 0.0
        %2453 = vmatprep.subr.mxu0 0.0
        %2454 = vmatpush1.msra.mxu0 0.0
        %2455 = vmatprep.subr.mxu0 0.0
        %2456 = vmatpush1.msra.mxu0 0.0
        %2457 = vmatprep.subr.mxu0 0.0
        %2458 = vmatpush1.msra.mxu0 0.0
        %2459 = vmatprep.subr.mxu0 0.0
        %2460 = vmatpush1.msra.mxu0 0.0
        %2461 = vmatprep.subr.mxu0 0.0
        %2462 = vmatpush1.msra.mxu0 0.0
        %2463 = vmatprep.subr.mxu0 0.0
        %2464 = vmatpush1.msra.mxu0 0.0
        %2465 = vmatprep.subr.mxu0 0.0
        %2466 = vmatpush1.msra.mxu0 0.0
        %2467 = vmatprep.subr.mxu0 0.0
        %2468 = vmatpush1.msra.mxu0 0.0
        %2469 = vmatprep.mubr.f32.mxu0 0.0
        %2470 = vmatmul.mubr.f32.gmra.mrb[0].mxu0 %v2325
        %v2471 = vpop.f32.mrb[0].mxu0
        %v2472 = vadd.f32 0.0, %v2471
        %v2473 = vpop.f32.mrb[0].mxu0
        %v2474 = vadd.f32 0.0, %v2473
        %2475 = vmatprep.mubr.f32.mxu0 0.0
        %2476 = vmatmul.mubr.f32.gmra.mrb[0].mxu0 %v2328
        %v2477 = vpop.f32.mrb[0].mxu0
        %v2478 = vadd.f32 0.0, %v2477
        %v2479 = vpop.f32.mrb[0].mxu0
        %v2480 = vadd.f32 0.0, %v2479
        %2481 = vmatprep.mubr.f32.mxu0 0.0
        %2482 = vmatmul.mubr.f32.gmra.mrb[0].mxu0 %v2331
        %v2483 = vpop.f32.mrb[0].mxu0
        %v2484 = vadd.f32 0.0, %v2483
        %v2485 = vpop.f32.mrb[0].mxu0
        %v2486 = vadd.f32 0.0, %v2485
        %2487 = vmatprep.mubr.f32.mxu0 0.0
        %2488 = vmatmul.mubr.f32.gmra.mrb[0].mxu0 %v2334
        %v2489 = vpop.f32.mrb[0].mxu0
        %v2490 = vadd.f32 0.0, %v2489
        %v2491 = vpop.f32.mrb[0].mxu0
        %v2492 = vadd.f32 0.0, %v2491
        %2493 = vmatprep.mubr.f32.mxu0 0.0
        %2494 = vmatmul.mubr.f32.gmra.mrb[0].mxu0 %v2337
        %v2495 = vpop.f32.mrb[0].mxu0
        %v2496 = vadd.f32 0.0, %v2495
        %v2497 = vpop.f32.mrb[0].mxu0
        %v2498 = vadd.f32 0.0, %v2497
        %2499 = vmatprep.mubr.f32.mxu0 0.0
        %2500 = vmatmul.mubr.f32.gmra.mrb[0].mxu0 %v2340
        %v2501 = vpop.f32.mrb[0].mxu0
        %v2502 = vadd.f32 0.0, %v2501
        %v2503 = vpop.f32.mrb[0].mxu0
        %v2504 = vadd.f32 0.0, %v2503
        %2505 = vmatprep.mubr.f32.mxu0 0.0
        %2506 = vmatmul.mubr.f32.gmra.mrb[0].mxu0 %v2343
        %v2507 = vpop.f32.mrb[0].mxu0
        %v2508 = vadd.f32 0.0, %v2507
        %v2509 = vpop.f32.mrb[0].mxu0
        %v2510 = vadd.f32 0.0, %v2509
        %2511 = vmatprep.mubr.f32.mxu0 0.0
        %2512 = vmatmul.mubr.f32.gmra.mrb[0].mxu0 %v2346
        %v2513 = vpop.f32.mrb[0].mxu0
        %v2514 = vadd.f32 0.0, %v2513
        %v2515 = vpop.f32.mrb[0].mxu0
        %v2516 = vadd.f32 0.0, %v2515
        %2517 = vmatprep.mubr.f32.mxu0 0.0
        %2518 = vmatmul.mubr.f32.gmra.mrb[0].mxu0 %v2349
        %v2519 = vpop.f32.mrb[0].mxu0
        %v2520 = vadd.f32 0.0, %v2519
        %v2521 = vpop.f32.mrb[0].mxu0
        %v2522 = vadd.f32 0.0, %v2521
        %2523 = vmatprep.mubr.f32.mxu0 0.0
        %2524 = vmatmul.mubr.f32.gmra.mrb[0].mxu0 %v2352
        %v2525 = vpop.f32.mrb[0].mxu0
        %v2526 = vadd.f32 0.0, %v2525
        %v2527 = vpop.f32.mrb[0].mxu0
        %v2528 = vadd.f32 0.0, %v2527
        %2529 = vmatprep.mubr.f32.mxu0 0.0
        %2530 = vmatmul.mubr.f32.gmra.mrb[0].mxu0 %v2355
        %v2531 = vpop.f32.mrb[0].mxu0
        %v2532 = vadd.f32 0.0, %v2531
        %v2533 = vpop.f32.mrb[0].mxu0
        %v2534 = vadd.f32 0.0, %v2533
        %2535 = vmatprep.mubr.f32.mxu0 0.0
        %2536 = vmatmul.mubr.f32.gmra.mrb[0].mxu0 %v2358
        %v2537 = vpop.f32.mrb[0].mxu0
        %v2538 = vadd.f32 0.0, %v2537
        %v2539 = vpop.f32.mrb[0].mxu0
        %v2540 = vadd.f32 0.0, %v2539
        %2541 = vmatprep.mubr.f32.mxu0 0.0
        %2542 = vmatmul.mubr.f32.gmra.mrb[0].mxu0 %v2361
        %v2543 = vpop.f32.mrb[0].mxu0
        %v2544 = vadd.f32 0.0, %v2543
        %v2545 = vpop.f32.mrb[0].mxu0
        %v2546 = vadd.f32 0.0, %v2545
        %2547 = vmatprep.mubr.f32.mxu0 0.0
        %2548 = vmatmul.mubr.f32.gmra.mrb[0].mxu0 %v2364
        %v2549 = vpop.f32.mrb[0].mxu0
        %v2550 = vadd.f32 0.0, %v2549
        %v2551 = vpop.f32.mrb[0].mxu0
        %v2552 = vadd.f32 0.0, %v2551
        %2553 = vmatprep.mubr.f32.mxu0 0.0
        %2554 = vmatmul.mubr.f32.gmra.mrb[0].mxu0 %v2367
        %v2555 = vpop.f32.mrb[0].mxu0
        %v2556 = vadd.f32 0.0, %v2555
        %v2557 = vpop.f32.mrb[0].mxu0
        %v2558 = vadd.f32 0.0, %v2557
        %2559 = vmatprep.mubr.f32.mxu0 0.0
        %2560 = vmatmul.mubr.f32.gmra.mrb[0].mxu0 %v2370
        %v2561 = vpop.f32.mrb[0].mxu0
        %v2562 = vadd.f32 0.0, %v2561
        %v2563 = vpop.f32.mrb[0].mxu0
        %v2564 = vadd.f32 0.0, %v2563
        %2565 = vmatprep.mubr.f32.mxu0 0.0
        %2566 = vmatmul.mubr.f32.gmra.mrb[0].mxu0 %v2373
        %v2567 = vpop.f32.mrb[0].mxu0
        %v2568 = vadd.f32 0.0, %v2567
        %v2569 = vpop.f32.mrb[0].mxu0
        %v2570 = vadd.f32 0.0, %v2569
        %2571 = vmatprep.mubr.f32.mxu0 0.0
        %2572 = vmatmul.mubr.f32.gmra.mrb[0].mxu0 %v2376
        %v2573 = vpop.f32.mrb[0].mxu0
        %v2574 = vadd.f32 0.0, %v2573
        %v2575 = vpop.f32.mrb[0].mxu0
        %v2576 = vadd.f32 0.0, %v2575
        %2577 = vmatprep.mubr.f32.mxu0 0.0
        %2578 = vmatmul.mubr.f32.gmra.mrb[0].mxu0 %v2379
        %v2579 = vpop.f32.mrb[0].mxu0
        %v2580 = vadd.f32 0.0, %v2579
        %v2581 = vpop.f32.mrb[0].mxu0
        %v2582 = vadd.f32 0.0, %v2581
        %2583 = vmatprep.mubr.f32.mxu0 0.0
        %2584 = vmatmul.mubr.f32.gmra.mrb[0].mxu0 %v2382
        %v2585 = vpop.f32.mrb[0].mxu0
        %v2586 = vadd.f32 0.0, %v2585
        %v2587 = vpop.f32.mrb[0].mxu0
        %v2588 = vadd.f32 0.0, %v2587
        %2589 = vmatprep.mubr.f32.mxu0 0.0
        %2590 = vmatmul.mubr.f32.gmra.mrb[0].mxu0 %v2385
        %v2591 = vpop.f32.mrb[0].mxu0
        %v2592 = vadd.f32 0.0, %v2591
        %v2593 = vpop.f32.mrb[0].mxu0
        %v2594 = vadd.f32 0.0, %v2593
        %2595 = vmatprep.mubr.f32.mxu0 0.0
        %2596 = vmatmul.mubr.f32.gmra.mrb[0].mxu0 %v2388
        %v2597 = vpop.f32.mrb[0].mxu0
        %v2598 = vadd.f32 0.0, %v2597
        %v2599 = vpop.f32.mrb[0].mxu0
        %v2600 = vadd.f32 0.0, %v2599
        %2601 = vmatprep.mubr.f32.mxu0 0.0
        %2602 = vmatmul.mubr.f32.gmra.mrb[0].mxu0 %v2391
        %v2603 = vpop.f32.mrb[0].mxu0
        %v2604 = vadd.f32 0.0, %v2603
        %v2605 = vpop.f32.mrb[0].mxu0
        %v2606 = vadd.f32 0.0, %v2605
        %2607 = vmatprep.mubr.f32.mxu0 0.0
        %2608 = vmatmul.mubr.f32.gmra.mrb[0].mxu0 %v2394
        %v2609 = vpop.f32.mrb[0].mxu0
        %v2610 = vadd.f32 0.0, %v2609
        %v2611 = vpop.f32.mrb[0].mxu0
        %v2612 = vadd.f32 0.0, %v2611
        %2613 = vdwg.mxu0
        %2614 = vmatprep.subr.mxu0 0.0
        %2615 = vmatpush1.msra.mxu0 %v2314
        %2616 = vmatprep.subr.mxu0 0.0
        %2617 = vmatpush1.msra.mxu0 %v2317
        %2618 = vmatprep.subr.mxu0 0.0
        %2619 = vmatpush1.msra.mxu0 %v2320
        %2620 = vmatprep.subr.mxu0 0.0
        %2621 = vmatpush1.msra.mxu0 %v2403
        %2622 = vmatprep.subr.mxu0 0.0
        %2623 = vmatpush1.msra.mxu0 0.0
        %2624 = vmatprep.subr.mxu0 0.0
        %2625 = vmatpush1.msra.mxu0 0.0
        %2626 = vmatprep.subr.mxu0 0.0
        %2627 = vmatpush1.msra.mxu0 0.0
        %2628 = vmatprep.subr.mxu0 0.0
        %2629 = vmatpush1.msra.mxu0 0.0
        %2630 = vmatprep.subr.mxu0 0.0
        %2631 = vmatpush1.msra.mxu0 0.0
        %2632 = vmatprep.subr.mxu0 0.0
        %2633 = vmatpush1.msra.mxu0 0.0
        %2634 = vmatprep.subr.mxu0 0.0
        %2635 = vmatpush1.msra.mxu0 0.0
        %2636 = vmatprep.subr.mxu0 0.0
        %2637 = vmatpush1.msra.mxu0 0.0
        %2638 = vmatprep.subr.mxu0 0.0
        %2639 = vmatpush1.msra.mxu0 0.0
        %2640 = vmatprep.subr.mxu0 0.0
        %2641 = vmatpush1.msra.mxu0 0.0
        %2642 = vmatprep.subr.mxu0 0.0
        %2643 = vmatpush1.msra.mxu0 0.0
        %2644 = vmatprep.subr.mxu0 0.0
        %2645 = vmatpush1.msra.mxu0 0.0
        %2646 = vmatprep.subr.mxu0 0.0
        %2647 = vmatpush1.msra.mxu0 0.0
        %2648 = vmatprep.subr.mxu0 0.0
        %2649 = vmatpush1.msra.mxu0 0.0
        %2650 = vmatprep.subr.mxu0 0.0
        %2651 = vmatpush1.msra.mxu0 0.0
        %2652 = vmatprep.subr.mxu0 0.0
        %2653 = vmatpush1.msra.mxu0 0.0
        %2654 = vmatprep.subr.mxu0 0.0
        %2655 = vmatpush1.msra.mxu0 0.0
        %2656 = vmatprep.subr.mxu0 0.0
        %2657 = vmatpush1.msra.mxu0 0.0
        %2658 = vmatprep.subr.mxu0 0.0
        %2659 = vmatpush1.msra.mxu0 0.0
        %2660 = vmatprep.subr.mxu0 0.0
        %2661 = vmatpush1.msra.mxu0 0.0
        %2662 = vmatprep.subr.mxu0 0.0
        %2663 = vmatpush1.msra.mxu0 0.0
        %2664 = vmatprep.subr.mxu0 0.0
        %2665 = vmatpush1.msra.mxu0 0.0
        %2666 = vmatprep.subr.mxu0 0.0
        %2667 = vmatpush1.msra.mxu0 0.0
        %2668 = vmatprep.subr.mxu0 0.0
        %2669 = vmatpush1.msra.mxu0 0.0
        %2670 = vmatprep.subr.mxu0 0.0
        %2671 = vmatpush1.msra.mxu0 0.0
        %2672 = vmatprep.subr.mxu0 0.0
        %2673 = vmatpush1.msra.mxu0 0.0
        %2674 = vmatprep.subr.mxu0 0.0
        %2675 = vmatpush1.msra.mxu0 0.0
        %2676 = vmatprep.subr.mxu0 0.0
        %2677 = vmatpush1.msra.mxu0 0.0
        %2678 = vmatprep.mubr.f32.mxu0 0.0
        %2679 = vmatmul.mubr.f32.gmra.mrb[0].mxu0 %v2325
        %v2680 = vpop.f32.mrb[0].mxu0
        %v2681 = vadd.f32 0.0, %v2680
        %v2682 = vpop.f32.mrb[0].mxu0
        %2683 = vmatprep.mubr.f32.mxu0 0.0
        %2684 = vmatmul.mubr.f32.gmra.mrb[0].mxu0 %v2328
        %v2685 = vpop.f32.mrb[0].mxu0
        %v2686 = vadd.f32 0.0, %v2685
        %v2687 = vpop.f32.mrb[0].mxu0
        %2688 = vmatprep.mubr.f32.mxu0 0.0
        %2689 = vmatmul.mubr.f32.gmra.mrb[0].mxu0 %v2331
        %v2690 = vpop.f32.mrb[0].mxu0
        %v2691 = vadd.f32 0.0, %v2690
        %v2692 = vpop.f32.mrb[0].mxu0
        %2693 = vmatprep.mubr.f32.mxu0 0.0
        %2694 = vmatmul.mubr.f32.gmra.mrb[0].mxu0 %v2334
        %v2695 = vpop.f32.mrb[0].mxu0
        %v2696 = vadd.f32 0.0, %v2695
        %v2697 = vpop.f32.mrb[0].mxu0
        %2698 = vmatprep.mubr.f32.mxu0 0.0
        %2699 = vmatmul.mubr.f32.gmra.mrb[0].mxu0 %v2337
        %v2700 = vpop.f32.mrb[0].mxu0
        %v2701 = vadd.f32 0.0, %v2700
        %v2702 = vpop.f32.mrb[0].mxu0
        %2703 = vmatprep.mubr.f32.mxu0 0.0
        %2704 = vmatmul.mubr.f32.gmra.mrb[0].mxu0 %v2340
        %v2705 = vpop.f32.mrb[0].mxu0
        %v2706 = vadd.f32 0.0, %v2705
        %v2707 = vpop.f32.mrb[0].mxu0
        %2708 = vmatprep.mubr.f32.mxu0 0.0
        %2709 = vmatmul.mubr.f32.gmra.mrb[0].mxu0 %v2343
        %v2710 = vpop.f32.mrb[0].mxu0
        %v2711 = vadd.f32 0.0, %v2710
        %v2712 = vpop.f32.mrb[0].mxu0
        %2713 = vmatprep.mubr.f32.mxu0 0.0
        %2714 = vmatmul.mubr.f32.gmra.mrb[0].mxu0 %v2346
        %v2715 = vpop.f32.mrb[0].mxu0
        %v2716 = vadd.f32 0.0, %v2715
        %v2717 = vpop.f32.mrb[0].mxu0
        %2718 = vmatprep.mubr.f32.mxu0 0.0
        %2719 = vmatmul.mubr.f32.gmra.mrb[0].mxu0 %v2349
        %v2720 = vpop.f32.mrb[0].mxu0
        %v2721 = vadd.f32 0.0, %v2720
        %v2722 = vpop.f32.mrb[0].mxu0
        %2723 = vmatprep.mubr.f32.mxu0 0.0
        %2724 = vmatmul.mubr.f32.gmra.mrb[0].mxu0 %v2352
        %v2725 = vpop.f32.mrb[0].mxu0
        %v2726 = vadd.f32 0.0, %v2725
        %v2727 = vpop.f32.mrb[0].mxu0
        %2728 = vmatprep.mubr.f32.mxu0 0.0
        %2729 = vmatmul.mubr.f32.gmra.mrb[0].mxu0 %v2355
        %v2730 = vpop.f32.mrb[0].mxu0
        %v2731 = vadd.f32 0.0, %v2730
        %v2732 = vpop.f32.mrb[0].mxu0
        %2733 = vmatprep.mubr.f32.mxu0 0.0
        %2734 = vmatmul.mubr.f32.gmra.mrb[0].mxu0 %v2358
        %v2735 = vpop.f32.mrb[0].mxu0
        %v2736 = vadd.f32 0.0, %v2735
        %v2737 = vpop.f32.mrb[0].mxu0
        %2738 = vmatprep.mubr.f32.mxu0 0.0
        %2739 = vmatmul.mubr.f32.gmra.mrb[0].mxu0 %v2361
        %v2740 = vpop.f32.mrb[0].mxu0
        %v2741 = vadd.f32 0.0, %v2740
        %v2742 = vpop.f32.mrb[0].mxu0
        %2743 = vmatprep.mubr.f32.mxu0 0.0
        %2744 = vmatmul.mubr.f32.gmra.mrb[0].mxu0 %v2364
        %v2745 = vpop.f32.mrb[0].mxu0
        %v2746 = vadd.f32 0.0, %v2745
        %v2747 = vpop.f32.mrb[0].mxu0
        %2748 = vmatprep.mubr.f32.mxu0 0.0
        %2749 = vmatmul.mubr.f32.gmra.mrb[0].mxu0 %v2367
        %v2750 = vpop.f32.mrb[0].mxu0
        %v2751 = vadd.f32 0.0, %v2750
        %v2752 = vpop.f32.mrb[0].mxu0
        %2753 = vmatprep.mubr.f32.mxu0 0.0
        %2754 = vmatmul.mubr.f32.gmra.mrb[0].mxu0 %v2370
        %v2755 = vpop.f32.mrb[0].mxu0
        %v2756 = vadd.f32 0.0, %v2755
        %v2757 = vpop.f32.mrb[0].mxu0
        %2758 = vmatprep.mubr.f32.mxu0 0.0
        %2759 = vmatmul.mubr.f32.gmra.mrb[0].mxu0 %v2373
        %v2760 = vpop.f32.mrb[0].mxu0
        %v2761 = vadd.f32 0.0, %v2760
        %v2762 = vpop.f32.mrb[0].mxu0
        %2763 = vmatprep.mubr.f32.mxu0 0.0
        %2764 = vmatmul.mubr.f32.gmra.mrb[0].mxu0 %v2376
        %v2765 = vpop.f32.mrb[0].mxu0
        %v2766 = vadd.f32 0.0, %v2765
        %v2767 = vpop.f32.mrb[0].mxu0
        %2768 = vmatprep.mubr.f32.mxu0 0.0
        %2769 = vmatmul.mubr.f32.gmra.mrb[0].mxu0 %v2379
        %v2770 = vpop.f32.mrb[0].mxu0
        %v2771 = vadd.f32 0.0, %v2770
        %v2772 = vpop.f32.mrb[0].mxu0
        %2773 = vmatprep.mubr.f32.mxu0 0.0
        %2774 = vmatmul.mubr.f32.gmra.mrb[0].mxu0 %v2382
        %v2775 = vpop.f32.mrb[0].mxu0
        %v2776 = vadd.f32 0.0, %v2775
        %v2777 = vpop.f32.mrb[0].mxu0
        %2778 = vmatprep.mubr.f32.mxu0 0.0
        %2779 = vmatmul.mubr.f32.gmra.mrb[0].mxu0 %v2385
        %v2780 = vpop.f32.mrb[0].mxu0
        %v2781 = vadd.f32 0.0, %v2780
        %v2782 = vpop.f32.mrb[0].mxu0
        %2783 = vmatprep.mubr.f32.mxu0 0.0
        %2784 = vmatmul.mubr.f32.gmra.mrb[0].mxu0 %v2388
        %v2785 = vpop.f32.mrb[0].mxu0
        %v2786 = vadd.f32 0.0, %v2785
        %v2787 = vpop.f32.mrb[0].mxu0
        %2788 = vmatprep.mubr.f32.mxu0 0.0
        %2789 = vmatmul.mubr.f32.gmra.mrb[0].mxu0 %v2391
        %v2790 = vpop.f32.mrb[0].mxu0
        %v2791 = vadd.f32 0.0, %v2790
        %v2792 = vpop.f32.mrb[0].mxu0
        %2793 = vmatprep.mubr.f32.mxu0 0.0
        %2794 = vmatmul.mubr.f32.gmra.mrb[0].mxu0 %v2394
        %v2795 = vpop.f32.mrb[0].mxu0
        %v2796 = vadd.f32 0.0, %v2795
        %v2797 = vpop.f32.mrb[0].mxu0
        %2798 = vdwg.mxu0
        %v2799 = vadd.f32 %v1141, %v2472
        %v2800 = vadd.f32 %v1143, %v2474
        %v2801 = vadd.f32 %v1350, %v2681
        %v2802 = vadd.f32 %v1147, %v2478
        %v2803 = vadd.f32 %v1149, %v2480
        %v2804 = vadd.f32 %v1355, %v2686
        %v2805 = vadd.f32 %v1153, %v2484
        %v2806 = vadd.f32 %v1155, %v2486
        %v2807 = vadd.f32 %v1360, %v2691
        %v2808 = vadd.f32 %v1159, %v2490
        %v2809 = vadd.f32 %v1161, %v2492
        %v2810 = vadd.f32 %v1365, %v2696
        %v2811 = vadd.f32 %v1165, %v2496
        %v2812 = vadd.f32 %v1167, %v2498
        %v2813 = vadd.f32 %v1370, %v2701
        %v2814 = vadd.f32 %v1171, %v2502
        %v2815 = vadd.f32 %v1173, %v2504
        %v2816 = vadd.f32 %v1375, %v2706
        %v2817 = vadd.f32 %v1177, %v2508
        %v2818 = vadd.f32 %v1179, %v2510
        %v2819 = vadd.f32 %v1380, %v2711
        %v2820 = vadd.f32 %v1183, %v2514
        %v2821 = vadd.f32 %v1185, %v2516
        %v2822 = vadd.f32 %v1385, %v2716
        %v2823 = vadd.f32 %v1189, %v2520
        %v2824 = vadd.f32 %v1191, %v2522
        %v2825 = vadd.f32 %v1390, %v2721
        %v2826 = vadd.f32 %v1195, %v2526
        %v2827 = vadd.f32 %v1197, %v2528
        %v2828 = vadd.f32 %v1395, %v2726
        %v2829 = vadd.f32 %v1201, %v2532
        %v2830 = vadd.f32 %v1203, %v2534
        %v2831 = vadd.f32 %v1400, %v2731
        %v2832 = vadd.f32 %v1207, %v2538
        %v2833 = vadd.f32 %v1209, %v2540
        %v2834 = vadd.f32 %v1405, %v2736
        %v2835 = vadd.f32 %v1213, %v2544
        %v2836 = vadd.f32 %v1215, %v2546
        %v2837 = vadd.f32 %v1410, %v2741
        %v2838 = vadd.f32 %v1219, %v2550
        %v2839 = vadd.f32 %v1221, %v2552
        %v2840 = vadd.f32 %v1415, %v2746
        %v2841 = vadd.f32 %v1225, %v2556
        %v2842 = vadd.f32 %v1227, %v2558
        %v2843 = vadd.f32 %v1420, %v2751
        %v2844 = vadd.f32 %v1231, %v2562
        %v2845 = vadd.f32 %v1233, %v2564
        %v2846 = vadd.f32 %v1425, %v2756
        %v2847 = vadd.f32 %v1237, %v2568
        %v2848 = vadd.f32 %v1239, %v2570
        %v2849 = vadd.f32 %v1430, %v2761
        %v2850 = vadd.f32 %v1243, %v2574
        %v2851 = vadd.f32 %v1245, %v2576
        %v2852 = vadd.f32 %v1435, %v2766
        %v2853 = vadd.f32 %v1249, %v2580
        %v2854 = vadd.f32 %v1251, %v2582
        %v2855 = vadd.f32 %v1440, %v2771
        %v2856 = vadd.f32 %v1255, %v2586
        %v2857 = vadd.f32 %v1257, %v2588
        %v2858 = vadd.f32 %v1445, %v2776
        %v2859 = vadd.f32 %v1261, %v2592
        %v2860 = vadd.f32 %v1263, %v2594
        %v2861 = vadd.f32 %v1450, %v2781
        %v2862 = vadd.f32 %v1267, %v2598
        %v2863 = vadd.f32 %v1269, %v2600
        %v2864 = vadd.f32 %v1455, %v2786
        %v2865 = vadd.f32 %v1273, %v2604
        %v2866 = vadd.f32 %v1275, %v2606
        %v2867 = vadd.f32 %v1460, %v2791
        %v2868 = vadd.f32 %v1279, %v2610
        %v2869 = vadd.f32 %v1281, %v2612
        %v2870 = vadd.f32 %v1465, %v2796
        %s2871 = scalar_lea.vmem %s1, 672
        %v2872 = vld [vmem:[%s2871] sm:$0xff]
        %v2873 = vld [vmem:[%s2871 + $0x8] sm:$0xff]
        %v2874 = vld [vmem:[%s2871 + $0x10] sm:$0xff]
        %v2875 = vld [vmem:[%s2871 + $0x18] sm:$0xff]
        %v2876 = vld [vmem:[%s2871 + $0x20] sm:$0xff]
        %v2877 = vld [vmem:[%s2871 + $0x28] sm:$0xff]
        %v2878 = vld [vmem:[%s2871 + $0x30] sm:$0xff]
        %v2879 = vld [vmem:[%s2871 + $0x38] sm:$0xff]
        %v2880 = vld [vmem:[%s2871 + $0x40] sm:$0xff]
        %v2881 = vld [vmem:[%s2871 + $0x48] sm:$0xf]
        %v2882 = vld [vmem:[%s2871 + $0x50] sm:$0xf]
        %v2883 = vld [vmem:[%s2871 + $0x58] sm:$0xf]
        %v2885 = vsel %vm589, %v2881, 0
        %v2888 = vsel %vm589, %v2882, 0
        %v2891 = vsel %vm589, %v2883, 0
        %2893 = vmatprep.subr.mxu0 %v2873
        %2894 = vmatpush1.msra.mxu0 %v2872
        %2895 = vmatprep.subr.mxu0 %v2876
        %2896 = vmatpush1.msra.mxu0 %v2875
        %2897 = vmatprep.subr.mxu0 %v2879
        %2898 = vmatpush1.msra.mxu0 %v2878
        %2899 = vmatprep.subr.mxu0 %v2888
        %2900 = vmatpush1.msra.mxu0 %v2885
        %2901 = vmatprep.subr.mxu0 0.0
        %2902 = vmatpush1.msra.mxu0 0.0
        %2903 = vmatprep.subr.mxu0 0.0
        %2904 = vmatpush1.msra.mxu0 0.0
        %2905 = vmatprep.subr.mxu0 0.0
        %2906 = vmatpush1.msra.mxu0 0.0
        %2907 = vmatprep.subr.mxu0 0.0
        %2908 = vmatpush1.msra.mxu0 0.0
        %2909 = vmatprep.subr.mxu0 0.0
        %2910 = vmatpush1.msra.mxu0 0.0
        %2911 = vmatprep.subr.mxu0 0.0
        %2912 = vmatpush1.msra.mxu0 0.0
        %2913 = vmatprep.subr.mxu0 0.0
        %2914 = vmatpush1.msra.mxu0 0.0
        %2915 = vmatprep.subr.mxu0 0.0
        %2916 = vmatpush1.msra.mxu0 0.0
        %2917 = vmatprep.subr.mxu0 0.0
        %2918 = vmatpush1.msra.mxu0 0.0
        %2919 = vmatprep.subr.mxu0 0.0
        %2920 = vmatpush1.msra.mxu0 0.0
        %2921 = vmatprep.subr.mxu0 0.0
        %2922 = vmatpush1.msra.mxu0 0.0
        %2923 = vmatprep.subr.mxu0 0.0
        %2924 = vmatpush1.msra.mxu0 0.0
        %2925 = vmatprep.subr.mxu0 0.0
        %2926 = vmatpush1.msra.mxu0 0.0
        %2927 = vmatprep.subr.mxu0 0.0
        %2928 = vmatpush1.msra.mxu0 0.0
        %2929 = vmatprep.subr.mxu0 0.0
        %2930 = vmatpush1.msra.mxu0 0.0
        %2931 = vmatprep.subr.mxu0 0.0
        %2932 = vmatpush1.msra.mxu0 0.0
        %2933 = vmatprep.subr.mxu0 0.0
        %2934 = vmatpush1.msra.mxu0 0.0
        %2935 = vmatprep.subr.mxu0 0.0
        %2936 = vmatpush1.msra.mxu0 0.0
        %2937 = vmatprep.subr.mxu0 0.0
        %2938 = vmatpush1.msra.mxu0 0.0
        %2939 = vmatprep.subr.mxu0 0.0
        %2940 = vmatpush1.msra.mxu0 0.0
        %2941 = vmatprep.subr.mxu0 0.0
        %2942 = vmatpush1.msra.mxu0 0.0
        %2943 = vmatprep.subr.mxu0 0.0
        %2944 = vmatpush1.msra.mxu0 0.0
        %2945 = vmatprep.subr.mxu0 0.0
        %2946 = vmatpush1.msra.mxu0 0.0
        %2947 = vmatprep.subr.mxu0 0.0
        %2948 = vmatpush1.msra.mxu0 0.0
        %2949 = vmatprep.subr.mxu0 0.0
        %2950 = vmatpush1.msra.mxu0 0.0
        %2951 = vmatprep.subr.mxu0 0.0
        %2952 = vmatpush1.msra.mxu0 0.0
        %2953 = vmatprep.subr.mxu0 0.0
        %2954 = vmatpush1.msra.mxu0 0.0
        %2955 = vmatprep.subr.mxu0 0.0
        %2956 = vmatpush1.msra.mxu0 0.0
        %2957 = vmatprep.mubr.f32.mxu0 0.0
        %2958 = vmatmul.mubr.f32.gmra.mrb[0].mxu0 %v2325
        %v2959 = vpop.f32.mrb[0].mxu0
        %v2960 = vadd.f32 0.0, %v2959
        %v2961 = vpop.f32.mrb[0].mxu0
        %v2962 = vadd.f32 0.0, %v2961
        %2963 = vmatprep.mubr.f32.mxu0 0.0
        %2964 = vmatmul.mubr.f32.gmra.mrb[0].mxu0 %v2328
        %v2965 = vpop.f32.mrb[0].mxu0
        %v2966 = vadd.f32 0.0, %v2965
        %v2967 = vpop.f32.mrb[0].mxu0
        %v2968 = vadd.f32 0.0, %v2967
        %2969 = vmatprep.mubr.f32.mxu0 0.0
        %2970 = vmatmul.mubr.f32.gmra.mrb[0].mxu0 %v2331
        %v2971 = vpop.f32.mrb[0].mxu0
        %v2972 = vadd.f32 0.0, %v2971
        %v2973 = vpop.f32.mrb[0].mxu0
        %v2974 = vadd.f32 0.0, %v2973
        %2975 = vmatprep.mubr.f32.mxu0 0.0
        %2976 = vmatmul.mubr.f32.gmra.mrb[0].mxu0 %v2334
        %v2977 = vpop.f32.mrb[0].mxu0
        %v2978 = vadd.f32 0.0, %v2977
        %v2979 = vpop.f32.mrb[0].mxu0
        %v2980 = vadd.f32 0.0, %v2979
        %2981 = vmatprep.mubr.f32.mxu0 0.0
        %2982 = vmatmul.mubr.f32.gmra.mrb[0].mxu0 %v2337
        %v2983 = vpop.f32.mrb[0].mxu0
        %v2984 = vadd.f32 0.0, %v2983
        %v2985 = vpop.f32.mrb[0].mxu0
        %v2986 = vadd.f32 0.0, %v2985
        %2987 = vmatprep.mubr.f32.mxu0 0.0
        %2988 = vmatmul.mubr.f32.gmra.mrb[0].mxu0 %v2340
        %v2989 = vpop.f32.mrb[0].mxu0
        %v2990 = vadd.f32 0.0, %v2989
        %v2991 = vpop.f32.mrb[0].mxu0
        %v2992 = vadd.f32 0.0, %v2991
        %2993 = vmatprep.mubr.f32.mxu0 0.0
        %2994 = vmatmul.mubr.f32.gmra.mrb[0].mxu0 %v2343
        %v2995 = vpop.f32.mrb[0].mxu0
        %v2996 = vadd.f32 0.0, %v2995
        %v2997 = vpop.f32.mrb[0].mxu0
        %v2998 = vadd.f32 0.0, %v2997
        %2999 = vmatprep.mubr.f32.mxu0 0.0
        %3000 = vmatmul.mubr.f32.gmra.mrb[0].mxu0 %v2346
        %v3001 = vpop.f32.mrb[0].mxu0
        %v3002 = vadd.f32 0.0, %v3001
        %v3003 = vpop.f32.mrb[0].mxu0
        %v3004 = vadd.f32 0.0, %v3003
        %3005 = vmatprep.mubr.f32.mxu0 0.0
        %3006 = vmatmul.mubr.f32.gmra.mrb[0].mxu0 %v2349
        %v3007 = vpop.f32.mrb[0].mxu0
        %v3008 = vadd.f32 0.0, %v3007
        %v3009 = vpop.f32.mrb[0].mxu0
        %v3010 = vadd.f32 0.0, %v3009
        %3011 = vmatprep.mubr.f32.mxu0 0.0
        %3012 = vmatmul.mubr.f32.gmra.mrb[0].mxu0 %v2352
        %v3013 = vpop.f32.mrb[0].mxu0
        %v3014 = vadd.f32 0.0, %v3013
        %v3015 = vpop.f32.mrb[0].mxu0
        %v3016 = vadd.f32 0.0, %v3015
        %3017 = vmatprep.mubr.f32.mxu0 0.0
        %3018 = vmatmul.mubr.f32.gmra.mrb[0].mxu0 %v2355
        %v3019 = vpop.f32.mrb[0].mxu0
        %v3020 = vadd.f32 0.0, %v3019
        %v3021 = vpop.f32.mrb[0].mxu0
        %v3022 = vadd.f32 0.0, %v3021
        %3023 = vmatprep.mubr.f32.mxu0 0.0
        %3024 = vmatmul.mubr.f32.gmra.mrb[0].mxu0 %v2358
        %v3025 = vpop.f32.mrb[0].mxu0
        %v3026 = vadd.f32 0.0, %v3025
        %v3027 = vpop.f32.mrb[0].mxu0
        %v3028 = vadd.f32 0.0, %v3027
        %3029 = vmatprep.mubr.f32.mxu0 0.0
        %3030 = vmatmul.mubr.f32.gmra.mrb[0].mxu0 %v2361
        %v3031 = vpop.f32.mrb[0].mxu0
        %v3032 = vadd.f32 0.0, %v3031
        %v3033 = vpop.f32.mrb[0].mxu0
        %v3034 = vadd.f32 0.0, %v3033
        %3035 = vmatprep.mubr.f32.mxu0 0.0
        %3036 = vmatmul.mubr.f32.gmra.mrb[0].mxu0 %v2364
        %v3037 = vpop.f32.mrb[0].mxu0
        %v3038 = vadd.f32 0.0, %v3037
        %v3039 = vpop.f32.mrb[0].mxu0
        %v3040 = vadd.f32 0.0, %v3039
        %3041 = vmatprep.mubr.f32.mxu0 0.0
        %3042 = vmatmul.mubr.f32.gmra.mrb[0].mxu0 %v2367
        %v3043 = vpop.f32.mrb[0].mxu0
        %v3044 = vadd.f32 0.0, %v3043
        %v3045 = vpop.f32.mrb[0].mxu0
        %v3046 = vadd.f32 0.0, %v3045
        %3047 = vmatprep.mubr.f32.mxu0 0.0
        %3048 = vmatmul.mubr.f32.gmra.mrb[0].mxu0 %v2370
        %v3049 = vpop.f32.mrb[0].mxu0
        %v3050 = vadd.f32 0.0, %v3049
        %v3051 = vpop.f32.mrb[0].mxu0
        %v3052 = vadd.f32 0.0, %v3051
        %3053 = vmatprep.mubr.f32.mxu0 0.0
        %3054 = vmatmul.mubr.f32.gmra.mrb[0].mxu0 %v2373
        %v3055 = vpop.f32.mrb[0].mxu0
        %v3056 = vadd.f32 0.0, %v3055
        %v3057 = vpop.f32.mrb[0].mxu0
        %v3058 = vadd.f32 0.0, %v3057
        %3059 = vmatprep.mubr.f32.mxu0 0.0
        %3060 = vmatmul.mubr.f32.gmra.mrb[0].mxu0 %v2376
        %v3061 = vpop.f32.mrb[0].mxu0
        %v3062 = vadd.f32 0.0, %v3061
        %v3063 = vpop.f32.mrb[0].mxu0
        %v3064 = vadd.f32 0.0, %v3063
        %3065 = vmatprep.mubr.f32.mxu0 0.0
        %3066 = vmatmul.mubr.f32.gmra.mrb[0].mxu0 %v2379
        %v3067 = vpop.f32.mrb[0].mxu0
        %v3068 = vadd.f32 0.0, %v3067
        %v3069 = vpop.f32.mrb[0].mxu0
        %v3070 = vadd.f32 0.0, %v3069
        %3071 = vmatprep.mubr.f32.mxu0 0.0
        %3072 = vmatmul.mubr.f32.gmra.mrb[0].mxu0 %v2382
        %v3073 = vpop.f32.mrb[0].mxu0
        %v3074 = vadd.f32 0.0, %v3073
        %v3075 = vpop.f32.mrb[0].mxu0
        %v3076 = vadd.f32 0.0, %v3075
        %3077 = vmatprep.mubr.f32.mxu0 0.0
        %3078 = vmatmul.mubr.f32.gmra.mrb[0].mxu0 %v2385
        %v3079 = vpop.f32.mrb[0].mxu0
        %v3080 = vadd.f32 0.0, %v3079
        %v3081 = vpop.f32.mrb[0].mxu0
        %v3082 = vadd.f32 0.0, %v3081
        %3083 = vmatprep.mubr.f32.mxu0 0.0
        %3084 = vmatmul.mubr.f32.gmra.mrb[0].mxu0 %v2388
        %v3085 = vpop.f32.mrb[0].mxu0
        %v3086 = vadd.f32 0.0, %v3085
        %v3087 = vpop.f32.mrb[0].mxu0
        %v3088 = vadd.f32 0.0, %v3087
        %3089 = vmatprep.mubr.f32.mxu0 0.0
        %3090 = vmatmul.mubr.f32.gmra.mrb[0].mxu0 %v2391
        %v3091 = vpop.f32.mrb[0].mxu0
        %v3092 = vadd.f32 0.0, %v3091
        %v3093 = vpop.f32.mrb[0].mxu0
        %v3094 = vadd.f32 0.0, %v3093
        %3095 = vmatprep.mubr.f32.mxu0 0.0
        %3096 = vmatmul.mubr.f32.gmra.mrb[0].mxu0 %v2394
        %v3097 = vpop.f32.mrb[0].mxu0
        %v3098 = vadd.f32 0.0, %v3097
        %v3099 = vpop.f32.mrb[0].mxu0
        %v3100 = vadd.f32 0.0, %v3099
        %3101 = vdwg.mxu0
        %3102 = vmatprep.subr.mxu0 0.0
        %3103 = vmatpush1.msra.mxu0 %v2874
        %3104 = vmatprep.subr.mxu0 0.0
        %3105 = vmatpush1.msra.mxu0 %v2877
        %3106 = vmatprep.subr.mxu0 0.0
        %3107 = vmatpush1.msra.mxu0 %v2880
        %3108 = vmatprep.subr.mxu0 0.0
        %3109 = vmatpush1.msra.mxu0 %v2891
        %3110 = vmatprep.subr.mxu0 0.0
        %3111 = vmatpush1.msra.mxu0 0.0
        %3112 = vmatprep.subr.mxu0 0.0
        %3113 = vmatpush1.msra.mxu0 0.0
        %3114 = vmatprep.subr.mxu0 0.0
        %3115 = vmatpush1.msra.mxu0 0.0
        %3116 = vmatprep.subr.mxu0 0.0
        %3117 = vmatpush1.msra.mxu0 0.0
        %3118 = vmatprep.subr.mxu0 0.0
        %3119 = vmatpush1.msra.mxu0 0.0
        %3120 = vmatprep.subr.mxu0 0.0
        %3121 = vmatpush1.msra.mxu0 0.0
        %3122 = vmatprep.subr.mxu0 0.0
        %3123 = vmatpush1.msra.mxu0 0.0
        %3124 = vmatprep.subr.mxu0 0.0
        %3125 = vmatpush1.msra.mxu0 0.0
        %3126 = vmatprep.subr.mxu0 0.0
        %3127 = vmatpush1.msra.mxu0 0.0
        %3128 = vmatprep.subr.mxu0 0.0
        %3129 = vmatpush1.msra.mxu0 0.0
        %3130 = vmatprep.subr.mxu0 0.0
        %3131 = vmatpush1.msra.mxu0 0.0
        %3132 = vmatprep.subr.mxu0 0.0
        %3133 = vmatpush1.msra.mxu0 0.0
        %3134 = vmatprep.subr.mxu0 0.0
        %3135 = vmatpush1.msra.mxu0 0.0
        %3136 = vmatprep.subr.mxu0 0.0
        %3137 = vmatpush1.msra.mxu0 0.0
        %3138 = vmatprep.subr.mxu0 0.0
        %3139 = vmatpush1.msra.mxu0 0.0
        %3140 = vmatprep.subr.mxu0 0.0
        %3141 = vmatpush1.msra.mxu0 0.0
        %3142 = vmatprep.subr.mxu0 0.0
        %3143 = vmatpush1.msra.mxu0 0.0
        %3144 = vmatprep.subr.mxu0 0.0
        %3145 = vmatpush1.msra.mxu0 0.0
        %3146 = vmatprep.subr.mxu0 0.0
        %3147 = vmatpush1.msra.mxu0 0.0
        %3148 = vmatprep.subr.mxu0 0.0
        %3149 = vmatpush1.msra.mxu0 0.0
        %3150 = vmatprep.subr.mxu0 0.0
        %3151 = vmatpush1.msra.mxu0 0.0
        %3152 = vmatprep.subr.mxu0 0.0
        %3153 = vmatpush1.msra.mxu0 0.0
        %3154 = vmatprep.subr.mxu0 0.0
        %3155 = vmatpush1.msra.mxu0 0.0
        %3156 = vmatprep.subr.mxu0 0.0
        %3157 = vmatpush1.msra.mxu0 0.0
        %3158 = vmatprep.subr.mxu0 0.0
        %3159 = vmatpush1.msra.mxu0 0.0
        %3160 = vmatprep.subr.mxu0 0.0
        %3161 = vmatpush1.msra.mxu0 0.0
        %3162 = vmatprep.subr.mxu0 0.0
        %3163 = vmatpush1.msra.mxu0 0.0
        %3164 = vmatprep.subr.mxu0 0.0
        %3165 = vmatpush1.msra.mxu0 0.0
        %3166 = vmatprep.mubr.f32.mxu0 0.0
        %3167 = vmatmul.mubr.f32.gmra.mrb[0].mxu0 %v2325
        %v3168 = vpop.f32.mrb[0].mxu0
        %v3169 = vadd.f32 0.0, %v3168
        %v3170 = vpop.f32.mrb[0].mxu0
        %3171 = vmatprep.mubr.f32.mxu0 0.0
        %3172 = vmatmul.mubr.f32.gmra.mrb[0].mxu0 %v2328
        %v3173 = vpop.f32.mrb[0].mxu0
        %v3174 = vadd.f32 0.0, %v3173
        %v3175 = vpop.f32.mrb[0].mxu0
        %3176 = vmatprep.mubr.f32.mxu0 0.0
        %3177 = vmatmul.mubr.f32.gmra.mrb[0].mxu0 %v2331
        %v3178 = vpop.f32.mrb[0].mxu0
        %v3179 = vadd.f32 0.0, %v3178
        %v3180 = vpop.f32.mrb[0].mxu0
        %3181 = vmatprep.mubr.f32.mxu0 0.0
        %3182 = vmatmul.mubr.f32.gmra.mrb[0].mxu0 %v2334
        %v3183 = vpop.f32.mrb[0].mxu0
        %v3184 = vadd.f32 0.0, %v3183
        %v3185 = vpop.f32.mrb[0].mxu0
        %3186 = vmatprep.mubr.f32.mxu0 0.0
        %3187 = vmatmul.mubr.f32.gmra.mrb[0].mxu0 %v2337
        %v3188 = vpop.f32.mrb[0].mxu0
        %v3189 = vadd.f32 0.0, %v3188
        %v3190 = vpop.f32.mrb[0].mxu0
        %3191 = vmatprep.mubr.f32.mxu0 0.0
        %3192 = vmatmul.mubr.f32.gmra.mrb[0].mxu0 %v2340
        %v3193 = vpop.f32.mrb[0].mxu0
        %v3194 = vadd.f32 0.0, %v3193
        %v3195 = vpop.f32.mrb[0].mxu0
        %3196 = vmatprep.mubr.f32.mxu0 0.0
        %3197 = vmatmul.mubr.f32.gmra.mrb[0].mxu0 %v2343
        %v3198 = vpop.f32.mrb[0].mxu0
        %v3199 = vadd.f32 0.0, %v3198
        %v3200 = vpop.f32.mrb[0].mxu0
        %3201 = vmatprep.mubr.f32.mxu0 0.0
        %3202 = vmatmul.mubr.f32.gmra.mrb[0].mxu0 %v2346
        %v3203 = vpop.f32.mrb[0].mxu0
        %v3204 = vadd.f32 0.0, %v3203
        %v3205 = vpop.f32.mrb[0].mxu0
        %3206 = vmatprep.mubr.f32.mxu0 0.0
        %3207 = vmatmul.mubr.f32.gmra.mrb[0].mxu0 %v2349
        %v3208 = vpop.f32.mrb[0].mxu0
        %v3209 = vadd.f32 0.0, %v3208
        %v3210 = vpop.f32.mrb[0].mxu0
        %3211 = vmatprep.mubr.f32.mxu0 0.0
        %3212 = vmatmul.mubr.f32.gmra.mrb[0].mxu0 %v2352
        %v3213 = vpop.f32.mrb[0].mxu0
        %v3214 = vadd.f32 0.0, %v3213
        %v3215 = vpop.f32.mrb[0].mxu0
        %3216 = vmatprep.mubr.f32.mxu0 0.0
        %3217 = vmatmul.mubr.f32.gmra.mrb[0].mxu0 %v2355
        %v3218 = vpop.f32.mrb[0].mxu0
        %v3219 = vadd.f32 0.0, %v3218
        %v3220 = vpop.f32.mrb[0].mxu0
        %3221 = vmatprep.mubr.f32.mxu0 0.0
        %3222 = vmatmul.mubr.f32.gmra.mrb[0].mxu0 %v2358
        %v3223 = vpop.f32.mrb[0].mxu0
        %v3224 = vadd.f32 0.0, %v3223
        %v3225 = vpop.f32.mrb[0].mxu0
        %3226 = vmatprep.mubr.f32.mxu0 0.0
        %3227 = vmatmul.mubr.f32.gmra.mrb[0].mxu0 %v2361
        %v3228 = vpop.f32.mrb[0].mxu0
        %v3229 = vadd.f32 0.0, %v3228
        %v3230 = vpop.f32.mrb[0].mxu0
        %3231 = vmatprep.mubr.f32.mxu0 0.0
        %3232 = vmatmul.mubr.f32.gmra.mrb[0].mxu0 %v2364
        %v3233 = vpop.f32.mrb[0].mxu0
        %v3234 = vadd.f32 0.0, %v3233
        %v3235 = vpop.f32.mrb[0].mxu0
        %3236 = vmatprep.mubr.f32.mxu0 0.0
        %3237 = vmatmul.mubr.f32.gmra.mrb[0].mxu0 %v2367
        %v3238 = vpop.f32.mrb[0].mxu0
        %v3239 = vadd.f32 0.0, %v3238
        %v3240 = vpop.f32.mrb[0].mxu0
        %3241 = vmatprep.mubr.f32.mxu0 0.0
        %3242 = vmatmul.mubr.f32.gmra.mrb[0].mxu0 %v2370
        %v3243 = vpop.f32.mrb[0].mxu0
        %v3244 = vadd.f32 0.0, %v3243
        %v3245 = vpop.f32.mrb[0].mxu0
        %3246 = vmatprep.mubr.f32.mxu0 0.0
        %3247 = vmatmul.mubr.f32.gmra.mrb[0].mxu0 %v2373
        %v3248 = vpop.f32.mrb[0].mxu0
        %v3249 = vadd.f32 0.0, %v3248
        %v3250 = vpop.f32.mrb[0].mxu0
        %3251 = vmatprep.mubr.f32.mxu0 0.0
        %3252 = vmatmul.mubr.f32.gmra.mrb[0].mxu0 %v2376
        %v3253 = vpop.f32.mrb[0].mxu0
        %v3254 = vadd.f32 0.0, %v3253
        %v3255 = vpop.f32.mrb[0].mxu0
        %3256 = vmatprep.mubr.f32.mxu0 0.0
        %3257 = vmatmul.mubr.f32.gmra.mrb[0].mxu0 %v2379
        %v3258 = vpop.f32.mrb[0].mxu0
        %v3259 = vadd.f32 0.0, %v3258
        %v3260 = vpop.f32.mrb[0].mxu0
        %3261 = vmatprep.mubr.f32.mxu0 0.0
        %3262 = vmatmul.mubr.f32.gmra.mrb[0].mxu0 %v2382
        %v3263 = vpop.f32.mrb[0].mxu0
        %v3264 = vadd.f32 0.0, %v3263
        %v3265 = vpop.f32.mrb[0].mxu0
        %3266 = vmatprep.mubr.f32.mxu0 0.0
        %3267 = vmatmul.mubr.f32.gmra.mrb[0].mxu0 %v2385
        %v3268 = vpop.f32.mrb[0].mxu0
        %v3269 = vadd.f32 0.0, %v3268
        %v3270 = vpop.f32.mrb[0].mxu0
        %3271 = vmatprep.mubr.f32.mxu0 0.0
        %3272 = vmatmul.mubr.f32.gmra.mrb[0].mxu0 %v2388
        %v3273 = vpop.f32.mrb[0].mxu0
        %v3274 = vadd.f32 0.0, %v3273
        %v3275 = vpop.f32.mrb[0].mxu0
        %3276 = vmatprep.mubr.f32.mxu0 0.0
        %3277 = vmatmul.mubr.f32.gmra.mrb[0].mxu0 %v2391
        %v3278 = vpop.f32.mrb[0].mxu0
        %v3279 = vadd.f32 0.0, %v3278
        %v3280 = vpop.f32.mrb[0].mxu0
        %3281 = vmatprep.mubr.f32.mxu0 0.0
        %3282 = vmatmul.mubr.f32.gmra.mrb[0].mxu0 %v2394
        %v3283 = vpop.f32.mrb[0].mxu0
        %v3284 = vadd.f32 0.0, %v3283
        %v3285 = vpop.f32.mrb[0].mxu0
        %3286 = vdwg.mxu0
        %v3287 = vadd.f32 %v1960, %v2960
        %v3288 = vadd.f32 %v1962, %v2962
        %v3289 = vadd.f32 %v2169, %v3169
        %v3290 = vadd.f32 %v1966, %v2966
        %v3291 = vadd.f32 %v1968, %v2968
        %v3292 = vadd.f32 %v2174, %v3174
        %v3293 = vadd.f32 %v1972, %v2972
        %v3294 = vadd.f32 %v1974, %v2974
        %v3295 = vadd.f32 %v2179, %v3179
        %v3296 = vadd.f32 %v1978, %v2978
        %v3297 = vadd.f32 %v1980, %v2980
        %v3298 = vadd.f32 %v2184, %v3184
        %v3299 = vadd.f32 %v1984, %v2984
        %v3300 = vadd.f32 %v1986, %v2986
        %v3301 = vadd.f32 %v2189, %v3189
        %v3302 = vadd.f32 %v1990, %v2990
        %v3303 = vadd.f32 %v1992, %v2992
        %v3304 = vadd.f32 %v2194, %v3194
        %v3305 = vadd.f32 %v1996, %v2996
        %v3306 = vadd.f32 %v1998, %v2998
        %v3307 = vadd.f32 %v2199, %v3199
        %v3308 = vadd.f32 %v2002, %v3002
        %v3309 = vadd.f32 %v2004, %v3004
        %v3310 = vadd.f32 %v2204, %v3204
        %v3311 = vadd.f32 %v2008, %v3008
        %v3312 = vadd.f32 %v2010, %v3010
        %v3313 = vadd.f32 %v2209, %v3209
        %v3314 = vadd.f32 %v2014, %v3014
        %v3315 = vadd.f32 %v2016, %v3016
        %v3316 = vadd.f32 %v2214, %v3214
        %v3317 = vadd.f32 %v2020, %v3020
        %v3318 = vadd.f32 %v2022, %v3022
        %v3319 = vadd.f32 %v2219, %v3219
        %v3320 = vadd.f32 %v2026, %v3026
        %v3321 = vadd.f32 %v2028, %v3028
        %v3322 = vadd.f32 %v2224, %v3224
        %v3323 = vadd.f32 %v2032, %v3032
        %v3324 = vadd.f32 %v2034, %v3034
        %v3325 = vadd.f32 %v2229, %v3229
        %v3326 = vadd.f32 %v2038, %v3038
        %v3327 = vadd.f32 %v2040, %v3040
        %v3328 = vadd.f32 %v2234, %v3234
        %v3329 = vadd.f32 %v2044, %v3044
        %v3330 = vadd.f32 %v2046, %v3046
        %v3331 = vadd.f32 %v2239, %v3239
        %v3332 = vadd.f32 %v2050, %v3050
        %v3333 = vadd.f32 %v2052, %v3052
        %v3334 = vadd.f32 %v2244, %v3244
        %v3335 = vadd.f32 %v2056, %v3056
        %v3336 = vadd.f32 %v2058, %v3058
        %v3337 = vadd.f32 %v2249, %v3249
        %v3338 = vadd.f32 %v2062, %v3062
        %v3339 = vadd.f32 %v2064, %v3064
        %v3340 = vadd.f32 %v2254, %v3254
        %v3341 = vadd.f32 %v2068, %v3068
        %v3342 = vadd.f32 %v2070, %v3070
        %v3343 = vadd.f32 %v2259, %v3259
        %v3344 = vadd.f32 %v2074, %v3074
        %v3345 = vadd.f32 %v2076, %v3076
        %v3346 = vadd.f32 %v2264, %v3264
        %v3347 = vadd.f32 %v2080, %v3080
        %v3348 = vadd.f32 %v2082, %v3082
        %v3349 = vadd.f32 %v2269, %v3269
        %v3350 = vadd.f32 %v2086, %v3086
        %v3351 = vadd.f32 %v2088, %v3088
        %v3352 = vadd.f32 %v2274, %v3274
        %v3353 = vadd.f32 %v2092, %v3092
        %v3354 = vadd.f32 %v2094, %v3094
        %v3355 = vadd.f32 %v2279, %v3279
        %v3356 = vadd.f32 %v2098, %v3098
        %v3357 = vadd.f32 %v2100, %v3100
        %v3358 = vadd.f32 %v2284, %v3284
        %v3359 = vld [vmem:[%s428 + $0x3] sm:$0xff]
        %v3360 = vld [vmem:[%s428 + $0xb] sm:$0xff]
        %v3361 = vld [vmem:[%s428 + $0x13] sm:$0xff]
        %v3362 = vld [vmem:[%s428 + $0x23] sm:$0xff]
        %v3363 = vld [vmem:[%s428 + $0x2b] sm:$0xff]
        %v3364 = vld [vmem:[%s428 + $0x33] sm:$0xff]
        %v3365 = vld [vmem:[%s428 + $0x43] sm:$0xff]
        %v3366 = vld [vmem:[%s428 + $0x4b] sm:$0xff]
        %v3367 = vld [vmem:[%s428 + $0x53] sm:$0xff]
        %v3368 = vld [vmem:[%s428 + $0x63] sm:$0xff]
        %v3369 = vld [vmem:[%s428 + $0x6b] sm:$0xff]
        %v3370 = vld [vmem:[%s428 + $0x73] sm:$0xff]
        %v3371 = vld [vmem:[%s428 + $0x83] sm:$0xff]
        %v3372 = vld [vmem:[%s428 + $0x8b] sm:$0xff]
        %v3373 = vld [vmem:[%s428 + $0x93] sm:$0xff]
        %v3374 = vld [vmem:[%s428 + $0xa3] sm:$0xff]
        %v3375 = vld [vmem:[%s428 + $0xab] sm:$0xff]
        %v3376 = vld [vmem:[%s428 + $0xb3] sm:$0xff]
        %v3377 = vld [vmem:[%s428 + $0xc3] sm:$0xff]
        %v3378 = vld [vmem:[%s428 + $0xcb] sm:$0xff]
        %v3379 = vld [vmem:[%s428 + $0xd3] sm:$0xff]
        %v3380 = vld [vmem:[%s428 + $0xe3] sm:$0xff]
        %v3381 = vld [vmem:[%s428 + $0xeb] sm:$0xff]
        %v3382 = vld [vmem:[%s428 + $0xf3] sm:$0xff]
        %s3383 = scalar_lea.vmem %s1, 288
        %v3384 = vld [vmem:[%s3383] sm:$0xff]
        %v3385 = vld [vmem:[%s3383 + $0x8] sm:$0xff]
        %v3386 = vld [vmem:[%s3383 + $0x10] sm:$0xff]
        %v3387 = vld [vmem:[%s3383 + $0x18] sm:$0xff]
        %v3388 = vld [vmem:[%s3383 + $0x20] sm:$0xff]
        %v3389 = vld [vmem:[%s3383 + $0x28] sm:$0xff]
        %v3390 = vld [vmem:[%s3383 + $0x30] sm:$0xff]
        %v3391 = vld [vmem:[%s3383 + $0x38] sm:$0xff]
        %v3392 = vld [vmem:[%s3383 + $0x40] sm:$0xff]
        %v3393 = vld [vmem:[%s3383 + $0x48] sm:$0xf]
        %v3394 = vld [vmem:[%s3383 + $0x50] sm:$0xf]
        %v3395 = vld [vmem:[%s3383 + $0x58] sm:$0xf]
        %v3397 = vsel %vm516, %v3359, 0
        %v3400 = vsel %vm516, %v3360, 0
        %v3403 = vsel %vm516, %v3361, 0
        %v3406 = vsel %vm516, %v3362, 0
        %v3409 = vsel %vm516, %v3363, 0
        %v3412 = vsel %vm516, %v3364, 0
        %v3415 = vsel %vm516, %v3365, 0
        %v3418 = vsel %vm516, %v3366, 0
        %v3421 = vsel %vm516, %v3367, 0
        %v3424 = vsel %vm516, %v3368, 0
        %v3427 = vsel %vm516, %v3369, 0
        %v3430 = vsel %vm516, %v3370, 0
        %v3433 = vsel %vm516, %v3371, 0
        %v3436 = vsel %vm516, %v3372, 0
        %v3439 = vsel %vm516, %v3373, 0
        %v3442 = vsel %vm516, %v3374, 0
        %v3445 = vsel %vm516, %v3375, 0
        %v3448 = vsel %vm516, %v3376, 0
        %v3451 = vsel %vm516, %v3377, 0
        %v3454 = vsel %vm516, %v3378, 0
        %v3457 = vsel %vm516, %v3379, 0
        %v3460 = vsel %vm516, %v3380, 0
        %v3463 = vsel %vm516, %v3381, 0
        %v3466 = vsel %vm516, %v3382, 0
        %v3469 = vsel %vm589, %v3393, 0
        %v3472 = vsel %vm589, %v3394, 0
        %v3475 = vsel %vm589, %v3395, 0
        %3477 = vmatprep.subr.mxu0 %v3385
        %3478 = vmatpush1.msra.mxu0 %v3384
        %3479 = vmatprep.subr.mxu0 %v3388
        %3480 = vmatpush1.msra.mxu0 %v3387
        %3481 = vmatprep.subr.mxu0 %v3391
        %3482 = vmatpush1.msra.mxu0 %v3390
        %3483 = vmatprep.subr.mxu0 %v3472
        %3484 = vmatpush1.msra.mxu0 %v3469
        %3485 = vmatprep.subr.mxu0 0.0
        %3486 = vmatpush1.msra.mxu0 0.0
        %3487 = vmatprep.subr.mxu0 0.0
        %3488 = vmatpush1.msra.mxu0 0.0
        %3489 = vmatprep.subr.mxu0 0.0
        %3490 = vmatpush1.msra.mxu0 0.0
        %3491 = vmatprep.subr.mxu0 0.0
        %3492 = vmatpush1.msra.mxu0 0.0
        %3493 = vmatprep.subr.mxu0 0.0
        %3494 = vmatpush1.msra.mxu0 0.0
        %3495 = vmatprep.subr.mxu0 0.0
        %3496 = vmatpush1.msra.mxu0 0.0
        %3497 = vmatprep.subr.mxu0 0.0
        %3498 = vmatpush1.msra.mxu0 0.0
        %3499 = vmatprep.subr.mxu0 0.0
        %3500 = vmatpush1.msra.mxu0 0.0
        %3501 = vmatprep.subr.mxu0 0.0
        %3502 = vmatpush1.msra.mxu0 0.0
        %3503 = vmatprep.subr.mxu0 0.0
        %3504 = vmatpush1.msra.mxu0 0.0
        %3505 = vmatprep.subr.mxu0 0.0
        %3506 = vmatpush1.msra.mxu0 0.0
        %3507 = vmatprep.subr.mxu0 0.0
        %3508 = vmatpush1.msra.mxu0 0.0
        %3509 = vmatprep.subr.mxu0 0.0
        %3510 = vmatpush1.msra.mxu0 0.0
        %3511 = vmatprep.subr.mxu0 0.0
        %3512 = vmatpush1.msra.mxu0 0.0
        %3513 = vmatprep.subr.mxu0 0.0
        %3514 = vmatpush1.msra.mxu0 0.0
        %3515 = vmatprep.subr.mxu0 0.0
        %3516 = vmatpush1.msra.mxu0 0.0
        %3517 = vmatprep.subr.mxu0 0.0
        %3518 = vmatpush1.msra.mxu0 0.0
        %3519 = vmatprep.subr.mxu0 0.0
        %3520 = vmatpush1.msra.mxu0 0.0
        %3521 = vmatprep.subr.mxu0 0.0
        %3522 = vmatpush1.msra.mxu0 0.0
        %3523 = vmatprep.subr.mxu0 0.0
        %3524 = vmatpush1.msra.mxu0 0.0
        %3525 = vmatprep.subr.mxu0 0.0
        %3526 = vmatpush1.msra.mxu0 0.0
        %3527 = vmatprep.subr.mxu0 0.0
        %3528 = vmatpush1.msra.mxu0 0.0
        %3529 = vmatprep.subr.mxu0 0.0
        %3530 = vmatpush1.msra.mxu0 0.0
        %3531 = vmatprep.subr.mxu0 0.0
        %3532 = vmatpush1.msra.mxu0 0.0
        %3533 = vmatprep.subr.mxu0 0.0
        %3534 = vmatpush1.msra.mxu0 0.0
        %3535 = vmatprep.subr.mxu0 0.0
        %3536 = vmatpush1.msra.mxu0 0.0
        %3537 = vmatprep.subr.mxu0 0.0
        %3538 = vmatpush1.msra.mxu0 0.0
        %3539 = vmatprep.subr.mxu0 0.0
        %3540 = vmatpush1.msra.mxu0 0.0
        %3541 = vmatprep.mubr.f32.mxu0 0.0
        %3542 = vmatmul.mubr.f32.gmra.mrb[0].mxu0 %v3397
        %v3543 = vpop.f32.mrb[0].mxu0
        %v3544 = vadd.f32 0.0, %v3543
        %v3545 = vpop.f32.mrb[0].mxu0
        %v3546 = vadd.f32 0.0, %v3545
        %3547 = vmatprep.mubr.f32.mxu0 0.0
        %3548 = vmatmul.mubr.f32.gmra.mrb[0].mxu0 %v3400
        %v3549 = vpop.f32.mrb[0].mxu0
        %v3550 = vadd.f32 0.0, %v3549
        %v3551 = vpop.f32.mrb[0].mxu0
        %v3552 = vadd.f32 0.0, %v3551
        %3553 = vmatprep.mubr.f32.mxu0 0.0
        %3554 = vmatmul.mubr.f32.gmra.mrb[0].mxu0 %v3403
        %v3555 = vpop.f32.mrb[0].mxu0
        %v3556 = vadd.f32 0.0, %v3555
        %v3557 = vpop.f32.mrb[0].mxu0
        %v3558 = vadd.f32 0.0, %v3557
        %3559 = vmatprep.mubr.f32.mxu0 0.0
        %3560 = vmatmul.mubr.f32.gmra.mrb[0].mxu0 %v3406
        %v3561 = vpop.f32.mrb[0].mxu0
        %v3562 = vadd.f32 0.0, %v3561
        %v3563 = vpop.f32.mrb[0].mxu0
        %v3564 = vadd.f32 0.0, %v3563
        %3565 = vmatprep.mubr.f32.mxu0 0.0
        %3566 = vmatmul.mubr.f32.gmra.mrb[0].mxu0 %v3409
        %v3567 = vpop.f32.mrb[0].mxu0
        %v3568 = vadd.f32 0.0, %v3567
        %v3569 = vpop.f32.mrb[0].mxu0
        %v3570 = vadd.f32 0.0, %v3569
        %3571 = vmatprep.mubr.f32.mxu0 0.0
        %3572 = vmatmul.mubr.f32.gmra.mrb[0].mxu0 %v3412
        %v3573 = vpop.f32.mrb[0].mxu0
        %v3574 = vadd.f32 0.0, %v3573
        %v3575 = vpop.f32.mrb[0].mxu0
        %v3576 = vadd.f32 0.0, %v3575
        %3577 = vmatprep.mubr.f32.mxu0 0.0
        %3578 = vmatmul.mubr.f32.gmra.mrb[0].mxu0 %v3415
        %v3579 = vpop.f32.mrb[0].mxu0
        %v3580 = vadd.f32 0.0, %v3579
        %v3581 = vpop.f32.mrb[0].mxu0
        %v3582 = vadd.f32 0.0, %v3581
        %3583 = vmatprep.mubr.f32.mxu0 0.0
        %3584 = vmatmul.mubr.f32.gmra.mrb[0].mxu0 %v3418
        %v3585 = vpop.f32.mrb[0].mxu0
        %v3586 = vadd.f32 0.0, %v3585
        %v3587 = vpop.f32.mrb[0].mxu0
        %v3588 = vadd.f32 0.0, %v3587
        %3589 = vmatprep.mubr.f32.mxu0 0.0
        %3590 = vmatmul.mubr.f32.gmra.mrb[0].mxu0 %v3421
        %v3591 = vpop.f32.mrb[0].mxu0
        %v3592 = vadd.f32 0.0, %v3591
        %v3593 = vpop.f32.mrb[0].mxu0
        %v3594 = vadd.f32 0.0, %v3593
        %3595 = vmatprep.mubr.f32.mxu0 0.0
        %3596 = vmatmul.mubr.f32.gmra.mrb[0].mxu0 %v3424
        %v3597 = vpop.f32.mrb[0].mxu0
        %v3598 = vadd.f32 0.0, %v3597
        %v3599 = vpop.f32.mrb[0].mxu0
        %v3600 = vadd.f32 0.0, %v3599
        %3601 = vmatprep.mubr.f32.mxu0 0.0
        %3602 = vmatmul.mubr.f32.gmra.mrb[0].mxu0 %v3427
        %v3603 = vpop.f32.mrb[0].mxu0
        %v3604 = vadd.f32 0.0, %v3603
        %v3605 = vpop.f32.mrb[0].mxu0
        %v3606 = vadd.f32 0.0, %v3605
        %3607 = vmatprep.mubr.f32.mxu0 0.0
        %3608 = vmatmul.mubr.f32.gmra.mrb[0].mxu0 %v3430
        %v3609 = vpop.f32.mrb[0].mxu0
        %v3610 = vadd.f32 0.0, %v3609
        %v3611 = vpop.f32.mrb[0].mxu0
        %v3612 = vadd.f32 0.0, %v3611
        %3613 = vmatprep.mubr.f32.mxu0 0.0
        %3614 = vmatmul.mubr.f32.gmra.mrb[0].mxu0 %v3433
        %v3615 = vpop.f32.mrb[0].mxu0
        %v3616 = vadd.f32 0.0, %v3615
        %v3617 = vpop.f32.mrb[0].mxu0
        %v3618 = vadd.f32 0.0, %v3617
        %3619 = vmatprep.mubr.f32.mxu0 0.0
        %3620 = vmatmul.mubr.f32.gmra.mrb[0].mxu0 %v3436
        %v3621 = vpop.f32.mrb[0].mxu0
        %v3622 = vadd.f32 0.0, %v3621
        %v3623 = vpop.f32.mrb[0].mxu0
        %v3624 = vadd.f32 0.0, %v3623
        %3625 = vmatprep.mubr.f32.mxu0 0.0
        %3626 = vmatmul.mubr.f32.gmra.mrb[0].mxu0 %v3439
        %v3627 = vpop.f32.mrb[0].mxu0
        %v3628 = vadd.f32 0.0, %v3627
        %v3629 = vpop.f32.mrb[0].mxu0
        %v3630 = vadd.f32 0.0, %v3629
        %3631 = vmatprep.mubr.f32.mxu0 0.0
        %3632 = vmatmul.mubr.f32.gmra.mrb[0].mxu0 %v3442
        %v3633 = vpop.f32.mrb[0].mxu0
        %v3634 = vadd.f32 0.0, %v3633
        %v3635 = vpop.f32.mrb[0].mxu0
        %v3636 = vadd.f32 0.0, %v3635
        %3637 = vmatprep.mubr.f32.mxu0 0.0
        %3638 = vmatmul.mubr.f32.gmra.mrb[0].mxu0 %v3445
        %v3639 = vpop.f32.mrb[0].mxu0
        %v3640 = vadd.f32 0.0, %v3639
        %v3641 = vpop.f32.mrb[0].mxu0
        %v3642 = vadd.f32 0.0, %v3641
        %3643 = vmatprep.mubr.f32.mxu0 0.0
        %3644 = vmatmul.mubr.f32.gmra.mrb[0].mxu0 %v3448
        %v3645 = vpop.f32.mrb[0].mxu0
        %v3646 = vadd.f32 0.0, %v3645
        %v3647 = vpop.f32.mrb[0].mxu0
        %v3648 = vadd.f32 0.0, %v3647
        %3649 = vmatprep.mubr.f32.mxu0 0.0
        %3650 = vmatmul.mubr.f32.gmra.mrb[0].mxu0 %v3451
        %v3651 = vpop.f32.mrb[0].mxu0
        %v3652 = vadd.f32 0.0, %v3651
        %v3653 = vpop.f32.mrb[0].mxu0
        %v3654 = vadd.f32 0.0, %v3653
        %3655 = vmatprep.mubr.f32.mxu0 0.0
        %3656 = vmatmul.mubr.f32.gmra.mrb[0].mxu0 %v3454
        %v3657 = vpop.f32.mrb[0].mxu0
        %v3658 = vadd.f32 0.0, %v3657
        %v3659 = vpop.f32.mrb[0].mxu0
        %v3660 = vadd.f32 0.0, %v3659
        %3661 = vmatprep.mubr.f32.mxu0 0.0
        %3662 = vmatmul.mubr.f32.gmra.mrb[0].mxu0 %v3457
        %v3663 = vpop.f32.mrb[0].mxu0
        %v3664 = vadd.f32 0.0, %v3663
        %v3665 = vpop.f32.mrb[0].mxu0
        %v3666 = vadd.f32 0.0, %v3665
        %3667 = vmatprep.mubr.f32.mxu0 0.0
        %3668 = vmatmul.mubr.f32.gmra.mrb[0].mxu0 %v3460
        %v3669 = vpop.f32.mrb[0].mxu0
        %v3670 = vadd.f32 0.0, %v3669
        %v3671 = vpop.f32.mrb[0].mxu0
        %v3672 = vadd.f32 0.0, %v3671
        %3673 = vmatprep.mubr.f32.mxu0 0.0
        %3674 = vmatmul.mubr.f32.gmra.mrb[0].mxu0 %v3463
        %v3675 = vpop.f32.mrb[0].mxu0
        %v3676 = vadd.f32 0.0, %v3675
        %v3677 = vpop.f32.mrb[0].mxu0
        %v3678 = vadd.f32 0.0, %v3677
        %3679 = vmatprep.mubr.f32.mxu0 0.0
        %3680 = vmatmul.mubr.f32.gmra.mrb[0].mxu0 %v3466
        %v3681 = vpop.f32.mrb[0].mxu0
        %v3682 = vadd.f32 0.0, %v3681
        %v3683 = vpop.f32.mrb[0].mxu0
        %v3684 = vadd.f32 0.0, %v3683
        %3685 = vdwg.mxu0
        %3686 = vmatprep.subr.mxu0 0.0
        %3687 = vmatpush1.msra.mxu0 %v3386
        %3688 = vmatprep.subr.mxu0 0.0
        %3689 = vmatpush1.msra.mxu0 %v3389
        %3690 = vmatprep.subr.mxu0 0.0
        %3691 = vmatpush1.msra.mxu0 %v3392
        %3692 = vmatprep.subr.mxu0 0.0
        %3693 = vmatpush1.msra.mxu0 %v3475
        %3694 = vmatprep.subr.mxu0 0.0
        %3695 = vmatpush1.msra.mxu0 0.0
        %3696 = vmatprep.subr.mxu0 0.0
        %3697 = vmatpush1.msra.mxu0 0.0
        %3698 = vmatprep.subr.mxu0 0.0
        %3699 = vmatpush1.msra.mxu0 0.0
        %3700 = vmatprep.subr.mxu0 0.0
        %3701 = vmatpush1.msra.mxu0 0.0
        %3702 = vmatprep.subr.mxu0 0.0
        %3703 = vmatpush1.msra.mxu0 0.0
        %3704 = vmatprep.subr.mxu0 0.0
        %3705 = vmatpush1.msra.mxu0 0.0
        %3706 = vmatprep.subr.mxu0 0.0
        %3707 = vmatpush1.msra.mxu0 0.0
        %3708 = vmatprep.subr.mxu0 0.0
        %3709 = vmatpush1.msra.mxu0 0.0
        %3710 = vmatprep.subr.mxu0 0.0
        %3711 = vmatpush1.msra.mxu0 0.0
        %3712 = vmatprep.subr.mxu0 0.0
        %3713 = vmatpush1.msra.mxu0 0.0
        %3714 = vmatprep.subr.mxu0 0.0
        %3715 = vmatpush1.msra.mxu0 0.0
        %3716 = vmatprep.subr.mxu0 0.0
        %3717 = vmatpush1.msra.mxu0 0.0
        %3718 = vmatprep.subr.mxu0 0.0
        %3719 = vmatpush1.msra.mxu0 0.0
        %3720 = vmatprep.subr.mxu0 0.0
        %3721 = vmatpush1.msra.mxu0 0.0
        %3722 = vmatprep.subr.mxu0 0.0
        %3723 = vmatpush1.msra.mxu0 0.0
        %3724 = vmatprep.subr.mxu0 0.0
        %3725 = vmatpush1.msra.mxu0 0.0
        %3726 = vmatprep.subr.mxu0 0.0
        %3727 = vmatpush1.msra.mxu0 0.0
        %3728 = vmatprep.subr.mxu0 0.0
        %3729 = vmatpush1.msra.mxu0 0.0
        %3730 = vmatprep.subr.mxu0 0.0
        %3731 = vmatpush1.msra.mxu0 0.0
        %3732 = vmatprep.subr.mxu0 0.0
        %3733 = vmatpush1.msra.mxu0 0.0
        %3734 = vmatprep.subr.mxu0 0.0
        %3735 = vmatpush1.msra.mxu0 0.0
        %3736 = vmatprep.subr.mxu0 0.0
        %3737 = vmatpush1.msra.mxu0 0.0
        %3738 = vmatprep.subr.mxu0 0.0
        %3739 = vmatpush1.msra.mxu0 0.0
        %3740 = vmatprep.subr.mxu0 0.0
        %3741 = vmatpush1.msra.mxu0 0.0
        %3742 = vmatprep.subr.mxu0 0.0
        %3743 = vmatpush1.msra.mxu0 0.0
        %3744 = vmatprep.subr.mxu0 0.0
        %3745 = vmatpush1.msra.mxu0 0.0
        %3746 = vmatprep.subr.mxu0 0.0
        %3747 = vmatpush1.msra.mxu0 0.0
        %3748 = vmatprep.subr.mxu0 0.0
        %3749 = vmatpush1.msra.mxu0 0.0
        %3750 = vmatprep.mubr.f32.mxu0 0.0
        %3751 = vmatmul.mubr.f32.gmra.mrb[0].mxu0 %v3397
        %v3752 = vpop.f32.mrb[0].mxu0
        %v3753 = vadd.f32 0.0, %v3752
        %v3754 = vpop.f32.mrb[0].mxu0
        %3755 = vmatprep.mubr.f32.mxu0 0.0
        %3756 = vmatmul.mubr.f32.gmra.mrb[0].mxu0 %v3400
        %v3757 = vpop.f32.mrb[0].mxu0
        %v3758 = vadd.f32 0.0, %v3757
        %v3759 = vpop.f32.mrb[0].mxu0
        %3760 = vmatprep.mubr.f32.mxu0 0.0
        %3761 = vmatmul.mubr.f32.gmra.mrb[0].mxu0 %v3403
        %v3762 = vpop.f32.mrb[0].mxu0
        %v3763 = vadd.f32 0.0, %v3762
        %v3764 = vpop.f32.mrb[0].mxu0
        %3765 = vmatprep.mubr.f32.mxu0 0.0
        %3766 = vmatmul.mubr.f32.gmra.mrb[0].mxu0 %v3406
        %v3767 = vpop.f32.mrb[0].mxu0
        %v3768 = vadd.f32 0.0, %v3767
        %v3769 = vpop.f32.mrb[0].mxu0
        %3770 = vmatprep.mubr.f32.mxu0 0.0
        %3771 = vmatmul.mubr.f32.gmra.mrb[0].mxu0 %v3409
        %v3772 = vpop.f32.mrb[0].mxu0
        %v3773 = vadd.f32 0.0, %v3772
        %v3774 = vpop.f32.mrb[0].mxu0
        %3775 = vmatprep.mubr.f32.mxu0 0.0
        %3776 = vmatmul.mubr.f32.gmra.mrb[0].mxu0 %v3412
        %v3777 = vpop.f32.mrb[0].mxu0
        %v3778 = vadd.f32 0.0, %v3777
        %v3779 = vpop.f32.mrb[0].mxu0
        %3780 = vmatprep.mubr.f32.mxu0 0.0
        %3781 = vmatmul.mubr.f32.gmra.mrb[0].mxu0 %v3415
        %v3782 = vpop.f32.mrb[0].mxu0
        %v3783 = vadd.f32 0.0, %v3782
        %v3784 = vpop.f32.mrb[0].mxu0
        %3785 = vmatprep.mubr.f32.mxu0 0.0
        %3786 = vmatmul.mubr.f32.gmra.mrb[0].mxu0 %v3418
        %v3787 = vpop.f32.mrb[0].mxu0
        %v3788 = vadd.f32 0.0, %v3787
        %v3789 = vpop.f32.mrb[0].mxu0
        %3790 = vmatprep.mubr.f32.mxu0 0.0
        %3791 = vmatmul.mubr.f32.gmra.mrb[0].mxu0 %v3421
        %v3792 = vpop.f32.mrb[0].mxu0
        %v3793 = vadd.f32 0.0, %v3792
        %v3794 = vpop.f32.mrb[0].mxu0
        %3795 = vmatprep.mubr.f32.mxu0 0.0
        %3796 = vmatmul.mubr.f32.gmra.mrb[0].mxu0 %v3424
        %v3797 = vpop.f32.mrb[0].mxu0
        %v3798 = vadd.f32 0.0, %v3797
        %v3799 = vpop.f32.mrb[0].mxu0
        %3800 = vmatprep.mubr.f32.mxu0 0.0
        %3801 = vmatmul.mubr.f32.gmra.mrb[0].mxu0 %v3427
        %v3802 = vpop.f32.mrb[0].mxu0
        %v3803 = vadd.f32 0.0, %v3802
        %v3804 = vpop.f32.mrb[0].mxu0
        %3805 = vmatprep.mubr.f32.mxu0 0.0
        %3806 = vmatmul.mubr.f32.gmra.mrb[0].mxu0 %v3430
        %v3807 = vpop.f32.mrb[0].mxu0
        %v3808 = vadd.f32 0.0, %v3807
        %v3809 = vpop.f32.mrb[0].mxu0
        %3810 = vmatprep.mubr.f32.mxu0 0.0
        %3811 = vmatmul.mubr.f32.gmra.mrb[0].mxu0 %v3433
        %v3812 = vpop.f32.mrb[0].mxu0
        %v3813 = vadd.f32 0.0, %v3812
        %v3814 = vpop.f32.mrb[0].mxu0
        %3815 = vmatprep.mubr.f32.mxu0 0.0
        %3816 = vmatmul.mubr.f32.gmra.mrb[0].mxu0 %v3436
        %v3817 = vpop.f32.mrb[0].mxu0
        %v3818 = vadd.f32 0.0, %v3817
        %v3819 = vpop.f32.mrb[0].mxu0
        %3820 = vmatprep.mubr.f32.mxu0 0.0
        %3821 = vmatmul.mubr.f32.gmra.mrb[0].mxu0 %v3439
        %v3822 = vpop.f32.mrb[0].mxu0
        %v3823 = vadd.f32 0.0, %v3822
        %v3824 = vpop.f32.mrb[0].mxu0
        %3825 = vmatprep.mubr.f32.mxu0 0.0
        %3826 = vmatmul.mubr.f32.gmra.mrb[0].mxu0 %v3442
        %v3827 = vpop.f32.mrb[0].mxu0
        %v3828 = vadd.f32 0.0, %v3827
        %v3829 = vpop.f32.mrb[0].mxu0
        %3830 = vmatprep.mubr.f32.mxu0 0.0
        %3831 = vmatmul.mubr.f32.gmra.mrb[0].mxu0 %v3445
        %v3832 = vpop.f32.mrb[0].mxu0
        %v3833 = vadd.f32 0.0, %v3832
        %v3834 = vpop.f32.mrb[0].mxu0
        %3835 = vmatprep.mubr.f32.mxu0 0.0
        %3836 = vmatmul.mubr.f32.gmra.mrb[0].mxu0 %v3448
        %v3837 = vpop.f32.mrb[0].mxu0
        %v3838 = vadd.f32 0.0, %v3837
        %v3839 = vpop.f32.mrb[0].mxu0
        %3840 = vmatprep.mubr.f32.mxu0 0.0
        %3841 = vmatmul.mubr.f32.gmra.mrb[0].mxu0 %v3451
        %v3842 = vpop.f32.mrb[0].mxu0
        %v3843 = vadd.f32 0.0, %v3842
        %v3844 = vpop.f32.mrb[0].mxu0
        %3845 = vmatprep.mubr.f32.mxu0 0.0
        %3846 = vmatmul.mubr.f32.gmra.mrb[0].mxu0 %v3454
        %v3847 = vpop.f32.mrb[0].mxu0
        %v3848 = vadd.f32 0.0, %v3847
        %v3849 = vpop.f32.mrb[0].mxu0
        %3850 = vmatprep.mubr.f32.mxu0 0.0
        %3851 = vmatmul.mubr.f32.gmra.mrb[0].mxu0 %v3457
        %v3852 = vpop.f32.mrb[0].mxu0
        %v3853 = vadd.f32 0.0, %v3852
        %v3854 = vpop.f32.mrb[0].mxu0
        %3855 = vmatprep.mubr.f32.mxu0 0.0
        %3856 = vmatmul.mubr.f32.gmra.mrb[0].mxu0 %v3460
        %v3857 = vpop.f32.mrb[0].mxu0
        %v3858 = vadd.f32 0.0, %v3857
        %v3859 = vpop.f32.mrb[0].mxu0
        %3860 = vmatprep.mubr.f32.mxu0 0.0
        %3861 = vmatmul.mubr.f32.gmra.mrb[0].mxu0 %v3463
        %v3862 = vpop.f32.mrb[0].mxu0
        %v3863 = vadd.f32 0.0, %v3862
        %v3864 = vpop.f32.mrb[0].mxu0
        %3865 = vmatprep.mubr.f32.mxu0 0.0
        %3866 = vmatmul.mubr.f32.gmra.mrb[0].mxu0 %v3466
        %v3867 = vpop.f32.mrb[0].mxu0
        %v3868 = vadd.f32 0.0, %v3867
        %v3869 = vpop.f32.mrb[0].mxu0
        %3870 = vdwg.mxu0
        %v3871 = vadd.f32 %v2799, %v3544
        %v3872 = vadd.f32 %v2800, %v3546
        %v3873 = vadd.f32 %v2801, %v3753
        %v3874 = vadd.f32 %v2802, %v3550
        %v3875 = vadd.f32 %v2803, %v3552
        %v3876 = vadd.f32 %v2804, %v3758
        %v3877 = vadd.f32 %v2805, %v3556
        %v3878 = vadd.f32 %v2806, %v3558
        %v3879 = vadd.f32 %v2807, %v3763
        %v3880 = vadd.f32 %v2808, %v3562
        %v3881 = vadd.f32 %v2809, %v3564
        %v3882 = vadd.f32 %v2810, %v3768
        %v3883 = vadd.f32 %v2811, %v3568
        %v3884 = vadd.f32 %v2812, %v3570
        %v3885 = vadd.f32 %v2813, %v3773
        %v3886 = vadd.f32 %v2814, %v3574
        %v3887 = vadd.f32 %v2815, %v3576
        %v3888 = vadd.f32 %v2816, %v3778
        %v3889 = vadd.f32 %v2817, %v3580
        %v3890 = vadd.f32 %v2818, %v3582
        %v3891 = vadd.f32 %v2819, %v3783
        %v3892 = vadd.f32 %v2820, %v3586
        %v3893 = vadd.f32 %v2821, %v3588
        %v3894 = vadd.f32 %v2822, %v3788
        %v3895 = vadd.f32 %v2823, %v3592
        %v3896 = vadd.f32 %v2824, %v3594
        %v3897 = vadd.f32 %v2825, %v3793
        %v3898 = vadd.f32 %v2826, %v3598
        %v3899 = vadd.f32 %v2827, %v3600
        %v3900 = vadd.f32 %v2828, %v3798
        %v3901 = vadd.f32 %v2829, %v3604
        %v3902 = vadd.f32 %v2830, %v3606
        %v3903 = vadd.f32 %v2831, %v3803
        %v3904 = vadd.f32 %v2832, %v3610
        %v3905 = vadd.f32 %v2833, %v3612
        %v3906 = vadd.f32 %v2834, %v3808
        %v3907 = vadd.f32 %v2835, %v3616
        %v3908 = vadd.f32 %v2836, %v3618
        %v3909 = vadd.f32 %v2837, %v3813
        %v3910 = vadd.f32 %v2838, %v3622
        %v3911 = vadd.f32 %v2839, %v3624
        %v3912 = vadd.f32 %v2840, %v3818
        %v3913 = vadd.f32 %v2841, %v3628
        %v3914 = vadd.f32 %v2842, %v3630
        %v3915 = vadd.f32 %v2843, %v3823
        %v3916 = vadd.f32 %v2844, %v3634
        %v3917 = vadd.f32 %v2845, %v3636
        %v3918 = vadd.f32 %v2846, %v3828
        %v3919 = vadd.f32 %v2847, %v3640
        %v3920 = vadd.f32 %v2848, %v3642
        %v3921 = vadd.f32 %v2849, %v3833
        %v3922 = vadd.f32 %v2850, %v3646
        %v3923 = vadd.f32 %v2851, %v3648
        %v3924 = vadd.f32 %v2852, %v3838
        %v3925 = vadd.f32 %v2853, %v3652
        %v3926 = vadd.f32 %v2854, %v3654
        %v3927 = vadd.f32 %v2855, %v3843
        %v3928 = vadd.f32 %v2856, %v3658
        %v3929 = vadd.f32 %v2857, %v3660
        %v3930 = vadd.f32 %v2858, %v3848
        %v3931 = vadd.f32 %v2859, %v3664
        %v3932 = vadd.f32 %v2860, %v3666
        %v3933 = vadd.f32 %v2861, %v3853
        %v3934 = vadd.f32 %v2862, %v3670
        %v3935 = vadd.f32 %v2863, %v3672
        %v3936 = vadd.f32 %v2864, %v3858
        %v3937 = vadd.f32 %v2865, %v3676
        %v3938 = vadd.f32 %v2866, %v3678
        %v3939 = vadd.f32 %v2867, %v3863
        %v3940 = vadd.f32 %v2868, %v3682
        %v3941 = vadd.f32 %v2869, %v3684
        %v3942 = vadd.f32 %v2870, %v3868
        %s3943 = scalar_lea.vmem %s1, 768
        %v3944 = vld [vmem:[%s3943] sm:$0xff]
        %v3945 = vld [vmem:[%s3943 + $0x8] sm:$0xff]
        %v3946 = vld [vmem:[%s3943 + $0x10] sm:$0xff]
        %v3947 = vld [vmem:[%s3943 + $0x18] sm:$0xff]
        %v3948 = vld [vmem:[%s3943 + $0x20] sm:$0xff]
        %v3949 = vld [vmem:[%s3943 + $0x28] sm:$0xff]
        %v3950 = vld [vmem:[%s3943 + $0x30] sm:$0xff]
        %v3951 = vld [vmem:[%s3943 + $0x38] sm:$0xff]
        %v3952 = vld [vmem:[%s3943 + $0x40] sm:$0xff]
        %v3953 = vld [vmem:[%s3943 + $0x48] sm:$0xf]
        %v3954 = vld [vmem:[%s3943 + $0x50] sm:$0xf]
        %v3955 = vld [vmem:[%s3943 + $0x58] sm:$0xf]
        %v3957 = vsel %vm589, %v3953, 0
        %v3960 = vsel %vm589, %v3954, 0
        %v3963 = vsel %vm589, %v3955, 0
        %3965 = vmatprep.subr.mxu0 %v3945
        %3966 = vmatpush1.msra.mxu0 %v3944
        %3967 = vmatprep.subr.mxu0 %v3948
        %3968 = vmatpush1.msra.mxu0 %v3947
        %3969 = vmatprep.subr.mxu0 %v3951
        %3970 = vmatpush1.msra.mxu0 %v3950
        %3971 = vmatprep.subr.mxu0 %v3960
        %3972 = vmatpush1.msra.mxu0 %v3957
        %3973 = vmatprep.subr.mxu0 0.0
        %3974 = vmatpush1.msra.mxu0 0.0
        %3975 = vmatprep.subr.mxu0 0.0
        %3976 = vmatpush1.msra.mxu0 0.0
        %3977 = vmatprep.subr.mxu0 0.0
        %3978 = vmatpush1.msra.mxu0 0.0
        %3979 = vmatprep.subr.mxu0 0.0
        %3980 = vmatpush1.msra.mxu0 0.0
        %3981 = vmatprep.subr.mxu0 0.0
        %3982 = vmatpush1.msra.mxu0 0.0
        %3983 = vmatprep.subr.mxu0 0.0
        %3984 = vmatpush1.msra.mxu0 0.0
        %3985 = vmatprep.subr.mxu0 0.0
        %3986 = vmatpush1.msra.mxu0 0.0
        %3987 = vmatprep.subr.mxu0 0.0
        %3988 = vmatpush1.msra.mxu0 0.0
        %3989 = vmatprep.subr.mxu0 0.0
        %3990 = vmatpush1.msra.mxu0 0.0
        %3991 = vmatprep.subr.mxu0 0.0
        %3992 = vmatpush1.msra.mxu0 0.0
        %3993 = vmatprep.subr.mxu0 0.0
        %3994 = vmatpush1.msra.mxu0 0.0
        %3995 = vmatprep.subr.mxu0 0.0
        %3996 = vmatpush1.msra.mxu0 0.0
        %3997 = vmatprep.subr.mxu0 0.0
        %3998 = vmatpush1.msra.mxu0 0.0
        %3999 = vmatprep.subr.mxu0 0.0
        %4000 = vmatpush1.msra.mxu0 0.0
        %4001 = vmatprep.subr.mxu0 0.0
        %4002 = vmatpush1.msra.mxu0 0.0
        %4003 = vmatprep.subr.mxu0 0.0
        %4004 = vmatpush1.msra.mxu0 0.0
        %4005 = vmatprep.subr.mxu0 0.0
        %4006 = vmatpush1.msra.mxu0 0.0
        %4007 = vmatprep.subr.mxu0 0.0
        %4008 = vmatpush1.msra.mxu0 0.0
        %4009 = vmatprep.subr.mxu0 0.0
        %4010 = vmatpush1.msra.mxu0 0.0
        %4011 = vmatprep.subr.mxu0 0.0
        %4012 = vmatpush1.msra.mxu0 0.0
        %4013 = vmatprep.subr.mxu0 0.0
        %4014 = vmatpush1.msra.mxu0 0.0
        %4015 = vmatprep.subr.mxu0 0.0
        %4016 = vmatpush1.msra.mxu0 0.0
        %4017 = vmatprep.subr.mxu0 0.0
        %4018 = vmatpush1.msra.mxu0 0.0
        %4019 = vmatprep.subr.mxu0 0.0
        %4020 = vmatpush1.msra.mxu0 0.0
        %4021 = vmatprep.subr.mxu0 0.0
        %4022 = vmatpush1.msra.mxu0 0.0
        %4023 = vmatprep.subr.mxu0 0.0
        %4024 = vmatpush1.msra.mxu0 0.0
        %4025 = vmatprep.subr.mxu0 0.0
        %4026 = vmatpush1.msra.mxu0 0.0
        %4027 = vmatprep.subr.mxu0 0.0
        %4028 = vmatpush1.msra.mxu0 0.0
        %4029 = vmatprep.mubr.f32.mxu0 0.0
        %4030 = vmatmul.mubr.f32.gmra.mrb[0].mxu0 %v3397
        %v4031 = vpop.f32.mrb[0].mxu0
        %v4032 = vadd.f32 0.0, %v4031
        %v4033 = vpop.f32.mrb[0].mxu0
        %v4034 = vadd.f32 0.0, %v4033
        %4035 = vmatprep.mubr.f32.mxu0 0.0
        %4036 = vmatmul.mubr.f32.gmra.mrb[0].mxu0 %v3400
        %v4037 = vpop.f32.mrb[0].mxu0
        %v4038 = vadd.f32 0.0, %v4037
        %v4039 = vpop.f32.mrb[0].mxu0
        %v4040 = vadd.f32 0.0, %v4039
        %4041 = vmatprep.mubr.f32.mxu0 0.0
        %4042 = vmatmul.mubr.f32.gmra.mrb[0].mxu0 %v3403
        %v4043 = vpop.f32.mrb[0].mxu0
        %v4044 = vadd.f32 0.0, %v4043
        %v4045 = vpop.f32.mrb[0].mxu0
        %v4046 = vadd.f32 0.0, %v4045
        %4047 = vmatprep.mubr.f32.mxu0 0.0
        %4048 = vmatmul.mubr.f32.gmra.mrb[0].mxu0 %v3406
        %v4049 = vpop.f32.mrb[0].mxu0
        %v4050 = vadd.f32 0.0, %v4049
        %v4051 = vpop.f32.mrb[0].mxu0
        %v4052 = vadd.f32 0.0, %v4051
        %4053 = vmatprep.mubr.f32.mxu0 0.0
        %4054 = vmatmul.mubr.f32.gmra.mrb[0].mxu0 %v3409
        %v4055 = vpop.f32.mrb[0].mxu0
        %v4056 = vadd.f32 0.0, %v4055
        %v4057 = vpop.f32.mrb[0].mxu0
        %v4058 = vadd.f32 0.0, %v4057
        %4059 = vmatprep.mubr.f32.mxu0 0.0
        %4060 = vmatmul.mubr.f32.gmra.mrb[0].mxu0 %v3412
        %v4061 = vpop.f32.mrb[0].mxu0
        %v4062 = vadd.f32 0.0, %v4061
        %v4063 = vpop.f32.mrb[0].mxu0
        %v4064 = vadd.f32 0.0, %v4063
        %4065 = vmatprep.mubr.f32.mxu0 0.0
        %4066 = vmatmul.mubr.f32.gmra.mrb[0].mxu0 %v3415
        %v4067 = vpop.f32.mrb[0].mxu0
        %v4068 = vadd.f32 0.0, %v4067
        %v4069 = vpop.f32.mrb[0].mxu0
        %v4070 = vadd.f32 0.0, %v4069
        %4071 = vmatprep.mubr.f32.mxu0 0.0
        %4072 = vmatmul.mubr.f32.gmra.mrb[0].mxu0 %v3418
        %v4073 = vpop.f32.mrb[0].mxu0
        %v4074 = vadd.f32 0.0, %v4073
        %v4075 = vpop.f32.mrb[0].mxu0
        %v4076 = vadd.f32 0.0, %v4075
        %4077 = vmatprep.mubr.f32.mxu0 0.0
        %4078 = vmatmul.mubr.f32.gmra.mrb[0].mxu0 %v3421
        %v4079 = vpop.f32.mrb[0].mxu0
        %v4080 = vadd.f32 0.0, %v4079
        %v4081 = vpop.f32.mrb[0].mxu0
        %v4082 = vadd.f32 0.0, %v4081
        %4083 = vmatprep.mubr.f32.mxu0 0.0
        %4084 = vmatmul.mubr.f32.gmra.mrb[0].mxu0 %v3424
        %v4085 = vpop.f32.mrb[0].mxu0
        %v4086 = vadd.f32 0.0, %v4085
        %v4087 = vpop.f32.mrb[0].mxu0
        %v4088 = vadd.f32 0.0, %v4087
        %4089 = vmatprep.mubr.f32.mxu0 0.0
        %4090 = vmatmul.mubr.f32.gmra.mrb[0].mxu0 %v3427
        %v4091 = vpop.f32.mrb[0].mxu0
        %v4092 = vadd.f32 0.0, %v4091
        %v4093 = vpop.f32.mrb[0].mxu0
        %v4094 = vadd.f32 0.0, %v4093
        %4095 = vmatprep.mubr.f32.mxu0 0.0
        %4096 = vmatmul.mubr.f32.gmra.mrb[0].mxu0 %v3430
        %v4097 = vpop.f32.mrb[0].mxu0
        %v4098 = vadd.f32 0.0, %v4097
        %v4099 = vpop.f32.mrb[0].mxu0
        %v4100 = vadd.f32 0.0, %v4099
        %4101 = vmatprep.mubr.f32.mxu0 0.0
        %4102 = vmatmul.mubr.f32.gmra.mrb[0].mxu0 %v3433
        %v4103 = vpop.f32.mrb[0].mxu0
        %v4104 = vadd.f32 0.0, %v4103
        %v4105 = vpop.f32.mrb[0].mxu0
        %v4106 = vadd.f32 0.0, %v4105
        %4107 = vmatprep.mubr.f32.mxu0 0.0
        %4108 = vmatmul.mubr.f32.gmra.mrb[0].mxu0 %v3436
        %v4109 = vpop.f32.mrb[0].mxu0
        %v4110 = vadd.f32 0.0, %v4109
        %v4111 = vpop.f32.mrb[0].mxu0
        %v4112 = vadd.f32 0.0, %v4111
        %4113 = vmatprep.mubr.f32.mxu0 0.0
        %4114 = vmatmul.mubr.f32.gmra.mrb[0].mxu0 %v3439
        %v4115 = vpop.f32.mrb[0].mxu0
        %v4116 = vadd.f32 0.0, %v4115
        %v4117 = vpop.f32.mrb[0].mxu0
        %v4118 = vadd.f32 0.0, %v4117
        %4119 = vmatprep.mubr.f32.mxu0 0.0
        %4120 = vmatmul.mubr.f32.gmra.mrb[0].mxu0 %v3442
        %v4121 = vpop.f32.mrb[0].mxu0
        %v4122 = vadd.f32 0.0, %v4121
        %v4123 = vpop.f32.mrb[0].mxu0
        %v4124 = vadd.f32 0.0, %v4123
        %4125 = vmatprep.mubr.f32.mxu0 0.0
        %4126 = vmatmul.mubr.f32.gmra.mrb[0].mxu0 %v3445
        %v4127 = vpop.f32.mrb[0].mxu0
        %v4128 = vadd.f32 0.0, %v4127
        %v4129 = vpop.f32.mrb[0].mxu0
        %v4130 = vadd.f32 0.0, %v4129
        %4131 = vmatprep.mubr.f32.mxu0 0.0
        %4132 = vmatmul.mubr.f32.gmra.mrb[0].mxu0 %v3448
        %v4133 = vpop.f32.mrb[0].mxu0
        %v4134 = vadd.f32 0.0, %v4133
        %v4135 = vpop.f32.mrb[0].mxu0
        %v4136 = vadd.f32 0.0, %v4135
        %4137 = vmatprep.mubr.f32.mxu0 0.0
        %4138 = vmatmul.mubr.f32.gmra.mrb[0].mxu0 %v3451
        %v4139 = vpop.f32.mrb[0].mxu0
        %v4140 = vadd.f32 0.0, %v4139
        %v4141 = vpop.f32.mrb[0].mxu0
        %v4142 = vadd.f32 0.0, %v4141
        %4143 = vmatprep.mubr.f32.mxu0 0.0
        %4144 = vmatmul.mubr.f32.gmra.mrb[0].mxu0 %v3454
        %v4145 = vpop.f32.mrb[0].mxu0
        %v4146 = vadd.f32 0.0, %v4145
        %v4147 = vpop.f32.mrb[0].mxu0
        %v4148 = vadd.f32 0.0, %v4147
        %4149 = vmatprep.mubr.f32.mxu0 0.0
        %4150 = vmatmul.mubr.f32.gmra.mrb[0].mxu0 %v3457
        %v4151 = vpop.f32.mrb[0].mxu0
        %v4152 = vadd.f32 0.0, %v4151
        %v4153 = vpop.f32.mrb[0].mxu0
        %v4154 = vadd.f32 0.0, %v4153
        %4155 = vmatprep.mubr.f32.mxu0 0.0
        %4156 = vmatmul.mubr.f32.gmra.mrb[0].mxu0 %v3460
        %v4157 = vpop.f32.mrb[0].mxu0
        %v4158 = vadd.f32 0.0, %v4157
        %v4159 = vpop.f32.mrb[0].mxu0
        %v4160 = vadd.f32 0.0, %v4159
        %4161 = vmatprep.mubr.f32.mxu0 0.0
        %4162 = vmatmul.mubr.f32.gmra.mrb[0].mxu0 %v3463
        %v4163 = vpop.f32.mrb[0].mxu0
        %v4164 = vadd.f32 0.0, %v4163
        %v4165 = vpop.f32.mrb[0].mxu0
        %v4166 = vadd.f32 0.0, %v4165
        %4167 = vmatprep.mubr.f32.mxu0 0.0
        %4168 = vmatmul.mubr.f32.gmra.mrb[0].mxu0 %v3466
        %v4169 = vpop.f32.mrb[0].mxu0
        %v4170 = vadd.f32 0.0, %v4169
        %v4171 = vpop.f32.mrb[0].mxu0
        %v4172 = vadd.f32 0.0, %v4171
        %4173 = vdwg.mxu0
        %4174 = vmatprep.subr.mxu0 0.0
        %4175 = vmatpush1.msra.mxu0 %v3946
        %4176 = vmatprep.subr.mxu0 0.0
        %4177 = vmatpush1.msra.mxu0 %v3949
        %4178 = vmatprep.subr.mxu0 0.0
        %4179 = vmatpush1.msra.mxu0 %v3952
        %4180 = vmatprep.subr.mxu0 0.0
        %4181 = vmatpush1.msra.mxu0 %v3963
        %4182 = vmatprep.subr.mxu0 0.0
        %4183 = vmatpush1.msra.mxu0 0.0
        %4184 = vmatprep.subr.mxu0 0.0
        %4185 = vmatpush1.msra.mxu0 0.0
        %4186 = vmatprep.subr.mxu0 0.0
        %4187 = vmatpush1.msra.mxu0 0.0
        %4188 = vmatprep.subr.mxu0 0.0
        %4189 = vmatpush1.msra.mxu0 0.0
        %4190 = vmatprep.subr.mxu0 0.0
        %4191 = vmatpush1.msra.mxu0 0.0
        %4192 = vmatprep.subr.mxu0 0.0
        %4193 = vmatpush1.msra.mxu0 0.0
        %4194 = vmatprep.subr.mxu0 0.0
        %4195 = vmatpush1.msra.mxu0 0.0
        %4196 = vmatprep.subr.mxu0 0.0
        %4197 = vmatpush1.msra.mxu0 0.0
        %4198 = vmatprep.subr.mxu0 0.0
        %4199 = vmatpush1.msra.mxu0 0.0
        %4200 = vmatprep.subr.mxu0 0.0
        %4201 = vmatpush1.msra.mxu0 0.0
        %4202 = vmatprep.subr.mxu0 0.0
        %4203 = vmatpush1.msra.mxu0 0.0
        %4204 = vmatprep.subr.mxu0 0.0
        %4205 = vmatpush1.msra.mxu0 0.0
        %4206 = vmatprep.subr.mxu0 0.0
        %4207 = vmatpush1.msra.mxu0 0.0
        %4208 = vmatprep.subr.mxu0 0.0
        %4209 = vmatpush1.msra.mxu0 0.0
        %4210 = vmatprep.subr.mxu0 0.0
        %4211 = vmatpush1.msra.mxu0 0.0
        %4212 = vmatprep.subr.mxu0 0.0
        %4213 = vmatpush1.msra.mxu0 0.0
        %4214 = vmatprep.subr.mxu0 0.0
        %4215 = vmatpush1.msra.mxu0 0.0
        %4216 = vmatprep.subr.mxu0 0.0
        %4217 = vmatpush1.msra.mxu0 0.0
        %4218 = vmatprep.subr.mxu0 0.0
        %4219 = vmatpush1.msra.mxu0 0.0
        %4220 = vmatprep.subr.mxu0 0.0
        %4221 = vmatpush1.msra.mxu0 0.0
        %4222 = vmatprep.subr.mxu0 0.0
        %4223 = vmatpush1.msra.mxu0 0.0
        %4224 = vmatprep.subr.mxu0 0.0
        %4225 = vmatpush1.msra.mxu0 0.0
        %4226 = vmatprep.subr.mxu0 0.0
        %4227 = vmatpush1.msra.mxu0 0.0
        %4228 = vmatprep.subr.mxu0 0.0
        %4229 = vmatpush1.msra.mxu0 0.0
        %4230 = vmatprep.subr.mxu0 0.0
        %4231 = vmatpush1.msra.mxu0 0.0
        %4232 = vmatprep.subr.mxu0 0.0
        %4233 = vmatpush1.msra.mxu0 0.0
        %4234 = vmatprep.subr.mxu0 0.0
        %4235 = vmatpush1.msra.mxu0 0.0
        %4236 = vmatprep.subr.mxu0 0.0
        %4237 = vmatpush1.msra.mxu0 0.0
        %4238 = vmatprep.mubr.f32.mxu0 0.0
        %4239 = vmatmul.mubr.f32.gmra.mrb[0].mxu0 %v3397
        %v4240 = vpop.f32.mrb[0].mxu0
        %v4241 = vadd.f32 0.0, %v4240
        %v4242 = vpop.f32.mrb[0].mxu0
        %4243 = vmatprep.mubr.f32.mxu0 0.0
        %4244 = vmatmul.mubr.f32.gmra.mrb[0].mxu0 %v3400
        %v4245 = vpop.f32.mrb[0].mxu0
        %v4246 = vadd.f32 0.0, %v4245
        %v4247 = vpop.f32.mrb[0].mxu0
        %4248 = vmatprep.mubr.f32.mxu0 0.0
        %4249 = vmatmul.mubr.f32.gmra.mrb[0].mxu0 %v3403
        %v4250 = vpop.f32.mrb[0].mxu0
        %v4251 = vadd.f32 0.0, %v4250
        %v4252 = vpop.f32.mrb[0].mxu0
        %4253 = vmatprep.mubr.f32.mxu0 0.0
        %4254 = vmatmul.mubr.f32.gmra.mrb[0].mxu0 %v3406
        %v4255 = vpop.f32.mrb[0].mxu0
        %v4256 = vadd.f32 0.0, %v4255
        %v4257 = vpop.f32.mrb[0].mxu0
        %4258 = vmatprep.mubr.f32.mxu0 0.0
        %4259 = vmatmul.mubr.f32.gmra.mrb[0].mxu0 %v3409
        %v4260 = vpop.f32.mrb[0].mxu0
        %v4261 = vadd.f32 0.0, %v4260
        %v4262 = vpop.f32.mrb[0].mxu0
        %4263 = vmatprep.mubr.f32.mxu0 0.0
        %4264 = vmatmul.mubr.f32.gmra.mrb[0].mxu0 %v3412
        %v4265 = vpop.f32.mrb[0].mxu0
        %v4266 = vadd.f32 0.0, %v4265
        %v4267 = vpop.f32.mrb[0].mxu0
        %4268 = vmatprep.mubr.f32.mxu0 0.0
        %4269 = vmatmul.mubr.f32.gmra.mrb[0].mxu0 %v3415
        %v4270 = vpop.f32.mrb[0].mxu0
        %v4271 = vadd.f32 0.0, %v4270
        %v4272 = vpop.f32.mrb[0].mxu0
        %4273 = vmatprep.mubr.f32.mxu0 0.0
        %4274 = vmatmul.mubr.f32.gmra.mrb[0].mxu0 %v3418
        %v4275 = vpop.f32.mrb[0].mxu0
        %v4276 = vadd.f32 0.0, %v4275
        %v4277 = vpop.f32.mrb[0].mxu0
        %4278 = vmatprep.mubr.f32.mxu0 0.0
        %4279 = vmatmul.mubr.f32.gmra.mrb[0].mxu0 %v3421
        %v4280 = vpop.f32.mrb[0].mxu0
        %v4281 = vadd.f32 0.0, %v4280
        %v4282 = vpop.f32.mrb[0].mxu0
        %4283 = vmatprep.mubr.f32.mxu0 0.0
        %4284 = vmatmul.mubr.f32.gmra.mrb[0].mxu0 %v3424
        %v4285 = vpop.f32.mrb[0].mxu0
        %v4286 = vadd.f32 0.0, %v4285
        %v4287 = vpop.f32.mrb[0].mxu0
        %4288 = vmatprep.mubr.f32.mxu0 0.0
        %4289 = vmatmul.mubr.f32.gmra.mrb[0].mxu0 %v3427
        %v4290 = vpop.f32.mrb[0].mxu0
        %v4291 = vadd.f32 0.0, %v4290
        %v4292 = vpop.f32.mrb[0].mxu0
        %4293 = vmatprep.mubr.f32.mxu0 0.0
        %4294 = vmatmul.mubr.f32.gmra.mrb[0].mxu0 %v3430
        %v4295 = vpop.f32.mrb[0].mxu0
        %v4296 = vadd.f32 0.0, %v4295
        %v4297 = vpop.f32.mrb[0].mxu0
        %4298 = vmatprep.mubr.f32.mxu0 0.0
        %4299 = vmatmul.mubr.f32.gmra.mrb[0].mxu0 %v3433
        %v4300 = vpop.f32.mrb[0].mxu0
        %v4301 = vadd.f32 0.0, %v4300
        %v4302 = vpop.f32.mrb[0].mxu0
        %4303 = vmatprep.mubr.f32.mxu0 0.0
        %4304 = vmatmul.mubr.f32.gmra.mrb[0].mxu0 %v3436
        %v4305 = vpop.f32.mrb[0].mxu0
        %v4306 = vadd.f32 0.0, %v4305
        %v4307 = vpop.f32.mrb[0].mxu0
        %4308 = vmatprep.mubr.f32.mxu0 0.0
        %4309 = vmatmul.mubr.f32.gmra.mrb[0].mxu0 %v3439
        %v4310 = vpop.f32.mrb[0].mxu0
        %v4311 = vadd.f32 0.0, %v4310
        %v4312 = vpop.f32.mrb[0].mxu0
        %4313 = vmatprep.mubr.f32.mxu0 0.0
        %4314 = vmatmul.mubr.f32.gmra.mrb[0].mxu0 %v3442
        %v4315 = vpop.f32.mrb[0].mxu0
        %v4316 = vadd.f32 0.0, %v4315
        %v4317 = vpop.f32.mrb[0].mxu0
        %4318 = vmatprep.mubr.f32.mxu0 0.0
        %4319 = vmatmul.mubr.f32.gmra.mrb[0].mxu0 %v3445
        %v4320 = vpop.f32.mrb[0].mxu0
        %v4321 = vadd.f32 0.0, %v4320
        %v4322 = vpop.f32.mrb[0].mxu0
        %4323 = vmatprep.mubr.f32.mxu0 0.0
        %4324 = vmatmul.mubr.f32.gmra.mrb[0].mxu0 %v3448
        %v4325 = vpop.f32.mrb[0].mxu0
        %v4326 = vadd.f32 0.0, %v4325
        %v4327 = vpop.f32.mrb[0].mxu0
        %4328 = vmatprep.mubr.f32.mxu0 0.0
        %4329 = vmatmul.mubr.f32.gmra.mrb[0].mxu0 %v3451
        %v4330 = vpop.f32.mrb[0].mxu0
        %v4331 = vadd.f32 0.0, %v4330
        %v4332 = vpop.f32.mrb[0].mxu0
        %4333 = vmatprep.mubr.f32.mxu0 0.0
        %4334 = vmatmul.mubr.f32.gmra.mrb[0].mxu0 %v3454
        %v4335 = vpop.f32.mrb[0].mxu0
        %v4336 = vadd.f32 0.0, %v4335
        %v4337 = vpop.f32.mrb[0].mxu0
        %4338 = vmatprep.mubr.f32.mxu0 0.0
        %4339 = vmatmul.mubr.f32.gmra.mrb[0].mxu0 %v3457
        %v4340 = vpop.f32.mrb[0].mxu0
        %v4341 = vadd.f32 0.0, %v4340
        %v4342 = vpop.f32.mrb[0].mxu0
        %4343 = vmatprep.mubr.f32.mxu0 0.0
        %4344 = vmatmul.mubr.f32.gmra.mrb[0].mxu0 %v3460
        %v4345 = vpop.f32.mrb[0].mxu0
        %v4346 = vadd.f32 0.0, %v4345
        %v4347 = vpop.f32.mrb[0].mxu0
        %4348 = vmatprep.mubr.f32.mxu0 0.0
        %4349 = vmatmul.mubr.f32.gmra.mrb[0].mxu0 %v3463
        %v4350 = vpop.f32.mrb[0].mxu0
        %v4351 = vadd.f32 0.0, %v4350
        %v4352 = vpop.f32.mrb[0].mxu0
        %4353 = vmatprep.mubr.f32.mxu0 0.0
        %4354 = vmatmul.mubr.f32.gmra.mrb[0].mxu0 %v3466
        %v4355 = vpop.f32.mrb[0].mxu0
        %v4356 = vadd.f32 0.0, %v4355
        %v4357 = vpop.f32.mrb[0].mxu0
        %4358 = vdwg.mxu0
        %v4359 = vadd.f32 %v3287, %v4032
        %v4360 = vadd.f32 %v3288, %v4034
        %v4361 = vadd.f32 %v3289, %v4241
        %v4362 = vadd.f32 %v3290, %v4038
        %v4363 = vadd.f32 %v3291, %v4040
        %v4364 = vadd.f32 %v3292, %v4246
        %v4365 = vadd.f32 %v3293, %v4044
        %v4366 = vadd.f32 %v3294, %v4046
        %v4367 = vadd.f32 %v3295, %v4251
        %v4368 = vadd.f32 %v3296, %v4050
        %v4369 = vadd.f32 %v3297, %v4052
        %v4370 = vadd.f32 %v3298, %v4256
        %v4371 = vadd.f32 %v3299, %v4056
        %v4372 = vadd.f32 %v3300, %v4058
        %v4373 = vadd.f32 %v3301, %v4261
        %v4374 = vadd.f32 %v3302, %v4062
        %v4375 = vadd.f32 %v3303, %v4064
        %v4376 = vadd.f32 %v3304, %v4266
        %v4377 = vadd.f32 %v3305, %v4068
        %v4378 = vadd.f32 %v3306, %v4070
        %v4379 = vadd.f32 %v3307, %v4271
        %v4380 = vadd.f32 %v3308, %v4074
        %v4381 = vadd.f32 %v3309, %v4076
        %v4382 = vadd.f32 %v3310, %v4276
        %v4383 = vadd.f32 %v3311, %v4080
        %v4384 = vadd.f32 %v3312, %v4082
        %v4385 = vadd.f32 %v3313, %v4281
        %v4386 = vadd.f32 %v3314, %v4086
        %v4387 = vadd.f32 %v3315, %v4088
        %v4388 = vadd.f32 %v3316, %v4286
        %v4389 = vadd.f32 %v3317, %v4092
        %v4390 = vadd.f32 %v3318, %v4094
        %v4391 = vadd.f32 %v3319, %v4291
        %v4392 = vadd.f32 %v3320, %v4098
        %v4393 = vadd.f32 %v3321, %v4100
        %v4394 = vadd.f32 %v3322, %v4296
        %v4395 = vadd.f32 %v3323, %v4104
        %v4396 = vadd.f32 %v3324, %v4106
        %v4397 = vadd.f32 %v3325, %v4301
        %v4398 = vadd.f32 %v3326, %v4110
        %v4399 = vadd.f32 %v3327, %v4112
        %v4400 = vadd.f32 %v3328, %v4306
        %v4401 = vadd.f32 %v3329, %v4116
        %v4402 = vadd.f32 %v3330, %v4118
        %v4403 = vadd.f32 %v3331, %v4311
        %v4404 = vadd.f32 %v3332, %v4122
        %v4405 = vadd.f32 %v3333, %v4124
        %v4406 = vadd.f32 %v3334, %v4316
        %v4407 = vadd.f32 %v3335, %v4128
        %v4408 = vadd.f32 %v3336, %v4130
        %v4409 = vadd.f32 %v3337, %v4321
        %v4410 = vadd.f32 %v3338, %v4134
        %v4411 = vadd.f32 %v3339, %v4136
        %v4412 = vadd.f32 %v3340, %v4326
        %v4413 = vadd.f32 %v3341, %v4140
        %v4414 = vadd.f32 %v3342, %v4142
        %v4415 = vadd.f32 %v3343, %v4331
        %v4416 = vadd.f32 %v3344, %v4146
        %v4417 = vadd.f32 %v3345, %v4148
        %v4418 = vadd.f32 %v3346, %v4336
        %v4419 = vadd.f32 %v3347, %v4152
        %v4420 = vadd.f32 %v3348, %v4154
        %v4421 = vadd.f32 %v3349, %v4341
        %v4422 = vadd.f32 %v3350, %v4158
        %v4423 = vadd.f32 %v3351, %v4160
        %v4424 = vadd.f32 %v3352, %v4346
        %v4425 = vadd.f32 %v3353, %v4164
        %v4426 = vadd.f32 %v3354, %v4166
        %v4427 = vadd.f32 %v3355, %v4351
        %v4428 = vadd.f32 %v3356, %v4170
        %v4429 = vadd.f32 %v3357, %v4172
        %v4430 = vadd.f32 %v3358, %v4356
        %v4431 = vld [vmem:[%s428 + $0x4] sm:$0xff]
        %v4432 = vld [vmem:[%s428 + $0xc] sm:$0xff]
        %v4433 = vld [vmem:[%s428 + $0x14] sm:$0xff]
        %v4434 = vld [vmem:[%s428 + $0x24] sm:$0xff]
        %v4435 = vld [vmem:[%s428 + $0x2c] sm:$0xff]
        %v4436 = vld [vmem:[%s428 + $0x34] sm:$0xff]
        %v4437 = vld [vmem:[%s428 + $0x44] sm:$0xff]
        %v4438 = vld [vmem:[%s428 + $0x4c] sm:$0xff]
        %v4439 = vld [vmem:[%s428 + $0x54] sm:$0xff]
        %v4440 = vld [vmem:[%s428 + $0x64] sm:$0xff]
        %v4441 = vld [vmem:[%s428 + $0x6c] sm:$0xff]
        %v4442 = vld [vmem:[%s428 + $0x74] sm:$0xff]
        %v4443 = vld [vmem:[%s428 + $0x84] sm:$0xff]
        %v4444 = vld [vmem:[%s428 + $0x8c] sm:$0xff]
        %v4445 = vld [vmem:[%s428 + $0x94] sm:$0xff]
        %v4446 = vld [vmem:[%s428 + $0xa4] sm:$0xff]
        %v4447 = vld [vmem:[%s428 + $0xac] sm:$0xff]
        %v4448 = vld [vmem:[%s428 + $0xb4] sm:$0xff]
        %v4449 = vld [vmem:[%s428 + $0xc4] sm:$0xff]
        %v4450 = vld [vmem:[%s428 + $0xcc] sm:$0xff]
        %v4451 = vld [vmem:[%s428 + $0xd4] sm:$0xff]
        %v4452 = vld [vmem:[%s428 + $0xe4] sm:$0xff]
        %v4453 = vld [vmem:[%s428 + $0xec] sm:$0xff]
        %v4454 = vld [vmem:[%s428 + $0xf4] sm:$0xff]
        %s4455 = scalar_lea.vmem %s1, 384
        %v4456 = vld [vmem:[%s4455] sm:$0xff]
        %v4457 = vld [vmem:[%s4455 + $0x8] sm:$0xff]
        %v4458 = vld [vmem:[%s4455 + $0x10] sm:$0xff]
        %v4459 = vld [vmem:[%s4455 + $0x18] sm:$0xff]
        %v4460 = vld [vmem:[%s4455 + $0x20] sm:$0xff]
        %v4461 = vld [vmem:[%s4455 + $0x28] sm:$0xff]
        %v4462 = vld [vmem:[%s4455 + $0x30] sm:$0xff]
        %v4463 = vld [vmem:[%s4455 + $0x38] sm:$0xff]
        %v4464 = vld [vmem:[%s4455 + $0x40] sm:$0xff]
        %v4465 = vld [vmem:[%s4455 + $0x48] sm:$0xf]
        %v4466 = vld [vmem:[%s4455 + $0x50] sm:$0xf]
        %v4467 = vld [vmem:[%s4455 + $0x58] sm:$0xf]
        %v4469 = vsel %vm516, %v4431, 0
        %v4472 = vsel %vm516, %v4432, 0
        %v4475 = vsel %vm516, %v4433, 0
        %v4478 = vsel %vm516, %v4434, 0
        %v4481 = vsel %vm516, %v4435, 0
        %v4484 = vsel %vm516, %v4436, 0
        %v4487 = vsel %vm516, %v4437, 0
        %v4490 = vsel %vm516, %v4438, 0
        %v4493 = vsel %vm516, %v4439, 0
        %v4496 = vsel %vm516, %v4440, 0
        %v4499 = vsel %vm516, %v4441, 0
        %v4502 = vsel %vm516, %v4442, 0
        %v4505 = vsel %vm516, %v4443, 0
        %v4508 = vsel %vm516, %v4444, 0
        %v4511 = vsel %vm516, %v4445, 0
        %v4514 = vsel %vm516, %v4446, 0
        %v4517 = vsel %vm516, %v4447, 0
        %v4520 = vsel %vm516, %v4448, 0
        %v4523 = vsel %vm516, %v4449, 0
        %v4526 = vsel %vm516, %v4450, 0
        %v4529 = vsel %vm516, %v4451, 0
        %v4532 = vsel %vm516, %v4452, 0
        %v4535 = vsel %vm516, %v4453, 0
        %v4538 = vsel %vm516, %v4454, 0
        %v4541 = vsel %vm589, %v4465, 0
        %v4544 = vsel %vm589, %v4466, 0
        %v4547 = vsel %vm589, %v4467, 0
        %4549 = vmatprep.subr.mxu0 %v4457
        %4550 = vmatpush1.msra.mxu0 %v4456
        %4551 = vmatprep.subr.mxu0 %v4460
        %4552 = vmatpush1.msra.mxu0 %v4459
        %4553 = vmatprep.subr.mxu0 %v4463
        %4554 = vmatpush1.msra.mxu0 %v4462
        %4555 = vmatprep.subr.mxu0 %v4544
        %4556 = vmatpush1.msra.mxu0 %v4541
        %4557 = vmatprep.subr.mxu0 0.0
        %4558 = vmatpush1.msra.mxu0 0.0
        %4559 = vmatprep.subr.mxu0 0.0
        %4560 = vmatpush1.msra.mxu0 0.0
        %4561 = vmatprep.subr.mxu0 0.0
        %4562 = vmatpush1.msra.mxu0 0.0
        %4563 = vmatprep.subr.mxu0 0.0
        %4564 = vmatpush1.msra.mxu0 0.0
        %4565 = vmatprep.subr.mxu0 0.0
        %4566 = vmatpush1.msra.mxu0 0.0
        %4567 = vmatprep.subr.mxu0 0.0
        %4568 = vmatpush1.msra.mxu0 0.0
        %4569 = vmatprep.subr.mxu0 0.0
        %4570 = vmatpush1.msra.mxu0 0.0
        %4571 = vmatprep.subr.mxu0 0.0
        %4572 = vmatpush1.msra.mxu0 0.0
        %4573 = vmatprep.subr.mxu0 0.0
        %4574 = vmatpush1.msra.mxu0 0.0
        %4575 = vmatprep.subr.mxu0 0.0
        %4576 = vmatpush1.msra.mxu0 0.0
        %4577 = vmatprep.subr.mxu0 0.0
        %4578 = vmatpush1.msra.mxu0 0.0
        %4579 = vmatprep.subr.mxu0 0.0
        %4580 = vmatpush1.msra.mxu0 0.0
        %4581 = vmatprep.subr.mxu0 0.0
        %4582 = vmatpush1.msra.mxu0 0.0
        %4583 = vmatprep.subr.mxu0 0.0
        %4584 = vmatpush1.msra.mxu0 0.0
        %4585 = vmatprep.subr.mxu0 0.0
        %4586 = vmatpush1.msra.mxu0 0.0
        %4587 = vmatprep.subr.mxu0 0.0
        %4588 = vmatpush1.msra.mxu0 0.0
        %4589 = vmatprep.subr.mxu0 0.0
        %4590 = vmatpush1.msra.mxu0 0.0
        %4591 = vmatprep.subr.mxu0 0.0
        %4592 = vmatpush1.msra.mxu0 0.0
        %4593 = vmatprep.subr.mxu0 0.0
        %4594 = vmatpush1.msra.mxu0 0.0
        %4595 = vmatprep.subr.mxu0 0.0
        %4596 = vmatpush1.msra.mxu0 0.0
        %4597 = vmatprep.subr.mxu0 0.0
        %4598 = vmatpush1.msra.mxu0 0.0
        %4599 = vmatprep.subr.mxu0 0.0
        %4600 = vmatpush1.msra.mxu0 0.0
        %4601 = vmatprep.subr.mxu0 0.0
        %4602 = vmatpush1.msra.mxu0 0.0
        %4603 = vmatprep.subr.mxu0 0.0
        %4604 = vmatpush1.msra.mxu0 0.0
        %4605 = vmatprep.subr.mxu0 0.0
        %4606 = vmatpush1.msra.mxu0 0.0
        %4607 = vmatprep.subr.mxu0 0.0
        %4608 = vmatpush1.msra.mxu0 0.0
        %4609 = vmatprep.subr.mxu0 0.0
        %4610 = vmatpush1.msra.mxu0 0.0
        %4611 = vmatprep.subr.mxu0 0.0
        %4612 = vmatpush1.msra.mxu0 0.0
        %4613 = vmatprep.mubr.f32.mxu0 0.0
        %4614 = vmatmul.mubr.f32.gmra.mrb[0].mxu0 %v4469
        %v4615 = vpop.f32.mrb[0].mxu0
        %v4616 = vadd.f32 0.0, %v4615
        %v4617 = vpop.f32.mrb[0].mxu0
        %v4618 = vadd.f32 0.0, %v4617
        %4619 = vmatprep.mubr.f32.mxu0 0.0
        %4620 = vmatmul.mubr.f32.gmra.mrb[0].mxu0 %v4472
        %v4621 = vpop.f32.mrb[0].mxu0
        %v4622 = vadd.f32 0.0, %v4621
        %v4623 = vpop.f32.mrb[0].mxu0
        %v4624 = vadd.f32 0.0, %v4623
        %4625 = vmatprep.mubr.f32.mxu0 0.0
        %4626 = vmatmul.mubr.f32.gmra.mrb[0].mxu0 %v4475
        %v4627 = vpop.f32.mrb[0].mxu0
        %v4628 = vadd.f32 0.0, %v4627
        %v4629 = vpop.f32.mrb[0].mxu0
        %v4630 = vadd.f32 0.0, %v4629
        %4631 = vmatprep.mubr.f32.mxu0 0.0
        %4632 = vmatmul.mubr.f32.gmra.mrb[0].mxu0 %v4478
        %v4633 = vpop.f32.mrb[0].mxu0
        %v4634 = vadd.f32 0.0, %v4633
        %v4635 = vpop.f32.mrb[0].mxu0
        %v4636 = vadd.f32 0.0, %v4635
        %4637 = vmatprep.mubr.f32.mxu0 0.0
        %4638 = vmatmul.mubr.f32.gmra.mrb[0].mxu0 %v4481
        %v4639 = vpop.f32.mrb[0].mxu0
        %v4640 = vadd.f32 0.0, %v4639
        %v4641 = vpop.f32.mrb[0].mxu0
        %v4642 = vadd.f32 0.0, %v4641
        %4643 = vmatprep.mubr.f32.mxu0 0.0
        %4644 = vmatmul.mubr.f32.gmra.mrb[0].mxu0 %v4484
        %v4645 = vpop.f32.mrb[0].mxu0
        %v4646 = vadd.f32 0.0, %v4645
        %v4647 = vpop.f32.mrb[0].mxu0
        %v4648 = vadd.f32 0.0, %v4647
        %4649 = vmatprep.mubr.f32.mxu0 0.0
        %4650 = vmatmul.mubr.f32.gmra.mrb[0].mxu0 %v4487
        %v4651 = vpop.f32.mrb[0].mxu0
        %v4652 = vadd.f32 0.0, %v4651
        %v4653 = vpop.f32.mrb[0].mxu0
        %v4654 = vadd.f32 0.0, %v4653
        %4655 = vmatprep.mubr.f32.mxu0 0.0
        %4656 = vmatmul.mubr.f32.gmra.mrb[0].mxu0 %v4490
        %v4657 = vpop.f32.mrb[0].mxu0
        %v4658 = vadd.f32 0.0, %v4657
        %v4659 = vpop.f32.mrb[0].mxu0
        %v4660 = vadd.f32 0.0, %v4659
        %4661 = vmatprep.mubr.f32.mxu0 0.0
        %4662 = vmatmul.mubr.f32.gmra.mrb[0].mxu0 %v4493
        %v4663 = vpop.f32.mrb[0].mxu0
        %v4664 = vadd.f32 0.0, %v4663
        %v4665 = vpop.f32.mrb[0].mxu0
        %v4666 = vadd.f32 0.0, %v4665
        %4667 = vmatprep.mubr.f32.mxu0 0.0
        %4668 = vmatmul.mubr.f32.gmra.mrb[0].mxu0 %v4496
        %v4669 = vpop.f32.mrb[0].mxu0
        %v4670 = vadd.f32 0.0, %v4669
        %v4671 = vpop.f32.mrb[0].mxu0
        %v4672 = vadd.f32 0.0, %v4671
        %4673 = vmatprep.mubr.f32.mxu0 0.0
        %4674 = vmatmul.mubr.f32.gmra.mrb[0].mxu0 %v4499
        %v4675 = vpop.f32.mrb[0].mxu0
        %v4676 = vadd.f32 0.0, %v4675
        %v4677 = vpop.f32.mrb[0].mxu0
        %v4678 = vadd.f32 0.0, %v4677
        %4679 = vmatprep.mubr.f32.mxu0 0.0
        %4680 = vmatmul.mubr.f32.gmra.mrb[0].mxu0 %v4502
        %v4681 = vpop.f32.mrb[0].mxu0
        %v4682 = vadd.f32 0.0, %v4681
        %v4683 = vpop.f32.mrb[0].mxu0
        %v4684 = vadd.f32 0.0, %v4683
        %4685 = vmatprep.mubr.f32.mxu0 0.0
        %4686 = vmatmul.mubr.f32.gmra.mrb[0].mxu0 %v4505
        %v4687 = vpop.f32.mrb[0].mxu0
        %v4688 = vadd.f32 0.0, %v4687
        %v4689 = vpop.f32.mrb[0].mxu0
        %v4690 = vadd.f32 0.0, %v4689
        %4691 = vmatprep.mubr.f32.mxu0 0.0
        %4692 = vmatmul.mubr.f32.gmra.mrb[0].mxu0 %v4508
        %v4693 = vpop.f32.mrb[0].mxu0
        %v4694 = vadd.f32 0.0, %v4693
        %v4695 = vpop.f32.mrb[0].mxu0
        %v4696 = vadd.f32 0.0, %v4695
        %4697 = vmatprep.mubr.f32.mxu0 0.0
        %4698 = vmatmul.mubr.f32.gmra.mrb[0].mxu0 %v4511
        %v4699 = vpop.f32.mrb[0].mxu0
        %v4700 = vadd.f32 0.0, %v4699
        %v4701 = vpop.f32.mrb[0].mxu0
        %v4702 = vadd.f32 0.0, %v4701
        %4703 = vmatprep.mubr.f32.mxu0 0.0
        %4704 = vmatmul.mubr.f32.gmra.mrb[0].mxu0 %v4514
        %v4705 = vpop.f32.mrb[0].mxu0
        %v4706 = vadd.f32 0.0, %v4705
        %v4707 = vpop.f32.mrb[0].mxu0
        %v4708 = vadd.f32 0.0, %v4707
        %4709 = vmatprep.mubr.f32.mxu0 0.0
        %4710 = vmatmul.mubr.f32.gmra.mrb[0].mxu0 %v4517
        %v4711 = vpop.f32.mrb[0].mxu0
        %v4712 = vadd.f32 0.0, %v4711
        %v4713 = vpop.f32.mrb[0].mxu0
        %v4714 = vadd.f32 0.0, %v4713
        %4715 = vmatprep.mubr.f32.mxu0 0.0
        %4716 = vmatmul.mubr.f32.gmra.mrb[0].mxu0 %v4520
        %v4717 = vpop.f32.mrb[0].mxu0
        %v4718 = vadd.f32 0.0, %v4717
        %v4719 = vpop.f32.mrb[0].mxu0
        %v4720 = vadd.f32 0.0, %v4719
        %4721 = vmatprep.mubr.f32.mxu0 0.0
        %4722 = vmatmul.mubr.f32.gmra.mrb[0].mxu0 %v4523
        %v4723 = vpop.f32.mrb[0].mxu0
        %v4724 = vadd.f32 0.0, %v4723
        %v4725 = vpop.f32.mrb[0].mxu0
        %v4726 = vadd.f32 0.0, %v4725
        %4727 = vmatprep.mubr.f32.mxu0 0.0
        %4728 = vmatmul.mubr.f32.gmra.mrb[0].mxu0 %v4526
        %v4729 = vpop.f32.mrb[0].mxu0
        %v4730 = vadd.f32 0.0, %v4729
        %v4731 = vpop.f32.mrb[0].mxu0
        %v4732 = vadd.f32 0.0, %v4731
        %4733 = vmatprep.mubr.f32.mxu0 0.0
        %4734 = vmatmul.mubr.f32.gmra.mrb[0].mxu0 %v4529
        %v4735 = vpop.f32.mrb[0].mxu0
        %v4736 = vadd.f32 0.0, %v4735
        %v4737 = vpop.f32.mrb[0].mxu0
        %v4738 = vadd.f32 0.0, %v4737
        %4739 = vmatprep.mubr.f32.mxu0 0.0
        %4740 = vmatmul.mubr.f32.gmra.mrb[0].mxu0 %v4532
        %v4741 = vpop.f32.mrb[0].mxu0
        %v4742 = vadd.f32 0.0, %v4741
        %v4743 = vpop.f32.mrb[0].mxu0
        %v4744 = vadd.f32 0.0, %v4743
        %4745 = vmatprep.mubr.f32.mxu0 0.0
        %4746 = vmatmul.mubr.f32.gmra.mrb[0].mxu0 %v4535
        %v4747 = vpop.f32.mrb[0].mxu0
        %v4748 = vadd.f32 0.0, %v4747
        %v4749 = vpop.f32.mrb[0].mxu0
        %v4750 = vadd.f32 0.0, %v4749
        %4751 = vmatprep.mubr.f32.mxu0 0.0
        %4752 = vmatmul.mubr.f32.gmra.mrb[0].mxu0 %v4538
        %v4753 = vpop.f32.mrb[0].mxu0
        %v4754 = vadd.f32 0.0, %v4753
        %v4755 = vpop.f32.mrb[0].mxu0
        %v4756 = vadd.f32 0.0, %v4755
        %4757 = vdwg.mxu0
        %4758 = vmatprep.subr.mxu0 0.0
        %4759 = vmatpush1.msra.mxu0 %v4458
        %4760 = vmatprep.subr.mxu0 0.0
        %4761 = vmatpush1.msra.mxu0 %v4461
        %4762 = vmatprep.subr.mxu0 0.0
        %4763 = vmatpush1.msra.mxu0 %v4464
        %4764 = vmatprep.subr.mxu0 0.0
        %4765 = vmatpush1.msra.mxu0 %v4547
        %4766 = vmatprep.subr.mxu0 0.0
        %4767 = vmatpush1.msra.mxu0 0.0
        %4768 = vmatprep.subr.mxu0 0.0
        %4769 = vmatpush1.msra.mxu0 0.0
        %4770 = vmatprep.subr.mxu0 0.0
        %4771 = vmatpush1.msra.mxu0 0.0
        %4772 = vmatprep.subr.mxu0 0.0
        %4773 = vmatpush1.msra.mxu0 0.0
        %4774 = vmatprep.subr.mxu0 0.0
        %4775 = vmatpush1.msra.mxu0 0.0
        %4776 = vmatprep.subr.mxu0 0.0
        %4777 = vmatpush1.msra.mxu0 0.0
        %4778 = vmatprep.subr.mxu0 0.0
        %4779 = vmatpush1.msra.mxu0 0.0
        %4780 = vmatprep.subr.mxu0 0.0
        %4781 = vmatpush1.msra.mxu0 0.0
        %4782 = vmatprep.subr.mxu0 0.0
        %4783 = vmatpush1.msra.mxu0 0.0
        %4784 = vmatprep.subr.mxu0 0.0
        %4785 = vmatpush1.msra.mxu0 0.0
        %4786 = vmatprep.subr.mxu0 0.0
        %4787 = vmatpush1.msra.mxu0 0.0
        %4788 = vmatprep.subr.mxu0 0.0
        %4789 = vmatpush1.msra.mxu0 0.0
        %4790 = vmatprep.subr.mxu0 0.0
        %4791 = vmatpush1.msra.mxu0 0.0
        %4792 = vmatprep.subr.mxu0 0.0
        %4793 = vmatpush1.msra.mxu0 0.0
        %4794 = vmatprep.subr.mxu0 0.0
        %4795 = vmatpush1.msra.mxu0 0.0
        %4796 = vmatprep.subr.mxu0 0.0
        %4797 = vmatpush1.msra.mxu0 0.0
        %4798 = vmatprep.subr.mxu0 0.0
        %4799 = vmatpush1.msra.mxu0 0.0
        %4800 = vmatprep.subr.mxu0 0.0
        %4801 = vmatpush1.msra.mxu0 0.0
        %4802 = vmatprep.subr.mxu0 0.0
        %4803 = vmatpush1.msra.mxu0 0.0
        %4804 = vmatprep.subr.mxu0 0.0
        %4805 = vmatpush1.msra.mxu0 0.0
        %4806 = vmatprep.subr.mxu0 0.0
        %4807 = vmatpush1.msra.mxu0 0.0
        %4808 = vmatprep.subr.mxu0 0.0
        %4809 = vmatpush1.msra.mxu0 0.0
        %4810 = vmatprep.subr.mxu0 0.0
        %4811 = vmatpush1.msra.mxu0 0.0
        %4812 = vmatprep.subr.mxu0 0.0
        %4813 = vmatpush1.msra.mxu0 0.0
        %4814 = vmatprep.subr.mxu0 0.0
        %4815 = vmatpush1.msra.mxu0 0.0
        %4816 = vmatprep.subr.mxu0 0.0
        %4817 = vmatpush1.msra.mxu0 0.0
        %4818 = vmatprep.subr.mxu0 0.0
        %4819 = vmatpush1.msra.mxu0 0.0
        %4820 = vmatprep.subr.mxu0 0.0
        %4821 = vmatpush1.msra.mxu0 0.0
        %4822 = vmatprep.mubr.f32.mxu0 0.0
        %4823 = vmatmul.mubr.f32.gmra.mrb[0].mxu0 %v4469
        %v4824 = vpop.f32.mrb[0].mxu0
        %v4825 = vadd.f32 0.0, %v4824
        %v4826 = vpop.f32.mrb[0].mxu0
        %4827 = vmatprep.mubr.f32.mxu0 0.0
        %4828 = vmatmul.mubr.f32.gmra.mrb[0].mxu0 %v4472
        %v4829 = vpop.f32.mrb[0].mxu0
        %v4830 = vadd.f32 0.0, %v4829
        %v4831 = vpop.f32.mrb[0].mxu0
        %4832 = vmatprep.mubr.f32.mxu0 0.0
        %4833 = vmatmul.mubr.f32.gmra.mrb[0].mxu0 %v4475
        %v4834 = vpop.f32.mrb[0].mxu0
        %v4835 = vadd.f32 0.0, %v4834
        %v4836 = vpop.f32.mrb[0].mxu0
        %4837 = vmatprep.mubr.f32.mxu0 0.0
        %4838 = vmatmul.mubr.f32.gmra.mrb[0].mxu0 %v4478
        %v4839 = vpop.f32.mrb[0].mxu0
        %v4840 = vadd.f32 0.0, %v4839
        %v4841 = vpop.f32.mrb[0].mxu0
        %4842 = vmatprep.mubr.f32.mxu0 0.0
        %4843 = vmatmul.mubr.f32.gmra.mrb[0].mxu0 %v4481
        %v4844 = vpop.f32.mrb[0].mxu0
        %v4845 = vadd.f32 0.0, %v4844
        %v4846 = vpop.f32.mrb[0].mxu0
        %4847 = vmatprep.mubr.f32.mxu0 0.0
        %4848 = vmatmul.mubr.f32.gmra.mrb[0].mxu0 %v4484
        %v4849 = vpop.f32.mrb[0].mxu0
        %v4850 = vadd.f32 0.0, %v4849
        %v4851 = vpop.f32.mrb[0].mxu0
        %4852 = vmatprep.mubr.f32.mxu0 0.0
        %4853 = vmatmul.mubr.f32.gmra.mrb[0].mxu0 %v4487
        %v4854 = vpop.f32.mrb[0].mxu0
        %v4855 = vadd.f32 0.0, %v4854
        %v4856 = vpop.f32.mrb[0].mxu0
        %4857 = vmatprep.mubr.f32.mxu0 0.0
        %4858 = vmatmul.mubr.f32.gmra.mrb[0].mxu0 %v4490
        %v4859 = vpop.f32.mrb[0].mxu0
        %v4860 = vadd.f32 0.0, %v4859
        %v4861 = vpop.f32.mrb[0].mxu0
        %4862 = vmatprep.mubr.f32.mxu0 0.0
        %4863 = vmatmul.mubr.f32.gmra.mrb[0].mxu0 %v4493
        %v4864 = vpop.f32.mrb[0].mxu0
        %v4865 = vadd.f32 0.0, %v4864
        %v4866 = vpop.f32.mrb[0].mxu0
        %4867 = vmatprep.mubr.f32.mxu0 0.0
        %4868 = vmatmul.mubr.f32.gmra.mrb[0].mxu0 %v4496
        %v4869 = vpop.f32.mrb[0].mxu0
        %v4870 = vadd.f32 0.0, %v4869
        %v4871 = vpop.f32.mrb[0].mxu0
        %4872 = vmatprep.mubr.f32.mxu0 0.0
        %4873 = vmatmul.mubr.f32.gmra.mrb[0].mxu0 %v4499
        %v4874 = vpop.f32.mrb[0].mxu0
        %v4875 = vadd.f32 0.0, %v4874
        %v4876 = vpop.f32.mrb[0].mxu0
        %4877 = vmatprep.mubr.f32.mxu0 0.0
        %4878 = vmatmul.mubr.f32.gmra.mrb[0].mxu0 %v4502
        %v4879 = vpop.f32.mrb[0].mxu0
        %v4880 = vadd.f32 0.0, %v4879
        %v4881 = vpop.f32.mrb[0].mxu0
        %4882 = vmatprep.mubr.f32.mxu0 0.0
        %4883 = vmatmul.mubr.f32.gmra.mrb[0].mxu0 %v4505
        %v4884 = vpop.f32.mrb[0].mxu0
        %v4885 = vadd.f32 0.0, %v4884
        %v4886 = vpop.f32.mrb[0].mxu0
        %4887 = vmatprep.mubr.f32.mxu0 0.0
        %4888 = vmatmul.mubr.f32.gmra.mrb[0].mxu0 %v4508
        %v4889 = vpop.f32.mrb[0].mxu0
        %v4890 = vadd.f32 0.0, %v4889
        %v4891 = vpop.f32.mrb[0].mxu0
        %4892 = vmatprep.mubr.f32.mxu0 0.0
        %4893 = vmatmul.mubr.f32.gmra.mrb[0].mxu0 %v4511
        %v4894 = vpop.f32.mrb[0].mxu0
        %v4895 = vadd.f32 0.0, %v4894
        %v4896 = vpop.f32.mrb[0].mxu0
        %4897 = vmatprep.mubr.f32.mxu0 0.0
        %4898 = vmatmul.mubr.f32.gmra.mrb[0].mxu0 %v4514
        %v4899 = vpop.f32.mrb[0].mxu0
        %v4900 = vadd.f32 0.0, %v4899
        %v4901 = vpop.f32.mrb[0].mxu0
        %4902 = vmatprep.mubr.f32.mxu0 0.0
        %4903 = vmatmul.mubr.f32.gmra.mrb[0].mxu0 %v4517
        %v4904 = vpop.f32.mrb[0].mxu0
        %v4905 = vadd.f32 0.0, %v4904
        %v4906 = vpop.f32.mrb[0].mxu0
        %4907 = vmatprep.mubr.f32.mxu0 0.0
        %4908 = vmatmul.mubr.f32.gmra.mrb[0].mxu0 %v4520
        %v4909 = vpop.f32.mrb[0].mxu0
        %v4910 = vadd.f32 0.0, %v4909
        %v4911 = vpop.f32.mrb[0].mxu0
        %4912 = vmatprep.mubr.f32.mxu0 0.0
        %4913 = vmatmul.mubr.f32.gmra.mrb[0].mxu0 %v4523
        %v4914 = vpop.f32.mrb[0].mxu0
        %v4915 = vadd.f32 0.0, %v4914
        %v4916 = vpop.f32.mrb[0].mxu0
        %4917 = vmatprep.mubr.f32.mxu0 0.0
        %4918 = vmatmul.mubr.f32.gmra.mrb[0].mxu0 %v4526
        %v4919 = vpop.f32.mrb[0].mxu0
        %v4920 = vadd.f32 0.0, %v4919
        %v4921 = vpop.f32.mrb[0].mxu0
        %4922 = vmatprep.mubr.f32.mxu0 0.0
        %4923 = vmatmul.mubr.f32.gmra.mrb[0].mxu0 %v4529
        %v4924 = vpop.f32.mrb[0].mxu0
        %v4925 = vadd.f32 0.0, %v4924
        %v4926 = vpop.f32.mrb[0].mxu0
        %4927 = vmatprep.mubr.f32.mxu0 0.0
        %4928 = vmatmul.mubr.f32.gmra.mrb[0].mxu0 %v4532
        %v4929 = vpop.f32.mrb[0].mxu0
        %v4930 = vadd.f32 0.0, %v4929
        %v4931 = vpop.f32.mrb[0].mxu0
        %4932 = vmatprep.mubr.f32.mxu0 0.0
        %4933 = vmatmul.mubr.f32.gmra.mrb[0].mxu0 %v4535
        %v4934 = vpop.f32.mrb[0].mxu0
        %v4935 = vadd.f32 0.0, %v4934
        %v4936 = vpop.f32.mrb[0].mxu0
        %4937 = vmatprep.mubr.f32.mxu0 0.0
        %4938 = vmatmul.mubr.f32.gmra.mrb[0].mxu0 %v4538
        %v4939 = vpop.f32.mrb[0].mxu0
        %v4940 = vadd.f32 0.0, %v4939
        %v4941 = vpop.f32.mrb[0].mxu0
        %4942 = vdwg.mxu0
        %v4943 = vadd.f32 %v3871, %v4616
        %v4944 = vadd.f32 %v3872, %v4618
        %v4945 = vadd.f32 %v3873, %v4825
        %v4946 = vadd.f32 %v3874, %v4622
        %v4947 = vadd.f32 %v3875, %v4624
        %v4948 = vadd.f32 %v3876, %v4830
        %v4949 = vadd.f32 %v3877, %v4628
        %v4950 = vadd.f32 %v3878, %v4630
        %v4951 = vadd.f32 %v3879, %v4835
        %v4952 = vadd.f32 %v3880, %v4634
        %v4953 = vadd.f32 %v3881, %v4636
        %v4954 = vadd.f32 %v3882, %v4840
        %v4955 = vadd.f32 %v3883, %v4640
        %v4956 = vadd.f32 %v3884, %v4642
        %v4957 = vadd.f32 %v3885, %v4845
        %v4958 = vadd.f32 %v3886, %v4646
        %v4959 = vadd.f32 %v3887, %v4648
        %v4960 = vadd.f32 %v3888, %v4850
        %v4961 = vadd.f32 %v3889, %v4652
        %v4962 = vadd.f32 %v3890, %v4654
        %v4963 = vadd.f32 %v3891, %v4855
        %v4964 = vadd.f32 %v3892, %v4658
        %v4965 = vadd.f32 %v3893, %v4660
        %v4966 = vadd.f32 %v3894, %v4860
        %v4967 = vadd.f32 %v3895, %v4664
        %v4968 = vadd.f32 %v3896, %v4666
        %v4969 = vadd.f32 %v3897, %v4865
        %v4970 = vadd.f32 %v3898, %v4670
        %v4971 = vadd.f32 %v3899, %v4672
        %v4972 = vadd.f32 %v3900, %v4870
        %v4973 = vadd.f32 %v3901, %v4676
        %v4974 = vadd.f32 %v3902, %v4678
        %v4975 = vadd.f32 %v3903, %v4875
        %v4976 = vadd.f32 %v3904, %v4682
        %v4977 = vadd.f32 %v3905, %v4684
        %v4978 = vadd.f32 %v3906, %v4880
        %v4979 = vadd.f32 %v3907, %v4688
        %v4980 = vadd.f32 %v3908, %v4690
        %v4981 = vadd.f32 %v3909, %v4885
        %v4982 = vadd.f32 %v3910, %v4694
        %v4983 = vadd.f32 %v3911, %v4696
        %v4984 = vadd.f32 %v3912, %v4890
        %v4985 = vadd.f32 %v3913, %v4700
        %v4986 = vadd.f32 %v3914, %v4702
        %v4987 = vadd.f32 %v3915, %v4895
        %v4988 = vadd.f32 %v3916, %v4706
        %v4989 = vadd.f32 %v3917, %v4708
        %v4990 = vadd.f32 %v3918, %v4900
        %v4991 = vadd.f32 %v3919, %v4712
        %v4992 = vadd.f32 %v3920, %v4714
        %v4993 = vadd.f32 %v3921, %v4905
        %v4994 = vadd.f32 %v3922, %v4718
        %v4995 = vadd.f32 %v3923, %v4720
        %v4996 = vadd.f32 %v3924, %v4910
        %v4997 = vadd.f32 %v3925, %v4724
        %v4998 = vadd.f32 %v3926, %v4726
        %v4999 = vadd.f32 %v3927, %v4915
        %v5000 = vadd.f32 %v3928, %v4730
        %v5001 = vadd.f32 %v3929, %v4732
        %v5002 = vadd.f32 %v3930, %v4920
        %v5003 = vadd.f32 %v3931, %v4736
        %v5004 = vadd.f32 %v3932, %v4738
        %v5005 = vadd.f32 %v3933, %v4925
        %v5006 = vadd.f32 %v3934, %v4742
        %v5007 = vadd.f32 %v3935, %v4744
        %v5008 = vadd.f32 %v3936, %v4930
        %v5009 = vadd.f32 %v3937, %v4748
        %v5010 = vadd.f32 %v3938, %v4750
        %v5011 = vadd.f32 %v3939, %v4935
        %v5012 = vadd.f32 %v3940, %v4754
        %v5013 = vadd.f32 %v3941, %v4756
        %v5014 = vadd.f32 %v3942, %v4940
        %s5015 = scalar_lea.vmem %s1, 864
        %v5016 = vld [vmem:[%s5015] sm:$0xff]
        %v5017 = vld [vmem:[%s5015 + $0x8] sm:$0xff]
        %v5018 = vld [vmem:[%s5015 + $0x10] sm:$0xff]
        %v5019 = vld [vmem:[%s5015 + $0x18] sm:$0xff]
        %v5020 = vld [vmem:[%s5015 + $0x20] sm:$0xff]
        %v5021 = vld [vmem:[%s5015 + $0x28] sm:$0xff]
        %v5022 = vld [vmem:[%s5015 + $0x30] sm:$0xff]
        %v5023 = vld [vmem:[%s5015 + $0x38] sm:$0xff]
        %v5024 = vld [vmem:[%s5015 + $0x40] sm:$0xff]
        %v5025 = vld [vmem:[%s5015 + $0x48] sm:$0xf]
        %v5026 = vld [vmem:[%s5015 + $0x50] sm:$0xf]
        %v5027 = vld [vmem:[%s5015 + $0x58] sm:$0xf]
        %v5029 = vsel %vm589, %v5025, 0
        %v5032 = vsel %vm589, %v5026, 0
        %v5035 = vsel %vm589, %v5027, 0
        %5037 = vmatprep.subr.mxu0 %v5017
        %5038 = vmatpush1.msra.mxu0 %v5016
        %5039 = vmatprep.subr.mxu0 %v5020
        %5040 = vmatpush1.msra.mxu0 %v5019
        %5041 = vmatprep.subr.mxu0 %v5023
        %5042 = vmatpush1.msra.mxu0 %v5022
        %5043 = vmatprep.subr.mxu0 %v5032
        %5044 = vmatpush1.msra.mxu0 %v5029
        %5045 = vmatprep.subr.mxu0 0.0
        %5046 = vmatpush1.msra.mxu0 0.0
        %5047 = vmatprep.subr.mxu0 0.0
        %5048 = vmatpush1.msra.mxu0 0.0
        %5049 = vmatprep.subr.mxu0 0.0
        %5050 = vmatpush1.msra.mxu0 0.0
        %5051 = vmatprep.subr.mxu0 0.0
        %5052 = vmatpush1.msra.mxu0 0.0
        %5053 = vmatprep.subr.mxu0 0.0
        %5054 = vmatpush1.msra.mxu0 0.0
        %5055 = vmatprep.subr.mxu0 0.0
        %5056 = vmatpush1.msra.mxu0 0.0
        %5057 = vmatprep.subr.mxu0 0.0
        %5058 = vmatpush1.msra.mxu0 0.0
        %5059 = vmatprep.subr.mxu0 0.0
        %5060 = vmatpush1.msra.mxu0 0.0
        %5061 = vmatprep.subr.mxu0 0.0
        %5062 = vmatpush1.msra.mxu0 0.0
        %5063 = vmatprep.subr.mxu0 0.0
        %5064 = vmatpush1.msra.mxu0 0.0
        %5065 = vmatprep.subr.mxu0 0.0
        %5066 = vmatpush1.msra.mxu0 0.0
        %5067 = vmatprep.subr.mxu0 0.0
        %5068 = vmatpush1.msra.mxu0 0.0
        %5069 = vmatprep.subr.mxu0 0.0
        %5070 = vmatpush1.msra.mxu0 0.0
        %5071 = vmatprep.subr.mxu0 0.0
        %5072 = vmatpush1.msra.mxu0 0.0
        %5073 = vmatprep.subr.mxu0 0.0
        %5074 = vmatpush1.msra.mxu0 0.0
        %5075 = vmatprep.subr.mxu0 0.0
        %5076 = vmatpush1.msra.mxu0 0.0
        %5077 = vmatprep.subr.mxu0 0.0
        %5078 = vmatpush1.msra.mxu0 0.0
        %5079 = vmatprep.subr.mxu0 0.0
        %5080 = vmatpush1.msra.mxu0 0.0
        %5081 = vmatprep.subr.mxu0 0.0
        %5082 = vmatpush1.msra.mxu0 0.0
        %5083 = vmatprep.subr.mxu0 0.0
        %5084 = vmatpush1.msra.mxu0 0.0
        %5085 = vmatprep.subr.mxu0 0.0
        %5086 = vmatpush1.msra.mxu0 0.0
        %5087 = vmatprep.subr.mxu0 0.0
        %5088 = vmatpush1.msra.mxu0 0.0
        %5089 = vmatprep.subr.mxu0 0.0
        %5090 = vmatpush1.msra.mxu0 0.0
        %5091 = vmatprep.subr.mxu0 0.0
        %5092 = vmatpush1.msra.mxu0 0.0
        %5093 = vmatprep.subr.mxu0 0.0
        %5094 = vmatpush1.msra.mxu0 0.0
        %5095 = vmatprep.subr.mxu0 0.0
        %5096 = vmatpush1.msra.mxu0 0.0
        %5097 = vmatprep.subr.mxu0 0.0
        %5098 = vmatpush1.msra.mxu0 0.0
        %5099 = vmatprep.subr.mxu0 0.0
        %5100 = vmatpush1.msra.mxu0 0.0
        %5101 = vmatprep.mubr.f32.mxu0 0.0
        %5102 = vmatmul.mubr.f32.gmra.mrb[0].mxu0 %v4469
        %v5103 = vpop.f32.mrb[0].mxu0
        %v5104 = vadd.f32 0.0, %v5103
        %v5105 = vpop.f32.mrb[0].mxu0
        %v5106 = vadd.f32 0.0, %v5105
        %5107 = vmatprep.mubr.f32.mxu0 0.0
        %5108 = vmatmul.mubr.f32.gmra.mrb[0].mxu0 %v4472
        %v5109 = vpop.f32.mrb[0].mxu0
        %v5110 = vadd.f32 0.0, %v5109
        %v5111 = vpop.f32.mrb[0].mxu0
        %v5112 = vadd.f32 0.0, %v5111
        %5113 = vmatprep.mubr.f32.mxu0 0.0
        %5114 = vmatmul.mubr.f32.gmra.mrb[0].mxu0 %v4475
        %v5115 = vpop.f32.mrb[0].mxu0
        %v5116 = vadd.f32 0.0, %v5115
        %v5117 = vpop.f32.mrb[0].mxu0
        %v5118 = vadd.f32 0.0, %v5117
        %5119 = vmatprep.mubr.f32.mxu0 0.0
        %5120 = vmatmul.mubr.f32.gmra.mrb[0].mxu0 %v4478
        %v5121 = vpop.f32.mrb[0].mxu0
        %v5122 = vadd.f32 0.0, %v5121
        %v5123 = vpop.f32.mrb[0].mxu0
        %v5124 = vadd.f32 0.0, %v5123
        %5125 = vmatprep.mubr.f32.mxu0 0.0
        %5126 = vmatmul.mubr.f32.gmra.mrb[0].mxu0 %v4481
        %v5127 = vpop.f32.mrb[0].mxu0
        %v5128 = vadd.f32 0.0, %v5127
        %v5129 = vpop.f32.mrb[0].mxu0
        %v5130 = vadd.f32 0.0, %v5129
        %5131 = vmatprep.mubr.f32.mxu0 0.0
        %5132 = vmatmul.mubr.f32.gmra.mrb[0].mxu0 %v4484
        %v5133 = vpop.f32.mrb[0].mxu0
        %v5134 = vadd.f32 0.0, %v5133
        %v5135 = vpop.f32.mrb[0].mxu0
        %v5136 = vadd.f32 0.0, %v5135
        %5137 = vmatprep.mubr.f32.mxu0 0.0
        %5138 = vmatmul.mubr.f32.gmra.mrb[0].mxu0 %v4487
        %v5139 = vpop.f32.mrb[0].mxu0
        %v5140 = vadd.f32 0.0, %v5139
        %v5141 = vpop.f32.mrb[0].mxu0
        %v5142 = vadd.f32 0.0, %v5141
        %5143 = vmatprep.mubr.f32.mxu0 0.0
        %5144 = vmatmul.mubr.f32.gmra.mrb[0].mxu0 %v4490
        %v5145 = vpop.f32.mrb[0].mxu0
        %v5146 = vadd.f32 0.0, %v5145
        %v5147 = vpop.f32.mrb[0].mxu0
        %v5148 = vadd.f32 0.0, %v5147
        %5149 = vmatprep.mubr.f32.mxu0 0.0
        %5150 = vmatmul.mubr.f32.gmra.mrb[0].mxu0 %v4493
        %v5151 = vpop.f32.mrb[0].mxu0
        %v5152 = vadd.f32 0.0, %v5151
        %v5153 = vpop.f32.mrb[0].mxu0
        %v5154 = vadd.f32 0.0, %v5153
        %5155 = vmatprep.mubr.f32.mxu0 0.0
        %5156 = vmatmul.mubr.f32.gmra.mrb[0].mxu0 %v4496
        %v5157 = vpop.f32.mrb[0].mxu0
        %v5158 = vadd.f32 0.0, %v5157
        %v5159 = vpop.f32.mrb[0].mxu0
        %v5160 = vadd.f32 0.0, %v5159
        %5161 = vmatprep.mubr.f32.mxu0 0.0
        %5162 = vmatmul.mubr.f32.gmra.mrb[0].mxu0 %v4499
        %v5163 = vpop.f32.mrb[0].mxu0
        %v5164 = vadd.f32 0.0, %v5163
        %v5165 = vpop.f32.mrb[0].mxu0
        %v5166 = vadd.f32 0.0, %v5165
        %5167 = vmatprep.mubr.f32.mxu0 0.0
        %5168 = vmatmul.mubr.f32.gmra.mrb[0].mxu0 %v4502
        %v5169 = vpop.f32.mrb[0].mxu0
        %v5170 = vadd.f32 0.0, %v5169
        %v5171 = vpop.f32.mrb[0].mxu0
        %v5172 = vadd.f32 0.0, %v5171
        %5173 = vmatprep.mubr.f32.mxu0 0.0
        %5174 = vmatmul.mubr.f32.gmra.mrb[0].mxu0 %v4505
        %v5175 = vpop.f32.mrb[0].mxu0
        %v5176 = vadd.f32 0.0, %v5175
        %v5177 = vpop.f32.mrb[0].mxu0
        %v5178 = vadd.f32 0.0, %v5177
        %5179 = vmatprep.mubr.f32.mxu0 0.0
        %5180 = vmatmul.mubr.f32.gmra.mrb[0].mxu0 %v4508
        %v5181 = vpop.f32.mrb[0].mxu0
        %v5182 = vadd.f32 0.0, %v5181
        %v5183 = vpop.f32.mrb[0].mxu0
        %v5184 = vadd.f32 0.0, %v5183
        %5185 = vmatprep.mubr.f32.mxu0 0.0
        %5186 = vmatmul.mubr.f32.gmra.mrb[0].mxu0 %v4511
        %v5187 = vpop.f32.mrb[0].mxu0
        %v5188 = vadd.f32 0.0, %v5187
        %v5189 = vpop.f32.mrb[0].mxu0
        %v5190 = vadd.f32 0.0, %v5189
        %5191 = vmatprep.mubr.f32.mxu0 0.0
        %5192 = vmatmul.mubr.f32.gmra.mrb[0].mxu0 %v4514
        %v5193 = vpop.f32.mrb[0].mxu0
        %v5194 = vadd.f32 0.0, %v5193
        %v5195 = vpop.f32.mrb[0].mxu0
        %v5196 = vadd.f32 0.0, %v5195
        %5197 = vmatprep.mubr.f32.mxu0 0.0
        %5198 = vmatmul.mubr.f32.gmra.mrb[0].mxu0 %v4517
        %v5199 = vpop.f32.mrb[0].mxu0
        %v5200 = vadd.f32 0.0, %v5199
        %v5201 = vpop.f32.mrb[0].mxu0
        %v5202 = vadd.f32 0.0, %v5201
        %5203 = vmatprep.mubr.f32.mxu0 0.0
        %5204 = vmatmul.mubr.f32.gmra.mrb[0].mxu0 %v4520
        %v5205 = vpop.f32.mrb[0].mxu0
        %v5206 = vadd.f32 0.0, %v5205
        %v5207 = vpop.f32.mrb[0].mxu0
        %v5208 = vadd.f32 0.0, %v5207
        %5209 = vmatprep.mubr.f32.mxu0 0.0
        %5210 = vmatmul.mubr.f32.gmra.mrb[0].mxu0 %v4523
        %v5211 = vpop.f32.mrb[0].mxu0
        %v5212 = vadd.f32 0.0, %v5211
        %v5213 = vpop.f32.mrb[0].mxu0
        %v5214 = vadd.f32 0.0, %v5213
        %5215 = vmatprep.mubr.f32.mxu0 0.0
        %5216 = vmatmul.mubr.f32.gmra.mrb[0].mxu0 %v4526
        %v5217 = vpop.f32.mrb[0].mxu0
        %v5218 = vadd.f32 0.0, %v5217
        %v5219 = vpop.f32.mrb[0].mxu0
        %v5220 = vadd.f32 0.0, %v5219
        %5221 = vmatprep.mubr.f32.mxu0 0.0
        %5222 = vmatmul.mubr.f32.gmra.mrb[0].mxu0 %v4529
        %v5223 = vpop.f32.mrb[0].mxu0
        %v5224 = vadd.f32 0.0, %v5223
        %v5225 = vpop.f32.mrb[0].mxu0
        %v5226 = vadd.f32 0.0, %v5225
        %5227 = vmatprep.mubr.f32.mxu0 0.0
        %5228 = vmatmul.mubr.f32.gmra.mrb[0].mxu0 %v4532
        %v5229 = vpop.f32.mrb[0].mxu0
        %v5230 = vadd.f32 0.0, %v5229
        %v5231 = vpop.f32.mrb[0].mxu0
        %v5232 = vadd.f32 0.0, %v5231
        %5233 = vmatprep.mubr.f32.mxu0 0.0
        %5234 = vmatmul.mubr.f32.gmra.mrb[0].mxu0 %v4535
        %v5235 = vpop.f32.mrb[0].mxu0
        %v5236 = vadd.f32 0.0, %v5235
        %v5237 = vpop.f32.mrb[0].mxu0
        %v5238 = vadd.f32 0.0, %v5237
        %5239 = vmatprep.mubr.f32.mxu0 0.0
        %5240 = vmatmul.mubr.f32.gmra.mrb[0].mxu0 %v4538
        %v5241 = vpop.f32.mrb[0].mxu0
        %v5242 = vadd.f32 0.0, %v5241
        %v5243 = vpop.f32.mrb[0].mxu0
        %v5244 = vadd.f32 0.0, %v5243
        %5245 = vdwg.mxu0
        %5246 = vmatprep.subr.mxu0 0.0
        %5247 = vmatpush1.msra.mxu0 %v5018
        %5248 = vmatprep.subr.mxu0 0.0
        %5249 = vmatpush1.msra.mxu0 %v5021
        %5250 = vmatprep.subr.mxu0 0.0
        %5251 = vmatpush1.msra.mxu0 %v5024
        %5252 = vmatprep.subr.mxu0 0.0
        %5253 = vmatpush1.msra.mxu0 %v5035
        %5254 = vmatprep.subr.mxu0 0.0
        %5255 = vmatpush1.msra.mxu0 0.0
        %5256 = vmatprep.subr.mxu0 0.0
        %5257 = vmatpush1.msra.mxu0 0.0
        %5258 = vmatprep.subr.mxu0 0.0
        %5259 = vmatpush1.msra.mxu0 0.0
        %5260 = vmatprep.subr.mxu0 0.0
        %5261 = vmatpush1.msra.mxu0 0.0
        %5262 = vmatprep.subr.mxu0 0.0
        %5263 = vmatpush1.msra.mxu0 0.0
        %5264 = vmatprep.subr.mxu0 0.0
        %5265 = vmatpush1.msra.mxu0 0.0
        %5266 = vmatprep.subr.mxu0 0.0
        %5267 = vmatpush1.msra.mxu0 0.0
        %5268 = vmatprep.subr.mxu0 0.0
        %5269 = vmatpush1.msra.mxu0 0.0
        %5270 = vmatprep.subr.mxu0 0.0
        %5271 = vmatpush1.msra.mxu0 0.0
        %5272 = vmatprep.subr.mxu0 0.0
        %5273 = vmatpush1.msra.mxu0 0.0
        %5274 = vmatprep.subr.mxu0 0.0
        %5275 = vmatpush1.msra.mxu0 0.0
        %5276 = vmatprep.subr.mxu0 0.0
        %5277 = vmatpush1.msra.mxu0 0.0
        %5278 = vmatprep.subr.mxu0 0.0
        %5279 = vmatpush1.msra.mxu0 0.0
        %5280 = vmatprep.subr.mxu0 0.0
        %5281 = vmatpush1.msra.mxu0 0.0
        %5282 = vmatprep.subr.mxu0 0.0
        %5283 = vmatpush1.msra.mxu0 0.0
        %5284 = vmatprep.subr.mxu0 0.0
        %5285 = vmatpush1.msra.mxu0 0.0
        %5286 = vmatprep.subr.mxu0 0.0
        %5287 = vmatpush1.msra.mxu0 0.0
        %5288 = vmatprep.subr.mxu0 0.0
        %5289 = vmatpush1.msra.mxu0 0.0
        %5290 = vmatprep.subr.mxu0 0.0
        %5291 = vmatpush1.msra.mxu0 0.0
        %5292 = vmatprep.subr.mxu0 0.0
        %5293 = vmatpush1.msra.mxu0 0.0
        %5294 = vmatprep.subr.mxu0 0.0
        %5295 = vmatpush1.msra.mxu0 0.0
        %5296 = vmatprep.subr.mxu0 0.0
        %5297 = vmatpush1.msra.mxu0 0.0
        %5298 = vmatprep.subr.mxu0 0.0
        %5299 = vmatpush1.msra.mxu0 0.0
        %5300 = vmatprep.subr.mxu0 0.0
        %5301 = vmatpush1.msra.mxu0 0.0
        %5302 = vmatprep.subr.mxu0 0.0
        %5303 = vmatpush1.msra.mxu0 0.0
        %5304 = vmatprep.subr.mxu0 0.0
        %5305 = vmatpush1.msra.mxu0 0.0
        %5306 = vmatprep.subr.mxu0 0.0
        %5307 = vmatpush1.msra.mxu0 0.0
        %5308 = vmatprep.subr.mxu0 0.0
        %5309 = vmatpush1.msra.mxu0 0.0
        %5310 = vmatprep.mubr.f32.mxu0 0.0
        %5311 = vmatmul.mubr.f32.gmra.mrb[0].mxu0 %v4469
        %v5312 = vpop.f32.mrb[0].mxu0
        %v5313 = vadd.f32 0.0, %v5312
        %v5314 = vpop.f32.mrb[0].mxu0
        %5315 = vmatprep.mubr.f32.mxu0 0.0
        %5316 = vmatmul.mubr.f32.gmra.mrb[0].mxu0 %v4472
        %v5317 = vpop.f32.mrb[0].mxu0
        %v5318 = vadd.f32 0.0, %v5317
        %v5319 = vpop.f32.mrb[0].mxu0
        %5320 = vmatprep.mubr.f32.mxu0 0.0
        %5321 = vmatmul.mubr.f32.gmra.mrb[0].mxu0 %v4475
        %v5322 = vpop.f32.mrb[0].mxu0
        %v5323 = vadd.f32 0.0, %v5322
        %v5324 = vpop.f32.mrb[0].mxu0
        %5325 = vmatprep.mubr.f32.mxu0 0.0
        %5326 = vmatmul.mubr.f32.gmra.mrb[0].mxu0 %v4478
        %v5327 = vpop.f32.mrb[0].mxu0
        %v5328 = vadd.f32 0.0, %v5327
        %v5329 = vpop.f32.mrb[0].mxu0
        %5330 = vmatprep.mubr.f32.mxu0 0.0
        %5331 = vmatmul.mubr.f32.gmra.mrb[0].mxu0 %v4481
        %v5332 = vpop.f32.mrb[0].mxu0
        %v5333 = vadd.f32 0.0, %v5332
        %v5334 = vpop.f32.mrb[0].mxu0
        %5335 = vmatprep.mubr.f32.mxu0 0.0
        %5336 = vmatmul.mubr.f32.gmra.mrb[0].mxu0 %v4484
        %v5337 = vpop.f32.mrb[0].mxu0
        %v5338 = vadd.f32 0.0, %v5337
        %v5339 = vpop.f32.mrb[0].mxu0
        %5340 = vmatprep.mubr.f32.mxu0 0.0
        %5341 = vmatmul.mubr.f32.gmra.mrb[0].mxu0 %v4487
        %v5342 = vpop.f32.mrb[0].mxu0
        %v5343 = vadd.f32 0.0, %v5342
        %v5344 = vpop.f32.mrb[0].mxu0
        %5345 = vmatprep.mubr.f32.mxu0 0.0
        %5346 = vmatmul.mubr.f32.gmra.mrb[0].mxu0 %v4490
        %v5347 = vpop.f32.mrb[0].mxu0
        %v5348 = vadd.f32 0.0, %v5347
        %v5349 = vpop.f32.mrb[0].mxu0
        %5350 = vmatprep.mubr.f32.mxu0 0.0
        %5351 = vmatmul.mubr.f32.gmra.mrb[0].mxu0 %v4493
        %v5352 = vpop.f32.mrb[0].mxu0
        %v5353 = vadd.f32 0.0, %v5352
        %v5354 = vpop.f32.mrb[0].mxu0
        %5355 = vmatprep.mubr.f32.mxu0 0.0
        %5356 = vmatmul.mubr.f32.gmra.mrb[0].mxu0 %v4496
        %v5357 = vpop.f32.mrb[0].mxu0
        %v5358 = vadd.f32 0.0, %v5357
        %v5359 = vpop.f32.mrb[0].mxu0
        %5360 = vmatprep.mubr.f32.mxu0 0.0
        %5361 = vmatmul.mubr.f32.gmra.mrb[0].mxu0 %v4499
        %v5362 = vpop.f32.mrb[0].mxu0
        %v5363 = vadd.f32 0.0, %v5362
        %v5364 = vpop.f32.mrb[0].mxu0
        %5365 = vmatprep.mubr.f32.mxu0 0.0
        %5366 = vmatmul.mubr.f32.gmra.mrb[0].mxu0 %v4502
        %v5367 = vpop.f32.mrb[0].mxu0
        %v5368 = vadd.f32 0.0, %v5367
        %v5369 = vpop.f32.mrb[0].mxu0
        %5370 = vmatprep.mubr.f32.mxu0 0.0
        %5371 = vmatmul.mubr.f32.gmra.mrb[0].mxu0 %v4505
        %v5372 = vpop.f32.mrb[0].mxu0
        %v5373 = vadd.f32 0.0, %v5372
        %v5374 = vpop.f32.mrb[0].mxu0
        %5375 = vmatprep.mubr.f32.mxu0 0.0
        %5376 = vmatmul.mubr.f32.gmra.mrb[0].mxu0 %v4508
        %v5377 = vpop.f32.mrb[0].mxu0
        %v5378 = vadd.f32 0.0, %v5377
        %v5379 = vpop.f32.mrb[0].mxu0
        %5380 = vmatprep.mubr.f32.mxu0 0.0
        %5381 = vmatmul.mubr.f32.gmra.mrb[0].mxu0 %v4511
        %v5382 = vpop.f32.mrb[0].mxu0
        %v5383 = vadd.f32 0.0, %v5382
        %v5384 = vpop.f32.mrb[0].mxu0
        %5385 = vmatprep.mubr.f32.mxu0 0.0
        %5386 = vmatmul.mubr.f32.gmra.mrb[0].mxu0 %v4514
        %v5387 = vpop.f32.mrb[0].mxu0
        %v5388 = vadd.f32 0.0, %v5387
        %v5389 = vpop.f32.mrb[0].mxu0
        %5390 = vmatprep.mubr.f32.mxu0 0.0
        %5391 = vmatmul.mubr.f32.gmra.mrb[0].mxu0 %v4517
        %v5392 = vpop.f32.mrb[0].mxu0
        %v5393 = vadd.f32 0.0, %v5392
        %v5394 = vpop.f32.mrb[0].mxu0
        %5395 = vmatprep.mubr.f32.mxu0 0.0
        %5396 = vmatmul.mubr.f32.gmra.mrb[0].mxu0 %v4520
        %v5397 = vpop.f32.mrb[0].mxu0
        %v5398 = vadd.f32 0.0, %v5397
        %v5399 = vpop.f32.mrb[0].mxu0
        %5400 = vmatprep.mubr.f32.mxu0 0.0
        %5401 = vmatmul.mubr.f32.gmra.mrb[0].mxu0 %v4523
        %v5402 = vpop.f32.mrb[0].mxu0
        %v5403 = vadd.f32 0.0, %v5402
        %v5404 = vpop.f32.mrb[0].mxu0
        %5405 = vmatprep.mubr.f32.mxu0 0.0
        %5406 = vmatmul.mubr.f32.gmra.mrb[0].mxu0 %v4526
        %v5407 = vpop.f32.mrb[0].mxu0
        %v5408 = vadd.f32 0.0, %v5407
        %v5409 = vpop.f32.mrb[0].mxu0
        %5410 = vmatprep.mubr.f32.mxu0 0.0
        %5411 = vmatmul.mubr.f32.gmra.mrb[0].mxu0 %v4529
        %v5412 = vpop.f32.mrb[0].mxu0
        %v5413 = vadd.f32 0.0, %v5412
        %v5414 = vpop.f32.mrb[0].mxu0
        %5415 = vmatprep.mubr.f32.mxu0 0.0
        %5416 = vmatmul.mubr.f32.gmra.mrb[0].mxu0 %v4532
        %v5417 = vpop.f32.mrb[0].mxu0
        %v5418 = vadd.f32 0.0, %v5417
        %v5419 = vpop.f32.mrb[0].mxu0
        %5420 = vmatprep.mubr.f32.mxu0 0.0
        %5421 = vmatmul.mubr.f32.gmra.mrb[0].mxu0 %v4535
        %v5422 = vpop.f32.mrb[0].mxu0
        %v5423 = vadd.f32 0.0, %v5422
        %v5424 = vpop.f32.mrb[0].mxu0
        %5425 = vmatprep.mubr.f32.mxu0 0.0
        %5426 = vmatmul.mubr.f32.gmra.mrb[0].mxu0 %v4538
        %v5427 = vpop.f32.mrb[0].mxu0
        %v5428 = vadd.f32 0.0, %v5427
        %v5429 = vpop.f32.mrb[0].mxu0
        %5430 = vdwg.mxu0
        %v5431 = vadd.f32 %v4359, %v5104
        %v5432 = vadd.f32 %v4360, %v5106
        %v5433 = vadd.f32 %v4361, %v5313
        %v5434 = vadd.f32 %v4362, %v5110
        %v5435 = vadd.f32 %v4363, %v5112
        %v5436 = vadd.f32 %v4364, %v5318
        %v5437 = vadd.f32 %v4365, %v5116
        %v5438 = vadd.f32 %v4366, %v5118
        %v5439 = vadd.f32 %v4367, %v5323
        %v5440 = vadd.f32 %v4368, %v5122
        %v5441 = vadd.f32 %v4369, %v5124
        %v5442 = vadd.f32 %v4370, %v5328
        %v5443 = vadd.f32 %v4371, %v5128
        %v5444 = vadd.f32 %v4372, %v5130
        %v5445 = vadd.f32 %v4373, %v5333
        %v5446 = vadd.f32 %v4374, %v5134
        %v5447 = vadd.f32 %v4375, %v5136
        %v5448 = vadd.f32 %v4376, %v5338
        %v5449 = vadd.f32 %v4377, %v5140
        %v5450 = vadd.f32 %v4378, %v5142
        %v5451 = vadd.f32 %v4379, %v5343
        %v5452 = vadd.f32 %v4380, %v5146
        %v5453 = vadd.f32 %v4381, %v5148
        %v5454 = vadd.f32 %v4382, %v5348
        %v5455 = vadd.f32 %v4383, %v5152
        %v5456 = vadd.f32 %v4384, %v5154
        %v5457 = vadd.f32 %v4385, %v5353
        %v5458 = vadd.f32 %v4386, %v5158
        %v5459 = vadd.f32 %v4387, %v5160
        %v5460 = vadd.f32 %v4388, %v5358
        %v5461 = vadd.f32 %v4389, %v5164
        %v5462 = vadd.f32 %v4390, %v5166
        %v5463 = vadd.f32 %v4391, %v5363
        %v5464 = vadd.f32 %v4392, %v5170
        %v5465 = vadd.f32 %v4393, %v5172
        %v5466 = vadd.f32 %v4394, %v5368
        %v5467 = vadd.f32 %v4395, %v5176
        %v5468 = vadd.f32 %v4396, %v5178
        %v5469 = vadd.f32 %v4397, %v5373
        %v5470 = vadd.f32 %v4398, %v5182
        %v5471 = vadd.f32 %v4399, %v5184
        %v5472 = vadd.f32 %v4400, %v5378
        %v5473 = vadd.f32 %v4401, %v5188
        %v5474 = vadd.f32 %v4402, %v5190
        %v5475 = vadd.f32 %v4403, %v5383
        %v5476 = vadd.f32 %v4404, %v5194
        %v5477 = vadd.f32 %v4405, %v5196
        %v5478 = vadd.f32 %v4406, %v5388
        %v5479 = vadd.f32 %v4407, %v5200
        %v5480 = vadd.f32 %v4408, %v5202
        %v5481 = vadd.f32 %v4409, %v5393
        %v5482 = vadd.f32 %v4410, %v5206
        %v5483 = vadd.f32 %v4411, %v5208
        %v5484 = vadd.f32 %v4412, %v5398
        %v5485 = vadd.f32 %v4413, %v5212
        %v5486 = vadd.f32 %v4414, %v5214
        %v5487 = vadd.f32 %v4415, %v5403
        %v5488 = vadd.f32 %v4416, %v5218
        %v5489 = vadd.f32 %v4417, %v5220
        %v5490 = vadd.f32 %v4418, %v5408
        %v5491 = vadd.f32 %v4419, %v5224
        %v5492 = vadd.f32 %v4420, %v5226
        %v5493 = vadd.f32 %v4421, %v5413
        %v5494 = vadd.f32 %v4422, %v5230
        %v5495 = vadd.f32 %v4423, %v5232
        %v5496 = vadd.f32 %v4424, %v5418
        %v5497 = vadd.f32 %v4425, %v5236
        %v5498 = vadd.f32 %v4426, %v5238
        %v5499 = vadd.f32 %v4427, %v5423
        %v5500 = vadd.f32 %v4428, %v5242
        %v5501 = vadd.f32 %v4429, %v5244
        %v5502 = vadd.f32 %v4430, %v5428
        %v5503 = vmax.f32 %v4943, %v5431
        %v5504 = vmax.f32 %v4944, %v5432
        %v5505 = vmax.f32 %v4945, %v5433
        %v5506 = vmax.f32 %v4946, %v5434
        %v5507 = vmax.f32 %v4947, %v5435
        %v5508 = vmax.f32 %v4948, %v5436
        %v5509 = vmax.f32 %v4949, %v5437
        %v5510 = vmax.f32 %v4950, %v5438
        %v5511 = vmax.f32 %v4951, %v5439
        %v5512 = vmax.f32 %v4952, %v5440
        %v5513 = vmax.f32 %v4953, %v5441
        %v5514 = vmax.f32 %v4954, %v5442
        %v5515 = vmax.f32 %v4955, %v5443
        %v5516 = vmax.f32 %v4956, %v5444
        %v5517 = vmax.f32 %v4957, %v5445
        %v5518 = vmax.f32 %v4958, %v5446
        %v5519 = vmax.f32 %v4959, %v5447
        %v5520 = vmax.f32 %v4960, %v5448
        %v5521 = vmax.f32 %v4961, %v5449
        %v5522 = vmax.f32 %v4962, %v5450
        %v5523 = vmax.f32 %v4963, %v5451
        %v5524 = vmax.f32 %v4964, %v5452
        %v5525 = vmax.f32 %v4965, %v5453
        %v5526 = vmax.f32 %v4966, %v5454
        %v5527 = vmax.f32 %v4967, %v5455
        %v5528 = vmax.f32 %v4968, %v5456
        %v5529 = vmax.f32 %v4969, %v5457
        %v5530 = vmax.f32 %v4970, %v5458
        %v5531 = vmax.f32 %v4971, %v5459
        %v5532 = vmax.f32 %v4972, %v5460
        %v5533 = vmax.f32 %v4973, %v5461
        %v5534 = vmax.f32 %v4974, %v5462
        %v5535 = vmax.f32 %v4975, %v5463
        %v5536 = vmax.f32 %v4976, %v5464
        %v5537 = vmax.f32 %v4977, %v5465
        %v5538 = vmax.f32 %v4978, %v5466
        %v5539 = vmax.f32 %v4979, %v5467
        %v5540 = vmax.f32 %v4980, %v5468
        %v5541 = vmax.f32 %v4981, %v5469
        %v5542 = vmax.f32 %v4982, %v5470
        %v5543 = vmax.f32 %v4983, %v5471
        %v5544 = vmax.f32 %v4984, %v5472
        %v5545 = vmax.f32 %v4985, %v5473
        %v5546 = vmax.f32 %v4986, %v5474
        %v5547 = vmax.f32 %v4987, %v5475
        %v5548 = vmax.f32 %v4988, %v5476
        %v5549 = vmax.f32 %v4989, %v5477
        %v5550 = vmax.f32 %v4990, %v5478
        %v5551 = vmax.f32 %v4991, %v5479
        %v5552 = vmax.f32 %v4992, %v5480
        %v5553 = vmax.f32 %v4993, %v5481
        %v5554 = vmax.f32 %v4994, %v5482
        %v5555 = vmax.f32 %v4995, %v5483
        %v5556 = vmax.f32 %v4996, %v5484
        %v5557 = vmax.f32 %v4997, %v5485
        %v5558 = vmax.f32 %v4998, %v5486
        %v5559 = vmax.f32 %v4999, %v5487
        %v5560 = vmax.f32 %v5000, %v5488
        %v5561 = vmax.f32 %v5001, %v5489
        %v5562 = vmax.f32 %v5002, %v5490
        %v5563 = vmax.f32 %v5003, %v5491
        %v5564 = vmax.f32 %v5004, %v5492
        %v5565 = vmax.f32 %v5005, %v5493
        %v5566 = vmax.f32 %v5006, %v5494
        %v5567 = vmax.f32 %v5007, %v5495
        %v5568 = vmax.f32 %v5008, %v5496
        %v5569 = vmax.f32 %v5009, %v5497
        %v5570 = vmax.f32 %v5010, %v5498
        %v5571 = vmax.f32 %v5011, %v5499
        %v5572 = vmax.f32 %v5012, %v5500
        %v5573 = vmax.f32 %v5013, %v5501
        %v5574 = vmax.f32 %v5014, %v5502
        %v5575 = vld [vmem:[#allocation2] sm:$0x7]
        %v5577 = vlaneseq
        %v5578 = vshrl.u32 %v5577, 7
        %v5579 = vsub.s32 0, %v5578
        %v5580 = vrot.slane %v5575, %v5579
        %v5581 = vlaneseq
        %v5582 = vshrl.u32 %v5581, 7
        %v5583 = vsub.s32 1, %v5582
        %v5584 = vrot.slane %v5575, %v5583
        %v5585 = vlaneseq
        %v5586 = vshrl.u32 %v5585, 7
        %v5587 = vsub.s32 2, %v5586
        %v5588 = vrot.slane %v5575, %v5587
        %v5592 = vadd.f32 %v5503, %v5580
        %v5593 = vadd.f32 %v5504, %v5584
        %v5594 = vadd.f32 %v5505, %v5588
        %v5595 = vadd.f32 %v5506, %v5580
        %v5596 = vadd.f32 %v5507, %v5584
        %v5597 = vadd.f32 %v5508, %v5588
        %v5598 = vadd.f32 %v5509, %v5580
        %v5599 = vadd.f32 %v5510, %v5584
        %v5600 = vadd.f32 %v5511, %v5588
        %v5601 = vadd.f32 %v5512, %v5580
        %v5602 = vadd.f32 %v5513, %v5584
        %v5603 = vadd.f32 %v5514, %v5588
        %v5604 = vadd.f32 %v5515, %v5580
        %v5605 = vadd.f32 %v5516, %v5584
        %v5606 = vadd.f32 %v5517, %v5588
        %v5607 = vadd.f32 %v5518, %v5580
        %v5608 = vadd.f32 %v5519, %v5584
        %v5609 = vadd.f32 %v5520, %v5588
        %v5610 = vadd.f32 %v5521, %v5580
        %v5611 = vadd.f32 %v5522, %v5584
        %v5612 = vadd.f32 %v5523, %v5588
        %v5613 = vadd.f32 %v5524, %v5580
        %v5614 = vadd.f32 %v5525, %v5584
        %v5615 = vadd.f32 %v5526, %v5588
        %v5616 = vadd.f32 %v5527, %v5580
        %v5617 = vadd.f32 %v5528, %v5584
        %v5618 = vadd.f32 %v5529, %v5588
        %v5619 = vadd.f32 %v5530, %v5580
        %v5620 = vadd.f32 %v5531, %v5584
        %v5621 = vadd.f32 %v5532, %v5588
        %v5622 = vadd.f32 %v5533, %v5580
        %v5623 = vadd.f32 %v5534, %v5584
        %v5624 = vadd.f32 %v5535, %v5588
        %v5625 = vadd.f32 %v5536, %v5580
        %v5626 = vadd.f32 %v5537, %v5584
        %v5627 = vadd.f32 %v5538, %v5588
        %v5628 = vadd.f32 %v5539, %v5580
        %v5629 = vadd.f32 %v5540, %v5584
        %v5630 = vadd.f32 %v5541, %v5588
        %v5631 = vadd.f32 %v5542, %v5580
        %v5632 = vadd.f32 %v5543, %v5584
        %v5633 = vadd.f32 %v5544, %v5588
        %v5634 = vadd.f32 %v5545, %v5580
        %v5635 = vadd.f32 %v5546, %v5584
        %v5636 = vadd.f32 %v5547, %v5588
        %v5637 = vadd.f32 %v5548, %v5580
        %v5638 = vadd.f32 %v5549, %v5584
        %v5639 = vadd.f32 %v5550, %v5588
        %v5640 = vadd.f32 %v5551, %v5580
        %v5641 = vadd.f32 %v5552, %v5584
        %v5642 = vadd.f32 %v5553, %v5588
        %v5643 = vadd.f32 %v5554, %v5580
        %v5644 = vadd.f32 %v5555, %v5584
        %v5645 = vadd.f32 %v5556, %v5588
        %v5646 = vadd.f32 %v5557, %v5580
        %v5647 = vadd.f32 %v5558, %v5584
        %v5648 = vadd.f32 %v5559, %v5588
        %v5649 = vadd.f32 %v5560, %v5580
        %v5650 = vadd.f32 %v5561, %v5584
        %v5651 = vadd.f32 %v5562, %v5588
        %v5652 = vadd.f32 %v5563, %v5580
        %v5653 = vadd.f32 %v5564, %v5584
        %v5654 = vadd.f32 %v5565, %v5588
        %v5655 = vadd.f32 %v5566, %v5580
        %v5656 = vadd.f32 %v5567, %v5584
        %v5657 = vadd.f32 %v5568, %v5588
        %v5658 = vadd.f32 %v5569, %v5580
        %v5659 = vadd.f32 %v5570, %v5584
        %v5660 = vadd.f32 %v5571, %v5588
        %v5661 = vadd.f32 %v5572, %v5580
        %v5662 = vadd.f32 %v5573, %v5584
        %v5663 = vadd.f32 %v5574, %v5588
        %v5664 = vmax.f32 %v5592, 0.0
        %v5665 = vmax.f32 %v5593, 0.0
        %v5666 = vmax.f32 %v5594, 0.0
        %v5667 = vmax.f32 %v5595, 0.0
        %v5668 = vmax.f32 %v5596, 0.0
        %v5669 = vmax.f32 %v5597, 0.0
        %v5670 = vmax.f32 %v5598, 0.0
        %v5671 = vmax.f32 %v5599, 0.0
        %v5672 = vmax.f32 %v5600, 0.0
        %v5673 = vmax.f32 %v5601, 0.0
        %v5674 = vmax.f32 %v5602, 0.0
        %v5675 = vmax.f32 %v5603, 0.0
        %v5676 = vmax.f32 %v5604, 0.0
        %v5677 = vmax.f32 %v5605, 0.0
        %v5678 = vmax.f32 %v5606, 0.0
        %v5679 = vmax.f32 %v5607, 0.0
        %v5680 = vmax.f32 %v5608, 0.0
        %v5681 = vmax.f32 %v5609, 0.0
        %v5682 = vmax.f32 %v5610, 0.0
        %v5683 = vmax.f32 %v5611, 0.0
        %v5684 = vmax.f32 %v5612, 0.0
        %v5685 = vmax.f32 %v5613, 0.0
        %v5686 = vmax.f32 %v5614, 0.0
        %v5687 = vmax.f32 %v5615, 0.0
        %v5688 = vmax.f32 %v5616, 0.0
        %v5689 = vmax.f32 %v5617, 0.0
        %v5690 = vmax.f32 %v5618, 0.0
        %v5691 = vmax.f32 %v5619, 0.0
        %v5692 = vmax.f32 %v5620, 0.0
        %v5693 = vmax.f32 %v5621, 0.0
        %v5694 = vmax.f32 %v5622, 0.0
        %v5695 = vmax.f32 %v5623, 0.0
        %v5696 = vmax.f32 %v5624, 0.0
        %v5697 = vmax.f32 %v5625, 0.0
        %v5698 = vmax.f32 %v5626, 0.0
        %v5699 = vmax.f32 %v5627, 0.0
        %v5700 = vmax.f32 %v5628, 0.0
        %v5701 = vmax.f32 %v5629, 0.0
        %v5702 = vmax.f32 %v5630, 0.0
        %v5703 = vmax.f32 %v5631, 0.0
        %v5704 = vmax.f32 %v5632, 0.0
        %v5705 = vmax.f32 %v5633, 0.0
        %v5706 = vmax.f32 %v5634, 0.0
        %v5707 = vmax.f32 %v5635, 0.0
        %v5708 = vmax.f32 %v5636, 0.0
        %v5709 = vmax.f32 %v5637, 0.0
        %v5710 = vmax.f32 %v5638, 0.0
        %v5711 = vmax.f32 %v5639, 0.0
        %v5712 = vmax.f32 %v5640, 0.0
        %v5713 = vmax.f32 %v5641, 0.0
        %v5714 = vmax.f32 %v5642, 0.0
        %v5715 = vmax.f32 %v5643, 0.0
        %v5716 = vmax.f32 %v5644, 0.0
        %v5717 = vmax.f32 %v5645, 0.0
        %v5718 = vmax.f32 %v5646, 0.0
        %v5719 = vmax.f32 %v5647, 0.0
        %v5720 = vmax.f32 %v5648, 0.0
        %v5721 = vmax.f32 %v5649, 0.0
        %v5722 = vmax.f32 %v5650, 0.0
        %v5723 = vmax.f32 %v5651, 0.0
        %v5724 = vmax.f32 %v5652, 0.0
        %v5725 = vmax.f32 %v5653, 0.0
        %v5726 = vmax.f32 %v5654, 0.0
        %v5727 = vmax.f32 %v5655, 0.0
        %v5728 = vmax.f32 %v5656, 0.0
        %v5729 = vmax.f32 %v5657, 0.0
        %v5730 = vmax.f32 %v5658, 0.0
        %v5731 = vmax.f32 %v5659, 0.0
        %v5732 = vmax.f32 %v5660, 0.0
        %v5733 = vmax.f32 %v5661, 0.0
        %v5734 = vmax.f32 %v5662, 0.0
        %v5735 = vmax.f32 %v5663, 0.0
        %v5760 = vrot.slane %v5664, 1
        %v5761 = vrot.slane %v5665, 1
        %v5762 = vrot.slane %v5666, 1
        %v5763 = vrot.slane %v5673, 1
        %v5764 = vrot.slane %v5674, 1
        %v5765 = vrot.slane %v5675, 1
        %v5766 = vrot.slane %v5682, 1
        %v5767 = vrot.slane %v5683, 1
        %v5768 = vrot.slane %v5684, 1
        %v5769 = vrot.slane %v5691, 1
        %v5770 = vrot.slane %v5692, 1
        %v5771 = vrot.slane %v5693, 1
        %v5772 = vrot.slane %v5700, 1
        %v5773 = vrot.slane %v5701, 1
        %v5774 = vrot.slane %v5702, 1
        %v5775 = vrot.slane %v5709, 1
        %v5776 = vrot.slane %v5710, 1
        %v5777 = vrot.slane %v5711, 1
        %v5778 = vrot.slane %v5718, 1
        %v5779 = vrot.slane %v5719, 1
        %v5780 = vrot.slane %v5720, 1
        %v5781 = vrot.slane %v5727, 1
        %v5782 = vrot.slane %v5728, 1
        %v5783 = vrot.slane %v5729, 1
        %v5808 = vmax.f32 %v5664, %v5760
        %v5809 = vmax.f32 %v5665, %v5761
        %v5810 = vmax.f32 %v5666, %v5762
        %v5811 = vmax.f32 %v5673, %v5763
        %v5812 = vmax.f32 %v5674, %v5764
        %v5813 = vmax.f32 %v5675, %v5765
        %v5814 = vmax.f32 %v5682, %v5766
        %v5815 = vmax.f32 %v5683, %v5767
        %v5816 = vmax.f32 %v5684, %v5768
        %v5817 = vmax.f32 %v5691, %v5769
        %v5818 = vmax.f32 %v5692, %v5770
        %v5819 = vmax.f32 %v5693, %v5771
        %v5820 = vmax.f32 %v5700, %v5772
        %v5821 = vmax.f32 %v5701, %v5773
        %v5822 = vmax.f32 %v5702, %v5774
        %v5823 = vmax.f32 %v5709, %v5775
        %v5824 = vmax.f32 %v5710, %v5776
        %v5825 = vmax.f32 %v5711, %v5777
        %v5826 = vmax.f32 %v5718, %v5778
        %v5827 = vmax.f32 %v5719, %v5779
        %v5828 = vmax.f32 %v5720, %v5780
        %v5829 = vmax.f32 %v5727, %v5781
        %v5830 = vmax.f32 %v5728, %v5782
        %v5831 = vmax.f32 %v5729, %v5783
        %v5856 = vrot.slane %v5667, 1
        %v5857 = vrot.slane %v5668, 1
        %v5858 = vrot.slane %v5669, 1
        %v5859 = vrot.slane %v5676, 1
        %v5860 = vrot.slane %v5677, 1
        %v5861 = vrot.slane %v5678, 1
        %v5862 = vrot.slane %v5685, 1
        %v5863 = vrot.slane %v5686, 1
        %v5864 = vrot.slane %v5687, 1
        %v5865 = vrot.slane %v5694, 1
        %v5866 = vrot.slane %v5695, 1
        %v5867 = vrot.slane %v5696, 1
        %v5868 = vrot.slane %v5703, 1
        %v5869 = vrot.slane %v5704, 1
        %v5870 = vrot.slane %v5705, 1
        %v5871 = vrot.slane %v5712, 1
        %v5872 = vrot.slane %v5713, 1
        %v5873 = vrot.slane %v5714, 1
        %v5874 = vrot.slane %v5721, 1
        %v5875 = vrot.slane %v5722, 1
        %v5876 = vrot.slane %v5723, 1
        %v5877 = vrot.slane %v5730, 1
        %v5878 = vrot.slane %v5731, 1
        %v5879 = vrot.slane %v5732, 1
        %v5904 = vmax.f32 %v5667, %v5856
        %v5905 = vmax.f32 %v5668, %v5857
        %v5906 = vmax.f32 %v5669, %v5858
        %v5907 = vmax.f32 %v5676, %v5859
        %v5908 = vmax.f32 %v5677, %v5860
        %v5909 = vmax.f32 %v5678, %v5861
        %v5910 = vmax.f32 %v5685, %v5862
        %v5911 = vmax.f32 %v5686, %v5863
        %v5912 = vmax.f32 %v5687, %v5864
        %v5913 = vmax.f32 %v5694, %v5865
        %v5914 = vmax.f32 %v5695, %v5866
        %v5915 = vmax.f32 %v5696, %v5867
        %v5916 = vmax.f32 %v5703, %v5868
        %v5917 = vmax.f32 %v5704, %v5869
        %v5918 = vmax.f32 %v5705, %v5870
        %v5919 = vmax.f32 %v5712, %v5871
        %v5920 = vmax.f32 %v5713, %v5872
        %v5921 = vmax.f32 %v5714, %v5873
        %v5922 = vmax.f32 %v5721, %v5874
        %v5923 = vmax.f32 %v5722, %v5875
        %v5924 = vmax.f32 %v5723, %v5876
        %v5925 = vmax.f32 %v5730, %v5877
        %v5926 = vmax.f32 %v5731, %v5878
        %v5927 = vmax.f32 %v5732, %v5879
        %v5952 = vrot.slane %v5670, 1
        %v5953 = vrot.slane %v5671, 1
        %v5954 = vrot.slane %v5672, 1
        %v5955 = vrot.slane %v5679, 1
        %v5956 = vrot.slane %v5680, 1
        %v5957 = vrot.slane %v5681, 1
        %v5958 = vrot.slane %v5688, 1
        %v5959 = vrot.slane %v5689, 1
        %v5960 = vrot.slane %v5690, 1
        %v5961 = vrot.slane %v5697, 1
        %v5962 = vrot.slane %v5698, 1
        %v5963 = vrot.slane %v5699, 1
        %v5964 = vrot.slane %v5706, 1
        %v5965 = vrot.slane %v5707, 1
        %v5966 = vrot.slane %v5708, 1
        %v5967 = vrot.slane %v5715, 1
        %v5968 = vrot.slane %v5716, 1
        %v5969 = vrot.slane %v5717, 1
        %v5970 = vrot.slane %v5724, 1
        %v5971 = vrot.slane %v5725, 1
        %v5972 = vrot.slane %v5726, 1
        %v5973 = vrot.slane %v5733, 1
        %v5974 = vrot.slane %v5734, 1
        %v5975 = vrot.slane %v5735, 1
        %v6000 = vmax.f32 %v5670, %v5952
        %v6001 = vmax.f32 %v5671, %v5953
        %v6002 = vmax.f32 %v5672, %v5954
        %v6003 = vmax.f32 %v5679, %v5955
        %v6004 = vmax.f32 %v5680, %v5956
        %v6005 = vmax.f32 %v5681, %v5957
        %v6006 = vmax.f32 %v5688, %v5958
        %v6007 = vmax.f32 %v5689, %v5959
        %v6008 = vmax.f32 %v5690, %v5960
        %v6009 = vmax.f32 %v5697, %v5961
        %v6010 = vmax.f32 %v5698, %v5962
        %v6011 = vmax.f32 %v5699, %v5963
        %v6012 = vmax.f32 %v5706, %v5964
        %v6013 = vmax.f32 %v5707, %v5965
        %v6014 = vmax.f32 %v5708, %v5966
        %v6015 = vmax.f32 %v5715, %v5967
        %v6016 = vmax.f32 %v5716, %v5968
        %v6017 = vmax.f32 %v5717, %v5969
        %v6018 = vmax.f32 %v5724, %v5970
        %v6019 = vmax.f32 %v5725, %v5971
        %v6020 = vmax.f32 %v5726, %v5972
        %v6021 = vmax.f32 %v5733, %v5973
        %v6022 = vmax.f32 %v5734, %v5974
        %v6023 = vmax.f32 %v5735, %v5975
        %v6048 = vrot.slane %v5808, 1
        %v6049 = vrot.slane %v5809, 1
        %v6050 = vrot.slane %v5810, 1
        %v6051 = vrot.slane %v5811, 1
        %v6052 = vrot.slane %v5812, 1
        %v6053 = vrot.slane %v5813, 1
        %v6054 = vrot.slane %v5814, 1
        %v6055 = vrot.slane %v5815, 1
        %v6056 = vrot.slane %v5816, 1
        %v6057 = vrot.slane %v5817, 1
        %v6058 = vrot.slane %v5818, 1
        %v6059 = vrot.slane %v5819, 1
        %v6060 = vrot.slane %v5820, 1
        %v6061 = vrot.slane %v5821, 1
        %v6062 = vrot.slane %v5822, 1
        %v6063 = vrot.slane %v5823, 1
        %v6064 = vrot.slane %v5824, 1
        %v6065 = vrot.slane %v5825, 1
        %v6066 = vrot.slane %v5826, 1
        %v6067 = vrot.slane %v5827, 1
        %v6068 = vrot.slane %v5828, 1
        %v6069 = vrot.slane %v5829, 1
        %v6070 = vrot.slane %v5830, 1
        %v6071 = vrot.slane %v5831, 1
        %v6096 = vrot.slane %v5808, 2
        %v6097 = vrot.slane %v5809, 2
        %v6098 = vrot.slane %v5810, 2
        %v6099 = vrot.slane %v5811, 2
        %v6100 = vrot.slane %v5812, 2
        %v6101 = vrot.slane %v5813, 2
        %v6102 = vrot.slane %v5814, 2
        %v6103 = vrot.slane %v5815, 2
        %v6104 = vrot.slane %v5816, 2
        %v6105 = vrot.slane %v5817, 2
        %v6106 = vrot.slane %v5818, 2
        %v6107 = vrot.slane %v5819, 2
        %v6108 = vrot.slane %v5820, 2
        %v6109 = vrot.slane %v5821, 2
        %v6110 = vrot.slane %v5822, 2
        %v6111 = vrot.slane %v5823, 2
        %v6112 = vrot.slane %v5824, 2
        %v6113 = vrot.slane %v5825, 2
        %v6114 = vrot.slane %v5826, 2
        %v6115 = vrot.slane %v5827, 2
        %v6116 = vrot.slane %v5828, 2
        %v6117 = vrot.slane %v5829, 2
        %v6118 = vrot.slane %v5830, 2
        %v6119 = vrot.slane %v5831, 2
        %v6144 = vrot.slane %v5808, 3
        %v6145 = vrot.slane %v5809, 3
        %v6146 = vrot.slane %v5810, 3
        %v6147 = vrot.slane %v5811, 3
        %v6148 = vrot.slane %v5812, 3
        %v6149 = vrot.slane %v5813, 3
        %v6150 = vrot.slane %v5814, 3
        %v6151 = vrot.slane %v5815, 3
        %v6152 = vrot.slane %v5816, 3
        %v6153 = vrot.slane %v5817, 3
        %v6154 = vrot.slane %v5818, 3
        %v6155 = vrot.slane %v5819, 3
        %v6156 = vrot.slane %v5820, 3
        %v6157 = vrot.slane %v5821, 3
        %v6158 = vrot.slane %v5822, 3
        %v6159 = vrot.slane %v5823, 3
        %v6160 = vrot.slane %v5824, 3
        %v6161 = vrot.slane %v5825, 3
        %v6162 = vrot.slane %v5826, 3
        %v6163 = vrot.slane %v5827, 3
        %v6164 = vrot.slane %v5828, 3
        %v6165 = vrot.slane %v5829, 3
        %v6166 = vrot.slane %v5830, 3
        %v6167 = vrot.slane %v5831, 3
        %v6216 = vrot.slane %v5904, 4
        %v6217 = vrot.slane %v5905, 4
        %v6218 = vrot.slane %v5906, 4
        %v6219 = vrot.slane %v5907, 4
        %v6220 = vrot.slane %v5908, 4
        %v6221 = vrot.slane %v5909, 4
        %v6222 = vrot.slane %v5910, 4
        %v6223 = vrot.slane %v5911, 4
        %v6224 = vrot.slane %v5912, 4
        %v6225 = vrot.slane %v5913, 4
        %v6226 = vrot.slane %v5914, 4
        %v6227 = vrot.slane %v5915, 4
        %v6228 = vrot.slane %v5916, 4
        %v6229 = vrot.slane %v5917, 4
        %v6230 = vrot.slane %v5918, 4
        %v6231 = vrot.slane %v5919, 4
        %v6232 = vrot.slane %v5920, 4
        %v6233 = vrot.slane %v5921, 4
        %v6234 = vrot.slane %v5922, 4
        %v6235 = vrot.slane %v5923, 4
        %v6236 = vrot.slane %v5924, 4
        %v6237 = vrot.slane %v5925, 4
        %v6238 = vrot.slane %v5926, 4
        %v6239 = vrot.slane %v5927, 4
        %v6264 = vrot.slane %v5904, 5
        %v6265 = vrot.slane %v5905, 5
        %v6266 = vrot.slane %v5906, 5
        %v6267 = vrot.slane %v5907, 5
        %v6268 = vrot.slane %v5908, 5
        %v6269 = vrot.slane %v5909, 5
        %v6270 = vrot.slane %v5910, 5
        %v6271 = vrot.slane %v5911, 5
        %v6272 = vrot.slane %v5912, 5
        %v6273 = vrot.slane %v5913, 5
        %v6274 = vrot.slane %v5914, 5
        %v6275 = vrot.slane %v5915, 5
        %v6276 = vrot.slane %v5916, 5
        %v6277 = vrot.slane %v5917, 5
        %v6278 = vrot.slane %v5918, 5
        %v6279 = vrot.slane %v5919, 5
        %v6280 = vrot.slane %v5920, 5
        %v6281 = vrot.slane %v5921, 5
        %v6282 = vrot.slane %v5922, 5
        %v6283 = vrot.slane %v5923, 5
        %v6284 = vrot.slane %v5924, 5
        %v6285 = vrot.slane %v5925, 5
        %v6286 = vrot.slane %v5926, 5
        %v6287 = vrot.slane %v5927, 5
        %v6312 = vrot.slane %v5904, 6
        %v6313 = vrot.slane %v5905, 6
        %v6314 = vrot.slane %v5906, 6
        %v6315 = vrot.slane %v5907, 6
        %v6316 = vrot.slane %v5908, 6
        %v6317 = vrot.slane %v5909, 6
        %v6318 = vrot.slane %v5910, 6
        %v6319 = vrot.slane %v5911, 6
        %v6320 = vrot.slane %v5912, 6
        %v6321 = vrot.slane %v5913, 6
        %v6322 = vrot.slane %v5914, 6
        %v6323 = vrot.slane %v5915, 6
        %v6324 = vrot.slane %v5916, 6
        %v6325 = vrot.slane %v5917, 6
        %v6326 = vrot.slane %v5918, 6
        %v6327 = vrot.slane %v5919, 6
        %v6328 = vrot.slane %v5920, 6
        %v6329 = vrot.slane %v5921, 6
        %v6330 = vrot.slane %v5922, 6
        %v6331 = vrot.slane %v5923, 6
        %v6332 = vrot.slane %v5924, 6
        %v6333 = vrot.slane %v5925, 6
        %v6334 = vrot.slane %v5926, 6
        %v6335 = vrot.slane %v5927, 6
        %v6360 = vrot.slane %v5904, 7
        %v6361 = vrot.slane %v5905, 7
        %v6362 = vrot.slane %v5906, 7
        %v6363 = vrot.slane %v5907, 7
        %v6364 = vrot.slane %v5908, 7
        %v6365 = vrot.slane %v5909, 7
        %v6366 = vrot.slane %v5910, 7
        %v6367 = vrot.slane %v5911, 7
        %v6368 = vrot.slane %v5912, 7
        %v6369 = vrot.slane %v5913, 7
        %v6370 = vrot.slane %v5914, 7
        %v6371 = vrot.slane %v5915, 7
        %v6372 = vrot.slane %v5916, 7
        %v6373 = vrot.slane %v5917, 7
        %v6374 = vrot.slane %v5918, 7
        %v6375 = vrot.slane %v5919, 7
        %v6376 = vrot.slane %v5920, 7
        %v6377 = vrot.slane %v5921, 7
        %v6378 = vrot.slane %v5922, 7
        %v6379 = vrot.slane %v5923, 7
        %v6380 = vrot.slane %v5924, 7
        %v6381 = vrot.slane %v5925, 7
        %v6382 = vrot.slane %v5926, 7
        %v6383 = vrot.slane %v5927, 7
        %v6432 = vrot.slane %v6000, 1
        %v6433 = vrot.slane %v6001, 1
        %v6434 = vrot.slane %v6002, 1
        %v6435 = vrot.slane %v6003, 1
        %v6436 = vrot.slane %v6004, 1
        %v6437 = vrot.slane %v6005, 1
        %v6438 = vrot.slane %v6006, 1
        %v6439 = vrot.slane %v6007, 1
        %v6440 = vrot.slane %v6008, 1
        %v6441 = vrot.slane %v6009, 1
        %v6442 = vrot.slane %v6010, 1
        %v6443 = vrot.slane %v6011, 1
        %v6444 = vrot.slane %v6012, 1
        %v6445 = vrot.slane %v6013, 1
        %v6446 = vrot.slane %v6014, 1
        %v6447 = vrot.slane %v6015, 1
        %v6448 = vrot.slane %v6016, 1
        %v6449 = vrot.slane %v6017, 1
        %v6450 = vrot.slane %v6018, 1
        %v6451 = vrot.slane %v6019, 1
        %v6452 = vrot.slane %v6020, 1
        %v6453 = vrot.slane %v6021, 1
        %v6454 = vrot.slane %v6022, 1
        %v6455 = vrot.slane %v6023, 1
        %v6480 = vrot.slane %v6000, 2
        %v6481 = vrot.slane %v6001, 2
        %v6482 = vrot.slane %v6002, 2
        %v6483 = vrot.slane %v6003, 2
        %v6484 = vrot.slane %v6004, 2
        %v6485 = vrot.slane %v6005, 2
        %v6486 = vrot.slane %v6006, 2
        %v6487 = vrot.slane %v6007, 2
        %v6488 = vrot.slane %v6008, 2
        %v6489 = vrot.slane %v6009, 2
        %v6490 = vrot.slane %v6010, 2
        %v6491 = vrot.slane %v6011, 2
        %v6492 = vrot.slane %v6012, 2
        %v6493 = vrot.slane %v6013, 2
        %v6494 = vrot.slane %v6014, 2
        %v6495 = vrot.slane %v6015, 2
        %v6496 = vrot.slane %v6016, 2
        %v6497 = vrot.slane %v6017, 2
        %v6498 = vrot.slane %v6018, 2
        %v6499 = vrot.slane %v6019, 2
        %v6500 = vrot.slane %v6020, 2
        %v6501 = vrot.slane %v6021, 2
        %v6502 = vrot.slane %v6022, 2
        %v6503 = vrot.slane %v6023, 2
        %v6528 = vrot.slane %v6000, 3
        %v6529 = vrot.slane %v6001, 3
        %v6530 = vrot.slane %v6002, 3
        %v6531 = vrot.slane %v6003, 3
        %v6532 = vrot.slane %v6004, 3
        %v6533 = vrot.slane %v6005, 3
        %v6534 = vrot.slane %v6006, 3
        %v6535 = vrot.slane %v6007, 3
        %v6536 = vrot.slane %v6008, 3
        %v6537 = vrot.slane %v6009, 3
        %v6538 = vrot.slane %v6010, 3
        %v6539 = vrot.slane %v6011, 3
        %v6540 = vrot.slane %v6012, 3
        %v6541 = vrot.slane %v6013, 3
        %v6542 = vrot.slane %v6014, 3
        %v6543 = vrot.slane %v6015, 3
        %v6544 = vrot.slane %v6016, 3
        %v6545 = vrot.slane %v6017, 3
        %v6546 = vrot.slane %v6018, 3
        %v6547 = vrot.slane %v6019, 3
        %v6548 = vrot.slane %v6020, 3
        %v6549 = vrot.slane %v6021, 3
        %v6550 = vrot.slane %v6022, 3
        %v6551 = vrot.slane %v6023, 3
        %vm6576 = vcmask 1040384
        %v6577 = vsel %vm6576, %v5808, %v6048
        %v6578 = vsel %vm6576, %v5809, %v6049
        %v6579 = vsel %vm6576, %v5810, %v6050
        %v6580 = vsel %vm6576, %v5811, %v6051
        %v6581 = vsel %vm6576, %v5812, %v6052
        %v6582 = vsel %vm6576, %v5813, %v6053
        %v6583 = vsel %vm6576, %v5814, %v6054
        %v6584 = vsel %vm6576, %v5815, %v6055
        %v6585 = vsel %vm6576, %v5816, %v6056
        %v6586 = vsel %vm6576, %v5817, %v6057
        %v6587 = vsel %vm6576, %v5818, %v6058
        %v6588 = vsel %vm6576, %v5819, %v6059
        %v6589 = vsel %vm6576, %v5820, %v6060
        %v6590 = vsel %vm6576, %v5821, %v6061
        %v6591 = vsel %vm6576, %v5822, %v6062
        %v6592 = vsel %vm6576, %v5823, %v6063
        %v6593 = vsel %vm6576, %v5824, %v6064
        %v6594 = vsel %vm6576, %v5825, %v6065
        %v6595 = vsel %vm6576, %v5826, %v6066
        %v6596 = vsel %vm6576, %v5827, %v6067
        %v6597 = vsel %vm6576, %v5828, %v6068
        %v6598 = vsel %vm6576, %v5829, %v6069
        %v6599 = vsel %vm6576, %v5830, %v6070
        %v6600 = vsel %vm6576, %v5831, %v6071
        %vm6601 = vcmask 1041408
        %v6602 = vsel %vm6601, %v6577, %v6096
        %v6603 = vsel %vm6601, %v6578, %v6097
        %v6604 = vsel %vm6601, %v6579, %v6098
        %v6605 = vsel %vm6601, %v6580, %v6099
        %v6606 = vsel %vm6601, %v6581, %v6100
        %v6607 = vsel %vm6601, %v6582, %v6101
        %v6608 = vsel %vm6601, %v6583, %v6102
        %v6609 = vsel %vm6601, %v6584, %v6103
        %v6610 = vsel %vm6601, %v6585, %v6104
        %v6611 = vsel %vm6601, %v6586, %v6105
        %v6612 = vsel %vm6601, %v6587, %v6106
        %v6613 = vsel %vm6601, %v6588, %v6107
        %v6614 = vsel %vm6601, %v6589, %v6108
        %v6615 = vsel %vm6601, %v6590, %v6109
        %v6616 = vsel %vm6601, %v6591, %v6110
        %v6617 = vsel %vm6601, %v6592, %v6111
        %v6618 = vsel %vm6601, %v6593, %v6112
        %v6619 = vsel %vm6601, %v6594, %v6113
        %v6620 = vsel %vm6601, %v6595, %v6114
        %v6621 = vsel %vm6601, %v6596, %v6115
        %v6622 = vsel %vm6601, %v6597, %v6116
        %v6623 = vsel %vm6601, %v6598, %v6117
        %v6624 = vsel %vm6601, %v6599, %v6118
        %v6625 = vsel %vm6601, %v6600, %v6119
        %vm6626 = vcmask 1042432
        %v6627 = vsel %vm6626, %v6602, %v6144
        %v6628 = vsel %vm6626, %v6603, %v6145
        %v6629 = vsel %vm6626, %v6604, %v6146
        %v6630 = vsel %vm6626, %v6605, %v6147
        %v6631 = vsel %vm6626, %v6606, %v6148
        %v6632 = vsel %vm6626, %v6607, %v6149
        %v6633 = vsel %vm6626, %v6608, %v6150
        %v6634 = vsel %vm6626, %v6609, %v6151
        %v6635 = vsel %vm6626, %v6610, %v6152
        %v6636 = vsel %vm6626, %v6611, %v6153
        %v6637 = vsel %vm6626, %v6612, %v6154
        %v6638 = vsel %vm6626, %v6613, %v6155
        %v6639 = vsel %vm6626, %v6614, %v6156
        %v6640 = vsel %vm6626, %v6615, %v6157
        %v6641 = vsel %vm6626, %v6616, %v6158
        %v6642 = vsel %vm6626, %v6617, %v6159
        %v6643 = vsel %vm6626, %v6618, %v6160
        %v6644 = vsel %vm6626, %v6619, %v6161
        %v6645 = vsel %vm6626, %v6620, %v6162
        %v6646 = vsel %vm6626, %v6621, %v6163
        %v6647 = vsel %vm6626, %v6622, %v6164
        %v6648 = vsel %vm6626, %v6623, %v6165
        %v6649 = vsel %vm6626, %v6624, %v6166
        %v6650 = vsel %vm6626, %v6625, %v6167
        %v6651 = vsel %vm589, %v6627, %v6216
        %v6652 = vsel %vm589, %v6628, %v6217
        %v6653 = vsel %vm589, %v6629, %v6218
        %v6654 = vsel %vm589, %v6630, %v6219
        %v6655 = vsel %vm589, %v6631, %v6220
        %v6656 = vsel %vm589, %v6632, %v6221
        %v6657 = vsel %vm589, %v6633, %v6222
        %v6658 = vsel %vm589, %v6634, %v6223
        %v6659 = vsel %vm589, %v6635, %v6224
        %v6660 = vsel %vm589, %v6636, %v6225
        %v6661 = vsel %vm589, %v6637, %v6226
        %v6662 = vsel %vm589, %v6638, %v6227
        %v6663 = vsel %vm589, %v6639, %v6228
        %v6664 = vsel %vm589, %v6640, %v6229
        %v6665 = vsel %vm589, %v6641, %v6230
        %v6666 = vsel %vm589, %v6642, %v6231
        %v6667 = vsel %vm589, %v6643, %v6232
        %v6668 = vsel %vm589, %v6644, %v6233
        %v6669 = vsel %vm589, %v6645, %v6234
        %v6670 = vsel %vm589, %v6646, %v6235
        %v6671 = vsel %vm589, %v6647, %v6236
        %v6672 = vsel %vm589, %v6648, %v6237
        %v6673 = vsel %vm589, %v6649, %v6238
        %v6674 = vsel %vm589, %v6650, %v6239
        %vm6675 = vcmask 1044480
        %v6676 = vsel %vm6675, %v6651, %v6264
        %v6677 = vsel %vm6675, %v6652, %v6265
        %v6678 = vsel %vm6675, %v6653, %v6266
        %v6679 = vsel %vm6675, %v6654, %v6267
        %v6680 = vsel %vm6675, %v6655, %v6268
        %v6681 = vsel %vm6675, %v6656, %v6269
        %v6682 = vsel %vm6675, %v6657, %v6270
        %v6683 = vsel %vm6675, %v6658, %v6271
        %v6684 = vsel %vm6675, %v6659, %v6272
        %v6685 = vsel %vm6675, %v6660, %v6273
        %v6686 = vsel %vm6675, %v6661, %v6274
        %v6687 = vsel %vm6675, %v6662, %v6275
        %v6688 = vsel %vm6675, %v6663, %v6276
        %v6689 = vsel %vm6675, %v6664, %v6277
        %v6690 = vsel %vm6675, %v6665, %v6278
        %v6691 = vsel %vm6675, %v6666, %v6279
        %v6692 = vsel %vm6675, %v6667, %v6280
        %v6693 = vsel %vm6675, %v6668, %v6281
        %v6694 = vsel %vm6675, %v6669, %v6282
        %v6695 = vsel %vm6675, %v6670, %v6283
        %v6696 = vsel %vm6675, %v6671, %v6284
        %v6697 = vsel %vm6675, %v6672, %v6285
        %v6698 = vsel %vm6675, %v6673, %v6286
        %v6699 = vsel %vm6675, %v6674, %v6287
        %vm6700 = vcmask 1045504
        %v6701 = vsel %vm6700, %v6676, %v6312
        %v6702 = vsel %vm6700, %v6677, %v6313
        %v6703 = vsel %vm6700, %v6678, %v6314
        %v6704 = vsel %vm6700, %v6679, %v6315
        %v6705 = vsel %vm6700, %v6680, %v6316
        %v6706 = vsel %vm6700, %v6681, %v6317
        %v6707 = vsel %vm6700, %v6682, %v6318
        %v6708 = vsel %vm6700, %v6683, %v6319
        %v6709 = vsel %vm6700, %v6684, %v6320
        %v6710 = vsel %vm6700, %v6685, %v6321
        %v6711 = vsel %vm6700, %v6686, %v6322
        %v6712 = vsel %vm6700, %v6687, %v6323
        %v6713 = vsel %vm6700, %v6688, %v6324
        %v6714 = vsel %vm6700, %v6689, %v6325
        %v6715 = vsel %vm6700, %v6690, %v6326
        %v6716 = vsel %vm6700, %v6691, %v6327
        %v6717 = vsel %vm6700, %v6692, %v6328
        %v6718 = vsel %vm6700, %v6693, %v6329
        %v6719 = vsel %vm6700, %v6694, %v6330
        %v6720 = vsel %vm6700, %v6695, %v6331
        %v6721 = vsel %vm6700, %v6696, %v6332
        %v6722 = vsel %vm6700, %v6697, %v6333
        %v6723 = vsel %vm6700, %v6698, %v6334
        %v6724 = vsel %vm6700, %v6699, %v6335
        %vm6725 = vcmask 1046528
        %v6726 = vsel %vm6725, %v6701, %v6360
        %v6727 = vsel %vm6725, %v6702, %v6361
        %v6728 = vsel %vm6725, %v6703, %v6362
        %v6729 = vsel %vm6725, %v6704, %v6363
        %v6730 = vsel %vm6725, %v6705, %v6364
        %v6731 = vsel %vm6725, %v6706, %v6365
        %v6732 = vsel %vm6725, %v6707, %v6366
        %v6733 = vsel %vm6725, %v6708, %v6367
        %v6734 = vsel %vm6725, %v6709, %v6368
        %v6735 = vsel %vm6725, %v6710, %v6369
        %v6736 = vsel %vm6725, %v6711, %v6370
        %v6737 = vsel %vm6725, %v6712, %v6371
        %v6738 = vsel %vm6725, %v6713, %v6372
        %v6739 = vsel %vm6725, %v6714, %v6373
        %v6740 = vsel %vm6725, %v6715, %v6374
        %v6741 = vsel %vm6725, %v6716, %v6375
        %v6742 = vsel %vm6725, %v6717, %v6376
        %v6743 = vsel %vm6725, %v6718, %v6377
        %v6744 = vsel %vm6725, %v6719, %v6378
        %v6745 = vsel %vm6725, %v6720, %v6379
        %v6746 = vsel %vm6725, %v6721, %v6380
        %v6747 = vsel %vm6725, %v6722, %v6381
        %v6748 = vsel %vm6725, %v6723, %v6382
        %v6749 = vsel %vm6725, %v6724, %v6383
        %v6750 = vsel %vm6576, %v6000, %v6432
        %v6751 = vsel %vm6576, %v6001, %v6433
        %v6752 = vsel %vm6576, %v6002, %v6434
        %v6753 = vsel %vm6576, %v6003, %v6435
        %v6754 = vsel %vm6576, %v6004, %v6436
        %v6755 = vsel %vm6576, %v6005, %v6437
        %v6756 = vsel %vm6576, %v6006, %v6438
        %v6757 = vsel %vm6576, %v6007, %v6439
        %v6758 = vsel %vm6576, %v6008, %v6440
        %v6759 = vsel %vm6576, %v6009, %v6441
        %v6760 = vsel %vm6576, %v6010, %v6442
        %v6761 = vsel %vm6576, %v6011, %v6443
        %v6762 = vsel %vm6576, %v6012, %v6444
        %v6763 = vsel %vm6576, %v6013, %v6445
        %v6764 = vsel %vm6576, %v6014, %v6446
        %v6765 = vsel %vm6576, %v6015, %v6447
        %v6766 = vsel %vm6576, %v6016, %v6448
        %v6767 = vsel %vm6576, %v6017, %v6449
        %v6768 = vsel %vm6576, %v6018, %v6450
        %v6769 = vsel %vm6576, %v6019, %v6451
        %v6770 = vsel %vm6576, %v6020, %v6452
        %v6771 = vsel %vm6576, %v6021, %v6453
        %v6772 = vsel %vm6576, %v6022, %v6454
        %v6773 = vsel %vm6576, %v6023, %v6455
        %v6774 = vsel %vm6601, %v6750, %v6480
        %v6775 = vsel %vm6601, %v6751, %v6481
        %v6776 = vsel %vm6601, %v6752, %v6482
        %v6777 = vsel %vm6601, %v6753, %v6483
        %v6778 = vsel %vm6601, %v6754, %v6484
        %v6779 = vsel %vm6601, %v6755, %v6485
        %v6780 = vsel %vm6601, %v6756, %v6486
        %v6781 = vsel %vm6601, %v6757, %v6487
        %v6782 = vsel %vm6601, %v6758, %v6488
        %v6783 = vsel %vm6601, %v6759, %v6489
        %v6784 = vsel %vm6601, %v6760, %v6490
        %v6785 = vsel %vm6601, %v6761, %v6491
        %v6786 = vsel %vm6601, %v6762, %v6492
        %v6787 = vsel %vm6601, %v6763, %v6493
        %v6788 = vsel %vm6601, %v6764, %v6494
        %v6789 = vsel %vm6601, %v6765, %v6495
        %v6790 = vsel %vm6601, %v6766, %v6496
        %v6791 = vsel %vm6601, %v6767, %v6497
        %v6792 = vsel %vm6601, %v6768, %v6498
        %v6793 = vsel %vm6601, %v6769, %v6499
        %v6794 = vsel %vm6601, %v6770, %v6500
        %v6795 = vsel %vm6601, %v6771, %v6501
        %v6796 = vsel %vm6601, %v6772, %v6502
        %v6797 = vsel %vm6601, %v6773, %v6503
        %v6798 = vsel %vm6626, %v6774, %v6528
        %v6799 = vsel %vm6626, %v6775, %v6529
        %v6800 = vsel %vm6626, %v6776, %v6530
        %v6801 = vsel %vm6626, %v6777, %v6531
        %v6802 = vsel %vm6626, %v6778, %v6532
        %v6803 = vsel %vm6626, %v6779, %v6533
        %v6804 = vsel %vm6626, %v6780, %v6534
        %v6805 = vsel %vm6626, %v6781, %v6535
        %v6806 = vsel %vm6626, %v6782, %v6536
        %v6807 = vsel %vm6626, %v6783, %v6537
        %v6808 = vsel %vm6626, %v6784, %v6538
        %v6809 = vsel %vm6626, %v6785, %v6539
        %v6810 = vsel %vm6626, %v6786, %v6540
        %v6811 = vsel %vm6626, %v6787, %v6541
        %v6812 = vsel %vm6626, %v6788, %v6542
        %v6813 = vsel %vm6626, %v6789, %v6543
        %v6814 = vsel %vm6626, %v6790, %v6544
        %v6815 = vsel %vm6626, %v6791, %v6545
        %v6816 = vsel %vm6626, %v6792, %v6546
        %v6817 = vsel %vm6626, %v6793, %v6547
        %v6818 = vsel %vm6626, %v6794, %v6548
        %v6819 = vsel %vm6626, %v6795, %v6549
        %v6820 = vsel %vm6626, %v6796, %v6550
        %v6821 = vsel %vm6626, %v6797, %v6551
        %v6822 = vld [vmem:[#allocation5] sm:$0xff]
        %v6823 = vld [vmem:[#allocation5 + $0x8] sm:$0xff]
        %v6824 = vld [vmem:[#allocation5 + $0x10] sm:$0xff]
        %v6825 = vld [vmem:[#allocation5 + $0x18] sm:$0xff]
        %v6826 = vld [vmem:[#allocation5 + $0x20] sm:$0xff]
        %v6827 = vld [vmem:[#allocation5 + $0x28] sm:$0xff]
        %v6828 = vld [vmem:[#allocation5 + $0x30] sm:$0xff]
        %v6829 = vld [vmem:[#allocation5 + $0x38] sm:$0xff]
        %v6830 = vld [vmem:[#allocation5 + $0x40] sm:$0xff]
        %v6831 = vld [vmem:[#allocation5 + $0x48] sm:$0xff]
        %v6832 = vld [vmem:[#allocation5 + $0x50] sm:$0xff]
        %v6833 = vld [vmem:[#allocation5 + $0x58] sm:$0xff]
        %v6834 = vld [vmem:[#allocation5 + $0x60] sm:$0xff]
        %v6835 = vld [vmem:[#allocation5 + $0x68] sm:$0xff]
        %v6836 = vld [vmem:[#allocation5 + $0x70] sm:$0xff]
        %v6837 = vld [vmem:[#allocation5 + $0x78] sm:$0xff]
        %v6838 = vld [vmem:[#allocation5 + $0x80] sm:$0xff]
        %v6839 = vld [vmem:[#allocation5 + $0x88] sm:$0xff]
        %v6840 = vld [vmem:[#allocation5 + $0x90] sm:$0xff]
        %v6841 = vld [vmem:[#allocation5 + $0x98] sm:$0xff]
        %v6842 = vld [vmem:[#allocation5 + $0xa0] sm:$0xff]
        %v6843 = vld [vmem:[#allocation5 + $0xa8] sm:$0xff]
        %v6844 = vld [vmem:[#allocation5 + $0xb0] sm:$0xff]
        %v6845 = vld [vmem:[#allocation5 + $0xb8] sm:$0xff]
        %v6846 = vld [vmem:[#allocation5 + $0xc0] sm:$0xff]
        %v6847 = vld [vmem:[#allocation5 + $0xc8] sm:$0xff]
        %v6848 = vld [vmem:[#allocation5 + $0xd0] sm:$0xff]
        %v6849 = vld [vmem:[#allocation5 + $0xd8] sm:$0xff]
        %v6850 = vld [vmem:[#allocation5 + $0xe0] sm:$0xff]
        %v6851 = vld [vmem:[#allocation5 + $0xe8] sm:$0xff]
        %v6852 = vld [vmem:[#allocation5 + $0xf0] sm:$0xff]
        %v6853 = vld [vmem:[#allocation5 + $0xf8] sm:$0xff]
        %v6854 = vld [vmem:[#allocation5 + $0x100] sm:$0xff]
        %v6855 = vld [vmem:[#allocation5 + $0x108] sm:$0xff]
        %v6856 = vld [vmem:[#allocation5 + $0x110] sm:$0xff]
        %v6857 = vld [vmem:[#allocation5 + $0x118] sm:$0xff]
        %v6858 = vld [vmem:[#allocation5 + $0x120] sm:$0xff]
        %v6859 = vld [vmem:[#allocation5 + $0x128] sm:$0xff]
        %v6860 = vld [vmem:[#allocation5 + $0x130] sm:$0xff]
        %v6861 = vld [vmem:[#allocation5 + $0x138] sm:$0xff]
        %v6862 = vld [vmem:[#allocation5 + $0x140] sm:$0xff]
        %v6863 = vld [vmem:[#allocation5 + $0x148] sm:$0xff]
        %v6864 = vld [vmem:[#allocation5 + $0x150] sm:$0xff]
        %v6865 = vld [vmem:[#allocation5 + $0x158] sm:$0xff]
        %v6866 = vld [vmem:[#allocation5 + $0x160] sm:$0xff]
        %v6867 = vld [vmem:[#allocation5 + $0x168] sm:$0xff]
        %v6868 = vld [vmem:[#allocation5 + $0x170] sm:$0xff]
        %v6869 = vld [vmem:[#allocation5 + $0x178] sm:$0xff]
        %s6870 = scalar_lea.vmem [#allocation5], 1920
        %v6871 = vld [vmem:[%s6870] sm:$0xff]
        %v6872 = vld [vmem:[%s6870 + $0x8] sm:$0xff]
        %v6873 = vld [vmem:[%s6870 + $0x10] sm:$0xff]
        %v6874 = vld [vmem:[%s6870 + $0x18] sm:$0xff]
        %v6875 = vld [vmem:[%s6870 + $0x20] sm:$0xff]
        %v6876 = vld [vmem:[%s6870 + $0x28] sm:$0xff]
        %v6877 = vld [vmem:[%s6870 + $0x30] sm:$0xff]
        %v6878 = vld [vmem:[%s6870 + $0x38] sm:$0xff]
        %v6879 = vld [vmem:[%s6870 + $0x40] sm:$0xff]
        %v6880 = vld [vmem:[%s6870 + $0x48] sm:$0xff]
        %v6881 = vld [vmem:[%s6870 + $0x50] sm:$0xff]
        %v6882 = vld [vmem:[%s6870 + $0x58] sm:$0xff]
        %v6883 = vld [vmem:[%s6870 + $0x60] sm:$0xff]
        %v6884 = vld [vmem:[%s6870 + $0x68] sm:$0xff]
        %v6885 = vld [vmem:[%s6870 + $0x70] sm:$0xff]
        %v6886 = vld [vmem:[%s6870 + $0x78] sm:$0xff]
        %v6887 = vld [vmem:[%s6870 + $0x80] sm:$0xff]
        %v6888 = vld [vmem:[%s6870 + $0x88] sm:$0xff]
        %v6889 = vld [vmem:[%s6870 + $0x90] sm:$0xff]
        %v6890 = vld [vmem:[%s6870 + $0x98] sm:$0xff]
        %v6891 = vld [vmem:[%s6870 + $0xa0] sm:$0xff]
        %v6892 = vld [vmem:[%s6870 + $0xa8] sm:$0xff]
        %v6893 = vld [vmem:[%s6870 + $0xb0] sm:$0xff]
        %v6894 = vld [vmem:[%s6870 + $0xb8] sm:$0xff]
        %v6895 = vld [vmem:[%s6870 + $0xc0] sm:$0xff]
        %v6896 = vld [vmem:[%s6870 + $0xc8] sm:$0xff]
        %v6897 = vld [vmem:[%s6870 + $0xd0] sm:$0xff]
        %v6898 = vld [vmem:[%s6870 + $0xd8] sm:$0xff]
        %v6899 = vld [vmem:[%s6870 + $0xe0] sm:$0xff]
        %v6900 = vld [vmem:[%s6870 + $0xe8] sm:$0xff]
        %v6901 = vld [vmem:[%s6870 + $0xf0] sm:$0xff]
        %v6902 = vld [vmem:[%s6870 + $0xf8] sm:$0xff]
        %v6903 = vld [vmem:[%s6870 + $0x100] sm:$0xff]
        %v6904 = vld [vmem:[%s6870 + $0x108] sm:$0xff]
        %v6905 = vld [vmem:[%s6870 + $0x110] sm:$0xff]
        %v6906 = vld [vmem:[%s6870 + $0x118] sm:$0xff]
        %v6907 = vld [vmem:[%s6870 + $0x120] sm:$0xff]
        %v6908 = vld [vmem:[%s6870 + $0x128] sm:$0xff]
        %v6909 = vld [vmem:[%s6870 + $0x130] sm:$0xff]
        %v6910 = vld [vmem:[%s6870 + $0x138] sm:$0xff]
        %v6911 = vld [vmem:[%s6870 + $0x140] sm:$0xff]
        %v6912 = vld [vmem:[%s6870 + $0x148] sm:$0xff]
        %v6913 = vld [vmem:[%s6870 + $0x150] sm:$0xff]
        %v6914 = vld [vmem:[%s6870 + $0x158] sm:$0xff]
        %v6915 = vld [vmem:[%s6870 + $0x160] sm:$0xff]
        %v6916 = vld [vmem:[%s6870 + $0x168] sm:$0xff]
        %v6917 = vld [vmem:[%s6870 + $0x170] sm:$0xff]
        %v6918 = vld [vmem:[%s6870 + $0x178] sm:$0xff]
        %v6967 = vrot.slane %v6726, 1
        %v6968 = vrot.slane %v6798, 1
        %v6969 = vsel %vm6725, %v6967, %v6968
        %v6970 = vrot.slane %v6727, 1
        %v6971 = vrot.slane %v6799, 1
        %v6972 = vsel %vm6725, %v6970, %v6971
        %v6973 = vrot.slane %v6728, 1
        %v6974 = vrot.slane %v6800, 1
        %v6975 = vsel %vm6725, %v6973, %v6974
        %v6976 = vrot.slane %v6729, 1
        %v6977 = vrot.slane %v6801, 1
        %v6978 = vsel %vm6725, %v6976, %v6977
        %v6979 = vrot.slane %v6730, 1
        %v6980 = vrot.slane %v6802, 1
        %v6981 = vsel %vm6725, %v6979, %v6980
        %v6982 = vrot.slane %v6731, 1
        %v6983 = vrot.slane %v6803, 1
        %v6984 = vsel %vm6725, %v6982, %v6983
        %v6985 = vrot.slane %v6732, 1
        %v6986 = vrot.slane %v6804, 1
        %v6987 = vsel %vm6725, %v6985, %v6986
        %v6988 = vrot.slane %v6733, 1
        %v6989 = vrot.slane %v6805, 1
        %v6990 = vsel %vm6725, %v6988, %v6989
        %v6991 = vrot.slane %v6734, 1
        %v6992 = vrot.slane %v6806, 1
        %v6993 = vsel %vm6725, %v6991, %v6992
        %v6994 = vrot.slane %v6735, 1
        %v6995 = vrot.slane %v6807, 1
        %v6996 = vsel %vm6725, %v6994, %v6995
        %v6997 = vrot.slane %v6736, 1
        %v6998 = vrot.slane %v6808, 1
        %v6999 = vsel %vm6725, %v6997, %v6998
        %v7000 = vrot.slane %v6737, 1
        %v7001 = vrot.slane %v6809, 1
        %v7002 = vsel %vm6725, %v7000, %v7001
        %v7003 = vrot.slane %v6738, 1
        %v7004 = vrot.slane %v6810, 1
        %v7005 = vsel %vm6725, %v7003, %v7004
        %v7006 = vrot.slane %v6739, 1
        %v7007 = vrot.slane %v6811, 1
        %v7008 = vsel %vm6725, %v7006, %v7007
        %v7009 = vrot.slane %v6740, 1
        %v7010 = vrot.slane %v6812, 1
        %v7011 = vsel %vm6725, %v7009, %v7010
        %v7012 = vrot.slane %v6741, 1
        %v7013 = vrot.slane %v6813, 1
        %v7014 = vsel %vm6725, %v7012, %v7013
        %v7015 = vrot.slane %v6742, 1
        %v7016 = vrot.slane %v6814, 1
        %v7017 = vsel %vm6725, %v7015, %v7016
        %v7018 = vrot.slane %v6743, 1
        %v7019 = vrot.slane %v6815, 1
        %v7020 = vsel %vm6725, %v7018, %v7019
        %v7021 = vrot.slane %v6744, 1
        %v7022 = vrot.slane %v6816, 1
        %v7023 = vsel %vm6725, %v7021, %v7022
        %v7024 = vrot.slane %v6745, 1
        %v7025 = vrot.slane %v6817, 1
        %v7026 = vsel %vm6725, %v7024, %v7025
        %v7027 = vrot.slane %v6746, 1
        %v7028 = vrot.slane %v6818, 1
        %v7029 = vsel %vm6725, %v7027, %v7028
        %v7030 = vrot.slane %v6747, 1
        %v7031 = vrot.slane %v6819, 1
        %v7032 = vsel %vm6725, %v7030, %v7031
        %v7033 = vrot.slane %v6748, 1
        %v7034 = vrot.slane %v6820, 1
        %v7035 = vsel %vm6725, %v7033, %v7034
        %v7036 = vrot.slane %v6749, 1
        %v7037 = vrot.slane %v6821, 1
        %v7038 = vsel %vm6725, %v7036, %v7037
        %s7063 = scalar_lea.vmem [#allocation5], 384
        %v7064 = vld [vmem:[%s7063] sm:$0xff]
        %v7065 = vld [vmem:[%s7063 + $0x8] sm:$0xff]
        %v7066 = vld [vmem:[%s7063 + $0x10] sm:$0xff]
        %v7067 = vld [vmem:[%s7063 + $0x18] sm:$0xff]
        %v7068 = vld [vmem:[%s7063 + $0x20] sm:$0xff]
        %v7069 = vld [vmem:[%s7063 + $0x28] sm:$0xff]
        %v7070 = vld [vmem:[%s7063 + $0x30] sm:$0xff]
        %v7071 = vld [vmem:[%s7063 + $0x38] sm:$0xff]
        %v7072 = vld [vmem:[%s7063 + $0x40] sm:$0xff]
        %v7073 = vld [vmem:[%s7063 + $0x48] sm:$0xff]
        %v7074 = vld [vmem:[%s7063 + $0x50] sm:$0xff]
        %v7075 = vld [vmem:[%s7063 + $0x58] sm:$0xff]
        %v7076 = vld [vmem:[%s7063 + $0x60] sm:$0xff]
        %v7077 = vld [vmem:[%s7063 + $0x68] sm:$0xff]
        %v7078 = vld [vmem:[%s7063 + $0x70] sm:$0xff]
        %v7079 = vld [vmem:[%s7063 + $0x78] sm:$0xff]
        %v7080 = vld [vmem:[%s7063 + $0x80] sm:$0xff]
        %v7081 = vld [vmem:[%s7063 + $0x88] sm:$0xff]
        %v7082 = vld [vmem:[%s7063 + $0x90] sm:$0xff]
        %v7083 = vld [vmem:[%s7063 + $0x98] sm:$0xff]
        %v7084 = vld [vmem:[%s7063 + $0xa0] sm:$0xff]
        %v7085 = vld [vmem:[%s7063 + $0xa8] sm:$0xff]
        %v7086 = vld [vmem:[%s7063 + $0xb0] sm:$0xff]
        %v7087 = vld [vmem:[%s7063 + $0xb8] sm:$0xff]
        %v7088 = vld [vmem:[%s7063 + $0xc0] sm:$0xff]
        %v7089 = vld [vmem:[%s7063 + $0xc8] sm:$0xff]
        %v7090 = vld [vmem:[%s7063 + $0xd0] sm:$0xff]
        %v7091 = vld [vmem:[%s7063 + $0xd8] sm:$0xff]
        %v7092 = vld [vmem:[%s7063 + $0xe0] sm:$0xff]
        %v7093 = vld [vmem:[%s7063 + $0xe8] sm:$0xff]
        %v7094 = vld [vmem:[%s7063 + $0xf0] sm:$0xff]
        %v7095 = vld [vmem:[%s7063 + $0xf8] sm:$0xff]
        %v7096 = vld [vmem:[%s7063 + $0x100] sm:$0xff]
        %v7097 = vld [vmem:[%s7063 + $0x108] sm:$0xff]
        %v7098 = vld [vmem:[%s7063 + $0x110] sm:$0xff]
        %v7099 = vld [vmem:[%s7063 + $0x118] sm:$0xff]
        %v7100 = vld [vmem:[%s7063 + $0x120] sm:$0xff]
        %v7101 = vld [vmem:[%s7063 + $0x128] sm:$0xff]
        %v7102 = vld [vmem:[%s7063 + $0x130] sm:$0xff]
        %v7103 = vld [vmem:[%s7063 + $0x138] sm:$0xff]
        %v7104 = vld [vmem:[%s7063 + $0x140] sm:$0xff]
        %v7105 = vld [vmem:[%s7063 + $0x148] sm:$0xff]
        %v7106 = vld [vmem:[%s7063 + $0x150] sm:$0xff]
        %v7107 = vld [vmem:[%s7063 + $0x158] sm:$0xff]
        %v7108 = vld [vmem:[%s7063 + $0x160] sm:$0xff]
        %v7109 = vld [vmem:[%s7063 + $0x168] sm:$0xff]
        %v7110 = vld [vmem:[%s7063 + $0x170] sm:$0xff]
        %v7111 = vld [vmem:[%s7063 + $0x178] sm:$0xff]
        %7112 = vmatprep.subr.mxu0 0.0
        %7113 = vmatpush1.msra.mxu0 %v7064
        %7114 = vmatprep.subr.mxu0 0.0
        %7115 = vmatpush1.msra.mxu0 %v7065
        %7116 = vmatprep.subr.mxu0 0.0
        %7117 = vmatpush1.msra.mxu0 %v7066
        %7118 = vmatprep.subr.mxu0 0.0
        %7119 = vmatpush1.msra.mxu0 %v7067
        %7120 = vmatprep.subr.mxu0 0.0
        %7121 = vmatpush1.msra.mxu0 %v7068
        %7122 = vmatprep.subr.mxu0 0.0
        %7123 = vmatpush1.msra.mxu0 %v7069
        %7124 = vmatprep.subr.mxu0 0.0
        %7125 = vmatpush1.msra.mxu0 %v7070
        %7126 = vmatprep.subr.mxu0 0.0
        %7127 = vmatpush1.msra.mxu0 %v7071
        %7128 = vmatprep.subr.mxu0 0.0
        %7129 = vmatpush1.msra.mxu0 %v7072
        %7130 = vmatprep.subr.mxu0 0.0
        %7131 = vmatpush1.msra.mxu0 %v7073
        %7132 = vmatprep.subr.mxu0 0.0
        %7133 = vmatpush1.msra.mxu0 %v7074
        %7134 = vmatprep.subr.mxu0 0.0
        %7135 = vmatpush1.msra.mxu0 %v7075
        %7136 = vmatprep.subr.mxu0 0.0
        %7137 = vmatpush1.msra.mxu0 %v7076
        %7138 = vmatprep.subr.mxu0 0.0
        %7139 = vmatpush1.msra.mxu0 %v7077
        %7140 = vmatprep.subr.mxu0 0.0
        %7141 = vmatpush1.msra.mxu0 %v7078
        %7142 = vmatprep.subr.mxu0 0.0
        %7143 = vmatpush1.msra.mxu0 %v7079
        %7144 = vmatprep.subr.mxu0 0.0
        %7145 = vmatpush1.msra.mxu0 %v7080
        %7146 = vmatprep.subr.mxu0 0.0
        %7147 = vmatpush1.msra.mxu0 %v7081
        %7148 = vmatprep.subr.mxu0 0.0
        %7149 = vmatpush1.msra.mxu0 %v7082
        %7150 = vmatprep.subr.mxu0 0.0
        %7151 = vmatpush1.msra.mxu0 %v7083
        %7152 = vmatprep.subr.mxu0 0.0
        %7153 = vmatpush1.msra.mxu0 %v7084
        %7154 = vmatprep.subr.mxu0 0.0
        %7155 = vmatpush1.msra.mxu0 %v7085
        %7156 = vmatprep.subr.mxu0 0.0
        %7157 = vmatpush1.msra.mxu0 %v7086
        %7158 = vmatprep.subr.mxu0 0.0
        %7159 = vmatpush1.msra.mxu0 %v7087
        %7160 = vmatprep.subr.mxu0 0.0
        %7161 = vmatpush1.msra.mxu0 %v7088
        %7162 = vmatprep.subr.mxu0 0.0
        %7163 = vmatpush1.msra.mxu0 %v7089
        %7164 = vmatprep.subr.mxu0 0.0
        %7165 = vmatpush1.msra.mxu0 %v7090
        %7166 = vmatprep.subr.mxu0 0.0
        %7167 = vmatpush1.msra.mxu0 %v7091
        %7168 = vmatprep.subr.mxu0 0.0
        %7169 = vmatpush1.msra.mxu0 %v7092
        %7170 = vmatprep.subr.mxu0 0.0
        %7171 = vmatpush1.msra.mxu0 %v7093
        %7172 = vmatprep.subr.mxu0 0.0
        %7173 = vmatpush1.msra.mxu0 %v7094
        %7174 = vmatprep.subr.mxu0 0.0
        %7175 = vmatpush1.msra.mxu0 %v7095
        %7176 = vmatprep.mubr.f32.mxu0 %v6972
        %7177 = vmatmul.mubr.f32.gmra.mrb[0].mxu0 %v6969
        %v7178 = vpop.f32.mrb[0].mxu0
        %v7179 = vadd.f32 0.0, %v7178
        %v7180 = vpop.f32.mrb[0].mxu0
        %7181 = vmatprep.mubr.f32.mxu0 %v6981
        %7182 = vmatmul.mubr.f32.gmra.mrb[0].mxu0 %v6978
        %v7183 = vpop.f32.mrb[0].mxu0
        %v7184 = vadd.f32 0.0, %v7183
        %v7185 = vpop.f32.mrb[0].mxu0
        %7186 = vmatprep.mubr.f32.mxu0 %v6990
        %7187 = vmatmul.mubr.f32.gmra.mrb[0].mxu0 %v6987
        %v7188 = vpop.f32.mrb[0].mxu0
        %v7189 = vadd.f32 0.0, %v7188
        %v7190 = vpop.f32.mrb[0].mxu0
        %7191 = vmatprep.mubr.f32.mxu0 %v6999
        %7192 = vmatmul.mubr.f32.gmra.mrb[0].mxu0 %v6996
        %v7193 = vpop.f32.mrb[0].mxu0
        %v7194 = vadd.f32 0.0, %v7193
        %v7195 = vpop.f32.mrb[0].mxu0
        %7196 = vmatprep.mubr.f32.mxu0 %v7008
        %7197 = vmatmul.mubr.f32.gmra.mrb[0].mxu0 %v7005
        %v7198 = vpop.f32.mrb[0].mxu0
        %v7199 = vadd.f32 0.0, %v7198
        %v7200 = vpop.f32.mrb[0].mxu0
        %7201 = vmatprep.mubr.f32.mxu0 %v7017
        %7202 = vmatmul.mubr.f32.gmra.mrb[0].mxu0 %v7014
        %v7203 = vpop.f32.mrb[0].mxu0
        %v7204 = vadd.f32 0.0, %v7203
        %v7205 = vpop.f32.mrb[0].mxu0
        %7206 = vmatprep.mubr.f32.mxu0 %v7026
        %7207 = vmatmul.mubr.f32.gmra.mrb[0].mxu0 %v7023
        %v7208 = vpop.f32.mrb[0].mxu0
        %v7209 = vadd.f32 0.0, %v7208
        %v7210 = vpop.f32.mrb[0].mxu0
        %7211 = vmatprep.mubr.f32.mxu0 %v7035
        %7212 = vmatmul.mubr.f32.gmra.mrb[0].mxu0 %v7032
        %v7213 = vpop.f32.mrb[0].mxu0
        %v7214 = vadd.f32 0.0, %v7213
        %v7215 = vpop.f32.mrb[0].mxu0
        %7216 = vdwg.mxu0
        %7217 = vmatprep.subr.mxu0 0.0
        %7218 = vmatpush1.msra.mxu0 %v7096
        %7219 = vmatprep.subr.mxu0 0.0
        %7220 = vmatpush1.msra.mxu0 %v7097
        %7221 = vmatprep.subr.mxu0 0.0
        %7222 = vmatpush1.msra.mxu0 %v7098
        %7223 = vmatprep.subr.mxu0 0.0
        %7224 = vmatpush1.msra.mxu0 %v7099
        %7225 = vmatprep.subr.mxu0 0.0
        %7226 = vmatpush1.msra.mxu0 %v7100
        %7227 = vmatprep.subr.mxu0 0.0
        %7228 = vmatpush1.msra.mxu0 %v7101
        %7229 = vmatprep.subr.mxu0 0.0
        %7230 = vmatpush1.msra.mxu0 %v7102
        %7231 = vmatprep.subr.mxu0 0.0
        %7232 = vmatpush1.msra.mxu0 %v7103
        %7233 = vmatprep.subr.mxu0 0.0
        %7234 = vmatpush1.msra.mxu0 %v7104
        %7235 = vmatprep.subr.mxu0 0.0
        %7236 = vmatpush1.msra.mxu0 %v7105
        %7237 = vmatprep.subr.mxu0 0.0
        %7238 = vmatpush1.msra.mxu0 %v7106
        %7239 = vmatprep.subr.mxu0 0.0
        %7240 = vmatpush1.msra.mxu0 %v7107
        %7241 = vmatprep.subr.mxu0 0.0
        %7242 = vmatpush1.msra.mxu0 %v7108
        %7243 = vmatprep.subr.mxu0 0.0
        %7244 = vmatpush1.msra.mxu0 %v7109
        %7245 = vmatprep.subr.mxu0 0.0
        %7246 = vmatpush1.msra.mxu0 %v7110
        %7247 = vmatprep.subr.mxu0 0.0
        %7248 = vmatpush1.msra.mxu0 %v7111
        %7249 = vmatprep.subr.mxu0 0.0
        %7250 = vmatpush1.msra.mxu0 0.0
        %7251 = vmatprep.subr.mxu0 0.0
        %7252 = vmatpush1.msra.mxu0 0.0
        %7253 = vmatprep.subr.mxu0 0.0
        %7254 = vmatpush1.msra.mxu0 0.0
        %7255 = vmatprep.subr.mxu0 0.0
        %7256 = vmatpush1.msra.mxu0 0.0
        %7257 = vmatprep.subr.mxu0 0.0
        %7258 = vmatpush1.msra.mxu0 0.0
        %7259 = vmatprep.subr.mxu0 0.0
        %7260 = vmatpush1.msra.mxu0 0.0
        %7261 = vmatprep.subr.mxu0 0.0
        %7262 = vmatpush1.msra.mxu0 0.0
        %7263 = vmatprep.subr.mxu0 0.0
        %7264 = vmatpush1.msra.mxu0 0.0
        %7265 = vmatprep.subr.mxu0 0.0
        %7266 = vmatpush1.msra.mxu0 0.0
        %7267 = vmatprep.subr.mxu0 0.0
        %7268 = vmatpush1.msra.mxu0 0.0
        %7269 = vmatprep.subr.mxu0 0.0
        %7270 = vmatpush1.msra.mxu0 0.0
        %7271 = vmatprep.subr.mxu0 0.0
        %7272 = vmatpush1.msra.mxu0 0.0
        %7273 = vmatprep.subr.mxu0 0.0
        %7274 = vmatpush1.msra.mxu0 0.0
        %7275 = vmatprep.subr.mxu0 0.0
        %7276 = vmatpush1.msra.mxu0 0.0
        %7277 = vmatprep.subr.mxu0 0.0
        %7278 = vmatpush1.msra.mxu0 0.0
        %7279 = vmatprep.subr.mxu0 0.0
        %7280 = vmatpush1.msra.mxu0 0.0
        %7281 = vmatprep.mubr.f32.mxu0 0.0
        %7282 = vmatmul.mubr.f32.gmra.mrb[0].mxu0 %v6975
        %v7283 = vpop.f32.mrb[0].mxu0
        %v7284 = vadd.f32 %v7179, %v7283
        %v7285 = vpop.f32.mrb[0].mxu0
        %7286 = vmatprep.mubr.f32.mxu0 0.0
        %7287 = vmatmul.mubr.f32.gmra.mrb[0].mxu0 %v6984
        %v7288 = vpop.f32.mrb[0].mxu0
        %v7289 = vadd.f32 %v7184, %v7288
        %v7290 = vpop.f32.mrb[0].mxu0
        %7291 = vmatprep.mubr.f32.mxu0 0.0
        %7292 = vmatmul.mubr.f32.gmra.mrb[0].mxu0 %v6993
        %v7293 = vpop.f32.mrb[0].mxu0
        %v7294 = vadd.f32 %v7189, %v7293
        %v7295 = vpop.f32.mrb[0].mxu0
        %7296 = vmatprep.mubr.f32.mxu0 0.0
        %7297 = vmatmul.mubr.f32.gmra.mrb[0].mxu0 %v7002
        %v7298 = vpop.f32.mrb[0].mxu0
        %v7299 = vadd.f32 %v7194, %v7298
        %v7300 = vpop.f32.mrb[0].mxu0
        %7301 = vmatprep.mubr.f32.mxu0 0.0
        %7302 = vmatmul.mubr.f32.gmra.mrb[0].mxu0 %v7011
        %v7303 = vpop.f32.mrb[0].mxu0
        %v7304 = vadd.f32 %v7199, %v7303
        %v7305 = vpop.f32.mrb[0].mxu0
        %7306 = vmatprep.mubr.f32.mxu0 0.0
        %7307 = vmatmul.mubr.f32.gmra.mrb[0].mxu0 %v7020
        %v7308 = vpop.f32.mrb[0].mxu0
        %v7309 = vadd.f32 %v7204, %v7308
        %v7310 = vpop.f32.mrb[0].mxu0
        %7311 = vmatprep.mubr.f32.mxu0 0.0
        %7312 = vmatmul.mubr.f32.gmra.mrb[0].mxu0 %v7029
        %v7313 = vpop.f32.mrb[0].mxu0
        %v7314 = vadd.f32 %v7209, %v7313
        %v7315 = vpop.f32.mrb[0].mxu0
        %7316 = vmatprep.mubr.f32.mxu0 0.0
        %7317 = vmatmul.mubr.f32.gmra.mrb[0].mxu0 %v7038
        %v7318 = vpop.f32.mrb[0].mxu0
        %v7319 = vadd.f32 %v7214, %v7318
        %v7320 = vpop.f32.mrb[0].mxu0
        %7321 = vdwg.mxu0
        %7322 = vmatprep.subr.mxu0 0.0
        %7323 = vmatpush1.msra.mxu0 %v6822
        %7324 = vmatprep.subr.mxu0 0.0
        %7325 = vmatpush1.msra.mxu0 %v6823
        %7326 = vmatprep.subr.mxu0 0.0
        %7327 = vmatpush1.msra.mxu0 %v6824
        %7328 = vmatprep.subr.mxu0 0.0
        %7329 = vmatpush1.msra.mxu0 %v6825
        %7330 = vmatprep.subr.mxu0 0.0
        %7331 = vmatpush1.msra.mxu0 %v6826
        %7332 = vmatprep.subr.mxu0 0.0
        %7333 = vmatpush1.msra.mxu0 %v6827
        %7334 = vmatprep.subr.mxu0 0.0
        %7335 = vmatpush1.msra.mxu0 %v6828
        %7336 = vmatprep.subr.mxu0 0.0
        %7337 = vmatpush1.msra.mxu0 %v6829
        %7338 = vmatprep.subr.mxu0 0.0
        %7339 = vmatpush1.msra.mxu0 %v6830
        %7340 = vmatprep.subr.mxu0 0.0
        %7341 = vmatpush1.msra.mxu0 %v6831
        %7342 = vmatprep.subr.mxu0 0.0
        %7343 = vmatpush1.msra.mxu0 %v6832
        %7344 = vmatprep.subr.mxu0 0.0
        %7345 = vmatpush1.msra.mxu0 %v6833
        %7346 = vmatprep.subr.mxu0 0.0
        %7347 = vmatpush1.msra.mxu0 %v6834
        %7348 = vmatprep.subr.mxu0 0.0
        %7349 = vmatpush1.msra.mxu0 %v6835
        %7350 = vmatprep.subr.mxu0 0.0
        %7351 = vmatpush1.msra.mxu0 %v6836
        %7352 = vmatprep.subr.mxu0 0.0
        %7353 = vmatpush1.msra.mxu0 %v6837
        %7354 = vmatprep.subr.mxu0 0.0
        %7355 = vmatpush1.msra.mxu0 %v6838
        %7356 = vmatprep.subr.mxu0 0.0
        %7357 = vmatpush1.msra.mxu0 %v6839
        %7358 = vmatprep.subr.mxu0 0.0
        %7359 = vmatpush1.msra.mxu0 %v6840
        %7360 = vmatprep.subr.mxu0 0.0
        %7361 = vmatpush1.msra.mxu0 %v6841
        %7362 = vmatprep.subr.mxu0 0.0
        %7363 = vmatpush1.msra.mxu0 %v6842
        %7364 = vmatprep.subr.mxu0 0.0
        %7365 = vmatpush1.msra.mxu0 %v6843
        %7366 = vmatprep.subr.mxu0 0.0
        %7367 = vmatpush1.msra.mxu0 %v6844
        %7368 = vmatprep.subr.mxu0 0.0
        %7369 = vmatpush1.msra.mxu0 %v6845
        %7370 = vmatprep.subr.mxu0 0.0
        %7371 = vmatpush1.msra.mxu0 %v6846
        %7372 = vmatprep.subr.mxu0 0.0
        %7373 = vmatpush1.msra.mxu0 %v6847
        %7374 = vmatprep.subr.mxu0 0.0
        %7375 = vmatpush1.msra.mxu0 %v6848
        %7376 = vmatprep.subr.mxu0 0.0
        %7377 = vmatpush1.msra.mxu0 %v6849
        %7378 = vmatprep.subr.mxu0 0.0
        %7379 = vmatpush1.msra.mxu0 %v6850
        %7380 = vmatprep.subr.mxu0 0.0
        %7381 = vmatpush1.msra.mxu0 %v6851
        %7382 = vmatprep.subr.mxu0 0.0
        %7383 = vmatpush1.msra.mxu0 %v6852
        %7384 = vmatprep.subr.mxu0 0.0
        %7385 = vmatpush1.msra.mxu0 %v6853
        %7386 = vmatprep.mubr.f32.mxu0 %v6727
        %7387 = vmatmul.mubr.f32.gmra.mrb[0].mxu0 %v6726
        %v7388 = vpop.f32.mrb[0].mxu0
        %v7389 = vadd.f32 %v7284, %v7388
        %v7390 = vpop.f32.mrb[0].mxu0
        %7391 = vmatprep.mubr.f32.mxu0 %v6730
        %7392 = vmatmul.mubr.f32.gmra.mrb[0].mxu0 %v6729
        %v7393 = vpop.f32.mrb[0].mxu0
        %v7394 = vadd.f32 %v7289, %v7393
        %v7395 = vpop.f32.mrb[0].mxu0
        %7396 = vmatprep.mubr.f32.mxu0 %v6733
        %7397 = vmatmul.mubr.f32.gmra.mrb[0].mxu0 %v6732
        %v7398 = vpop.f32.mrb[0].mxu0
        %v7399 = vadd.f32 %v7294, %v7398
        %v7400 = vpop.f32.mrb[0].mxu0
        %7401 = vmatprep.mubr.f32.mxu0 %v6736
        %7402 = vmatmul.mubr.f32.gmra.mrb[0].mxu0 %v6735
        %v7403 = vpop.f32.mrb[0].mxu0
        %v7404 = vadd.f32 %v7299, %v7403
        %v7405 = vpop.f32.mrb[0].mxu0
        %7406 = vmatprep.mubr.f32.mxu0 %v6739
        %7407 = vmatmul.mubr.f32.gmra.mrb[0].mxu0 %v6738
        %v7408 = vpop.f32.mrb[0].mxu0
        %v7409 = vadd.f32 %v7304, %v7408
        %v7410 = vpop.f32.mrb[0].mxu0
        %7411 = vmatprep.mubr.f32.mxu0 %v6742
        %7412 = vmatmul.mubr.f32.gmra.mrb[0].mxu0 %v6741
        %v7413 = vpop.f32.mrb[0].mxu0
        %v7414 = vadd.f32 %v7309, %v7413
        %v7415 = vpop.f32.mrb[0].mxu0
        %7416 = vmatprep.mubr.f32.mxu0 %v6745
        %7417 = vmatmul.mubr.f32.gmra.mrb[0].mxu0 %v6744
        %v7418 = vpop.f32.mrb[0].mxu0
        %v7419 = vadd.f32 %v7314, %v7418
        %v7420 = vpop.f32.mrb[0].mxu0
        %7421 = vmatprep.mubr.f32.mxu0 %v6748
        %7422 = vmatmul.mubr.f32.gmra.mrb[0].mxu0 %v6747
        %v7423 = vpop.f32.mrb[0].mxu0
        %v7424 = vadd.f32 %v7319, %v7423
        %v7425 = vpop.f32.mrb[0].mxu0
        %7426 = vdwg.mxu0
        %7427 = vmatprep.subr.mxu0 0.0
        %7428 = vmatpush1.msra.mxu0 %v6854
        %7429 = vmatprep.subr.mxu0 0.0
        %7430 = vmatpush1.msra.mxu0 %v6855
        %7431 = vmatprep.subr.mxu0 0.0
        %7432 = vmatpush1.msra.mxu0 %v6856
        %7433 = vmatprep.subr.mxu0 0.0
        %7434 = vmatpush1.msra.mxu0 %v6857
        %7435 = vmatprep.subr.mxu0 0.0
        %7436 = vmatpush1.msra.mxu0 %v6858
        %7437 = vmatprep.subr.mxu0 0.0
        %7438 = vmatpush1.msra.mxu0 %v6859
        %7439 = vmatprep.subr.mxu0 0.0
        %7440 = vmatpush1.msra.mxu0 %v6860
        %7441 = vmatprep.subr.mxu0 0.0
        %7442 = vmatpush1.msra.mxu0 %v6861
        %7443 = vmatprep.subr.mxu0 0.0
        %7444 = vmatpush1.msra.mxu0 %v6862
        %7445 = vmatprep.subr.mxu0 0.0
        %7446 = vmatpush1.msra.mxu0 %v6863
        %7447 = vmatprep.subr.mxu0 0.0
        %7448 = vmatpush1.msra.mxu0 %v6864
        %7449 = vmatprep.subr.mxu0 0.0
        %7450 = vmatpush1.msra.mxu0 %v6865
        %7451 = vmatprep.subr.mxu0 0.0
        %7452 = vmatpush1.msra.mxu0 %v6866
        %7453 = vmatprep.subr.mxu0 0.0
        %7454 = vmatpush1.msra.mxu0 %v6867
        %7455 = vmatprep.subr.mxu0 0.0
        %7456 = vmatpush1.msra.mxu0 %v6868
        %7457 = vmatprep.subr.mxu0 0.0
        %7458 = vmatpush1.msra.mxu0 %v6869
        %7459 = vmatprep.subr.mxu0 0.0
        %7460 = vmatpush1.msra.mxu0 0.0
        %7461 = vmatprep.subr.mxu0 0.0
        %7462 = vmatpush1.msra.mxu0 0.0
        %7463 = vmatprep.subr.mxu0 0.0
        %7464 = vmatpush1.msra.mxu0 0.0
        %7465 = vmatprep.subr.mxu0 0.0
        %7466 = vmatpush1.msra.mxu0 0.0
        %7467 = vmatprep.subr.mxu0 0.0
        %7468 = vmatpush1.msra.mxu0 0.0
        %7469 = vmatprep.subr.mxu0 0.0
        %7470 = vmatpush1.msra.mxu0 0.0
        %7471 = vmatprep.subr.mxu0 0.0
        %7472 = vmatpush1.msra.mxu0 0.0
        %7473 = vmatprep.subr.mxu0 0.0
        %7474 = vmatpush1.msra.mxu0 0.0
        %7475 = vmatprep.subr.mxu0 0.0
        %7476 = vmatpush1.msra.mxu0 0.0
        %7477 = vmatprep.subr.mxu0 0.0
        %7478 = vmatpush1.msra.mxu0 0.0
        %7479 = vmatprep.subr.mxu0 0.0
        %7480 = vmatpush1.msra.mxu0 0.0
        %7481 = vmatprep.subr.mxu0 0.0
        %7482 = vmatpush1.msra.mxu0 0.0
        %7483 = vmatprep.subr.mxu0 0.0
        %7484 = vmatpush1.msra.mxu0 0.0
        %7485 = vmatprep.subr.mxu0 0.0
        %7486 = vmatpush1.msra.mxu0 0.0
        %7487 = vmatprep.subr.mxu0 0.0
        %7488 = vmatpush1.msra.mxu0 0.0
        %7489 = vmatprep.subr.mxu0 0.0
        %7490 = vmatpush1.msra.mxu0 0.0
        %7491 = vmatprep.mubr.f32.mxu0 0.0
        %7492 = vmatmul.mubr.f32.gmra.mrb[0].mxu0 %v6728
        %v7493 = vpop.f32.mrb[0].mxu0
        %v7494 = vadd.f32 %v7389, %v7493
        %v7495 = vpop.f32.mrb[0].mxu0
        %7496 = vmatprep.mubr.f32.mxu0 0.0
        %7497 = vmatmul.mubr.f32.gmra.mrb[0].mxu0 %v6731
        %v7498 = vpop.f32.mrb[0].mxu0
        %v7499 = vadd.f32 %v7394, %v7498
        %v7500 = vpop.f32.mrb[0].mxu0
        %7501 = vmatprep.mubr.f32.mxu0 0.0
        %7502 = vmatmul.mubr.f32.gmra.mrb[0].mxu0 %v6734
        %v7503 = vpop.f32.mrb[0].mxu0
        %v7504 = vadd.f32 %v7399, %v7503
        %v7505 = vpop.f32.mrb[0].mxu0
        %7506 = vmatprep.mubr.f32.mxu0 0.0
        %7507 = vmatmul.mubr.f32.gmra.mrb[0].mxu0 %v6737
        %v7508 = vpop.f32.mrb[0].mxu0
        %v7509 = vadd.f32 %v7404, %v7508
        %v7510 = vpop.f32.mrb[0].mxu0
        %7511 = vmatprep.mubr.f32.mxu0 0.0
        %7512 = vmatmul.mubr.f32.gmra.mrb[0].mxu0 %v6740
        %v7513 = vpop.f32.mrb[0].mxu0
        %v7514 = vadd.f32 %v7409, %v7513
        %v7515 = vpop.f32.mrb[0].mxu0
        %7516 = vmatprep.mubr.f32.mxu0 0.0
        %7517 = vmatmul.mubr.f32.gmra.mrb[0].mxu0 %v6743
        %v7518 = vpop.f32.mrb[0].mxu0
        %v7519 = vadd.f32 %v7414, %v7518
        %v7520 = vpop.f32.mrb[0].mxu0
        %7521 = vmatprep.mubr.f32.mxu0 0.0
        %7522 = vmatmul.mubr.f32.gmra.mrb[0].mxu0 %v6746
        %v7523 = vpop.f32.mrb[0].mxu0
        %v7524 = vadd.f32 %v7419, %v7523
        %v7525 = vpop.f32.mrb[0].mxu0
        %7526 = vmatprep.mubr.f32.mxu0 0.0
        %7527 = vmatmul.mubr.f32.gmra.mrb[0].mxu0 %v6749
        %v7528 = vpop.f32.mrb[0].mxu0
        %v7529 = vadd.f32 %v7424, %v7528
        %v7530 = vpop.f32.mrb[0].mxu0
        %7531 = vdwg.mxu0
        %s7532 = scalar_lea.vmem [#allocation5], 2304
        %v7533 = vld [vmem:[%s7532] sm:$0xff]
        %v7534 = vld [vmem:[%s7532 + $0x8] sm:$0xff]
        %v7535 = vld [vmem:[%s7532 + $0x10] sm:$0xff]
        %v7536 = vld [vmem:[%s7532 + $0x18] sm:$0xff]
        %v7537 = vld [vmem:[%s7532 + $0x20] sm:$0xff]
        %v7538 = vld [vmem:[%s7532 + $0x28] sm:$0xff]
        %v7539 = vld [vmem:[%s7532 + $0x30] sm:$0xff]
        %v7540 = vld [vmem:[%s7532 + $0x38] sm:$0xff]
        %v7541 = vld [vmem:[%s7532 + $0x40] sm:$0xff]
        %v7542 = vld [vmem:[%s7532 + $0x48] sm:$0xff]
        %v7543 = vld [vmem:[%s7532 + $0x50] sm:$0xff]
        %v7544 = vld [vmem:[%s7532 + $0x58] sm:$0xff]
        %v7545 = vld [vmem:[%s7532 + $0x60] sm:$0xff]
        %v7546 = vld [vmem:[%s7532 + $0x68] sm:$0xff]
        %v7547 = vld [vmem:[%s7532 + $0x70] sm:$0xff]
        %v7548 = vld [vmem:[%s7532 + $0x78] sm:$0xff]
        %v7549 = vld [vmem:[%s7532 + $0x80] sm:$0xff]
        %v7550 = vld [vmem:[%s7532 + $0x88] sm:$0xff]
        %v7551 = vld [vmem:[%s7532 + $0x90] sm:$0xff]
        %v7552 = vld [vmem:[%s7532 + $0x98] sm:$0xff]
        %v7553 = vld [vmem:[%s7532 + $0xa0] sm:$0xff]
        %v7554 = vld [vmem:[%s7532 + $0xa8] sm:$0xff]
        %v7555 = vld [vmem:[%s7532 + $0xb0] sm:$0xff]
        %v7556 = vld [vmem:[%s7532 + $0xb8] sm:$0xff]
        %v7557 = vld [vmem:[%s7532 + $0xc0] sm:$0xff]
        %v7558 = vld [vmem:[%s7532 + $0xc8] sm:$0xff]
        %v7559 = vld [vmem:[%s7532 + $0xd0] sm:$0xff]
        %v7560 = vld [vmem:[%s7532 + $0xd8] sm:$0xff]
        %v7561 = vld [vmem:[%s7532 + $0xe0] sm:$0xff]
        %v7562 = vld [vmem:[%s7532 + $0xe8] sm:$0xff]
        %v7563 = vld [vmem:[%s7532 + $0xf0] sm:$0xff]
        %v7564 = vld [vmem:[%s7532 + $0xf8] sm:$0xff]
        %v7565 = vld [vmem:[%s7532 + $0x100] sm:$0xff]
        %v7566 = vld [vmem:[%s7532 + $0x108] sm:$0xff]
        %v7567 = vld [vmem:[%s7532 + $0x110] sm:$0xff]
        %v7568 = vld [vmem:[%s7532 + $0x118] sm:$0xff]
        %v7569 = vld [vmem:[%s7532 + $0x120] sm:$0xff]
        %v7570 = vld [vmem:[%s7532 + $0x128] sm:$0xff]
        %v7571 = vld [vmem:[%s7532 + $0x130] sm:$0xff]
        %v7572 = vld [vmem:[%s7532 + $0x138] sm:$0xff]
        %v7573 = vld [vmem:[%s7532 + $0x140] sm:$0xff]
        %v7574 = vld [vmem:[%s7532 + $0x148] sm:$0xff]
        %v7575 = vld [vmem:[%s7532 + $0x150] sm:$0xff]
        %v7576 = vld [vmem:[%s7532 + $0x158] sm:$0xff]
        %v7577 = vld [vmem:[%s7532 + $0x160] sm:$0xff]
        %v7578 = vld [vmem:[%s7532 + $0x168] sm:$0xff]
        %v7579 = vld [vmem:[%s7532 + $0x170] sm:$0xff]
        %v7580 = vld [vmem:[%s7532 + $0x178] sm:$0xff]
        %7581 = vmatprep.subr.mxu0 0.0
        %7582 = vmatpush1.msra.mxu0 %v7533
        %7583 = vmatprep.subr.mxu0 0.0
        %7584 = vmatpush1.msra.mxu0 %v7534
        %7585 = vmatprep.subr.mxu0 0.0
        %7586 = vmatpush1.msra.mxu0 %v7535
        %7587 = vmatprep.subr.mxu0 0.0
        %7588 = vmatpush1.msra.mxu0 %v7536
        %7589 = vmatprep.subr.mxu0 0.0
        %7590 = vmatpush1.msra.mxu0 %v7537
        %7591 = vmatprep.subr.mxu0 0.0
        %7592 = vmatpush1.msra.mxu0 %v7538
        %7593 = vmatprep.subr.mxu0 0.0
        %7594 = vmatpush1.msra.mxu0 %v7539
        %7595 = vmatprep.subr.mxu0 0.0
        %7596 = vmatpush1.msra.mxu0 %v7540
        %7597 = vmatprep.subr.mxu0 0.0
        %7598 = vmatpush1.msra.mxu0 %v7541
        %7599 = vmatprep.subr.mxu0 0.0
        %7600 = vmatpush1.msra.mxu0 %v7542
        %7601 = vmatprep.subr.mxu0 0.0
        %7602 = vmatpush1.msra.mxu0 %v7543
        %7603 = vmatprep.subr.mxu0 0.0
        %7604 = vmatpush1.msra.mxu0 %v7544
        %7605 = vmatprep.subr.mxu0 0.0
        %7606 = vmatpush1.msra.mxu0 %v7545
        %7607 = vmatprep.subr.mxu0 0.0
        %7608 = vmatpush1.msra.mxu0 %v7546
        %7609 = vmatprep.subr.mxu0 0.0
        %7610 = vmatpush1.msra.mxu0 %v7547
        %7611 = vmatprep.subr.mxu0 0.0
        %7612 = vmatpush1.msra.mxu0 %v7548
        %7613 = vmatprep.subr.mxu0 0.0
        %7614 = vmatpush1.msra.mxu0 %v7549
        %7615 = vmatprep.subr.mxu0 0.0
        %7616 = vmatpush1.msra.mxu0 %v7550
        %7617 = vmatprep.subr.mxu0 0.0
        %7618 = vmatpush1.msra.mxu0 %v7551
        %7619 = vmatprep.subr.mxu0 0.0
        %7620 = vmatpush1.msra.mxu0 %v7552
        %7621 = vmatprep.subr.mxu0 0.0
        %7622 = vmatpush1.msra.mxu0 %v7553
        %7623 = vmatprep.subr.mxu0 0.0
        %7624 = vmatpush1.msra.mxu0 %v7554
        %7625 = vmatprep.subr.mxu0 0.0
        %7626 = vmatpush1.msra.mxu0 %v7555
        %7627 = vmatprep.subr.mxu0 0.0
        %7628 = vmatpush1.msra.mxu0 %v7556
        %7629 = vmatprep.subr.mxu0 0.0
        %7630 = vmatpush1.msra.mxu0 %v7557
        %7631 = vmatprep.subr.mxu0 0.0
        %7632 = vmatpush1.msra.mxu0 %v7558
        %7633 = vmatprep.subr.mxu0 0.0
        %7634 = vmatpush1.msra.mxu0 %v7559
        %7635 = vmatprep.subr.mxu0 0.0
        %7636 = vmatpush1.msra.mxu0 %v7560
        %7637 = vmatprep.subr.mxu0 0.0
        %7638 = vmatpush1.msra.mxu0 %v7561
        %7639 = vmatprep.subr.mxu0 0.0
        %7640 = vmatpush1.msra.mxu0 %v7562
        %7641 = vmatprep.subr.mxu0 0.0
        %7642 = vmatpush1.msra.mxu0 %v7563
        %7643 = vmatprep.subr.mxu0 0.0
        %7644 = vmatpush1.msra.mxu0 %v7564
        %7645 = vmatprep.mubr.f32.mxu0 %v6972
        %7646 = vmatmul.mubr.f32.gmra.mrb[0].mxu0 %v6969
        %v7647 = vpop.f32.mrb[0].mxu0
        %v7648 = vadd.f32 0.0, %v7647
        %v7649 = vpop.f32.mrb[0].mxu0
        %7650 = vmatprep.mubr.f32.mxu0 %v6981
        %7651 = vmatmul.mubr.f32.gmra.mrb[0].mxu0 %v6978
        %v7652 = vpop.f32.mrb[0].mxu0
        %v7653 = vadd.f32 0.0, %v7652
        %v7654 = vpop.f32.mrb[0].mxu0
        %7655 = vmatprep.mubr.f32.mxu0 %v6990
        %7656 = vmatmul.mubr.f32.gmra.mrb[0].mxu0 %v6987
        %v7657 = vpop.f32.mrb[0].mxu0
        %v7658 = vadd.f32 0.0, %v7657
        %v7659 = vpop.f32.mrb[0].mxu0
        %7660 = vmatprep.mubr.f32.mxu0 %v6999
        %7661 = vmatmul.mubr.f32.gmra.mrb[0].mxu0 %v6996
        %v7662 = vpop.f32.mrb[0].mxu0
        %v7663 = vadd.f32 0.0, %v7662
        %v7664 = vpop.f32.mrb[0].mxu0
        %7665 = vmatprep.mubr.f32.mxu0 %v7008
        %7666 = vmatmul.mubr.f32.gmra.mrb[0].mxu0 %v7005
        %v7667 = vpop.f32.mrb[0].mxu0
        %v7668 = vadd.f32 0.0, %v7667
        %v7669 = vpop.f32.mrb[0].mxu0
        %7670 = vmatprep.mubr.f32.mxu0 %v7017
        %7671 = vmatmul.mubr.f32.gmra.mrb[0].mxu0 %v7014
        %v7672 = vpop.f32.mrb[0].mxu0
        %v7673 = vadd.f32 0.0, %v7672
        %v7674 = vpop.f32.mrb[0].mxu0
        %7675 = vmatprep.mubr.f32.mxu0 %v7026
        %7676 = vmatmul.mubr.f32.gmra.mrb[0].mxu0 %v7023
        %v7677 = vpop.f32.mrb[0].mxu0
        %v7678 = vadd.f32 0.0, %v7677
        %v7679 = vpop.f32.mrb[0].mxu0
        %7680 = vmatprep.mubr.f32.mxu0 %v7035
        %7681 = vmatmul.mubr.f32.gmra.mrb[0].mxu0 %v7032
        %v7682 = vpop.f32.mrb[0].mxu0
        %v7683 = vadd.f32 0.0, %v7682
        %v7684 = vpop.f32.mrb[0].mxu0
        %7685 = vdwg.mxu0
        %7686 = vmatprep.subr.mxu0 0.0
        %7687 = vmatpush1.msra.mxu0 %v7565
        %7688 = vmatprep.subr.mxu0 0.0
        %7689 = vmatpush1.msra.mxu0 %v7566
        %7690 = vmatprep.subr.mxu0 0.0
        %7691 = vmatpush1.msra.mxu0 %v7567
        %7692 = vmatprep.subr.mxu0 0.0
        %7693 = vmatpush1.msra.mxu0 %v7568
        %7694 = vmatprep.subr.mxu0 0.0
        %7695 = vmatpush1.msra.mxu0 %v7569
        %7696 = vmatprep.subr.mxu0 0.0
        %7697 = vmatpush1.msra.mxu0 %v7570
        %7698 = vmatprep.subr.mxu0 0.0
        %7699 = vmatpush1.msra.mxu0 %v7571
        %7700 = vmatprep.subr.mxu0 0.0
        %7701 = vmatpush1.msra.mxu0 %v7572
        %7702 = vmatprep.subr.mxu0 0.0
        %7703 = vmatpush1.msra.mxu0 %v7573
        %7704 = vmatprep.subr.mxu0 0.0
        %7705 = vmatpush1.msra.mxu0 %v7574
        %7706 = vmatprep.subr.mxu0 0.0
        %7707 = vmatpush1.msra.mxu0 %v7575
        %7708 = vmatprep.subr.mxu0 0.0
        %7709 = vmatpush1.msra.mxu0 %v7576
        %7710 = vmatprep.subr.mxu0 0.0
        %7711 = vmatpush1.msra.mxu0 %v7577
        %7712 = vmatprep.subr.mxu0 0.0
        %7713 = vmatpush1.msra.mxu0 %v7578
        %7714 = vmatprep.subr.mxu0 0.0
        %7715 = vmatpush1.msra.mxu0 %v7579
        %7716 = vmatprep.subr.mxu0 0.0
        %7717 = vmatpush1.msra.mxu0 %v7580
        %7718 = vmatprep.subr.mxu0 0.0
        %7719 = vmatpush1.msra.mxu0 0.0
        %7720 = vmatprep.subr.mxu0 0.0
        %7721 = vmatpush1.msra.mxu0 0.0
        %7722 = vmatprep.subr.mxu0 0.0
        %7723 = vmatpush1.msra.mxu0 0.0
        %7724 = vmatprep.subr.mxu0 0.0
        %7725 = vmatpush1.msra.mxu0 0.0
        %7726 = vmatprep.subr.mxu0 0.0
        %7727 = vmatpush1.msra.mxu0 0.0
        %7728 = vmatprep.subr.mxu0 0.0
        %7729 = vmatpush1.msra.mxu0 0.0
        %7730 = vmatprep.subr.mxu0 0.0
        %7731 = vmatpush1.msra.mxu0 0.0
        %7732 = vmatprep.subr.mxu0 0.0
        %7733 = vmatpush1.msra.mxu0 0.0
        %7734 = vmatprep.subr.mxu0 0.0
        %7735 = vmatpush1.msra.mxu0 0.0
        %7736 = vmatprep.subr.mxu0 0.0
        %7737 = vmatpush1.msra.mxu0 0.0
        %7738 = vmatprep.subr.mxu0 0.0
        %7739 = vmatpush1.msra.mxu0 0.0
        %7740 = vmatprep.subr.mxu0 0.0
        %7741 = vmatpush1.msra.mxu0 0.0
        %7742 = vmatprep.subr.mxu0 0.0
        %7743 = vmatpush1.msra.mxu0 0.0
        %7744 = vmatprep.subr.mxu0 0.0
        %7745 = vmatpush1.msra.mxu0 0.0
        %7746 = vmatprep.subr.mxu0 0.0
        %7747 = vmatpush1.msra.mxu0 0.0
        %7748 = vmatprep.subr.mxu0 0.0
        %7749 = vmatpush1.msra.mxu0 0.0
        %7750 = vmatprep.mubr.f32.mxu0 0.0
        %7751 = vmatmul.mubr.f32.gmra.mrb[0].mxu0 %v6975
        %v7752 = vpop.f32.mrb[0].mxu0
        %v7753 = vadd.f32 %v7648, %v7752
        %v7754 = vpop.f32.mrb[0].mxu0
        %7755 = vmatprep.mubr.f32.mxu0 0.0
        %7756 = vmatmul.mubr.f32.gmra.mrb[0].mxu0 %v6984
        %v7757 = vpop.f32.mrb[0].mxu0
        %v7758 = vadd.f32 %v7653, %v7757
        %v7759 = vpop.f32.mrb[0].mxu0
        %7760 = vmatprep.mubr.f32.mxu0 0.0
        %7761 = vmatmul.mubr.f32.gmra.mrb[0].mxu0 %v6993
        %v7762 = vpop.f32.mrb[0].mxu0
        %v7763 = vadd.f32 %v7658, %v7762
        %v7764 = vpop.f32.mrb[0].mxu0
        %7765 = vmatprep.mubr.f32.mxu0 0.0
        %7766 = vmatmul.mubr.f32.gmra.mrb[0].mxu0 %v7002
        %v7767 = vpop.f32.mrb[0].mxu0
        %v7768 = vadd.f32 %v7663, %v7767
        %v7769 = vpop.f32.mrb[0].mxu0
        %7770 = vmatprep.mubr.f32.mxu0 0.0
        %7771 = vmatmul.mubr.f32.gmra.mrb[0].mxu0 %v7011
        %v7772 = vpop.f32.mrb[0].mxu0
        %v7773 = vadd.f32 %v7668, %v7772
        %v7774 = vpop.f32.mrb[0].mxu0
        %7775 = vmatprep.mubr.f32.mxu0 0.0
        %7776 = vmatmul.mubr.f32.gmra.mrb[0].mxu0 %v7020
        %v7777 = vpop.f32.mrb[0].mxu0
        %v7778 = vadd.f32 %v7673, %v7777
        %v7779 = vpop.f32.mrb[0].mxu0
        %7780 = vmatprep.mubr.f32.mxu0 0.0
        %7781 = vmatmul.mubr.f32.gmra.mrb[0].mxu0 %v7029
        %v7782 = vpop.f32.mrb[0].mxu0
        %v7783 = vadd.f32 %v7678, %v7782
        %v7784 = vpop.f32.mrb[0].mxu0
        %7785 = vmatprep.mubr.f32.mxu0 0.0
        %7786 = vmatmul.mubr.f32.gmra.mrb[0].mxu0 %v7038
        %v7787 = vpop.f32.mrb[0].mxu0
        %v7788 = vadd.f32 %v7683, %v7787
        %v7789 = vpop.f32.mrb[0].mxu0
        %7790 = vdwg.mxu0
        %7791 = vmatprep.subr.mxu0 0.0
        %7792 = vmatpush1.msra.mxu0 %v6871
        %7793 = vmatprep.subr.mxu0 0.0
        %7794 = vmatpush1.msra.mxu0 %v6872
        %7795 = vmatprep.subr.mxu0 0.0
        %7796 = vmatpush1.msra.mxu0 %v6873
        %7797 = vmatprep.subr.mxu0 0.0
        %7798 = vmatpush1.msra.mxu0 %v6874
        %7799 = vmatprep.subr.mxu0 0.0
        %7800 = vmatpush1.msra.mxu0 %v6875
        %7801 = vmatprep.subr.mxu0 0.0
        %7802 = vmatpush1.msra.mxu0 %v6876
        %7803 = vmatprep.subr.mxu0 0.0
        %7804 = vmatpush1.msra.mxu0 %v6877
        %7805 = vmatprep.subr.mxu0 0.0
        %7806 = vmatpush1.msra.mxu0 %v6878
        %7807 = vmatprep.subr.mxu0 0.0
        %7808 = vmatpush1.msra.mxu0 %v6879
        %7809 = vmatprep.subr.mxu0 0.0
        %7810 = vmatpush1.msra.mxu0 %v6880
        %7811 = vmatprep.subr.mxu0 0.0
        %7812 = vmatpush1.msra.mxu0 %v6881
        %7813 = vmatprep.subr.mxu0 0.0
        %7814 = vmatpush1.msra.mxu0 %v6882
        %7815 = vmatprep.subr.mxu0 0.0
        %7816 = vmatpush1.msra.mxu0 %v6883
        %7817 = vmatprep.subr.mxu0 0.0
        %7818 = vmatpush1.msra.mxu0 %v6884
        %7819 = vmatprep.subr.mxu0 0.0
        %7820 = vmatpush1.msra.mxu0 %v6885
        %7821 = vmatprep.subr.mxu0 0.0
        %7822 = vmatpush1.msra.mxu0 %v6886
        %7823 = vmatprep.subr.mxu0 0.0
        %7824 = vmatpush1.msra.mxu0 %v6887
        %7825 = vmatprep.subr.mxu0 0.0
        %7826 = vmatpush1.msra.mxu0 %v6888
        %7827 = vmatprep.subr.mxu0 0.0
        %7828 = vmatpush1.msra.mxu0 %v6889
        %7829 = vmatprep.subr.mxu0 0.0
        %7830 = vmatpush1.msra.mxu0 %v6890
        %7831 = vmatprep.subr.mxu0 0.0
        %7832 = vmatpush1.msra.mxu0 %v6891
        %7833 = vmatprep.subr.mxu0 0.0
        %7834 = vmatpush1.msra.mxu0 %v6892
        %7835 = vmatprep.subr.mxu0 0.0
        %7836 = vmatpush1.msra.mxu0 %v6893
        %7837 = vmatprep.subr.mxu0 0.0
        %7838 = vmatpush1.msra.mxu0 %v6894
        %7839 = vmatprep.subr.mxu0 0.0
        %7840 = vmatpush1.msra.mxu0 %v6895
        %7841 = vmatprep.subr.mxu0 0.0
        %7842 = vmatpush1.msra.mxu0 %v6896
        %7843 = vmatprep.subr.mxu0 0.0
        %7844 = vmatpush1.msra.mxu0 %v6897
        %7845 = vmatprep.subr.mxu0 0.0
        %7846 = vmatpush1.msra.mxu0 %v6898
        %7847 = vmatprep.subr.mxu0 0.0
        %7848 = vmatpush1.msra.mxu0 %v6899
        %7849 = vmatprep.subr.mxu0 0.0
        %7850 = vmatpush1.msra.mxu0 %v6900
        %7851 = vmatprep.subr.mxu0 0.0
        %7852 = vmatpush1.msra.mxu0 %v6901
        %7853 = vmatprep.subr.mxu0 0.0
        %7854 = vmatpush1.msra.mxu0 %v6902
        %7855 = vmatprep.mubr.f32.mxu0 %v6727
        %7856 = vmatmul.mubr.f32.gmra.mrb[0].mxu0 %v6726
        %v7857 = vpop.f32.mrb[0].mxu0
        %v7858 = vadd.f32 %v7753, %v7857
        %v7859 = vpop.f32.mrb[0].mxu0
        %7860 = vmatprep.mubr.f32.mxu0 %v6730
        %7861 = vmatmul.mubr.f32.gmra.mrb[0].mxu0 %v6729
        %v7862 = vpop.f32.mrb[0].mxu0
        %v7863 = vadd.f32 %v7758, %v7862
        %v7864 = vpop.f32.mrb[0].mxu0
        %7865 = vmatprep.mubr.f32.mxu0 %v6733
        %7866 = vmatmul.mubr.f32.gmra.mrb[0].mxu0 %v6732
        %v7867 = vpop.f32.mrb[0].mxu0
        %v7868 = vadd.f32 %v7763, %v7867
        %v7869 = vpop.f32.mrb[0].mxu0
        %7870 = vmatprep.mubr.f32.mxu0 %v6736
        %7871 = vmatmul.mubr.f32.gmra.mrb[0].mxu0 %v6735
        %v7872 = vpop.f32.mrb[0].mxu0
        %v7873 = vadd.f32 %v7768, %v7872
        %v7874 = vpop.f32.mrb[0].mxu0
        %7875 = vmatprep.mubr.f32.mxu0 %v6739
        %7876 = vmatmul.mubr.f32.gmra.mrb[0].mxu0 %v6738
        %v7877 = vpop.f32.mrb[0].mxu0
        %v7878 = vadd.f32 %v7773, %v7877
        %v7879 = vpop.f32.mrb[0].mxu0
        %7880 = vmatprep.mubr.f32.mxu0 %v6742
        %7881 = vmatmul.mubr.f32.gmra.mrb[0].mxu0 %v6741
        %v7882 = vpop.f32.mrb[0].mxu0
        %v7883 = vadd.f32 %v7778, %v7882
        %v7884 = vpop.f32.mrb[0].mxu0
        %7885 = vmatprep.mubr.f32.mxu0 %v6745
        %7886 = vmatmul.mubr.f32.gmra.mrb[0].mxu0 %v6744
        %v7887 = vpop.f32.mrb[0].mxu0
        %v7888 = vadd.f32 %v7783, %v7887
        %v7889 = vpop.f32.mrb[0].mxu0
        %7890 = vmatprep.mubr.f32.mxu0 %v6748
        %7891 = vmatmul.mubr.f32.gmra.mrb[0].mxu0 %v6747
        %v7892 = vpop.f32.mrb[0].mxu0
        %v7893 = vadd.f32 %v7788, %v7892
        %v7894 = vpop.f32.mrb[0].mxu0
        %7895 = vdwg.mxu0
        %7896 = vmatprep.subr.mxu0 0.0
        %7897 = vmatpush1.msra.mxu0 %v6903
        %7898 = vmatprep.subr.mxu0 0.0
        %7899 = vmatpush1.msra.mxu0 %v6904
        %7900 = vmatprep.subr.mxu0 0.0
        %7901 = vmatpush1.msra.mxu0 %v6905
        %7902 = vmatprep.subr.mxu0 0.0
        %7903 = vmatpush1.msra.mxu0 %v6906
        %7904 = vmatprep.subr.mxu0 0.0
        %7905 = vmatpush1.msra.mxu0 %v6907
        %7906 = vmatprep.subr.mxu0 0.0
        %7907 = vmatpush1.msra.mxu0 %v6908
        %7908 = vmatprep.subr.mxu0 0.0
        %7909 = vmatpush1.msra.mxu0 %v6909
        %7910 = vmatprep.subr.mxu0 0.0
        %7911 = vmatpush1.msra.mxu0 %v6910
        %7912 = vmatprep.subr.mxu0 0.0
        %7913 = vmatpush1.msra.mxu0 %v6911
        %7914 = vmatprep.subr.mxu0 0.0
        %7915 = vmatpush1.msra.mxu0 %v6912
        %7916 = vmatprep.subr.mxu0 0.0
        %7917 = vmatpush1.msra.mxu0 %v6913
        %7918 = vmatprep.subr.mxu0 0.0
        %7919 = vmatpush1.msra.mxu0 %v6914
        %7920 = vmatprep.subr.mxu0 0.0
        %7921 = vmatpush1.msra.mxu0 %v6915
        %7922 = vmatprep.subr.mxu0 0.0
        %7923 = vmatpush1.msra.mxu0 %v6916
        %7924 = vmatprep.subr.mxu0 0.0
        %7925 = vmatpush1.msra.mxu0 %v6917
        %7926 = vmatprep.subr.mxu0 0.0
        %7927 = vmatpush1.msra.mxu0 %v6918
        %7928 = vmatprep.subr.mxu0 0.0
        %7929 = vmatpush1.msra.mxu0 0.0
        %7930 = vmatprep.subr.mxu0 0.0
        %7931 = vmatpush1.msra.mxu0 0.0
        %7932 = vmatprep.subr.mxu0 0.0
        %7933 = vmatpush1.msra.mxu0 0.0
        %7934 = vmatprep.subr.mxu0 0.0
        %7935 = vmatpush1.msra.mxu0 0.0
        %7936 = vmatprep.subr.mxu0 0.0
        %7937 = vmatpush1.msra.mxu0 0.0
        %7938 = vmatprep.subr.mxu0 0.0
        %7939 = vmatpush1.msra.mxu0 0.0
        %7940 = vmatprep.subr.mxu0 0.0
        %7941 = vmatpush1.msra.mxu0 0.0
        %7942 = vmatprep.subr.mxu0 0.0
        %7943 = vmatpush1.msra.mxu0 0.0
        %7944 = vmatprep.subr.mxu0 0.0
        %7945 = vmatpush1.msra.mxu0 0.0
        %7946 = vmatprep.subr.mxu0 0.0
        %7947 = vmatpush1.msra.mxu0 0.0
        %7948 = vmatprep.subr.mxu0 0.0
        %7949 = vmatpush1.msra.mxu0 0.0
        %7950 = vmatprep.subr.mxu0 0.0
        %7951 = vmatpush1.msra.mxu0 0.0
        %7952 = vmatprep.subr.mxu0 0.0
        %7953 = vmatpush1.msra.mxu0 0.0
        %7954 = vmatprep.subr.mxu0 0.0
        %7955 = vmatpush1.msra.mxu0 0.0
        %7956 = vmatprep.subr.mxu0 0.0
        %7957 = vmatpush1.msra.mxu0 0.0
        %7958 = vmatprep.subr.mxu0 0.0
        %7959 = vmatpush1.msra.mxu0 0.0
        %7960 = vmatprep.mubr.f32.mxu0 0.0
        %7961 = vmatmul.mubr.f32.gmra.mrb[0].mxu0 %v6728
        %v7962 = vpop.f32.mrb[0].mxu0
        %v7963 = vadd.f32 %v7858, %v7962
        %v7964 = vpop.f32.mrb[0].mxu0
        %7965 = vmatprep.mubr.f32.mxu0 0.0
        %7966 = vmatmul.mubr.f32.gmra.mrb[0].mxu0 %v6731
        %v7967 = vpop.f32.mrb[0].mxu0
        %v7968 = vadd.f32 %v7863, %v7967
        %v7969 = vpop.f32.mrb[0].mxu0
        %7970 = vmatprep.mubr.f32.mxu0 0.0
        %7971 = vmatmul.mubr.f32.gmra.mrb[0].mxu0 %v6734
        %v7972 = vpop.f32.mrb[0].mxu0
        %v7973 = vadd.f32 %v7868, %v7972
        %v7974 = vpop.f32.mrb[0].mxu0
        %7975 = vmatprep.mubr.f32.mxu0 0.0
        %7976 = vmatmul.mubr.f32.gmra.mrb[0].mxu0 %v6737
        %v7977 = vpop.f32.mrb[0].mxu0
        %v7978 = vadd.f32 %v7873, %v7977
        %v7979 = vpop.f32.mrb[0].mxu0
        %7980 = vmatprep.mubr.f32.mxu0 0.0
        %7981 = vmatmul.mubr.f32.gmra.mrb[0].mxu0 %v6740
        %v7982 = vpop.f32.mrb[0].mxu0
        %v7983 = vadd.f32 %v7878, %v7982
        %v7984 = vpop.f32.mrb[0].mxu0
        %7985 = vmatprep.mubr.f32.mxu0 0.0
        %7986 = vmatmul.mubr.f32.gmra.mrb[0].mxu0 %v6743
        %v7987 = vpop.f32.mrb[0].mxu0
        %v7988 = vadd.f32 %v7883, %v7987
        %v7989 = vpop.f32.mrb[0].mxu0
        %7990 = vmatprep.mubr.f32.mxu0 0.0
        %7991 = vmatmul.mubr.f32.gmra.mrb[0].mxu0 %v6746
        %v7992 = vpop.f32.mrb[0].mxu0
        %v7993 = vadd.f32 %v7888, %v7992
        %v7994 = vpop.f32.mrb[0].mxu0
        %7995 = vmatprep.mubr.f32.mxu0 0.0
        %7996 = vmatmul.mubr.f32.gmra.mrb[0].mxu0 %v6749
        %v7997 = vpop.f32.mrb[0].mxu0
        %v7998 = vadd.f32 %v7893, %v7997
        %v7999 = vpop.f32.mrb[0].mxu0
        %8000 = vdwg.mxu0
        %v8001 = vrot.slane %v6726, 2
        %v8002 = vrot.slane %v6798, 2
        %v8003 = vsel %vm6700, %v8001, %v8002
        %v8004 = vrot.slane %v6727, 2
        %v8005 = vrot.slane %v6799, 2
        %v8006 = vsel %vm6700, %v8004, %v8005
        %v8007 = vrot.slane %v6728, 2
        %v8008 = vrot.slane %v6800, 2
        %v8009 = vsel %vm6700, %v8007, %v8008
        %v8010 = vrot.slane %v6729, 2
        %v8011 = vrot.slane %v6801, 2
        %v8012 = vsel %vm6700, %v8010, %v8011
        %v8013 = vrot.slane %v6730, 2
        %v8014 = vrot.slane %v6802, 2
        %v8015 = vsel %vm6700, %v8013, %v8014
        %v8016 = vrot.slane %v6731, 2
        %v8017 = vrot.slane %v6803, 2
        %v8018 = vsel %vm6700, %v8016, %v8017
        %v8019 = vrot.slane %v6732, 2
        %v8020 = vrot.slane %v6804, 2
        %v8021 = vsel %vm6700, %v8019, %v8020
        %v8022 = vrot.slane %v6733, 2
        %v8023 = vrot.slane %v6805, 2
        %v8024 = vsel %vm6700, %v8022, %v8023
        %v8025 = vrot.slane %v6734, 2
        %v8026 = vrot.slane %v6806, 2
        %v8027 = vsel %vm6700, %v8025, %v8026
        %v8028 = vrot.slane %v6735, 2
        %v8029 = vrot.slane %v6807, 2
        %v8030 = vsel %vm6700, %v8028, %v8029
        %v8031 = vrot.slane %v6736, 2
        %v8032 = vrot.slane %v6808, 2
        %v8033 = vsel %vm6700, %v8031, %v8032
        %v8034 = vrot.slane %v6737, 2
        %v8035 = vrot.slane %v6809, 2
        %v8036 = vsel %vm6700, %v8034, %v8035
        %v8037 = vrot.slane %v6738, 2
        %v8038 = vrot.slane %v6810, 2
        %v8039 = vsel %vm6700, %v8037, %v8038
        %v8040 = vrot.slane %v6739, 2
        %v8041 = vrot.slane %v6811, 2
        %v8042 = vsel %vm6700, %v8040, %v8041
        %v8043 = vrot.slane %v6740, 2
        %v8044 = vrot.slane %v6812, 2
        %v8045 = vsel %vm6700, %v8043, %v8044
        %v8046 = vrot.slane %v6741, 2
        %v8047 = vrot.slane %v6813, 2
        %v8048 = vsel %vm6700, %v8046, %v8047
        %v8049 = vrot.slane %v6742, 2
        %v8050 = vrot.slane %v6814, 2
        %v8051 = vsel %vm6700, %v8049, %v8050
        %v8052 = vrot.slane %v6743, 2
        %v8053 = vrot.slane %v6815, 2
        %v8054 = vsel %vm6700, %v8052, %v8053
        %v8055 = vrot.slane %v6744, 2
        %v8056 = vrot.slane %v6816, 2
        %v8057 = vsel %vm6700, %v8055, %v8056
        %v8058 = vrot.slane %v6745, 2
        %v8059 = vrot.slane %v6817, 2
        %v8060 = vsel %vm6700, %v8058, %v8059
        %v8061 = vrot.slane %v6746, 2
        %v8062 = vrot.slane %v6818, 2
        %v8063 = vsel %vm6700, %v8061, %v8062
        %v8064 = vrot.slane %v6747, 2
        %v8065 = vrot.slane %v6819, 2
        %v8066 = vsel %vm6700, %v8064, %v8065
        %v8067 = vrot.slane %v6748, 2
        %v8068 = vrot.slane %v6820, 2
        %v8069 = vsel %vm6700, %v8067, %v8068
        %v8070 = vrot.slane %v6749, 2
        %v8071 = vrot.slane %v6821, 2
        %v8072 = vsel %vm6700, %v8070, %v8071
        %s8097 = scalar_lea.vmem [#allocation5], 768
        %v8098 = vld [vmem:[%s8097] sm:$0xff]
        %v8099 = vld [vmem:[%s8097 + $0x8] sm:$0xff]
        %v8100 = vld [vmem:[%s8097 + $0x10] sm:$0xff]
        %v8101 = vld [vmem:[%s8097 + $0x18] sm:$0xff]
        %v8102 = vld [vmem:[%s8097 + $0x20] sm:$0xff]
        %v8103 = vld [vmem:[%s8097 + $0x28] sm:$0xff]
        %v8104 = vld [vmem:[%s8097 + $0x30] sm:$0xff]
        %v8105 = vld [vmem:[%s8097 + $0x38] sm:$0xff]
        %v8106 = vld [vmem:[%s8097 + $0x40] sm:$0xff]
        %v8107 = vld [vmem:[%s8097 + $0x48] sm:$0xff]
        %v8108 = vld [vmem:[%s8097 + $0x50] sm:$0xff]
        %v8109 = vld [vmem:[%s8097 + $0x58] sm:$0xff]
        %v8110 = vld [vmem:[%s8097 + $0x60] sm:$0xff]
        %v8111 = vld [vmem:[%s8097 + $0x68] sm:$0xff]
        %v8112 = vld [vmem:[%s8097 + $0x70] sm:$0xff]
        %v8113 = vld [vmem:[%s8097 + $0x78] sm:$0xff]
        %v8114 = vld [vmem:[%s8097 + $0x80] sm:$0xff]
        %v8115 = vld [vmem:[%s8097 + $0x88] sm:$0xff]
        %v8116 = vld [vmem:[%s8097 + $0x90] sm:$0xff]
        %v8117 = vld [vmem:[%s8097 + $0x98] sm:$0xff]
        %v8118 = vld [vmem:[%s8097 + $0xa0] sm:$0xff]
        %v8119 = vld [vmem:[%s8097 + $0xa8] sm:$0xff]
        %v8120 = vld [vmem:[%s8097 + $0xb0] sm:$0xff]
        %v8121 = vld [vmem:[%s8097 + $0xb8] sm:$0xff]
        %v8122 = vld [vmem:[%s8097 + $0xc0] sm:$0xff]
        %v8123 = vld [vmem:[%s8097 + $0xc8] sm:$0xff]
        %v8124 = vld [vmem:[%s8097 + $0xd0] sm:$0xff]
        %v8125 = vld [vmem:[%s8097 + $0xd8] sm:$0xff]
        %v8126 = vld [vmem:[%s8097 + $0xe0] sm:$0xff]
        %v8127 = vld [vmem:[%s8097 + $0xe8] sm:$0xff]
        %v8128 = vld [vmem:[%s8097 + $0xf0] sm:$0xff]
        %v8129 = vld [vmem:[%s8097 + $0xf8] sm:$0xff]
        %v8130 = vld [vmem:[%s8097 + $0x100] sm:$0xff]
        %v8131 = vld [vmem:[%s8097 + $0x108] sm:$0xff]
        %v8132 = vld [vmem:[%s8097 + $0x110] sm:$0xff]
        %v8133 = vld [vmem:[%s8097 + $0x118] sm:$0xff]
        %v8134 = vld [vmem:[%s8097 + $0x120] sm:$0xff]
        %v8135 = vld [vmem:[%s8097 + $0x128] sm:$0xff]
        %v8136 = vld [vmem:[%s8097 + $0x130] sm:$0xff]
        %v8137 = vld [vmem:[%s8097 + $0x138] sm:$0xff]
        %v8138 = vld [vmem:[%s8097 + $0x140] sm:$0xff]
        %v8139 = vld [vmem:[%s8097 + $0x148] sm:$0xff]
        %v8140 = vld [vmem:[%s8097 + $0x150] sm:$0xff]
        %v8141 = vld [vmem:[%s8097 + $0x158] sm:$0xff]
        %v8142 = vld [vmem:[%s8097 + $0x160] sm:$0xff]
        %v8143 = vld [vmem:[%s8097 + $0x168] sm:$0xff]
        %v8144 = vld [vmem:[%s8097 + $0x170] sm:$0xff]
        %v8145 = vld [vmem:[%s8097 + $0x178] sm:$0xff]
        %8146 = vmatprep.subr.mxu0 0.0
        %8147 = vmatpush1.msra.mxu0 %v8098
        %8148 = vmatprep.subr.mxu0 0.0
        %8149 = vmatpush1.msra.mxu0 %v8099
        %8150 = vmatprep.subr.mxu0 0.0
        %8151 = vmatpush1.msra.mxu0 %v8100
        %8152 = vmatprep.subr.mxu0 0.0
        %8153 = vmatpush1.msra.mxu0 %v8101
        %8154 = vmatprep.subr.mxu0 0.0
        %8155 = vmatpush1.msra.mxu0 %v8102
        %8156 = vmatprep.subr.mxu0 0.0
        %8157 = vmatpush1.msra.mxu0 %v8103
        %8158 = vmatprep.subr.mxu0 0.0
        %8159 = vmatpush1.msra.mxu0 %v8104
        %8160 = vmatprep.subr.mxu0 0.0
        %8161 = vmatpush1.msra.mxu0 %v8105
        %8162 = vmatprep.subr.mxu0 0.0
        %8163 = vmatpush1.msra.mxu0 %v8106
        %8164 = vmatprep.subr.mxu0 0.0
        %8165 = vmatpush1.msra.mxu0 %v8107
        %8166 = vmatprep.subr.mxu0 0.0
        %8167 = vmatpush1.msra.mxu0 %v8108
        %8168 = vmatprep.subr.mxu0 0.0
        %8169 = vmatpush1.msra.mxu0 %v8109
        %8170 = vmatprep.subr.mxu0 0.0
        %8171 = vmatpush1.msra.mxu0 %v8110
        %8172 = vmatprep.subr.mxu0 0.0
        %8173 = vmatpush1.msra.mxu0 %v8111
        %8174 = vmatprep.subr.mxu0 0.0
        %8175 = vmatpush1.msra.mxu0 %v8112
        %8176 = vmatprep.subr.mxu0 0.0
        %8177 = vmatpush1.msra.mxu0 %v8113
        %8178 = vmatprep.subr.mxu0 0.0
        %8179 = vmatpush1.msra.mxu0 %v8114
        %8180 = vmatprep.subr.mxu0 0.0
        %8181 = vmatpush1.msra.mxu0 %v8115
        %8182 = vmatprep.subr.mxu0 0.0
        %8183 = vmatpush1.msra.mxu0 %v8116
        %8184 = vmatprep.subr.mxu0 0.0
        %8185 = vmatpush1.msra.mxu0 %v8117
        %8186 = vmatprep.subr.mxu0 0.0
        %8187 = vmatpush1.msra.mxu0 %v8118
        %8188 = vmatprep.subr.mxu0 0.0
        %8189 = vmatpush1.msra.mxu0 %v8119
        %8190 = vmatprep.subr.mxu0 0.0
        %8191 = vmatpush1.msra.mxu0 %v8120
        %8192 = vmatprep.subr.mxu0 0.0
        %8193 = vmatpush1.msra.mxu0 %v8121
        %8194 = vmatprep.subr.mxu0 0.0
        %8195 = vmatpush1.msra.mxu0 %v8122
        %8196 = vmatprep.subr.mxu0 0.0
        %8197 = vmatpush1.msra.mxu0 %v8123
        %8198 = vmatprep.subr.mxu0 0.0
        %8199 = vmatpush1.msra.mxu0 %v8124
        %8200 = vmatprep.subr.mxu0 0.0
        %8201 = vmatpush1.msra.mxu0 %v8125
        %8202 = vmatprep.subr.mxu0 0.0
        %8203 = vmatpush1.msra.mxu0 %v8126
        %8204 = vmatprep.subr.mxu0 0.0
        %8205 = vmatpush1.msra.mxu0 %v8127
        %8206 = vmatprep.subr.mxu0 0.0
        %8207 = vmatpush1.msra.mxu0 %v8128
        %8208 = vmatprep.subr.mxu0 0.0
        %8209 = vmatpush1.msra.mxu0 %v8129
        %8210 = vmatprep.mubr.f32.mxu0 %v8006
        %8211 = vmatmul.mubr.f32.gmra.mrb[0].mxu0 %v8003
        %v8212 = vpop.f32.mrb[0].mxu0
        %v8213 = vadd.f32 0.0, %v8212
        %v8214 = vpop.f32.mrb[0].mxu0
        %8215 = vmatprep.mubr.f32.mxu0 %v8015
        %8216 = vmatmul.mubr.f32.gmra.mrb[0].mxu0 %v8012
        %v8217 = vpop.f32.mrb[0].mxu0
        %v8218 = vadd.f32 0.0, %v8217
        %v8219 = vpop.f32.mrb[0].mxu0
        %8220 = vmatprep.mubr.f32.mxu0 %v8024
        %8221 = vmatmul.mubr.f32.gmra.mrb[0].mxu0 %v8021
        %v8222 = vpop.f32.mrb[0].mxu0
        %v8223 = vadd.f32 0.0, %v8222
        %v8224 = vpop.f32.mrb[0].mxu0
        %8225 = vmatprep.mubr.f32.mxu0 %v8033
        %8226 = vmatmul.mubr.f32.gmra.mrb[0].mxu0 %v8030
        %v8227 = vpop.f32.mrb[0].mxu0
        %v8228 = vadd.f32 0.0, %v8227
        %v8229 = vpop.f32.mrb[0].mxu0
        %8230 = vmatprep.mubr.f32.mxu0 %v8042
        %8231 = vmatmul.mubr.f32.gmra.mrb[0].mxu0 %v8039
        %v8232 = vpop.f32.mrb[0].mxu0
        %v8233 = vadd.f32 0.0, %v8232
        %v8234 = vpop.f32.mrb[0].mxu0
        %8235 = vmatprep.mubr.f32.mxu0 %v8051
        %8236 = vmatmul.mubr.f32.gmra.mrb[0].mxu0 %v8048
        %v8237 = vpop.f32.mrb[0].mxu0
        %v8238 = vadd.f32 0.0, %v8237
        %v8239 = vpop.f32.mrb[0].mxu0
        %8240 = vmatprep.mubr.f32.mxu0 %v8060
        %8241 = vmatmul.mubr.f32.gmra.mrb[0].mxu0 %v8057
        %v8242 = vpop.f32.mrb[0].mxu0
        %v8243 = vadd.f32 0.0, %v8242
        %v8244 = vpop.f32.mrb[0].mxu0
        %8245 = vmatprep.mubr.f32.mxu0 %v8069
        %8246 = vmatmul.mubr.f32.gmra.mrb[0].mxu0 %v8066
        %v8247 = vpop.f32.mrb[0].mxu0
        %v8248 = vadd.f32 0.0, %v8247
        %v8249 = vpop.f32.mrb[0].mxu0
        %8250 = vdwg.mxu0
        %8251 = vmatprep.subr.mxu0 0.0
        %8252 = vmatpush1.msra.mxu0 %v8130
        %8253 = vmatprep.subr.mxu0 0.0
        %8254 = vmatpush1.msra.mxu0 %v8131
        %8255 = vmatprep.subr.mxu0 0.0
        %8256 = vmatpush1.msra.mxu0 %v8132
        %8257 = vmatprep.subr.mxu0 0.0
        %8258 = vmatpush1.msra.mxu0 %v8133
        %8259 = vmatprep.subr.mxu0 0.0
        %8260 = vmatpush1.msra.mxu0 %v8134
        %8261 = vmatprep.subr.mxu0 0.0
        %8262 = vmatpush1.msra.mxu0 %v8135
        %8263 = vmatprep.subr.mxu0 0.0
        %8264 = vmatpush1.msra.mxu0 %v8136
        %8265 = vmatprep.subr.mxu0 0.0
        %8266 = vmatpush1.msra.mxu0 %v8137
        %8267 = vmatprep.subr.mxu0 0.0
        %8268 = vmatpush1.msra.mxu0 %v8138
        %8269 = vmatprep.subr.mxu0 0.0
        %8270 = vmatpush1.msra.mxu0 %v8139
        %8271 = vmatprep.subr.mxu0 0.0
        %8272 = vmatpush1.msra.mxu0 %v8140
        %8273 = vmatprep.subr.mxu0 0.0
        %8274 = vmatpush1.msra.mxu0 %v8141
        %8275 = vmatprep.subr.mxu0 0.0
        %8276 = vmatpush1.msra.mxu0 %v8142
        %8277 = vmatprep.subr.mxu0 0.0
        %8278 = vmatpush1.msra.mxu0 %v8143
        %8279 = vmatprep.subr.mxu0 0.0
        %8280 = vmatpush1.msra.mxu0 %v8144
        %8281 = vmatprep.subr.mxu0 0.0
        %8282 = vmatpush1.msra.mxu0 %v8145
        %8283 = vmatprep.subr.mxu0 0.0
        %8284 = vmatpush1.msra.mxu0 0.0
        %8285 = vmatprep.subr.mxu0 0.0
        %8286 = vmatpush1.msra.mxu0 0.0
        %8287 = vmatprep.subr.mxu0 0.0
        %8288 = vmatpush1.msra.mxu0 0.0
        %8289 = vmatprep.subr.mxu0 0.0
        %8290 = vmatpush1.msra.mxu0 0.0
        %8291 = vmatprep.subr.mxu0 0.0
        %8292 = vmatpush1.msra.mxu0 0.0
        %8293 = vmatprep.subr.mxu0 0.0
        %8294 = vmatpush1.msra.mxu0 0.0
        %8295 = vmatprep.subr.mxu0 0.0
        %8296 = vmatpush1.msra.mxu0 0.0
        %8297 = vmatprep.subr.mxu0 0.0
        %8298 = vmatpush1.msra.mxu0 0.0
        %8299 = vmatprep.subr.mxu0 0.0
        %8300 = vmatpush1.msra.mxu0 0.0
        %8301 = vmatprep.subr.mxu0 0.0
        %8302 = vmatpush1.msra.mxu0 0.0
        %8303 = vmatprep.subr.mxu0 0.0
        %8304 = vmatpush1.msra.mxu0 0.0
        %8305 = vmatprep.subr.mxu0 0.0
        %8306 = vmatpush1.msra.mxu0 0.0
        %8307 = vmatprep.subr.mxu0 0.0
        %8308 = vmatpush1.msra.mxu0 0.0
        %8309 = vmatprep.subr.mxu0 0.0
        %8310 = vmatpush1.msra.mxu0 0.0
        %8311 = vmatprep.subr.mxu0 0.0
        %8312 = vmatpush1.msra.mxu0 0.0
        %8313 = vmatprep.subr.mxu0 0.0
        %8314 = vmatpush1.msra.mxu0 0.0
        %8315 = vmatprep.mubr.f32.mxu0 0.0
        %8316 = vmatmul.mubr.f32.gmra.mrb[0].mxu0 %v8009
        %v8317 = vpop.f32.mrb[0].mxu0
        %v8318 = vadd.f32 %v8213, %v8317
        %v8319 = vpop.f32.mrb[0].mxu0
        %8320 = vmatprep.mubr.f32.mxu0 0.0
        %8321 = vmatmul.mubr.f32.gmra.mrb[0].mxu0 %v8018
        %v8322 = vpop.f32.mrb[0].mxu0
        %v8323 = vadd.f32 %v8218, %v8322
        %v8324 = vpop.f32.mrb[0].mxu0
        %8325 = vmatprep.mubr.f32.mxu0 0.0
        %8326 = vmatmul.mubr.f32.gmra.mrb[0].mxu0 %v8027
        %v8327 = vpop.f32.mrb[0].mxu0
        %v8328 = vadd.f32 %v8223, %v8327
        %v8329 = vpop.f32.mrb[0].mxu0
        %8330 = vmatprep.mubr.f32.mxu0 0.0
        %8331 = vmatmul.mubr.f32.gmra.mrb[0].mxu0 %v8036
        %v8332 = vpop.f32.mrb[0].mxu0
        %v8333 = vadd.f32 %v8228, %v8332
        %v8334 = vpop.f32.mrb[0].mxu0
        %8335 = vmatprep.mubr.f32.mxu0 0.0
        %8336 = vmatmul.mubr.f32.gmra.mrb[0].mxu0 %v8045
        %v8337 = vpop.f32.mrb[0].mxu0
        %v8338 = vadd.f32 %v8233, %v8337
        %v8339 = vpop.f32.mrb[0].mxu0
        %8340 = vmatprep.mubr.f32.mxu0 0.0
        %8341 = vmatmul.mubr.f32.gmra.mrb[0].mxu0 %v8054
        %v8342 = vpop.f32.mrb[0].mxu0
        %v8343 = vadd.f32 %v8238, %v8342
        %v8344 = vpop.f32.mrb[0].mxu0
        %8345 = vmatprep.mubr.f32.mxu0 0.0
        %8346 = vmatmul.mubr.f32.gmra.mrb[0].mxu0 %v8063
        %v8347 = vpop.f32.mrb[0].mxu0
        %v8348 = vadd.f32 %v8243, %v8347
        %v8349 = vpop.f32.mrb[0].mxu0
        %8350 = vmatprep.mubr.f32.mxu0 0.0
        %8351 = vmatmul.mubr.f32.gmra.mrb[0].mxu0 %v8072
        %v8352 = vpop.f32.mrb[0].mxu0
        %v8353 = vadd.f32 %v8248, %v8352
        %v8354 = vpop.f32.mrb[0].mxu0
        %8355 = vdwg.mxu0
        %v8356 = vadd.f32 %v7494, %v8318
        %v8357 = vadd.f32 %v7499, %v8323
        %v8358 = vadd.f32 %v7504, %v8328
        %v8359 = vadd.f32 %v7509, %v8333
        %v8360 = vadd.f32 %v7514, %v8338
        %v8361 = vadd.f32 %v7519, %v8343
        %v8362 = vadd.f32 %v7524, %v8348
        %v8363 = vadd.f32 %v7529, %v8353
        %s8364 = scalar_lea.vmem [#allocation5], 2688
        %v8365 = vld [vmem:[%s8364] sm:$0xff]
        %v8366 = vld [vmem:[%s8364 + $0x8] sm:$0xff]
        %v8367 = vld [vmem:[%s8364 + $0x10] sm:$0xff]
        %v8368 = vld [vmem:[%s8364 + $0x18] sm:$0xff]
        %v8369 = vld [vmem:[%s8364 + $0x20] sm:$0xff]
        %v8370 = vld [vmem:[%s8364 + $0x28] sm:$0xff]
        %v8371 = vld [vmem:[%s8364 + $0x30] sm:$0xff]
        %v8372 = vld [vmem:[%s8364 + $0x38] sm:$0xff]
        %v8373 = vld [vmem:[%s8364 + $0x40] sm:$0xff]
        %v8374 = vld [vmem:[%s8364 + $0x48] sm:$0xff]
        %v8375 = vld [vmem:[%s8364 + $0x50] sm:$0xff]
        %v8376 = vld [vmem:[%s8364 + $0x58] sm:$0xff]
        %v8377 = vld [vmem:[%s8364 + $0x60] sm:$0xff]
        %v8378 = vld [vmem:[%s8364 + $0x68] sm:$0xff]
        %v8379 = vld [vmem:[%s8364 + $0x70] sm:$0xff]
        %v8380 = vld [vmem:[%s8364 + $0x78] sm:$0xff]
        %v8381 = vld [vmem:[%s8364 + $0x80] sm:$0xff]
        %v8382 = vld [vmem:[%s8364 + $0x88] sm:$0xff]
        %v8383 = vld [vmem:[%s8364 + $0x90] sm:$0xff]
        %v8384 = vld [vmem:[%s8364 + $0x98] sm:$0xff]
        %v8385 = vld [vmem:[%s8364 + $0xa0] sm:$0xff]
        %v8386 = vld [vmem:[%s8364 + $0xa8] sm:$0xff]
        %v8387 = vld [vmem:[%s8364 + $0xb0] sm:$0xff]
        %v8388 = vld [vmem:[%s8364 + $0xb8] sm:$0xff]
        %v8389 = vld [vmem:[%s8364 + $0xc0] sm:$0xff]
        %v8390 = vld [vmem:[%s8364 + $0xc8] sm:$0xff]
        %v8391 = vld [vmem:[%s8364 + $0xd0] sm:$0xff]
        %v8392 = vld [vmem:[%s8364 + $0xd8] sm:$0xff]
        %v8393 = vld [vmem:[%s8364 + $0xe0] sm:$0xff]
        %v8394 = vld [vmem:[%s8364 + $0xe8] sm:$0xff]
        %v8395 = vld [vmem:[%s8364 + $0xf0] sm:$0xff]
        %v8396 = vld [vmem:[%s8364 + $0xf8] sm:$0xff]
        %v8397 = vld [vmem:[%s8364 + $0x100] sm:$0xff]
        %v8398 = vld [vmem:[%s8364 + $0x108] sm:$0xff]
        %v8399 = vld [vmem:[%s8364 + $0x110] sm:$0xff]
        %v8400 = vld [vmem:[%s8364 + $0x118] sm:$0xff]
        %v8401 = vld [vmem:[%s8364 + $0x120] sm:$0xff]
        %v8402 = vld [vmem:[%s8364 + $0x128] sm:$0xff]
        %v8403 = vld [vmem:[%s8364 + $0x130] sm:$0xff]
        %v8404 = vld [vmem:[%s8364 + $0x138] sm:$0xff]
        %v8405 = vld [vmem:[%s8364 + $0x140] sm:$0xff]
        %v8406 = vld [vmem:[%s8364 + $0x148] sm:$0xff]
        %v8407 = vld [vmem:[%s8364 + $0x150] sm:$0xff]
        %v8408 = vld [vmem:[%s8364 + $0x158] sm:$0xff]
        %v8409 = vld [vmem:[%s8364 + $0x160] sm:$0xff]
        %v8410 = vld [vmem:[%s8364 + $0x168] sm:$0xff]
        %v8411 = vld [vmem:[%s8364 + $0x170] sm:$0xff]
        %v8412 = vld [vmem:[%s8364 + $0x178] sm:$0xff]
        %8413 = vmatprep.subr.mxu0 0.0
        %8414 = vmatpush1.msra.mxu0 %v8365
        %8415 = vmatprep.subr.mxu0 0.0
        %8416 = vmatpush1.msra.mxu0 %v8366
        %8417 = vmatprep.subr.mxu0 0.0
        %8418 = vmatpush1.msra.mxu0 %v8367
        %8419 = vmatprep.subr.mxu0 0.0
        %8420 = vmatpush1.msra.mxu0 %v8368
        %8421 = vmatprep.subr.mxu0 0.0
        %8422 = vmatpush1.msra.mxu0 %v8369
        %8423 = vmatprep.subr.mxu0 0.0
        %8424 = vmatpush1.msra.mxu0 %v8370
        %8425 = vmatprep.subr.mxu0 0.0
        %8426 = vmatpush1.msra.mxu0 %v8371
        %8427 = vmatprep.subr.mxu0 0.0
        %8428 = vmatpush1.msra.mxu0 %v8372
        %8429 = vmatprep.subr.mxu0 0.0
        %8430 = vmatpush1.msra.mxu0 %v8373
        %8431 = vmatprep.subr.mxu0 0.0
        %8432 = vmatpush1.msra.mxu0 %v8374
        %8433 = vmatprep.subr.mxu0 0.0
        %8434 = vmatpush1.msra.mxu0 %v8375
        %8435 = vmatprep.subr.mxu0 0.0
        %8436 = vmatpush1.msra.mxu0 %v8376
        %8437 = vmatprep.subr.mxu0 0.0
        %8438 = vmatpush1.msra.mxu0 %v8377
        %8439 = vmatprep.subr.mxu0 0.0
        %8440 = vmatpush1.msra.mxu0 %v8378
        %8441 = vmatprep.subr.mxu0 0.0
        %8442 = vmatpush1.msra.mxu0 %v8379
        %8443 = vmatprep.subr.mxu0 0.0
        %8444 = vmatpush1.msra.mxu0 %v8380
        %8445 = vmatprep.subr.mxu0 0.0
        %8446 = vmatpush1.msra.mxu0 %v8381
        %8447 = vmatprep.subr.mxu0 0.0
        %8448 = vmatpush1.msra.mxu0 %v8382
        %8449 = vmatprep.subr.mxu0 0.0
        %8450 = vmatpush1.msra.mxu0 %v8383
        %8451 = vmatprep.subr.mxu0 0.0
        %8452 = vmatpush1.msra.mxu0 %v8384
        %8453 = vmatprep.subr.mxu0 0.0
        %8454 = vmatpush1.msra.mxu0 %v8385
        %8455 = vmatprep.subr.mxu0 0.0
        %8456 = vmatpush1.msra.mxu0 %v8386
        %8457 = vmatprep.subr.mxu0 0.0
        %8458 = vmatpush1.msra.mxu0 %v8387
        %8459 = vmatprep.subr.mxu0 0.0
        %8460 = vmatpush1.msra.mxu0 %v8388
        %8461 = vmatprep.subr.mxu0 0.0
        %8462 = vmatpush1.msra.mxu0 %v8389
        %8463 = vmatprep.subr.mxu0 0.0
        %8464 = vmatpush1.msra.mxu0 %v8390
        %8465 = vmatprep.subr.mxu0 0.0
        %8466 = vmatpush1.msra.mxu0 %v8391
        %8467 = vmatprep.subr.mxu0 0.0
        %8468 = vmatpush1.msra.mxu0 %v8392
        %8469 = vmatprep.subr.mxu0 0.0
        %8470 = vmatpush1.msra.mxu0 %v8393
        %8471 = vmatprep.subr.mxu0 0.0
        %8472 = vmatpush1.msra.mxu0 %v8394
        %8473 = vmatprep.subr.mxu0 0.0
        %8474 = vmatpush1.msra.mxu0 %v8395
        %8475 = vmatprep.subr.mxu0 0.0
        %8476 = vmatpush1.msra.mxu0 %v8396
        %8477 = vmatprep.mubr.f32.mxu0 %v8006
        %8478 = vmatmul.mubr.f32.gmra.mrb[0].mxu0 %v8003
        %v8479 = vpop.f32.mrb[0].mxu0
        %v8480 = vadd.f32 0.0, %v8479
        %v8481 = vpop.f32.mrb[0].mxu0
        %8482 = vmatprep.mubr.f32.mxu0 %v8015
        %8483 = vmatmul.mubr.f32.gmra.mrb[0].mxu0 %v8012
        %v8484 = vpop.f32.mrb[0].mxu0
        %v8485 = vadd.f32 0.0, %v8484
        %v8486 = vpop.f32.mrb[0].mxu0
        %8487 = vmatprep.mubr.f32.mxu0 %v8024
        %8488 = vmatmul.mubr.f32.gmra.mrb[0].mxu0 %v8021
        %v8489 = vpop.f32.mrb[0].mxu0
        %v8490 = vadd.f32 0.0, %v8489
        %v8491 = vpop.f32.mrb[0].mxu0
        %8492 = vmatprep.mubr.f32.mxu0 %v8033
        %8493 = vmatmul.mubr.f32.gmra.mrb[0].mxu0 %v8030
        %v8494 = vpop.f32.mrb[0].mxu0
        %v8495 = vadd.f32 0.0, %v8494
        %v8496 = vpop.f32.mrb[0].mxu0
        %8497 = vmatprep.mubr.f32.mxu0 %v8042
        %8498 = vmatmul.mubr.f32.gmra.mrb[0].mxu0 %v8039
        %v8499 = vpop.f32.mrb[0].mxu0
        %v8500 = vadd.f32 0.0, %v8499
        %v8501 = vpop.f32.mrb[0].mxu0
        %8502 = vmatprep.mubr.f32.mxu0 %v8051
        %8503 = vmatmul.mubr.f32.gmra.mrb[0].mxu0 %v8048
        %v8504 = vpop.f32.mrb[0].mxu0
        %v8505 = vadd.f32 0.0, %v8504
        %v8506 = vpop.f32.mrb[0].mxu0
        %8507 = vmatprep.mubr.f32.mxu0 %v8060
        %8508 = vmatmul.mubr.f32.gmra.mrb[0].mxu0 %v8057
        %v8509 = vpop.f32.mrb[0].mxu0
        %v8510 = vadd.f32 0.0, %v8509
        %v8511 = vpop.f32.mrb[0].mxu0
        %8512 = vmatprep.mubr.f32.mxu0 %v8069
        %8513 = vmatmul.mubr.f32.gmra.mrb[0].mxu0 %v8066
        %v8514 = vpop.f32.mrb[0].mxu0
        %v8515 = vadd.f32 0.0, %v8514
        %v8516 = vpop.f32.mrb[0].mxu0
        %8517 = vdwg.mxu0
        %8518 = vmatprep.subr.mxu0 0.0
        %8519 = vmatpush1.msra.mxu0 %v8397
        %8520 = vmatprep.subr.mxu0 0.0
        %8521 = vmatpush1.msra.mxu0 %v8398
        %8522 = vmatprep.subr.mxu0 0.0
        %8523 = vmatpush1.msra.mxu0 %v8399
        %8524 = vmatprep.subr.mxu0 0.0
        %8525 = vmatpush1.msra.mxu0 %v8400
        %8526 = vmatprep.subr.mxu0 0.0
        %8527 = vmatpush1.msra.mxu0 %v8401
        %8528 = vmatprep.subr.mxu0 0.0
        %8529 = vmatpush1.msra.mxu0 %v8402
        %8530 = vmatprep.subr.mxu0 0.0
        %8531 = vmatpush1.msra.mxu0 %v8403
        %8532 = vmatprep.subr.mxu0 0.0
        %8533 = vmatpush1.msra.mxu0 %v8404
        %8534 = vmatprep.subr.mxu0 0.0
        %8535 = vmatpush1.msra.mxu0 %v8405
        %8536 = vmatprep.subr.mxu0 0.0
        %8537 = vmatpush1.msra.mxu0 %v8406
        %8538 = vmatprep.subr.mxu0 0.0
        %8539 = vmatpush1.msra.mxu0 %v8407
        %8540 = vmatprep.subr.mxu0 0.0
        %8541 = vmatpush1.msra.mxu0 %v8408
        %8542 = vmatprep.subr.mxu0 0.0
        %8543 = vmatpush1.msra.mxu0 %v8409
        %8544 = vmatprep.subr.mxu0 0.0
        %8545 = vmatpush1.msra.mxu0 %v8410
        %8546 = vmatprep.subr.mxu0 0.0
        %8547 = vmatpush1.msra.mxu0 %v8411
        %8548 = vmatprep.subr.mxu0 0.0
        %8549 = vmatpush1.msra.mxu0 %v8412
        %8550 = vmatprep.subr.mxu0 0.0
        %8551 = vmatpush1.msra.mxu0 0.0
        %8552 = vmatprep.subr.mxu0 0.0
        %8553 = vmatpush1.msra.mxu0 0.0
        %8554 = vmatprep.subr.mxu0 0.0
        %8555 = vmatpush1.msra.mxu0 0.0
        %8556 = vmatprep.subr.mxu0 0.0
        %8557 = vmatpush1.msra.mxu0 0.0
        %8558 = vmatprep.subr.mxu0 0.0
        %8559 = vmatpush1.msra.mxu0 0.0
        %8560 = vmatprep.subr.mxu0 0.0
        %8561 = vmatpush1.msra.mxu0 0.0
        %8562 = vmatprep.subr.mxu0 0.0
        %8563 = vmatpush1.msra.mxu0 0.0
        %8564 = vmatprep.subr.mxu0 0.0
        %8565 = vmatpush1.msra.mxu0 0.0
        %8566 = vmatprep.subr.mxu0 0.0
        %8567 = vmatpush1.msra.mxu0 0.0
        %8568 = vmatprep.subr.mxu0 0.0
        %8569 = vmatpush1.msra.mxu0 0.0
        %8570 = vmatprep.subr.mxu0 0.0
        %8571 = vmatpush1.msra.mxu0 0.0
        %8572 = vmatprep.subr.mxu0 0.0
        %8573 = vmatpush1.msra.mxu0 0.0
        %8574 = vmatprep.subr.mxu0 0.0
        %8575 = vmatpush1.msra.mxu0 0.0
        %8576 = vmatprep.subr.mxu0 0.0
        %8577 = vmatpush1.msra.mxu0 0.0
        %8578 = vmatprep.subr.mxu0 0.0
        %8579 = vmatpush1.msra.mxu0 0.0
        %8580 = vmatprep.subr.mxu0 0.0
        %8581 = vmatpush1.msra.mxu0 0.0
        %8582 = vmatprep.mubr.f32.mxu0 0.0
        %8583 = vmatmul.mubr.f32.gmra.mrb[0].mxu0 %v8009
        %v8584 = vpop.f32.mrb[0].mxu0
        %v8585 = vadd.f32 %v8480, %v8584
        %v8586 = vpop.f32.mrb[0].mxu0
        %8587 = vmatprep.mubr.f32.mxu0 0.0
        %8588 = vmatmul.mubr.f32.gmra.mrb[0].mxu0 %v8018
        %v8589 = vpop.f32.mrb[0].mxu0
        %v8590 = vadd.f32 %v8485, %v8589
        %v8591 = vpop.f32.mrb[0].mxu0
        %8592 = vmatprep.mubr.f32.mxu0 0.0
        %8593 = vmatmul.mubr.f32.gmra.mrb[0].mxu0 %v8027
        %v8594 = vpop.f32.mrb[0].mxu0
        %v8595 = vadd.f32 %v8490, %v8594
        %v8596 = vpop.f32.mrb[0].mxu0
        %8597 = vmatprep.mubr.f32.mxu0 0.0
        %8598 = vmatmul.mubr.f32.gmra.mrb[0].mxu0 %v8036
        %v8599 = vpop.f32.mrb[0].mxu0
        %v8600 = vadd.f32 %v8495, %v8599
        %v8601 = vpop.f32.mrb[0].mxu0
        %8602 = vmatprep.mubr.f32.mxu0 0.0
        %8603 = vmatmul.mubr.f32.gmra.mrb[0].mxu0 %v8045
        %v8604 = vpop.f32.mrb[0].mxu0
        %v8605 = vadd.f32 %v8500, %v8604
        %v8606 = vpop.f32.mrb[0].mxu0
        %8607 = vmatprep.mubr.f32.mxu0 0.0
        %8608 = vmatmul.mubr.f32.gmra.mrb[0].mxu0 %v8054
        %v8609 = vpop.f32.mrb[0].mxu0
        %v8610 = vadd.f32 %v8505, %v8609
        %v8611 = vpop.f32.mrb[0].mxu0
        %8612 = vmatprep.mubr.f32.mxu0 0.0
        %8613 = vmatmul.mubr.f32.gmra.mrb[0].mxu0 %v8063
        %v8614 = vpop.f32.mrb[0].mxu0
        %v8615 = vadd.f32 %v8510, %v8614
        %v8616 = vpop.f32.mrb[0].mxu0
        %8617 = vmatprep.mubr.f32.mxu0 0.0
        %8618 = vmatmul.mubr.f32.gmra.mrb[0].mxu0 %v8072
        %v8619 = vpop.f32.mrb[0].mxu0
        %v8620 = vadd.f32 %v8515, %v8619
        %v8621 = vpop.f32.mrb[0].mxu0
        %8622 = vdwg.mxu0
        %v8623 = vadd.f32 %v7963, %v8585
        %v8624 = vadd.f32 %v7968, %v8590
        %v8625 = vadd.f32 %v7973, %v8595
        %v8626 = vadd.f32 %v7978, %v8600
        %v8627 = vadd.f32 %v7983, %v8605
        %v8628 = vadd.f32 %v7988, %v8610
        %v8629 = vadd.f32 %v7993, %v8615
        %v8630 = vadd.f32 %v7998, %v8620
        %v8631 = vrot.slane %v6726, 3
        %v8632 = vrot.slane %v6798, 3
        %v8633 = vsel %vm6675, %v8631, %v8632
        %v8634 = vrot.slane %v6727, 3
        %v8635 = vrot.slane %v6799, 3
        %v8636 = vsel %vm6675, %v8634, %v8635
        %v8637 = vrot.slane %v6728, 3
        %v8638 = vrot.slane %v6800, 3
        %v8639 = vsel %vm6675, %v8637, %v8638
        %v8640 = vrot.slane %v6729, 3
        %v8641 = vrot.slane %v6801, 3
        %v8642 = vsel %vm6675, %v8640, %v8641
        %v8643 = vrot.slane %v6730, 3
        %v8644 = vrot.slane %v6802, 3
        %v8645 = vsel %vm6675, %v8643, %v8644
        %v8646 = vrot.slane %v6731, 3
        %v8647 = vrot.slane %v6803, 3
        %v8648 = vsel %vm6675, %v8646, %v8647
        %v8649 = vrot.slane %v6732, 3
        %v8650 = vrot.slane %v6804, 3
        %v8651 = vsel %vm6675, %v8649, %v8650
        %v8652 = vrot.slane %v6733, 3
        %v8653 = vrot.slane %v6805, 3
        %v8654 = vsel %vm6675, %v8652, %v8653
        %v8655 = vrot.slane %v6734, 3
        %v8656 = vrot.slane %v6806, 3
        %v8657 = vsel %vm6675, %v8655, %v8656
        %v8658 = vrot.slane %v6735, 3
        %v8659 = vrot.slane %v6807, 3
        %v8660 = vsel %vm6675, %v8658, %v8659
        %v8661 = vrot.slane %v6736, 3
        %v8662 = vrot.slane %v6808, 3
        %v8663 = vsel %vm6675, %v8661, %v8662
        %v8664 = vrot.slane %v6737, 3
        %v8665 = vrot.slane %v6809, 3
        %v8666 = vsel %vm6675, %v8664, %v8665
        %v8667 = vrot.slane %v6738, 3
        %v8668 = vrot.slane %v6810, 3
        %v8669 = vsel %vm6675, %v8667, %v8668
        %v8670 = vrot.slane %v6739, 3
        %v8671 = vrot.slane %v6811, 3
        %v8672 = vsel %vm6675, %v8670, %v8671
        %v8673 = vrot.slane %v6740, 3
        %v8674 = vrot.slane %v6812, 3
        %v8675 = vsel %vm6675, %v8673, %v8674
        %v8676 = vrot.slane %v6741, 3
        %v8677 = vrot.slane %v6813, 3
        %v8678 = vsel %vm6675, %v8676, %v8677
        %v8679 = vrot.slane %v6742, 3
        %v8680 = vrot.slane %v6814, 3
        %v8681 = vsel %vm6675, %v8679, %v8680
        %v8682 = vrot.slane %v6743, 3
        %v8683 = vrot.slane %v6815, 3
        %v8684 = vsel %vm6675, %v8682, %v8683
        %v8685 = vrot.slane %v6744, 3
        %v8686 = vrot.slane %v6816, 3
        %v8687 = vsel %vm6675, %v8685, %v8686
        %v8688 = vrot.slane %v6745, 3
        %v8689 = vrot.slane %v6817, 3
        %v8690 = vsel %vm6675, %v8688, %v8689
        %v8691 = vrot.slane %v6746, 3
        %v8692 = vrot.slane %v6818, 3
        %v8693 = vsel %vm6675, %v8691, %v8692
        %v8694 = vrot.slane %v6747, 3
        %v8695 = vrot.slane %v6819, 3
        %v8696 = vsel %vm6675, %v8694, %v8695
        %v8697 = vrot.slane %v6748, 3
        %v8698 = vrot.slane %v6820, 3
        %v8699 = vsel %vm6675, %v8697, %v8698
        %v8700 = vrot.slane %v6749, 3
        %v8701 = vrot.slane %v6821, 3
        %v8702 = vsel %vm6675, %v8700, %v8701
        %s8727 = scalar_lea.vmem [#allocation5], 1152
        %v8728 = vld [vmem:[%s8727] sm:$0xff]
        %v8729 = vld [vmem:[%s8727 + $0x8] sm:$0xff]
        %v8730 = vld [vmem:[%s8727 + $0x10] sm:$0xff]
        %v8731 = vld [vmem:[%s8727 + $0x18] sm:$0xff]
        %v8732 = vld [vmem:[%s8727 + $0x20] sm:$0xff]
        %v8733 = vld [vmem:[%s8727 + $0x28] sm:$0xff]
        %v8734 = vld [vmem:[%s8727 + $0x30] sm:$0xff]
        %v8735 = vld [vmem:[%s8727 + $0x38] sm:$0xff]
        %v8736 = vld [vmem:[%s8727 + $0x40] sm:$0xff]
        %v8737 = vld [vmem:[%s8727 + $0x48] sm:$0xff]
        %v8738 = vld [vmem:[%s8727 + $0x50] sm:$0xff]
        %v8739 = vld [vmem:[%s8727 + $0x58] sm:$0xff]
        %v8740 = vld [vmem:[%s8727 + $0x60] sm:$0xff]
        %v8741 = vld [vmem:[%s8727 + $0x68] sm:$0xff]
        %v8742 = vld [vmem:[%s8727 + $0x70] sm:$0xff]
        %v8743 = vld [vmem:[%s8727 + $0x78] sm:$0xff]
        %v8744 = vld [vmem:[%s8727 + $0x80] sm:$0xff]
        %v8745 = vld [vmem:[%s8727 + $0x88] sm:$0xff]
        %v8746 = vld [vmem:[%s8727 + $0x90] sm:$0xff]
        %v8747 = vld [vmem:[%s8727 + $0x98] sm:$0xff]
        %v8748 = vld [vmem:[%s8727 + $0xa0] sm:$0xff]
        %v8749 = vld [vmem:[%s8727 + $0xa8] sm:$0xff]
        %v8750 = vld [vmem:[%s8727 + $0xb0] sm:$0xff]
        %v8751 = vld [vmem:[%s8727 + $0xb8] sm:$0xff]
        %v8752 = vld [vmem:[%s8727 + $0xc0] sm:$0xff]
        %v8753 = vld [vmem:[%s8727 + $0xc8] sm:$0xff]
        %v8754 = vld [vmem:[%s8727 + $0xd0] sm:$0xff]
        %v8755 = vld [vmem:[%s8727 + $0xd8] sm:$0xff]
        %v8756 = vld [vmem:[%s8727 + $0xe0] sm:$0xff]
        %v8757 = vld [vmem:[%s8727 + $0xe8] sm:$0xff]
        %v8758 = vld [vmem:[%s8727 + $0xf0] sm:$0xff]
        %v8759 = vld [vmem:[%s8727 + $0xf8] sm:$0xff]
        %v8760 = vld [vmem:[%s8727 + $0x100] sm:$0xff]
        %v8761 = vld [vmem:[%s8727 + $0x108] sm:$0xff]
        %v8762 = vld [vmem:[%s8727 + $0x110] sm:$0xff]
        %v8763 = vld [vmem:[%s8727 + $0x118] sm:$0xff]
        %v8764 = vld [vmem:[%s8727 + $0x120] sm:$0xff]
        %v8765 = vld [vmem:[%s8727 + $0x128] sm:$0xff]
        %v8766 = vld [vmem:[%s8727 + $0x130] sm:$0xff]
        %v8767 = vld [vmem:[%s8727 + $0x138] sm:$0xff]
        %v8768 = vld [vmem:[%s8727 + $0x140] sm:$0xff]
        %v8769 = vld [vmem:[%s8727 + $0x148] sm:$0xff]
        %v8770 = vld [vmem:[%s8727 + $0x150] sm:$0xff]
        %v8771 = vld [vmem:[%s8727 + $0x158] sm:$0xff]
        %v8772 = vld [vmem:[%s8727 + $0x160] sm:$0xff]
        %v8773 = vld [vmem:[%s8727 + $0x168] sm:$0xff]
        %v8774 = vld [vmem:[%s8727 + $0x170] sm:$0xff]
        %v8775 = vld [vmem:[%s8727 + $0x178] sm:$0xff]
        %8776 = vmatprep.subr.mxu0 0.0
        %8777 = vmatpush1.msra.mxu0 %v8728
        %8778 = vmatprep.subr.mxu0 0.0
        %8779 = vmatpush1.msra.mxu0 %v8729
        %8780 = vmatprep.subr.mxu0 0.0
        %8781 = vmatpush1.msra.mxu0 %v8730
        %8782 = vmatprep.subr.mxu0 0.0
        %8783 = vmatpush1.msra.mxu0 %v8731
        %8784 = vmatprep.subr.mxu0 0.0
        %8785 = vmatpush1.msra.mxu0 %v8732
        %8786 = vmatprep.subr.mxu0 0.0
        %8787 = vmatpush1.msra.mxu0 %v8733
        %8788 = vmatprep.subr.mxu0 0.0
        %8789 = vmatpush1.msra.mxu0 %v8734
        %8790 = vmatprep.subr.mxu0 0.0
        %8791 = vmatpush1.msra.mxu0 %v8735
        %8792 = vmatprep.subr.mxu0 0.0
        %8793 = vmatpush1.msra.mxu0 %v8736
        %8794 = vmatprep.subr.mxu0 0.0
        %8795 = vmatpush1.msra.mxu0 %v8737
        %8796 = vmatprep.subr.mxu0 0.0
        %8797 = vmatpush1.msra.mxu0 %v8738
        %8798 = vmatprep.subr.mxu0 0.0
        %8799 = vmatpush1.msra.mxu0 %v8739
        %8800 = vmatprep.subr.mxu0 0.0
        %8801 = vmatpush1.msra.mxu0 %v8740
        %8802 = vmatprep.subr.mxu0 0.0
        %8803 = vmatpush1.msra.mxu0 %v8741
        %8804 = vmatprep.subr.mxu0 0.0
        %8805 = vmatpush1.msra.mxu0 %v8742
        %8806 = vmatprep.subr.mxu0 0.0
        %8807 = vmatpush1.msra.mxu0 %v8743
        %8808 = vmatprep.subr.mxu0 0.0
        %8809 = vmatpush1.msra.mxu0 %v8744
        %8810 = vmatprep.subr.mxu0 0.0
        %8811 = vmatpush1.msra.mxu0 %v8745
        %8812 = vmatprep.subr.mxu0 0.0
        %8813 = vmatpush1.msra.mxu0 %v8746
        %8814 = vmatprep.subr.mxu0 0.0
        %8815 = vmatpush1.msra.mxu0 %v8747
        %8816 = vmatprep.subr.mxu0 0.0
        %8817 = vmatpush1.msra.mxu0 %v8748
        %8818 = vmatprep.subr.mxu0 0.0
        %8819 = vmatpush1.msra.mxu0 %v8749
        %8820 = vmatprep.subr.mxu0 0.0
        %8821 = vmatpush1.msra.mxu0 %v8750
        %8822 = vmatprep.subr.mxu0 0.0
        %8823 = vmatpush1.msra.mxu0 %v8751
        %8824 = vmatprep.subr.mxu0 0.0
        %8825 = vmatpush1.msra.mxu0 %v8752
        %8826 = vmatprep.subr.mxu0 0.0
        %8827 = vmatpush1.msra.mxu0 %v8753
        %8828 = vmatprep.subr.mxu0 0.0
        %8829 = vmatpush1.msra.mxu0 %v8754
        %8830 = vmatprep.subr.mxu0 0.0
        %8831 = vmatpush1.msra.mxu0 %v8755
        %8832 = vmatprep.subr.mxu0 0.0
        %8833 = vmatpush1.msra.mxu0 %v8756
        %8834 = vmatprep.subr.mxu0 0.0
        %8835 = vmatpush1.msra.mxu0 %v8757
        %8836 = vmatprep.subr.mxu0 0.0
        %8837 = vmatpush1.msra.mxu0 %v8758
        %8838 = vmatprep.subr.mxu0 0.0
        %8839 = vmatpush1.msra.mxu0 %v8759
        %8840 = vmatprep.mubr.f32.mxu0 %v8636
        %8841 = vmatmul.mubr.f32.gmra.mrb[0].mxu0 %v8633
        %v8842 = vpop.f32.mrb[0].mxu0
        %v8843 = vadd.f32 0.0, %v8842
        %v8844 = vpop.f32.mrb[0].mxu0
        %8845 = vmatprep.mubr.f32.mxu0 %v8645
        %8846 = vmatmul.mubr.f32.gmra.mrb[0].mxu0 %v8642
        %v8847 = vpop.f32.mrb[0].mxu0
        %v8848 = vadd.f32 0.0, %v8847
        %v8849 = vpop.f32.mrb[0].mxu0
        %8850 = vmatprep.mubr.f32.mxu0 %v8654
        %8851 = vmatmul.mubr.f32.gmra.mrb[0].mxu0 %v8651
        %v8852 = vpop.f32.mrb[0].mxu0
        %v8853 = vadd.f32 0.0, %v8852
        %v8854 = vpop.f32.mrb[0].mxu0
        %8855 = vmatprep.mubr.f32.mxu0 %v8663
        %8856 = vmatmul.mubr.f32.gmra.mrb[0].mxu0 %v8660
        %v8857 = vpop.f32.mrb[0].mxu0
        %v8858 = vadd.f32 0.0, %v8857
        %v8859 = vpop.f32.mrb[0].mxu0
        %8860 = vmatprep.mubr.f32.mxu0 %v8672
        %8861 = vmatmul.mubr.f32.gmra.mrb[0].mxu0 %v8669
        %v8862 = vpop.f32.mrb[0].mxu0
        %v8863 = vadd.f32 0.0, %v8862
        %v8864 = vpop.f32.mrb[0].mxu0
        %8865 = vmatprep.mubr.f32.mxu0 %v8681
        %8866 = vmatmul.mubr.f32.gmra.mrb[0].mxu0 %v8678
        %v8867 = vpop.f32.mrb[0].mxu0
        %v8868 = vadd.f32 0.0, %v8867
        %v8869 = vpop.f32.mrb[0].mxu0
        %8870 = vmatprep.mubr.f32.mxu0 %v8690
        %8871 = vmatmul.mubr.f32.gmra.mrb[0].mxu0 %v8687
        %v8872 = vpop.f32.mrb[0].mxu0
        %v8873 = vadd.f32 0.0, %v8872
        %v8874 = vpop.f32.mrb[0].mxu0
        %8875 = vmatprep.mubr.f32.mxu0 %v8699
        %8876 = vmatmul.mubr.f32.gmra.mrb[0].mxu0 %v8696
        %v8877 = vpop.f32.mrb[0].mxu0
        %v8878 = vadd.f32 0.0, %v8877
        %v8879 = vpop.f32.mrb[0].mxu0
        %8880 = vdwg.mxu0
        %8881 = vmatprep.subr.mxu0 0.0
        %8882 = vmatpush1.msra.mxu0 %v8760
        %8883 = vmatprep.subr.mxu0 0.0
        %8884 = vmatpush1.msra.mxu0 %v8761
        %8885 = vmatprep.subr.mxu0 0.0
        %8886 = vmatpush1.msra.mxu0 %v8762
        %8887 = vmatprep.subr.mxu0 0.0
        %8888 = vmatpush1.msra.mxu0 %v8763
        %8889 = vmatprep.subr.mxu0 0.0
        %8890 = vmatpush1.msra.mxu0 %v8764
        %8891 = vmatprep.subr.mxu0 0.0
        %8892 = vmatpush1.msra.mxu0 %v8765
        %8893 = vmatprep.subr.mxu0 0.0
        %8894 = vmatpush1.msra.mxu0 %v8766
        %8895 = vmatprep.subr.mxu0 0.0
        %8896 = vmatpush1.msra.mxu0 %v8767
        %8897 = vmatprep.subr.mxu0 0.0
        %8898 = vmatpush1.msra.mxu0 %v8768
        %8899 = vmatprep.subr.mxu0 0.0
        %8900 = vmatpush1.msra.mxu0 %v8769
        %8901 = vmatprep.subr.mxu0 0.0
        %8902 = vmatpush1.msra.mxu0 %v8770
        %8903 = vmatprep.subr.mxu0 0.0
        %8904 = vmatpush1.msra.mxu0 %v8771
        %8905 = vmatprep.subr.mxu0 0.0
        %8906 = vmatpush1.msra.mxu0 %v8772
        %8907 = vmatprep.subr.mxu0 0.0
        %8908 = vmatpush1.msra.mxu0 %v8773
        %8909 = vmatprep.subr.mxu0 0.0
        %8910 = vmatpush1.msra.mxu0 %v8774
        %8911 = vmatprep.subr.mxu0 0.0
        %8912 = vmatpush1.msra.mxu0 %v8775
        %8913 = vmatprep.subr.mxu0 0.0
        %8914 = vmatpush1.msra.mxu0 0.0
        %8915 = vmatprep.subr.mxu0 0.0
        %8916 = vmatpush1.msra.mxu0 0.0
        %8917 = vmatprep.subr.mxu0 0.0
        %8918 = vmatpush1.msra.mxu0 0.0
        %8919 = vmatprep.subr.mxu0 0.0
        %8920 = vmatpush1.msra.mxu0 0.0
        %8921 = vmatprep.subr.mxu0 0.0
        %8922 = vmatpush1.msra.mxu0 0.0
        %8923 = vmatprep.subr.mxu0 0.0
        %8924 = vmatpush1.msra.mxu0 0.0
        %8925 = vmatprep.subr.mxu0 0.0
        %8926 = vmatpush1.msra.mxu0 0.0
        %8927 = vmatprep.subr.mxu0 0.0
        %8928 = vmatpush1.msra.mxu0 0.0
        %8929 = vmatprep.subr.mxu0 0.0
        %8930 = vmatpush1.msra.mxu0 0.0
        %8931 = vmatprep.subr.mxu0 0.0
        %8932 = vmatpush1.msra.mxu0 0.0
        %8933 = vmatprep.subr.mxu0 0.0
        %8934 = vmatpush1.msra.mxu0 0.0
        %8935 = vmatprep.subr.mxu0 0.0
        %8936 = vmatpush1.msra.mxu0 0.0
        %8937 = vmatprep.subr.mxu0 0.0
        %8938 = vmatpush1.msra.mxu0 0.0
        %8939 = vmatprep.subr.mxu0 0.0
        %8940 = vmatpush1.msra.mxu0 0.0
        %8941 = vmatprep.subr.mxu0 0.0
        %8942 = vmatpush1.msra.mxu0 0.0
        %8943 = vmatprep.subr.mxu0 0.0
        %8944 = vmatpush1.msra.mxu0 0.0
        %8945 = vmatprep.mubr.f32.mxu0 0.0
        %8946 = vmatmul.mubr.f32.gmra.mrb[0].mxu0 %v8639
        %v8947 = vpop.f32.mrb[0].mxu0
        %v8948 = vadd.f32 %v8843, %v8947
        %v8949 = vpop.f32.mrb[0].mxu0
        %8950 = vmatprep.mubr.f32.mxu0 0.0
        %8951 = vmatmul.mubr.f32.gmra.mrb[0].mxu0 %v8648
        %v8952 = vpop.f32.mrb[0].mxu0
        %v8953 = vadd.f32 %v8848, %v8952
        %v8954 = vpop.f32.mrb[0].mxu0
        %8955 = vmatprep.mubr.f32.mxu0 0.0
        %8956 = vmatmul.mubr.f32.gmra.mrb[0].mxu0 %v8657
        %v8957 = vpop.f32.mrb[0].mxu0
        %v8958 = vadd.f32 %v8853, %v8957
        %v8959 = vpop.f32.mrb[0].mxu0
        %8960 = vmatprep.mubr.f32.mxu0 0.0
        %8961 = vmatmul.mubr.f32.gmra.mrb[0].mxu0 %v8666
        %v8962 = vpop.f32.mrb[0].mxu0
        %v8963 = vadd.f32 %v8858, %v8962
        %v8964 = vpop.f32.mrb[0].mxu0
        %8965 = vmatprep.mubr.f32.mxu0 0.0
        %8966 = vmatmul.mubr.f32.gmra.mrb[0].mxu0 %v8675
        %v8967 = vpop.f32.mrb[0].mxu0
        %v8968 = vadd.f32 %v8863, %v8967
        %v8969 = vpop.f32.mrb[0].mxu0
        %8970 = vmatprep.mubr.f32.mxu0 0.0
        %8971 = vmatmul.mubr.f32.gmra.mrb[0].mxu0 %v8684
        %v8972 = vpop.f32.mrb[0].mxu0
        %v8973 = vadd.f32 %v8868, %v8972
        %v8974 = vpop.f32.mrb[0].mxu0
        %8975 = vmatprep.mubr.f32.mxu0 0.0
        %8976 = vmatmul.mubr.f32.gmra.mrb[0].mxu0 %v8693
        %v8977 = vpop.f32.mrb[0].mxu0
        %v8978 = vadd.f32 %v8873, %v8977
        %v8979 = vpop.f32.mrb[0].mxu0
        %8980 = vmatprep.mubr.f32.mxu0 0.0
        %8981 = vmatmul.mubr.f32.gmra.mrb[0].mxu0 %v8702
        %v8982 = vpop.f32.mrb[0].mxu0
        %v8983 = vadd.f32 %v8878, %v8982
        %v8984 = vpop.f32.mrb[0].mxu0
        %8985 = vdwg.mxu0
        %v8986 = vadd.f32 %v8356, %v8948
        %v8987 = vadd.f32 %v8357, %v8953
        %v8988 = vadd.f32 %v8358, %v8958
        %v8989 = vadd.f32 %v8359, %v8963
        %v8990 = vadd.f32 %v8360, %v8968
        %v8991 = vadd.f32 %v8361, %v8973
        %v8992 = vadd.f32 %v8362, %v8978
        %v8993 = vadd.f32 %v8363, %v8983
        %s8994 = scalar_lea.vmem [#allocation5], 3072
        %v8995 = vld [vmem:[%s8994] sm:$0xff]
        %v8996 = vld [vmem:[%s8994 + $0x8] sm:$0xff]
        %v8997 = vld [vmem:[%s8994 + $0x10] sm:$0xff]
        %v8998 = vld [vmem:[%s8994 + $0x18] sm:$0xff]
        %v8999 = vld [vmem:[%s8994 + $0x20] sm:$0xff]
        %v9000 = vld [vmem:[%s8994 + $0x28] sm:$0xff]
        %v9001 = vld [vmem:[%s8994 + $0x30] sm:$0xff]
        %v9002 = vld [vmem:[%s8994 + $0x38] sm:$0xff]
        %v9003 = vld [vmem:[%s8994 + $0x40] sm:$0xff]
        %v9004 = vld [vmem:[%s8994 + $0x48] sm:$0xff]
        %v9005 = vld [vmem:[%s8994 + $0x50] sm:$0xff]
        %v9006 = vld [vmem:[%s8994 + $0x58] sm:$0xff]
        %v9007 = vld [vmem:[%s8994 + $0x60] sm:$0xff]
        %v9008 = vld [vmem:[%s8994 + $0x68] sm:$0xff]
        %v9009 = vld [vmem:[%s8994 + $0x70] sm:$0xff]
        %v9010 = vld [vmem:[%s8994 + $0x78] sm:$0xff]
        %v9011 = vld [vmem:[%s8994 + $0x80] sm:$0xff]
        %v9012 = vld [vmem:[%s8994 + $0x88] sm:$0xff]
        %v9013 = vld [vmem:[%s8994 + $0x90] sm:$0xff]
        %v9014 = vld [vmem:[%s8994 + $0x98] sm:$0xff]
        %v9015 = vld [vmem:[%s8994 + $0xa0] sm:$0xff]
        %v9016 = vld [vmem:[%s8994 + $0xa8] sm:$0xff]
        %v9017 = vld [vmem:[%s8994 + $0xb0] sm:$0xff]
        %v9018 = vld [vmem:[%s8994 + $0xb8] sm:$0xff]
        %v9019 = vld [vmem:[%s8994 + $0xc0] sm:$0xff]
        %v9020 = vld [vmem:[%s8994 + $0xc8] sm:$0xff]
        %v9021 = vld [vmem:[%s8994 + $0xd0] sm:$0xff]
        %v9022 = vld [vmem:[%s8994 + $0xd8] sm:$0xff]
        %v9023 = vld [vmem:[%s8994 + $0xe0] sm:$0xff]
        %v9024 = vld [vmem:[%s8994 + $0xe8] sm:$0xff]
        %v9025 = vld [vmem:[%s8994 + $0xf0] sm:$0xff]
        %v9026 = vld [vmem:[%s8994 + $0xf8] sm:$0xff]
        %v9027 = vld [vmem:[%s8994 + $0x100] sm:$0xff]
        %v9028 = vld [vmem:[%s8994 + $0x108] sm:$0xff]
        %v9029 = vld [vmem:[%s8994 + $0x110] sm:$0xff]
        %v9030 = vld [vmem:[%s8994 + $0x118] sm:$0xff]
        %v9031 = vld [vmem:[%s8994 + $0x120] sm:$0xff]
        %v9032 = vld [vmem:[%s8994 + $0x128] sm:$0xff]
        %v9033 = vld [vmem:[%s8994 + $0x130] sm:$0xff]
        %v9034 = vld [vmem:[%s8994 + $0x138] sm:$0xff]
        %v9035 = vld [vmem:[%s8994 + $0x140] sm:$0xff]
        %v9036 = vld [vmem:[%s8994 + $0x148] sm:$0xff]
        %v9037 = vld [vmem:[%s8994 + $0x150] sm:$0xff]
        %v9038 = vld [vmem:[%s8994 + $0x158] sm:$0xff]
        %v9039 = vld [vmem:[%s8994 + $0x160] sm:$0xff]
        %v9040 = vld [vmem:[%s8994 + $0x168] sm:$0xff]
        %v9041 = vld [vmem:[%s8994 + $0x170] sm:$0xff]
        %v9042 = vld [vmem:[%s8994 + $0x178] sm:$0xff]
        %9043 = vmatprep.subr.mxu0 0.0
        %9044 = vmatpush1.msra.mxu0 %v8995
        %9045 = vmatprep.subr.mxu0 0.0
        %9046 = vmatpush1.msra.mxu0 %v8996
        %9047 = vmatprep.subr.mxu0 0.0
        %9048 = vmatpush1.msra.mxu0 %v8997
        %9049 = vmatprep.subr.mxu0 0.0
        %9050 = vmatpush1.msra.mxu0 %v8998
        %9051 = vmatprep.subr.mxu0 0.0
        %9052 = vmatpush1.msra.mxu0 %v8999
        %9053 = vmatprep.subr.mxu0 0.0
        %9054 = vmatpush1.msra.mxu0 %v9000
        %9055 = vmatprep.subr.mxu0 0.0
        %9056 = vmatpush1.msra.mxu0 %v9001
        %9057 = vmatprep.subr.mxu0 0.0
        %9058 = vmatpush1.msra.mxu0 %v9002
        %9059 = vmatprep.subr.mxu0 0.0
        %9060 = vmatpush1.msra.mxu0 %v9003
        %9061 = vmatprep.subr.mxu0 0.0
        %9062 = vmatpush1.msra.mxu0 %v9004
        %9063 = vmatprep.subr.mxu0 0.0
        %9064 = vmatpush1.msra.mxu0 %v9005
        %9065 = vmatprep.subr.mxu0 0.0
        %9066 = vmatpush1.msra.mxu0 %v9006
        %9067 = vmatprep.subr.mxu0 0.0
        %9068 = vmatpush1.msra.mxu0 %v9007
        %9069 = vmatprep.subr.mxu0 0.0
        %9070 = vmatpush1.msra.mxu0 %v9008
        %9071 = vmatprep.subr.mxu0 0.0
        %9072 = vmatpush1.msra.mxu0 %v9009
        %9073 = vmatprep.subr.mxu0 0.0
        %9074 = vmatpush1.msra.mxu0 %v9010
        %9075 = vmatprep.subr.mxu0 0.0
        %9076 = vmatpush1.msra.mxu0 %v9011
        %9077 = vmatprep.subr.mxu0 0.0
        %9078 = vmatpush1.msra.mxu0 %v9012
        %9079 = vmatprep.subr.mxu0 0.0
        %9080 = vmatpush1.msra.mxu0 %v9013
        %9081 = vmatprep.subr.mxu0 0.0
        %9082 = vmatpush1.msra.mxu0 %v9014
        %9083 = vmatprep.subr.mxu0 0.0
        %9084 = vmatpush1.msra.mxu0 %v9015
        %9085 = vmatprep.subr.mxu0 0.0
        %9086 = vmatpush1.msra.mxu0 %v9016
        %9087 = vmatprep.subr.mxu0 0.0
        %9088 = vmatpush1.msra.mxu0 %v9017
        %9089 = vmatprep.subr.mxu0 0.0
        %9090 = vmatpush1.msra.mxu0 %v9018
        %9091 = vmatprep.subr.mxu0 0.0
        %9092 = vmatpush1.msra.mxu0 %v9019
        %9093 = vmatprep.subr.mxu0 0.0
        %9094 = vmatpush1.msra.mxu0 %v9020
        %9095 = vmatprep.subr.mxu0 0.0
        %9096 = vmatpush1.msra.mxu0 %v9021
        %9097 = vmatprep.subr.mxu0 0.0
        %9098 = vmatpush1.msra.mxu0 %v9022
        %9099 = vmatprep.subr.mxu0 0.0
        %9100 = vmatpush1.msra.mxu0 %v9023
        %9101 = vmatprep.subr.mxu0 0.0
        %9102 = vmatpush1.msra.mxu0 %v9024
        %9103 = vmatprep.subr.mxu0 0.0
        %9104 = vmatpush1.msra.mxu0 %v9025
        %9105 = vmatprep.subr.mxu0 0.0
        %9106 = vmatpush1.msra.mxu0 %v9026
        %9107 = vmatprep.mubr.f32.mxu0 %v8636
        %9108 = vmatmul.mubr.f32.gmra.mrb[0].mxu0 %v8633
        %v9109 = vpop.f32.mrb[0].mxu0
        %v9110 = vadd.f32 0.0, %v9109
        %v9111 = vpop.f32.mrb[0].mxu0
        %9112 = vmatprep.mubr.f32.mxu0 %v8645
        %9113 = vmatmul.mubr.f32.gmra.mrb[0].mxu0 %v8642
        %v9114 = vpop.f32.mrb[0].mxu0
        %v9115 = vadd.f32 0.0, %v9114
        %v9116 = vpop.f32.mrb[0].mxu0
        %9117 = vmatprep.mubr.f32.mxu0 %v8654
        %9118 = vmatmul.mubr.f32.gmra.mrb[0].mxu0 %v8651
        %v9119 = vpop.f32.mrb[0].mxu0
        %v9120 = vadd.f32 0.0, %v9119
        %v9121 = vpop.f32.mrb[0].mxu0
        %9122 = vmatprep.mubr.f32.mxu0 %v8663
        %9123 = vmatmul.mubr.f32.gmra.mrb[0].mxu0 %v8660
        %v9124 = vpop.f32.mrb[0].mxu0
        %v9125 = vadd.f32 0.0, %v9124
        %v9126 = vpop.f32.mrb[0].mxu0
        %9127 = vmatprep.mubr.f32.mxu0 %v8672
        %9128 = vmatmul.mubr.f32.gmra.mrb[0].mxu0 %v8669
        %v9129 = vpop.f32.mrb[0].mxu0
        %v9130 = vadd.f32 0.0, %v9129
        %v9131 = vpop.f32.mrb[0].mxu0
        %9132 = vmatprep.mubr.f32.mxu0 %v8681
        %9133 = vmatmul.mubr.f32.gmra.mrb[0].mxu0 %v8678
        %v9134 = vpop.f32.mrb[0].mxu0
        %v9135 = vadd.f32 0.0, %v9134
        %v9136 = vpop.f32.mrb[0].mxu0
        %9137 = vmatprep.mubr.f32.mxu0 %v8690
        %9138 = vmatmul.mubr.f32.gmra.mrb[0].mxu0 %v8687
        %v9139 = vpop.f32.mrb[0].mxu0
        %v9140 = vadd.f32 0.0, %v9139
        %v9141 = vpop.f32.mrb[0].mxu0
        %9142 = vmatprep.mubr.f32.mxu0 %v8699
        %9143 = vmatmul.mubr.f32.gmra.mrb[0].mxu0 %v8696
        %v9144 = vpop.f32.mrb[0].mxu0
        %v9145 = vadd.f32 0.0, %v9144
        %v9146 = vpop.f32.mrb[0].mxu0
        %9147 = vdwg.mxu0
        %9148 = vmatprep.subr.mxu0 0.0
        %9149 = vmatpush1.msra.mxu0 %v9027
        %9150 = vmatprep.subr.mxu0 0.0
        %9151 = vmatpush1.msra.mxu0 %v9028
        %9152 = vmatprep.subr.mxu0 0.0
        %9153 = vmatpush1.msra.mxu0 %v9029
        %9154 = vmatprep.subr.mxu0 0.0
        %9155 = vmatpush1.msra.mxu0 %v9030
        %9156 = vmatprep.subr.mxu0 0.0
        %9157 = vmatpush1.msra.mxu0 %v9031
        %9158 = vmatprep.subr.mxu0 0.0
        %9159 = vmatpush1.msra.mxu0 %v9032
        %9160 = vmatprep.subr.mxu0 0.0
        %9161 = vmatpush1.msra.mxu0 %v9033
        %9162 = vmatprep.subr.mxu0 0.0
        %9163 = vmatpush1.msra.mxu0 %v9034
        %9164 = vmatprep.subr.mxu0 0.0
        %9165 = vmatpush1.msra.mxu0 %v9035
        %9166 = vmatprep.subr.mxu0 0.0
        %9167 = vmatpush1.msra.mxu0 %v9036
        %9168 = vmatprep.subr.mxu0 0.0
        %9169 = vmatpush1.msra.mxu0 %v9037
        %9170 = vmatprep.subr.mxu0 0.0
        %9171 = vmatpush1.msra.mxu0 %v9038
        %9172 = vmatprep.subr.mxu0 0.0
        %9173 = vmatpush1.msra.mxu0 %v9039
        %9174 = vmatprep.subr.mxu0 0.0
        %9175 = vmatpush1.msra.mxu0 %v9040
        %9176 = vmatprep.subr.mxu0 0.0
        %9177 = vmatpush1.msra.mxu0 %v9041
        %9178 = vmatprep.subr.mxu0 0.0
        %9179 = vmatpush1.msra.mxu0 %v9042
        %9180 = vmatprep.subr.mxu0 0.0
        %9181 = vmatpush1.msra.mxu0 0.0
        %9182 = vmatprep.subr.mxu0 0.0
        %9183 = vmatpush1.msra.mxu0 0.0
        %9184 = vmatprep.subr.mxu0 0.0
        %9185 = vmatpush1.msra.mxu0 0.0
        %9186 = vmatprep.subr.mxu0 0.0
        %9187 = vmatpush1.msra.mxu0 0.0
        %9188 = vmatprep.subr.mxu0 0.0
        %9189 = vmatpush1.msra.mxu0 0.0
        %9190 = vmatprep.subr.mxu0 0.0
        %9191 = vmatpush1.msra.mxu0 0.0
        %9192 = vmatprep.subr.mxu0 0.0
        %9193 = vmatpush1.msra.mxu0 0.0
        %9194 = vmatprep.subr.mxu0 0.0
        %9195 = vmatpush1.msra.mxu0 0.0
        %9196 = vmatprep.subr.mxu0 0.0
        %9197 = vmatpush1.msra.mxu0 0.0
        %9198 = vmatprep.subr.mxu0 0.0
        %9199 = vmatpush1.msra.mxu0 0.0
        %9200 = vmatprep.subr.mxu0 0.0
        %9201 = vmatpush1.msra.mxu0 0.0
        %9202 = vmatprep.subr.mxu0 0.0
        %9203 = vmatpush1.msra.mxu0 0.0
        %9204 = vmatprep.subr.mxu0 0.0
        %9205 = vmatpush1.msra.mxu0 0.0
        %9206 = vmatprep.subr.mxu0 0.0
        %9207 = vmatpush1.msra.mxu0 0.0
        %9208 = vmatprep.subr.mxu0 0.0
        %9209 = vmatpush1.msra.mxu0 0.0
        %9210 = vmatprep.subr.mxu0 0.0
        %9211 = vmatpush1.msra.mxu0 0.0
        %9212 = vmatprep.mubr.f32.mxu0 0.0
        %9213 = vmatmul.mubr.f32.gmra.mrb[0].mxu0 %v8639
        %v9214 = vpop.f32.mrb[0].mxu0
        %v9215 = vadd.f32 %v9110, %v9214
        %v9216 = vpop.f32.mrb[0].mxu0
        %9217 = vmatprep.mubr.f32.mxu0 0.0
        %9218 = vmatmul.mubr.f32.gmra.mrb[0].mxu0 %v8648
        %v9219 = vpop.f32.mrb[0].mxu0
        %v9220 = vadd.f32 %v9115, %v9219
        %v9221 = vpop.f32.mrb[0].mxu0
        %9222 = vmatprep.mubr.f32.mxu0 0.0
        %9223 = vmatmul.mubr.f32.gmra.mrb[0].mxu0 %v8657
        %v9224 = vpop.f32.mrb[0].mxu0
        %v9225 = vadd.f32 %v9120, %v9224
        %v9226 = vpop.f32.mrb[0].mxu0
        %9227 = vmatprep.mubr.f32.mxu0 0.0
        %9228 = vmatmul.mubr.f32.gmra.mrb[0].mxu0 %v8666
        %v9229 = vpop.f32.mrb[0].mxu0
        %v9230 = vadd.f32 %v9125, %v9229
        %v9231 = vpop.f32.mrb[0].mxu0
        %9232 = vmatprep.mubr.f32.mxu0 0.0
        %9233 = vmatmul.mubr.f32.gmra.mrb[0].mxu0 %v8675
        %v9234 = vpop.f32.mrb[0].mxu0
        %v9235 = vadd.f32 %v9130, %v9234
        %v9236 = vpop.f32.mrb[0].mxu0
        %9237 = vmatprep.mubr.f32.mxu0 0.0
        %9238 = vmatmul.mubr.f32.gmra.mrb[0].mxu0 %v8684
        %v9239 = vpop.f32.mrb[0].mxu0
        %v9240 = vadd.f32 %v9135, %v9239
        %v9241 = vpop.f32.mrb[0].mxu0
        %9242 = vmatprep.mubr.f32.mxu0 0.0
        %9243 = vmatmul.mubr.f32.gmra.mrb[0].mxu0 %v8693
        %v9244 = vpop.f32.mrb[0].mxu0
        %v9245 = vadd.f32 %v9140, %v9244
        %v9246 = vpop.f32.mrb[0].mxu0
        %9247 = vmatprep.mubr.f32.mxu0 0.0
        %9248 = vmatmul.mubr.f32.gmra.mrb[0].mxu0 %v8702
        %v9249 = vpop.f32.mrb[0].mxu0
        %v9250 = vadd.f32 %v9145, %v9249
        %v9251 = vpop.f32.mrb[0].mxu0
        %9252 = vdwg.mxu0
        %v9253 = vadd.f32 %v8623, %v9215
        %v9254 = vadd.f32 %v8624, %v9220
        %v9255 = vadd.f32 %v8625, %v9225
        %v9256 = vadd.f32 %v8626, %v9230
        %v9257 = vadd.f32 %v8627, %v9235
        %v9258 = vadd.f32 %v8628, %v9240
        %v9259 = vadd.f32 %v8629, %v9245
        %v9260 = vadd.f32 %v8630, %v9250
        %v9261 = vrot.slane %v6726, 4
        %v9262 = vrot.slane %v6798, 4
        %v9263 = vsel %vm589, %v9261, %v9262
        %v9264 = vrot.slane %v6727, 4
        %v9265 = vrot.slane %v6799, 4
        %v9266 = vsel %vm589, %v9264, %v9265
        %v9267 = vrot.slane %v6728, 4
        %v9268 = vrot.slane %v6800, 4
        %v9269 = vsel %vm589, %v9267, %v9268
        %v9270 = vrot.slane %v6729, 4
        %v9271 = vrot.slane %v6801, 4
        %v9272 = vsel %vm589, %v9270, %v9271
        %v9273 = vrot.slane %v6730, 4
        %v9274 = vrot.slane %v6802, 4
        %v9275 = vsel %vm589, %v9273, %v9274
        %v9276 = vrot.slane %v6731, 4
        %v9277 = vrot.slane %v6803, 4
        %v9278 = vsel %vm589, %v9276, %v9277
        %v9279 = vrot.slane %v6732, 4
        %v9280 = vrot.slane %v6804, 4
        %v9281 = vsel %vm589, %v9279, %v9280
        %v9282 = vrot.slane %v6733, 4
        %v9283 = vrot.slane %v6805, 4
        %v9284 = vsel %vm589, %v9282, %v9283
        %v9285 = vrot.slane %v6734, 4
        %v9286 = vrot.slane %v6806, 4
        %v9287 = vsel %vm589, %v9285, %v9286
        %v9288 = vrot.slane %v6735, 4
        %v9289 = vrot.slane %v6807, 4
        %v9290 = vsel %vm589, %v9288, %v9289
        %v9291 = vrot.slane %v6736, 4
        %v9292 = vrot.slane %v6808, 4
        %v9293 = vsel %vm589, %v9291, %v9292
        %v9294 = vrot.slane %v6737, 4
        %v9295 = vrot.slane %v6809, 4
        %v9296 = vsel %vm589, %v9294, %v9295
        %v9297 = vrot.slane %v6738, 4
        %v9298 = vrot.slane %v6810, 4
        %v9299 = vsel %vm589, %v9297, %v9298
        %v9300 = vrot.slane %v6739, 4
        %v9301 = vrot.slane %v6811, 4
        %v9302 = vsel %vm589, %v9300, %v9301
        %v9303 = vrot.slane %v6740, 4
        %v9304 = vrot.slane %v6812, 4
        %v9305 = vsel %vm589, %v9303, %v9304
        %v9306 = vrot.slane %v6741, 4
        %v9307 = vrot.slane %v6813, 4
        %v9308 = vsel %vm589, %v9306, %v9307
        %v9309 = vrot.slane %v6742, 4
        %v9310 = vrot.slane %v6814, 4
        %v9311 = vsel %vm589, %v9309, %v9310
        %v9312 = vrot.slane %v6743, 4
        %v9313 = vrot.slane %v6815, 4
        %v9314 = vsel %vm589, %v9312, %v9313
        %v9315 = vrot.slane %v6744, 4
        %v9316 = vrot.slane %v6816, 4
        %v9317 = vsel %vm589, %v9315, %v9316
        %v9318 = vrot.slane %v6745, 4
        %v9319 = vrot.slane %v6817, 4
        %v9320 = vsel %vm589, %v9318, %v9319
        %v9321 = vrot.slane %v6746, 4
        %v9322 = vrot.slane %v6818, 4
        %v9323 = vsel %vm589, %v9321, %v9322
        %v9324 = vrot.slane %v6747, 4
        %v9325 = vrot.slane %v6819, 4
        %v9326 = vsel %vm589, %v9324, %v9325
        %v9327 = vrot.slane %v6748, 4
        %v9328 = vrot.slane %v6820, 4
        %v9329 = vsel %vm589, %v9327, %v9328
        %v9330 = vrot.slane %v6749, 4
        %v9331 = vrot.slane %v6821, 4
        %v9332 = vsel %vm589, %v9330, %v9331
        %s9357 = scalar_lea.vmem [#allocation5], 1536
        %v9358 = vld [vmem:[%s9357] sm:$0xff]
        %v9359 = vld [vmem:[%s9357 + $0x8] sm:$0xff]
        %v9360 = vld [vmem:[%s9357 + $0x10] sm:$0xff]
        %v9361 = vld [vmem:[%s9357 + $0x18] sm:$0xff]
        %v9362 = vld [vmem:[%s9357 + $0x20] sm:$0xff]
        %v9363 = vld [vmem:[%s9357 + $0x28] sm:$0xff]
        %v9364 = vld [vmem:[%s9357 + $0x30] sm:$0xff]
        %v9365 = vld [vmem:[%s9357 + $0x38] sm:$0xff]
        %v9366 = vld [vmem:[%s9357 + $0x40] sm:$0xff]
        %v9367 = vld [vmem:[%s9357 + $0x48] sm:$0xff]
        %v9368 = vld [vmem:[%s9357 + $0x50] sm:$0xff]
        %v9369 = vld [vmem:[%s9357 + $0x58] sm:$0xff]
        %v9370 = vld [vmem:[%s9357 + $0x60] sm:$0xff]
        %v9371 = vld [vmem:[%s9357 + $0x68] sm:$0xff]
        %v9372 = vld [vmem:[%s9357 + $0x70] sm:$0xff]
        %v9373 = vld [vmem:[%s9357 + $0x78] sm:$0xff]
        %v9374 = vld [vmem:[%s9357 + $0x80] sm:$0xff]
        %v9375 = vld [vmem:[%s9357 + $0x88] sm:$0xff]
        %v9376 = vld [vmem:[%s9357 + $0x90] sm:$0xff]
        %v9377 = vld [vmem:[%s9357 + $0x98] sm:$0xff]
        %v9378 = vld [vmem:[%s9357 + $0xa0] sm:$0xff]
        %v9379 = vld [vmem:[%s9357 + $0xa8] sm:$0xff]
        %v9380 = vld [vmem:[%s9357 + $0xb0] sm:$0xff]
        %v9381 = vld [vmem:[%s9357 + $0xb8] sm:$0xff]
        %v9382 = vld [vmem:[%s9357 + $0xc0] sm:$0xff]
        %v9383 = vld [vmem:[%s9357 + $0xc8] sm:$0xff]
        %v9384 = vld [vmem:[%s9357 + $0xd0] sm:$0xff]
        %v9385 = vld [vmem:[%s9357 + $0xd8] sm:$0xff]
        %v9386 = vld [vmem:[%s9357 + $0xe0] sm:$0xff]
        %v9387 = vld [vmem:[%s9357 + $0xe8] sm:$0xff]
        %v9388 = vld [vmem:[%s9357 + $0xf0] sm:$0xff]
        %v9389 = vld [vmem:[%s9357 + $0xf8] sm:$0xff]
        %v9390 = vld [vmem:[%s9357 + $0x100] sm:$0xff]
        %v9391 = vld [vmem:[%s9357 + $0x108] sm:$0xff]
        %v9392 = vld [vmem:[%s9357 + $0x110] sm:$0xff]
        %v9393 = vld [vmem:[%s9357 + $0x118] sm:$0xff]
        %v9394 = vld [vmem:[%s9357 + $0x120] sm:$0xff]
        %v9395 = vld [vmem:[%s9357 + $0x128] sm:$0xff]
        %v9396 = vld [vmem:[%s9357 + $0x130] sm:$0xff]
        %v9397 = vld [vmem:[%s9357 + $0x138] sm:$0xff]
        %v9398 = vld [vmem:[%s9357 + $0x140] sm:$0xff]
        %v9399 = vld [vmem:[%s9357 + $0x148] sm:$0xff]
        %v9400 = vld [vmem:[%s9357 + $0x150] sm:$0xff]
        %v9401 = vld [vmem:[%s9357 + $0x158] sm:$0xff]
        %v9402 = vld [vmem:[%s9357 + $0x160] sm:$0xff]
        %v9403 = vld [vmem:[%s9357 + $0x168] sm:$0xff]
        %v9404 = vld [vmem:[%s9357 + $0x170] sm:$0xff]
        %v9405 = vld [vmem:[%s9357 + $0x178] sm:$0xff]
        %9406 = vmatprep.subr.mxu0 0.0
        %9407 = vmatpush1.msra.mxu0 %v9358
        %9408 = vmatprep.subr.mxu0 0.0
        %9409 = vmatpush1.msra.mxu0 %v9359
        %9410 = vmatprep.subr.mxu0 0.0
        %9411 = vmatpush1.msra.mxu0 %v9360
        %9412 = vmatprep.subr.mxu0 0.0
        %9413 = vmatpush1.msra.mxu0 %v9361
        %9414 = vmatprep.subr.mxu0 0.0
        %9415 = vmatpush1.msra.mxu0 %v9362
        %9416 = vmatprep.subr.mxu0 0.0
        %9417 = vmatpush1.msra.mxu0 %v9363
        %9418 = vmatprep.subr.mxu0 0.0
        %9419 = vmatpush1.msra.mxu0 %v9364
        %9420 = vmatprep.subr.mxu0 0.0
        %9421 = vmatpush1.msra.mxu0 %v9365
        %9422 = vmatprep.subr.mxu0 0.0
        %9423 = vmatpush1.msra.mxu0 %v9366
        %9424 = vmatprep.subr.mxu0 0.0
        %9425 = vmatpush1.msra.mxu0 %v9367
        %9426 = vmatprep.subr.mxu0 0.0
        %9427 = vmatpush1.msra.mxu0 %v9368
        %9428 = vmatprep.subr.mxu0 0.0
        %9429 = vmatpush1.msra.mxu0 %v9369
        %9430 = vmatprep.subr.mxu0 0.0
        %9431 = vmatpush1.msra.mxu0 %v9370
        %9432 = vmatprep.subr.mxu0 0.0
        %9433 = vmatpush1.msra.mxu0 %v9371
        %9434 = vmatprep.subr.mxu0 0.0
        %9435 = vmatpush1.msra.mxu0 %v9372
        %9436 = vmatprep.subr.mxu0 0.0
        %9437 = vmatpush1.msra.mxu0 %v9373
        %9438 = vmatprep.subr.mxu0 0.0
        %9439 = vmatpush1.msra.mxu0 %v9374
        %9440 = vmatprep.subr.mxu0 0.0
        %9441 = vmatpush1.msra.mxu0 %v9375
        %9442 = vmatprep.subr.mxu0 0.0
        %9443 = vmatpush1.msra.mxu0 %v9376
        %9444 = vmatprep.subr.mxu0 0.0
        %9445 = vmatpush1.msra.mxu0 %v9377
        %9446 = vmatprep.subr.mxu0 0.0
        %9447 = vmatpush1.msra.mxu0 %v9378
        %9448 = vmatprep.subr.mxu0 0.0
        %9449 = vmatpush1.msra.mxu0 %v9379
        %9450 = vmatprep.subr.mxu0 0.0
        %9451 = vmatpush1.msra.mxu0 %v9380
        %9452 = vmatprep.subr.mxu0 0.0
        %9453 = vmatpush1.msra.mxu0 %v9381
        %9454 = vmatprep.subr.mxu0 0.0
        %9455 = vmatpush1.msra.mxu0 %v9382
        %9456 = vmatprep.subr.mxu0 0.0
        %9457 = vmatpush1.msra.mxu0 %v9383
        %9458 = vmatprep.subr.mxu0 0.0
        %9459 = vmatpush1.msra.mxu0 %v9384
        %9460 = vmatprep.subr.mxu0 0.0
        %9461 = vmatpush1.msra.mxu0 %v9385
        %9462 = vmatprep.subr.mxu0 0.0
        %9463 = vmatpush1.msra.mxu0 %v9386
        %9464 = vmatprep.subr.mxu0 0.0
        %9465 = vmatpush1.msra.mxu0 %v9387
        %9466 = vmatprep.subr.mxu0 0.0
        %9467 = vmatpush1.msra.mxu0 %v9388
        %9468 = vmatprep.subr.mxu0 0.0
        %9469 = vmatpush1.msra.mxu0 %v9389
        %9470 = vmatprep.mubr.f32.mxu0 %v9266
        %9471 = vmatmul.mubr.f32.gmra.mrb[0].mxu0 %v9263
        %v9472 = vpop.f32.mrb[0].mxu0
        %v9473 = vadd.f32 0.0, %v9472
        %v9474 = vpop.f32.mrb[0].mxu0
        %9475 = vmatprep.mubr.f32.mxu0 %v9275
        %9476 = vmatmul.mubr.f32.gmra.mrb[0].mxu0 %v9272
        %v9477 = vpop.f32.mrb[0].mxu0
        %v9478 = vadd.f32 0.0, %v9477
        %v9479 = vpop.f32.mrb[0].mxu0
        %9480 = vmatprep.mubr.f32.mxu0 %v9284
        %9481 = vmatmul.mubr.f32.gmra.mrb[0].mxu0 %v9281
        %v9482 = vpop.f32.mrb[0].mxu0
        %v9483 = vadd.f32 0.0, %v9482
        %v9484 = vpop.f32.mrb[0].mxu0
        %9485 = vmatprep.mubr.f32.mxu0 %v9293
        %9486 = vmatmul.mubr.f32.gmra.mrb[0].mxu0 %v9290
        %v9487 = vpop.f32.mrb[0].mxu0
        %v9488 = vadd.f32 0.0, %v9487
        %v9489 = vpop.f32.mrb[0].mxu0
        %9490 = vmatprep.mubr.f32.mxu0 %v9302
        %9491 = vmatmul.mubr.f32.gmra.mrb[0].mxu0 %v9299
        %v9492 = vpop.f32.mrb[0].mxu0
        %v9493 = vadd.f32 0.0, %v9492
        %v9494 = vpop.f32.mrb[0].mxu0
        %9495 = vmatprep.mubr.f32.mxu0 %v9311
        %9496 = vmatmul.mubr.f32.gmra.mrb[0].mxu0 %v9308
        %v9497 = vpop.f32.mrb[0].mxu0
        %v9498 = vadd.f32 0.0, %v9497
        %v9499 = vpop.f32.mrb[0].mxu0
        %9500 = vmatprep.mubr.f32.mxu0 %v9320
        %9501 = vmatmul.mubr.f32.gmra.mrb[0].mxu0 %v9317
        %v9502 = vpop.f32.mrb[0].mxu0
        %v9503 = vadd.f32 0.0, %v9502
        %v9504 = vpop.f32.mrb[0].mxu0
        %9505 = vmatprep.mubr.f32.mxu0 %v9329
        %9506 = vmatmul.mubr.f32.gmra.mrb[0].mxu0 %v9326
        %v9507 = vpop.f32.mrb[0].mxu0
        %v9508 = vadd.f32 0.0, %v9507
        %v9509 = vpop.f32.mrb[0].mxu0
        %9510 = vdwg.mxu0
        %9511 = vmatprep.subr.mxu0 0.0
        %9512 = vmatpush1.msra.mxu0 %v9390
        %9513 = vmatprep.subr.mxu0 0.0
        %9514 = vmatpush1.msra.mxu0 %v9391
        %9515 = vmatprep.subr.mxu0 0.0
        %9516 = vmatpush1.msra.mxu0 %v9392
        %9517 = vmatprep.subr.mxu0 0.0
        %9518 = vmatpush1.msra.mxu0 %v9393
        %9519 = vmatprep.subr.mxu0 0.0
        %9520 = vmatpush1.msra.mxu0 %v9394
        %9521 = vmatprep.subr.mxu0 0.0
        %9522 = vmatpush1.msra.mxu0 %v9395
        %9523 = vmatprep.subr.mxu0 0.0
        %9524 = vmatpush1.msra.mxu0 %v9396
        %9525 = vmatprep.subr.mxu0 0.0
        %9526 = vmatpush1.msra.mxu0 %v9397
        %9527 = vmatprep.subr.mxu0 0.0
        %9528 = vmatpush1.msra.mxu0 %v9398
        %9529 = vmatprep.subr.mxu0 0.0
        %9530 = vmatpush1.msra.mxu0 %v9399
        %9531 = vmatprep.subr.mxu0 0.0
        %9532 = vmatpush1.msra.mxu0 %v9400
        %9533 = vmatprep.subr.mxu0 0.0
        %9534 = vmatpush1.msra.mxu0 %v9401
        %9535 = vmatprep.subr.mxu0 0.0
        %9536 = vmatpush1.msra.mxu0 %v9402
        %9537 = vmatprep.subr.mxu0 0.0
        %9538 = vmatpush1.msra.mxu0 %v9403
        %9539 = vmatprep.subr.mxu0 0.0
        %9540 = vmatpush1.msra.mxu0 %v9404
        %9541 = vmatprep.subr.mxu0 0.0
        %9542 = vmatpush1.msra.mxu0 %v9405
        %9543 = vmatprep.subr.mxu0 0.0
        %9544 = vmatpush1.msra.mxu0 0.0
        %9545 = vmatprep.subr.mxu0 0.0
        %9546 = vmatpush1.msra.mxu0 0.0
        %9547 = vmatprep.subr.mxu0 0.0
        %9548 = vmatpush1.msra.mxu0 0.0
        %9549 = vmatprep.subr.mxu0 0.0
        %9550 = vmatpush1.msra.mxu0 0.0
        %9551 = vmatprep.subr.mxu0 0.0
        %9552 = vmatpush1.msra.mxu0 0.0
        %9553 = vmatprep.subr.mxu0 0.0
        %9554 = vmatpush1.msra.mxu0 0.0
        %9555 = vmatprep.subr.mxu0 0.0
        %9556 = vmatpush1.msra.mxu0 0.0
        %9557 = vmatprep.subr.mxu0 0.0
        %9558 = vmatpush1.msra.mxu0 0.0
        %9559 = vmatprep.subr.mxu0 0.0
        %9560 = vmatpush1.msra.mxu0 0.0
        %9561 = vmatprep.subr.mxu0 0.0
        %9562 = vmatpush1.msra.mxu0 0.0
        %9563 = vmatprep.subr.mxu0 0.0
        %9564 = vmatpush1.msra.mxu0 0.0
        %9565 = vmatprep.subr.mxu0 0.0
        %9566 = vmatpush1.msra.mxu0 0.0
        %9567 = vmatprep.subr.mxu0 0.0
        %9568 = vmatpush1.msra.mxu0 0.0
        %9569 = vmatprep.subr.mxu0 0.0
        %9570 = vmatpush1.msra.mxu0 0.0
        %9571 = vmatprep.subr.mxu0 0.0
        %9572 = vmatpush1.msra.mxu0 0.0
        %9573 = vmatprep.subr.mxu0 0.0
        %9574 = vmatpush1.msra.mxu0 0.0
        %9575 = vmatprep.mubr.f32.mxu0 0.0
        %9576 = vmatmul.mubr.f32.gmra.mrb[0].mxu0 %v9269
        %v9577 = vpop.f32.mrb[0].mxu0
        %v9578 = vadd.f32 %v9473, %v9577
        %v9579 = vpop.f32.mrb[0].mxu0
        %9580 = vmatprep.mubr.f32.mxu0 0.0
        %9581 = vmatmul.mubr.f32.gmra.mrb[0].mxu0 %v9278
        %v9582 = vpop.f32.mrb[0].mxu0
        %v9583 = vadd.f32 %v9478, %v9582
        %v9584 = vpop.f32.mrb[0].mxu0
        %9585 = vmatprep.mubr.f32.mxu0 0.0
        %9586 = vmatmul.mubr.f32.gmra.mrb[0].mxu0 %v9287
        %v9587 = vpop.f32.mrb[0].mxu0
        %v9588 = vadd.f32 %v9483, %v9587
        %v9589 = vpop.f32.mrb[0].mxu0
        %9590 = vmatprep.mubr.f32.mxu0 0.0
        %9591 = vmatmul.mubr.f32.gmra.mrb[0].mxu0 %v9296
        %v9592 = vpop.f32.mrb[0].mxu0
        %v9593 = vadd.f32 %v9488, %v9592
        %v9594 = vpop.f32.mrb[0].mxu0
        %9595 = vmatprep.mubr.f32.mxu0 0.0
        %9596 = vmatmul.mubr.f32.gmra.mrb[0].mxu0 %v9305
        %v9597 = vpop.f32.mrb[0].mxu0
        %v9598 = vadd.f32 %v9493, %v9597
        %v9599 = vpop.f32.mrb[0].mxu0
        %9600 = vmatprep.mubr.f32.mxu0 0.0
        %9601 = vmatmul.mubr.f32.gmra.mrb[0].mxu0 %v9314
        %v9602 = vpop.f32.mrb[0].mxu0
        %v9603 = vadd.f32 %v9498, %v9602
        %v9604 = vpop.f32.mrb[0].mxu0
        %9605 = vmatprep.mubr.f32.mxu0 0.0
        %9606 = vmatmul.mubr.f32.gmra.mrb[0].mxu0 %v9323
        %v9607 = vpop.f32.mrb[0].mxu0
        %v9608 = vadd.f32 %v9503, %v9607
        %v9609 = vpop.f32.mrb[0].mxu0
        %9610 = vmatprep.mubr.f32.mxu0 0.0
        %9611 = vmatmul.mubr.f32.gmra.mrb[0].mxu0 %v9332
        %v9612 = vpop.f32.mrb[0].mxu0
        %v9613 = vadd.f32 %v9508, %v9612
        %v9614 = vpop.f32.mrb[0].mxu0
        %9615 = vdwg.mxu0
        %v9616 = vadd.f32 %v8986, %v9578
        %v9617 = vadd.f32 %v8987, %v9583
        %v9618 = vadd.f32 %v8988, %v9588
        %v9619 = vadd.f32 %v8989, %v9593
        %v9620 = vadd.f32 %v8990, %v9598
        %v9621 = vadd.f32 %v8991, %v9603
        %v9622 = vadd.f32 %v8992, %v9608
        %v9623 = vadd.f32 %v8993, %v9613
        %s9624 = scalar_lea.vmem [#allocation5], 3456
        %v9625 = vld [vmem:[%s9624] sm:$0xff]
        %v9626 = vld [vmem:[%s9624 + $0x8] sm:$0xff]
        %v9627 = vld [vmem:[%s9624 + $0x10] sm:$0xff]
        %v9628 = vld [vmem:[%s9624 + $0x18] sm:$0xff]
        %v9629 = vld [vmem:[%s9624 + $0x20] sm:$0xff]
        %v9630 = vld [vmem:[%s9624 + $0x28] sm:$0xff]
        %v9631 = vld [vmem:[%s9624 + $0x30] sm:$0xff]
        %v9632 = vld [vmem:[%s9624 + $0x38] sm:$0xff]
        %v9633 = vld [vmem:[%s9624 + $0x40] sm:$0xff]
        %v9634 = vld [vmem:[%s9624 + $0x48] sm:$0xff]
        %v9635 = vld [vmem:[%s9624 + $0x50] sm:$0xff]
        %v9636 = vld [vmem:[%s9624 + $0x58] sm:$0xff]
        %v9637 = vld [vmem:[%s9624 + $0x60] sm:$0xff]
        %v9638 = vld [vmem:[%s9624 + $0x68] sm:$0xff]
        %v9639 = vld [vmem:[%s9624 + $0x70] sm:$0xff]
        %v9640 = vld [vmem:[%s9624 + $0x78] sm:$0xff]
        %v9641 = vld [vmem:[%s9624 + $0x80] sm:$0xff]
        %v9642 = vld [vmem:[%s9624 + $0x88] sm:$0xff]
        %v9643 = vld [vmem:[%s9624 + $0x90] sm:$0xff]
        %v9644 = vld [vmem:[%s9624 + $0x98] sm:$0xff]
        %v9645 = vld [vmem:[%s9624 + $0xa0] sm:$0xff]
        %v9646 = vld [vmem:[%s9624 + $0xa8] sm:$0xff]
        %v9647 = vld [vmem:[%s9624 + $0xb0] sm:$0xff]
        %v9648 = vld [vmem:[%s9624 + $0xb8] sm:$0xff]
        %v9649 = vld [vmem:[%s9624 + $0xc0] sm:$0xff]
        %v9650 = vld [vmem:[%s9624 + $0xc8] sm:$0xff]
        %v9651 = vld [vmem:[%s9624 + $0xd0] sm:$0xff]
        %v9652 = vld [vmem:[%s9624 + $0xd8] sm:$0xff]
        %v9653 = vld [vmem:[%s9624 + $0xe0] sm:$0xff]
        %v9654 = vld [vmem:[%s9624 + $0xe8] sm:$0xff]
        %v9655 = vld [vmem:[%s9624 + $0xf0] sm:$0xff]
        %v9656 = vld [vmem:[%s9624 + $0xf8] sm:$0xff]
        %v9657 = vld [vmem:[%s9624 + $0x100] sm:$0xff]
        %v9658 = vld [vmem:[%s9624 + $0x108] sm:$0xff]
        %v9659 = vld [vmem:[%s9624 + $0x110] sm:$0xff]
        %v9660 = vld [vmem:[%s9624 + $0x118] sm:$0xff]
        %v9661 = vld [vmem:[%s9624 + $0x120] sm:$0xff]
        %v9662 = vld [vmem:[%s9624 + $0x128] sm:$0xff]
        %v9663 = vld [vmem:[%s9624 + $0x130] sm:$0xff]
        %v9664 = vld [vmem:[%s9624 + $0x138] sm:$0xff]
        %v9665 = vld [vmem:[%s9624 + $0x140] sm:$0xff]
        %v9666 = vld [vmem:[%s9624 + $0x148] sm:$0xff]
        %v9667 = vld [vmem:[%s9624 + $0x150] sm:$0xff]
        %v9668 = vld [vmem:[%s9624 + $0x158] sm:$0xff]
        %v9669 = vld [vmem:[%s9624 + $0x160] sm:$0xff]
        %v9670 = vld [vmem:[%s9624 + $0x168] sm:$0xff]
        %v9671 = vld [vmem:[%s9624 + $0x170] sm:$0xff]
        %v9672 = vld [vmem:[%s9624 + $0x178] sm:$0xff]
        %9673 = vmatprep.subr.mxu0 0.0
        %9674 = vmatpush1.msra.mxu0 %v9625
        %9675 = vmatprep.subr.mxu0 0.0
        %9676 = vmatpush1.msra.mxu0 %v9626
        %9677 = vmatprep.subr.mxu0 0.0
        %9678 = vmatpush1.msra.mxu0 %v9627
        %9679 = vmatprep.subr.mxu0 0.0
        %9680 = vmatpush1.msra.mxu0 %v9628
        %9681 = vmatprep.subr.mxu0 0.0
        %9682 = vmatpush1.msra.mxu0 %v9629
        %9683 = vmatprep.subr.mxu0 0.0
        %9684 = vmatpush1.msra.mxu0 %v9630
        %9685 = vmatprep.subr.mxu0 0.0
        %9686 = vmatpush1.msra.mxu0 %v9631
        %9687 = vmatprep.subr.mxu0 0.0
        %9688 = vmatpush1.msra.mxu0 %v9632
        %9689 = vmatprep.subr.mxu0 0.0
        %9690 = vmatpush1.msra.mxu0 %v9633
        %9691 = vmatprep.subr.mxu0 0.0
        %9692 = vmatpush1.msra.mxu0 %v9634
        %9693 = vmatprep.subr.mxu0 0.0
        %9694 = vmatpush1.msra.mxu0 %v9635
        %9695 = vmatprep.subr.mxu0 0.0
        %9696 = vmatpush1.msra.mxu0 %v9636
        %9697 = vmatprep.subr.mxu0 0.0
        %9698 = vmatpush1.msra.mxu0 %v9637
        %9699 = vmatprep.subr.mxu0 0.0
        %9700 = vmatpush1.msra.mxu0 %v9638
        %9701 = vmatprep.subr.mxu0 0.0
        %9702 = vmatpush1.msra.mxu0 %v9639
        %9703 = vmatprep.subr.mxu0 0.0
        %9704 = vmatpush1.msra.mxu0 %v9640
        %9705 = vmatprep.subr.mxu0 0.0
        %9706 = vmatpush1.msra.mxu0 %v9641
        %9707 = vmatprep.subr.mxu0 0.0
        %9708 = vmatpush1.msra.mxu0 %v9642
        %9709 = vmatprep.subr.mxu0 0.0
        %9710 = vmatpush1.msra.mxu0 %v9643
        %9711 = vmatprep.subr.mxu0 0.0
        %9712 = vmatpush1.msra.mxu0 %v9644
        %9713 = vmatprep.subr.mxu0 0.0
        %9714 = vmatpush1.msra.mxu0 %v9645
        %9715 = vmatprep.subr.mxu0 0.0
        %9716 = vmatpush1.msra.mxu0 %v9646
        %9717 = vmatprep.subr.mxu0 0.0
        %9718 = vmatpush1.msra.mxu0 %v9647
        %9719 = vmatprep.subr.mxu0 0.0
        %9720 = vmatpush1.msra.mxu0 %v9648
        %9721 = vmatprep.subr.mxu0 0.0
        %9722 = vmatpush1.msra.mxu0 %v9649
        %9723 = vmatprep.subr.mxu0 0.0
        %9724 = vmatpush1.msra.mxu0 %v9650
        %9725 = vmatprep.subr.mxu0 0.0
        %9726 = vmatpush1.msra.mxu0 %v9651
        %9727 = vmatprep.subr.mxu0 0.0
        %9728 = vmatpush1.msra.mxu0 %v9652
        %9729 = vmatprep.subr.mxu0 0.0
        %9730 = vmatpush1.msra.mxu0 %v9653
        %9731 = vmatprep.subr.mxu0 0.0
        %9732 = vmatpush1.msra.mxu0 %v9654
        %9733 = vmatprep.subr.mxu0 0.0
        %9734 = vmatpush1.msra.mxu0 %v9655
        %9735 = vmatprep.subr.mxu0 0.0
        %9736 = vmatpush1.msra.mxu0 %v9656
        %9737 = vmatprep.mubr.f32.mxu0 %v9266
        %9738 = vmatmul.mubr.f32.gmra.mrb[0].mxu0 %v9263
        %v9739 = vpop.f32.mrb[0].mxu0
        %v9740 = vadd.f32 0.0, %v9739
        %v9741 = vpop.f32.mrb[0].mxu0
        %9742 = vmatprep.mubr.f32.mxu0 %v9275
        %9743 = vmatmul.mubr.f32.gmra.mrb[0].mxu0 %v9272
        %v9744 = vpop.f32.mrb[0].mxu0
        %v9745 = vadd.f32 0.0, %v9744
        %v9746 = vpop.f32.mrb[0].mxu0
        %9747 = vmatprep.mubr.f32.mxu0 %v9284
        %9748 = vmatmul.mubr.f32.gmra.mrb[0].mxu0 %v9281
        %v9749 = vpop.f32.mrb[0].mxu0
        %v9750 = vadd.f32 0.0, %v9749
        %v9751 = vpop.f32.mrb[0].mxu0
        %9752 = vmatprep.mubr.f32.mxu0 %v9293
        %9753 = vmatmul.mubr.f32.gmra.mrb[0].mxu0 %v9290
        %v9754 = vpop.f32.mrb[0].mxu0
        %v9755 = vadd.f32 0.0, %v9754
        %v9756 = vpop.f32.mrb[0].mxu0
        %9757 = vmatprep.mubr.f32.mxu0 %v9302
        %9758 = vmatmul.mubr.f32.gmra.mrb[0].mxu0 %v9299
        %v9759 = vpop.f32.mrb[0].mxu0
        %v9760 = vadd.f32 0.0, %v9759
        %v9761 = vpop.f32.mrb[0].mxu0
        %9762 = vmatprep.mubr.f32.mxu0 %v9311
        %9763 = vmatmul.mubr.f32.gmra.mrb[0].mxu0 %v9308
        %v9764 = vpop.f32.mrb[0].mxu0
        %v9765 = vadd.f32 0.0, %v9764
        %v9766 = vpop.f32.mrb[0].mxu0
        %9767 = vmatprep.mubr.f32.mxu0 %v9320
        %9768 = vmatmul.mubr.f32.gmra.mrb[0].mxu0 %v9317
        %v9769 = vpop.f32.mrb[0].mxu0
        %v9770 = vadd.f32 0.0, %v9769
        %v9771 = vpop.f32.mrb[0].mxu0
        %9772 = vmatprep.mubr.f32.mxu0 %v9329
        %9773 = vmatmul.mubr.f32.gmra.mrb[0].mxu0 %v9326
        %v9774 = vpop.f32.mrb[0].mxu0
        %v9775 = vadd.f32 0.0, %v9774
        %v9776 = vpop.f32.mrb[0].mxu0
        %9777 = vdwg.mxu0
        %9778 = vmatprep.subr.mxu0 0.0
        %9779 = vmatpush1.msra.mxu0 %v9657
        %9780 = vmatprep.subr.mxu0 0.0
        %9781 = vmatpush1.msra.mxu0 %v9658
        %9782 = vmatprep.subr.mxu0 0.0
        %9783 = vmatpush1.msra.mxu0 %v9659
        %9784 = vmatprep.subr.mxu0 0.0
        %9785 = vmatpush1.msra.mxu0 %v9660
        %9786 = vmatprep.subr.mxu0 0.0
        %9787 = vmatpush1.msra.mxu0 %v9661
        %9788 = vmatprep.subr.mxu0 0.0
        %9789 = vmatpush1.msra.mxu0 %v9662
        %9790 = vmatprep.subr.mxu0 0.0
        %9791 = vmatpush1.msra.mxu0 %v9663
        %9792 = vmatprep.subr.mxu0 0.0
        %9793 = vmatpush1.msra.mxu0 %v9664
        %9794 = vmatprep.subr.mxu0 0.0
        %9795 = vmatpush1.msra.mxu0 %v9665
        %9796 = vmatprep.subr.mxu0 0.0
        %9797 = vmatpush1.msra.mxu0 %v9666
        %9798 = vmatprep.subr.mxu0 0.0
        %9799 = vmatpush1.msra.mxu0 %v9667
        %9800 = vmatprep.subr.mxu0 0.0
        %9801 = vmatpush1.msra.mxu0 %v9668
        %9802 = vmatprep.subr.mxu0 0.0
        %9803 = vmatpush1.msra.mxu0 %v9669
        %9804 = vmatprep.subr.mxu0 0.0
        %9805 = vmatpush1.msra.mxu0 %v9670
        %9806 = vmatprep.subr.mxu0 0.0
        %9807 = vmatpush1.msra.mxu0 %v9671
        %9808 = vmatprep.subr.mxu0 0.0
        %9809 = vmatpush1.msra.mxu0 %v9672
        %9810 = vmatprep.subr.mxu0 0.0
        %9811 = vmatpush1.msra.mxu0 0.0
        %9812 = vmatprep.subr.mxu0 0.0
        %9813 = vmatpush1.msra.mxu0 0.0
        %9814 = vmatprep.subr.mxu0 0.0
        %9815 = vmatpush1.msra.mxu0 0.0
        %9816 = vmatprep.subr.mxu0 0.0
        %9817 = vmatpush1.msra.mxu0 0.0
        %9818 = vmatprep.subr.mxu0 0.0
        %9819 = vmatpush1.msra.mxu0 0.0
        %9820 = vmatprep.subr.mxu0 0.0
        %9821 = vmatpush1.msra.mxu0 0.0
        %9822 = vmatprep.subr.mxu0 0.0
        %9823 = vmatpush1.msra.mxu0 0.0
        %9824 = vmatprep.subr.mxu0 0.0
        %9825 = vmatpush1.msra.mxu0 0.0
        %9826 = vmatprep.subr.mxu0 0.0
        %9827 = vmatpush1.msra.mxu0 0.0
        %9828 = vmatprep.subr.mxu0 0.0
        %9829 = vmatpush1.msra.mxu0 0.0
        %9830 = vmatprep.subr.mxu0 0.0
        %9831 = vmatpush1.msra.mxu0 0.0
        %9832 = vmatprep.subr.mxu0 0.0
        %9833 = vmatpush1.msra.mxu0 0.0
        %9834 = vmatprep.subr.mxu0 0.0
        %9835 = vmatpush1.msra.mxu0 0.0
        %9836 = vmatprep.subr.mxu0 0.0
        %9837 = vmatpush1.msra.mxu0 0.0
        %9838 = vmatprep.subr.mxu0 0.0
        %9839 = vmatpush1.msra.mxu0 0.0
        %9840 = vmatprep.subr.mxu0 0.0
        %9841 = vmatpush1.msra.mxu0 0.0
        %9842 = vmatprep.mubr.f32.mxu0 0.0
        %9843 = vmatmul.mubr.f32.gmra.mrb[0].mxu0 %v9269
        %v9844 = vpop.f32.mrb[0].mxu0
        %v9845 = vadd.f32 %v9740, %v9844
        %v9846 = vpop.f32.mrb[0].mxu0
        %9847 = vmatprep.mubr.f32.mxu0 0.0
        %9848 = vmatmul.mubr.f32.gmra.mrb[0].mxu0 %v9278
        %v9849 = vpop.f32.mrb[0].mxu0
        %v9850 = vadd.f32 %v9745, %v9849
        %v9851 = vpop.f32.mrb[0].mxu0
        %9852 = vmatprep.mubr.f32.mxu0 0.0
        %9853 = vmatmul.mubr.f32.gmra.mrb[0].mxu0 %v9287
        %v9854 = vpop.f32.mrb[0].mxu0
        %v9855 = vadd.f32 %v9750, %v9854
        %v9856 = vpop.f32.mrb[0].mxu0
        %9857 = vmatprep.mubr.f32.mxu0 0.0
        %9858 = vmatmul.mubr.f32.gmra.mrb[0].mxu0 %v9296
        %v9859 = vpop.f32.mrb[0].mxu0
        %v9860 = vadd.f32 %v9755, %v9859
        %v9861 = vpop.f32.mrb[0].mxu0
        %9862 = vmatprep.mubr.f32.mxu0 0.0
        %9863 = vmatmul.mubr.f32.gmra.mrb[0].mxu0 %v9305
        %v9864 = vpop.f32.mrb[0].mxu0
        %v9865 = vadd.f32 %v9760, %v9864
        %v9866 = vpop.f32.mrb[0].mxu0
        %9867 = vmatprep.mubr.f32.mxu0 0.0
        %9868 = vmatmul.mubr.f32.gmra.mrb[0].mxu0 %v9314
        %v9869 = vpop.f32.mrb[0].mxu0
        %v9870 = vadd.f32 %v9765, %v9869
        %v9871 = vpop.f32.mrb[0].mxu0
        %9872 = vmatprep.mubr.f32.mxu0 0.0
        %9873 = vmatmul.mubr.f32.gmra.mrb[0].mxu0 %v9323
        %v9874 = vpop.f32.mrb[0].mxu0
        %v9875 = vadd.f32 %v9770, %v9874
        %v9876 = vpop.f32.mrb[0].mxu0
        %9877 = vmatprep.mubr.f32.mxu0 0.0
        %9878 = vmatmul.mubr.f32.gmra.mrb[0].mxu0 %v9332
        %v9879 = vpop.f32.mrb[0].mxu0
        %v9880 = vadd.f32 %v9775, %v9879
        %v9881 = vpop.f32.mrb[0].mxu0
        %9882 = vdwg.mxu0
        %v9883 = vadd.f32 %v9253, %v9845
        %v9884 = vadd.f32 %v9254, %v9850
        %v9885 = vadd.f32 %v9255, %v9855
        %v9886 = vadd.f32 %v9256, %v9860
        %v9887 = vadd.f32 %v9257, %v9865
        %v9888 = vadd.f32 %v9258, %v9870
        %v9889 = vadd.f32 %v9259, %v9875
        %v9890 = vadd.f32 %v9260, %v9880
        %v9891 = vmax.f32 %v9616, %v9883
        %v9892 = vmax.f32 %v9617, %v9884
        %v9893 = vmax.f32 %v9618, %v9885
        %v9894 = vmax.f32 %v9619, %v9886
        %v9895 = vmax.f32 %v9620, %v9887
        %v9896 = vmax.f32 %v9621, %v9888
        %v9897 = vmax.f32 %v9622, %v9889
        %v9898 = vmax.f32 %v9623, %v9890
        %v9899 = vld [vmem:[#allocation7] sm:$0x1]
        %v9901 = vlaneseq
        %v9902 = vshrl.u32 %v9901, 7
        %v9903 = vsub.s32 0, %v9902
        %v9904 = vrot.slane %v9899, %v9903
        %v9906 = vadd.f32 %v9891, %v9904
        %v9907 = vadd.f32 %v9892, %v9904
        %v9908 = vadd.f32 %v9893, %v9904
        %v9909 = vadd.f32 %v9894, %v9904
        %v9910 = vadd.f32 %v9895, %v9904
        %v9911 = vadd.f32 %v9896, %v9904
        %v9912 = vadd.f32 %v9897, %v9904
        %v9913 = vadd.f32 %v9898, %v9904
        %v9914 = vmax.f32 %v9906, 0.0
        %v9915 = vmax.f32 %v9907, 0.0
        %v9916 = vmax.f32 %v9908, 0.0
        %v9917 = vmax.f32 %v9909, 0.0
        %v9918 = vmax.f32 %v9910, 0.0
        %v9919 = vmax.f32 %v9911, 0.0
        %v9920 = vmax.f32 %v9912, 0.0
        %v9921 = vmax.f32 %v9913, 0.0
        %v9930 = vrot.slane %v9914, 1
        %v9931 = vrot.slane %v9915, 1
        %v9932 = vrot.slane %v9916, 1
        %v9933 = vrot.slane %v9917, 1
        %v9934 = vrot.slane %v9918, 1
        %v9935 = vrot.slane %v9919, 1
        %v9936 = vrot.slane %v9920, 1
        %v9937 = vrot.slane %v9921, 1
        %v9946 = vmax.f32 %v9914, %v9930
        %v9947 = vmax.f32 %v9915, %v9931
        %v9948 = vmax.f32 %v9916, %v9932
        %v9949 = vmax.f32 %v9917, %v9933
        %v9950 = vmax.f32 %v9918, %v9934
        %v9951 = vmax.f32 %v9919, %v9935
        %v9952 = vmax.f32 %v9920, %v9936
        %v9953 = vmax.f32 %v9921, %v9937
        %v9954 = vld [vmem:[#allocation8] sm:$0xff]
        %v9955 = vld [vmem:[#allocation8 + $0x8] sm:$0xff]
        %v9956 = vld [vmem:[#allocation8 + $0x10] sm:$0xff]
        %v9957 = vld [vmem:[#allocation8 + $0x18] sm:$0xff]
        %v9958 = vld [vmem:[#allocation8 + $0x20] sm:$0xff]
        %v9959 = vld [vmem:[#allocation8 + $0x28] sm:$0xff]
        %v9960 = vld [vmem:[#allocation8 + $0x30] sm:$0xff]
        %v9961 = vld [vmem:[#allocation8 + $0x38] sm:$0xff]
        %v9962 = vld [vmem:[#allocation8 + $0x40] sm:$0xff]
        %v9963 = vld [vmem:[#allocation8 + $0x48] sm:$0xff]
        %v9964 = vld [vmem:[#allocation8 + $0x50] sm:$0xff]
        %v9965 = vld [vmem:[#allocation8 + $0x58] sm:$0xff]
        %v9966 = vld [vmem:[#allocation8 + $0x60] sm:$0xff]
        %v9967 = vld [vmem:[#allocation8 + $0x68] sm:$0xff]
        %v9968 = vld [vmem:[#allocation8 + $0x70] sm:$0xff]
        %v9969 = vld [vmem:[#allocation8 + $0x78] sm:$0xff]
        %s9970 = scalar_lea.vmem [#allocation8], 128
        %v9971 = vld [vmem:[%s9970] sm:$0xff]
        %v9972 = vld [vmem:[%s9970 + $0x8] sm:$0xff]
        %v9973 = vld [vmem:[%s9970 + $0x10] sm:$0xff]
        %v9974 = vld [vmem:[%s9970 + $0x18] sm:$0xff]
        %v9975 = vld [vmem:[%s9970 + $0x20] sm:$0xff]
        %v9976 = vld [vmem:[%s9970 + $0x28] sm:$0xff]
        %v9977 = vld [vmem:[%s9970 + $0x30] sm:$0xff]
        %v9978 = vld [vmem:[%s9970 + $0x38] sm:$0xff]
        %v9979 = vld [vmem:[%s9970 + $0x40] sm:$0xff]
        %v9980 = vld [vmem:[%s9970 + $0x48] sm:$0xff]
        %v9981 = vld [vmem:[%s9970 + $0x50] sm:$0xff]
        %v9982 = vld [vmem:[%s9970 + $0x58] sm:$0xff]
        %v9983 = vld [vmem:[%s9970 + $0x60] sm:$0xff]
        %v9984 = vld [vmem:[%s9970 + $0x68] sm:$0xff]
        %v9985 = vld [vmem:[%s9970 + $0x70] sm:$0xff]
        %v9986 = vld [vmem:[%s9970 + $0x78] sm:$0xff]
        %v9995 = vrot.slane %v9946, 2
        %v9996 = vrot.slane %v9947, 1
        %vm9997 = vcmask 1041409
        %v9998 = vsel %vm9997, %v9996, %v9995
        %vm9999 = vcmask 1042434
        %v10000 = vsel %vm9999, %v9948, %v9998
        %v10001 = vrot.slane %v9949, 7
        %vm10002 = vcmask 1043459
        %v10003 = vsel %vm10002, %v10001, %v10000
        %v10004 = vrot.slane %v9950, 6
        %vm10005 = vcmask 1044484
        %v10006 = vsel %vm10005, %v10004, %v10003
        %v10007 = vrot.slane %v9951, 5
        %vm10008 = vcmask 1045509
        %v10009 = vsel %vm10008, %v10007, %v10006
        %v10010 = vrot.slane %v9952, 4
        %vm10011 = vcmask 1046534
        %v10012 = vsel %vm10011, %v10010, %v10009
        %v10013 = vrot.slane %v9953, 3
        %vm10014 = vcmask 1047559
        %v10015 = vsel %vm10014, %v10013, %v10012
        %10017 = vmatprep.subr.mxu0 0.0
        %10018 = vmatpush1.msra.mxu0 %v9971
        %10019 = vmatprep.subr.mxu0 0.0
        %10020 = vmatpush1.msra.mxu0 %v9972
        %10021 = vmatprep.subr.mxu0 0.0
        %10022 = vmatpush1.msra.mxu0 %v9973
        %10023 = vmatprep.subr.mxu0 0.0
        %10024 = vmatpush1.msra.mxu0 %v9974
        %10025 = vmatprep.subr.mxu0 0.0
        %10026 = vmatpush1.msra.mxu0 %v9975
        %10027 = vmatprep.subr.mxu0 0.0
        %10028 = vmatpush1.msra.mxu0 %v9976
        %10029 = vmatprep.subr.mxu0 0.0
        %10030 = vmatpush1.msra.mxu0 %v9977
        %10031 = vmatprep.subr.mxu0 0.0
        %10032 = vmatpush1.msra.mxu0 %v9978
        %10033 = vmatprep.subr.mxu0 0.0
        %10034 = vmatpush1.msra.mxu0 %v9979
        %10035 = vmatprep.subr.mxu0 0.0
        %10036 = vmatpush1.msra.mxu0 %v9980
        %10037 = vmatprep.subr.mxu0 0.0
        %10038 = vmatpush1.msra.mxu0 %v9981
        %10039 = vmatprep.subr.mxu0 0.0
        %10040 = vmatpush1.msra.mxu0 %v9982
        %10041 = vmatprep.subr.mxu0 0.0
        %10042 = vmatpush1.msra.mxu0 %v9983
        %10043 = vmatprep.subr.mxu0 0.0
        %10044 = vmatpush1.msra.mxu0 %v9984
        %10045 = vmatprep.subr.mxu0 0.0
        %10046 = vmatpush1.msra.mxu0 %v9985
        %10047 = vmatprep.subr.mxu0 0.0
        %10048 = vmatpush1.msra.mxu0 %v9986
        %10049 = vmatprep.subr.mxu0 0.0
        %10050 = vmatpush1.msra.mxu0 0.0
        %10051 = vmatprep.subr.mxu0 0.0
        %10052 = vmatpush1.msra.mxu0 0.0
        %10053 = vmatprep.subr.mxu0 0.0
        %10054 = vmatpush1.msra.mxu0 0.0
        %10055 = vmatprep.subr.mxu0 0.0
        %10056 = vmatpush1.msra.mxu0 0.0
        %10057 = vmatprep.subr.mxu0 0.0
        %10058 = vmatpush1.msra.mxu0 0.0
        %10059 = vmatprep.subr.mxu0 0.0
        %10060 = vmatpush1.msra.mxu0 0.0
        %10061 = vmatprep.subr.mxu0 0.0
        %10062 = vmatpush1.msra.mxu0 0.0
        %10063 = vmatprep.subr.mxu0 0.0
        %10064 = vmatpush1.msra.mxu0 0.0
        %10065 = vmatprep.subr.mxu0 0.0
        %10066 = vmatpush1.msra.mxu0 0.0
        %10067 = vmatprep.subr.mxu0 0.0
        %10068 = vmatpush1.msra.mxu0 0.0
        %10069 = vmatprep.subr.mxu0 0.0
        %10070 = vmatpush1.msra.mxu0 0.0
        %10071 = vmatprep.subr.mxu0 0.0
        %10072 = vmatpush1.msra.mxu0 0.0
        %10073 = vmatprep.subr.mxu0 0.0
        %10074 = vmatpush1.msra.mxu0 0.0
        %10075 = vmatprep.subr.mxu0 0.0
        %10076 = vmatpush1.msra.mxu0 0.0
        %10077 = vmatprep.subr.mxu0 0.0
        %10078 = vmatpush1.msra.mxu0 0.0
        %10079 = vmatprep.subr.mxu0 0.0
        %10080 = vmatpush1.msra.mxu0 0.0
        %10081 = vmatprep.mubr.f32.mxu0 0.0
        %10082 = vmatmul.mubr.f32.gmra.mrb[0].mxu0 %v10015
        %v10083 = vpop.f32.mrb[0].mxu0
        %v10084 = vadd.f32 0.0, %v10083
        %v10085 = vpop.f32.mrb[0].mxu0
        %10086 = vdwg.mxu0
        %v10087 = vrot.slane %v9947, 7
        %v10088 = vsel %vm9997, %v10087, %v9946
        %v10089 = vrot.slane %v9948, 6
        %v10090 = vsel %vm9999, %v10089, %v10088
        %v10091 = vrot.slane %v9949, 5
        %v10092 = vsel %vm10002, %v10091, %v10090
        %v10093 = vrot.slane %v9950, 4
        %v10094 = vsel %vm10005, %v10093, %v10092
        %v10095 = vrot.slane %v9951, 3
        %v10096 = vsel %vm10008, %v10095, %v10094
        %v10097 = vrot.slane %v9952, 2
        %v10098 = vsel %vm10011, %v10097, %v10096
        %v10099 = vrot.slane %v9953, 1
        %v10100 = vsel %vm10014, %v10099, %v10098
        %10102 = vmatprep.subr.mxu0 0.0
        %10103 = vmatpush1.msra.mxu0 %v9954
        %10104 = vmatprep.subr.mxu0 0.0
        %10105 = vmatpush1.msra.mxu0 %v9955
        %10106 = vmatprep.subr.mxu0 0.0
        %10107 = vmatpush1.msra.mxu0 %v9956
        %10108 = vmatprep.subr.mxu0 0.0
        %10109 = vmatpush1.msra.mxu0 %v9957
        %10110 = vmatprep.subr.mxu0 0.0
        %10111 = vmatpush1.msra.mxu0 %v9958
        %10112 = vmatprep.subr.mxu0 0.0
        %10113 = vmatpush1.msra.mxu0 %v9959
        %10114 = vmatprep.subr.mxu0 0.0
        %10115 = vmatpush1.msra.mxu0 %v9960
        %10116 = vmatprep.subr.mxu0 0.0
        %10117 = vmatpush1.msra.mxu0 %v9961
        %10118 = vmatprep.subr.mxu0 0.0
        %10119 = vmatpush1.msra.mxu0 %v9962
        %10120 = vmatprep.subr.mxu0 0.0
        %10121 = vmatpush1.msra.mxu0 %v9963
        %10122 = vmatprep.subr.mxu0 0.0
        %10123 = vmatpush1.msra.mxu0 %v9964
        %10124 = vmatprep.subr.mxu0 0.0
        %10125 = vmatpush1.msra.mxu0 %v9965
        %10126 = vmatprep.subr.mxu0 0.0
        %10127 = vmatpush1.msra.mxu0 %v9966
        %10128 = vmatprep.subr.mxu0 0.0
        %10129 = vmatpush1.msra.mxu0 %v9967
        %10130 = vmatprep.subr.mxu0 0.0
        %10131 = vmatpush1.msra.mxu0 %v9968
        %10132 = vmatprep.subr.mxu0 0.0
        %10133 = vmatpush1.msra.mxu0 %v9969
        %10134 = vmatprep.subr.mxu0 0.0
        %10135 = vmatpush1.msra.mxu0 0.0
        %10136 = vmatprep.subr.mxu0 0.0
        %10137 = vmatpush1.msra.mxu0 0.0
        %10138 = vmatprep.subr.mxu0 0.0
        %10139 = vmatpush1.msra.mxu0 0.0
        %10140 = vmatprep.subr.mxu0 0.0
        %10141 = vmatpush1.msra.mxu0 0.0
        %10142 = vmatprep.subr.mxu0 0.0
        %10143 = vmatpush1.msra.mxu0 0.0
        %10144 = vmatprep.subr.mxu0 0.0
        %10145 = vmatpush1.msra.mxu0 0.0
        %10146 = vmatprep.subr.mxu0 0.0
        %10147 = vmatpush1.msra.mxu0 0.0
        %10148 = vmatprep.subr.mxu0 0.0
        %10149 = vmatpush1.msra.mxu0 0.0
        %10150 = vmatprep.subr.mxu0 0.0
        %10151 = vmatpush1.msra.mxu0 0.0
        %10152 = vmatprep.subr.mxu0 0.0
        %10153 = vmatpush1.msra.mxu0 0.0
        %10154 = vmatprep.subr.mxu0 0.0
        %10155 = vmatpush1.msra.mxu0 0.0
        %10156 = vmatprep.subr.mxu0 0.0
        %10157 = vmatpush1.msra.mxu0 0.0
        %10158 = vmatprep.subr.mxu0 0.0
        %10159 = vmatpush1.msra.mxu0 0.0
        %10160 = vmatprep.subr.mxu0 0.0
        %10161 = vmatpush1.msra.mxu0 0.0
        %10162 = vmatprep.subr.mxu0 0.0
        %10163 = vmatpush1.msra.mxu0 0.0
        %10164 = vmatprep.subr.mxu0 0.0
        %10165 = vmatpush1.msra.mxu0 0.0
        %10166 = vmatprep.mubr.f32.mxu0 0.0
        %10167 = vmatmul.mubr.f32.gmra.mrb[0].mxu0 %v10100
        %v10168 = vpop.f32.mrb[0].mxu0
        %v10169 = vadd.f32 %v10084, %v10168
        %v10170 = vpop.f32.mrb[0].mxu0
        %10171 = vdwg.mxu0
        %s10172 = scalar_lea.vmem [#allocation8], 256
        %v10173 = vld [vmem:[%s10172] sm:$0xff]
        %v10174 = vld [vmem:[%s10172 + $0x8] sm:$0xff]
        %v10175 = vld [vmem:[%s10172 + $0x10] sm:$0xff]
        %v10176 = vld [vmem:[%s10172 + $0x18] sm:$0xff]
        %v10177 = vld [vmem:[%s10172 + $0x20] sm:$0xff]
        %v10178 = vld [vmem:[%s10172 + $0x28] sm:$0xff]
        %v10179 = vld [vmem:[%s10172 + $0x30] sm:$0xff]
        %v10180 = vld [vmem:[%s10172 + $0x38] sm:$0xff]
        %v10181 = vld [vmem:[%s10172 + $0x40] sm:$0xff]
        %v10182 = vld [vmem:[%s10172 + $0x48] sm:$0xff]
        %v10183 = vld [vmem:[%s10172 + $0x50] sm:$0xff]
        %v10184 = vld [vmem:[%s10172 + $0x58] sm:$0xff]
        %v10185 = vld [vmem:[%s10172 + $0x60] sm:$0xff]
        %v10186 = vld [vmem:[%s10172 + $0x68] sm:$0xff]
        %v10187 = vld [vmem:[%s10172 + $0x70] sm:$0xff]
        %v10188 = vld [vmem:[%s10172 + $0x78] sm:$0xff]
        %v10189 = vrot.slane %v9946, 4
        %v10190 = vrot.slane %v9947, 3
        %v10191 = vsel %vm9997, %v10190, %v10189
        %v10192 = vrot.slane %v9948, 2
        %v10193 = vsel %vm9999, %v10192, %v10191
        %v10194 = vrot.slane %v9949, 1
        %v10195 = vsel %vm10002, %v10194, %v10193
        %v10196 = vsel %vm10005, %v9950, %v10195
        %v10197 = vrot.slane %v9951, 7
        %v10198 = vsel %vm10008, %v10197, %v10196
        %v10199 = vrot.slane %v9952, 6
        %v10200 = vsel %vm10011, %v10199, %v10198
        %v10201 = vrot.slane %v9953, 5
        %v10202 = vsel %vm10014, %v10201, %v10200
        %10204 = vmatprep.subr.mxu0 0.0
        %10205 = vmatpush1.msra.mxu0 %v10173
        %10206 = vmatprep.subr.mxu0 0.0
        %10207 = vmatpush1.msra.mxu0 %v10174
        %10208 = vmatprep.subr.mxu0 0.0
        %10209 = vmatpush1.msra.mxu0 %v10175
        %10210 = vmatprep.subr.mxu0 0.0
        %10211 = vmatpush1.msra.mxu0 %v10176
        %10212 = vmatprep.subr.mxu0 0.0
        %10213 = vmatpush1.msra.mxu0 %v10177
        %10214 = vmatprep.subr.mxu0 0.0
        %10215 = vmatpush1.msra.mxu0 %v10178
        %10216 = vmatprep.subr.mxu0 0.0
        %10217 = vmatpush1.msra.mxu0 %v10179
        %10218 = vmatprep.subr.mxu0 0.0
        %10219 = vmatpush1.msra.mxu0 %v10180
        %10220 = vmatprep.subr.mxu0 0.0
        %10221 = vmatpush1.msra.mxu0 %v10181
        %10222 = vmatprep.subr.mxu0 0.0
        %10223 = vmatpush1.msra.mxu0 %v10182
        %10224 = vmatprep.subr.mxu0 0.0
        %10225 = vmatpush1.msra.mxu0 %v10183
        %10226 = vmatprep.subr.mxu0 0.0
        %10227 = vmatpush1.msra.mxu0 %v10184
        %10228 = vmatprep.subr.mxu0 0.0
        %10229 = vmatpush1.msra.mxu0 %v10185
        %10230 = vmatprep.subr.mxu0 0.0
        %10231 = vmatpush1.msra.mxu0 %v10186
        %10232 = vmatprep.subr.mxu0 0.0
        %10233 = vmatpush1.msra.mxu0 %v10187
        %10234 = vmatprep.subr.mxu0 0.0
        %10235 = vmatpush1.msra.mxu0 %v10188
        %10236 = vmatprep.subr.mxu0 0.0
        %10237 = vmatpush1.msra.mxu0 0.0
        %10238 = vmatprep.subr.mxu0 0.0
        %10239 = vmatpush1.msra.mxu0 0.0
        %10240 = vmatprep.subr.mxu0 0.0
        %10241 = vmatpush1.msra.mxu0 0.0
        %10242 = vmatprep.subr.mxu0 0.0
        %10243 = vmatpush1.msra.mxu0 0.0
        %10244 = vmatprep.subr.mxu0 0.0
        %10245 = vmatpush1.msra.mxu0 0.0
        %10246 = vmatprep.subr.mxu0 0.0
        %10247 = vmatpush1.msra.mxu0 0.0
        %10248 = vmatprep.subr.mxu0 0.0
        %10249 = vmatpush1.msra.mxu0 0.0
        %10250 = vmatprep.subr.mxu0 0.0
        %10251 = vmatpush1.msra.mxu0 0.0
        %10252 = vmatprep.subr.mxu0 0.0
        %10253 = vmatpush1.msra.mxu0 0.0
        %10254 = vmatprep.subr.mxu0 0.0
        %10255 = vmatpush1.msra.mxu0 0.0
        %10256 = vmatprep.subr.mxu0 0.0
        %10257 = vmatpush1.msra.mxu0 0.0
        %10258 = vmatprep.subr.mxu0 0.0
        %10259 = vmatpush1.msra.mxu0 0.0
        %10260 = vmatprep.subr.mxu0 0.0
        %10261 = vmatpush1.msra.mxu0 0.0
        %10262 = vmatprep.subr.mxu0 0.0
        %10263 = vmatpush1.msra.mxu0 0.0
        %10264 = vmatprep.subr.mxu0 0.0
        %10265 = vmatpush1.msra.mxu0 0.0
        %10266 = vmatprep.subr.mxu0 0.0
        %10267 = vmatpush1.msra.mxu0 0.0
        %10268 = vmatprep.mubr.f32.mxu0 0.0
        %10269 = vmatmul.mubr.f32.gmra.mrb[0].mxu0 %v10202
        %v10270 = vpop.f32.mrb[0].mxu0
        %v10271 = vadd.f32 0.0, %v10270
        %v10272 = vpop.f32.mrb[0].mxu0
        %10273 = vdwg.mxu0
        %v10274 = vadd.f32 %v10169, %v10271
        %s10275 = scalar_lea.vmem [#allocation8], 384
        %v10276 = vld [vmem:[%s10275] sm:$0xff]
        %v10277 = vld [vmem:[%s10275 + $0x8] sm:$0xff]
        %v10278 = vld [vmem:[%s10275 + $0x10] sm:$0xff]
        %v10279 = vld [vmem:[%s10275 + $0x18] sm:$0xff]
        %v10280 = vld [vmem:[%s10275 + $0x20] sm:$0xff]
        %v10281 = vld [vmem:[%s10275 + $0x28] sm:$0xff]
        %v10282 = vld [vmem:[%s10275 + $0x30] sm:$0xff]
        %v10283 = vld [vmem:[%s10275 + $0x38] sm:$0xff]
        %v10284 = vld [vmem:[%s10275 + $0x40] sm:$0xff]
        %v10285 = vld [vmem:[%s10275 + $0x48] sm:$0xff]
        %v10286 = vld [vmem:[%s10275 + $0x50] sm:$0xff]
        %v10287 = vld [vmem:[%s10275 + $0x58] sm:$0xff]
        %v10288 = vld [vmem:[%s10275 + $0x60] sm:$0xff]
        %v10289 = vld [vmem:[%s10275 + $0x68] sm:$0xff]
        %v10290 = vld [vmem:[%s10275 + $0x70] sm:$0xff]
        %v10291 = vld [vmem:[%s10275 + $0x78] sm:$0xff]
        %v10292 = vrot.slane %v9946, 6
        %v10293 = vrot.slane %v9947, 5
        %v10294 = vsel %vm9997, %v10293, %v10292
        %v10295 = vrot.slane %v9948, 4
        %v10296 = vsel %vm9999, %v10295, %v10294
        %v10297 = vrot.slane %v9949, 3
        %v10298 = vsel %vm10002, %v10297, %v10296
        %v10299 = vrot.slane %v9950, 2
        %v10300 = vsel %vm10005, %v10299, %v10298
        %v10301 = vrot.slane %v9951, 1
        %v10302 = vsel %vm10008, %v10301, %v10300
        %v10303 = vsel %vm10011, %v9952, %v10302
        %v10304 = vrot.slane %v9953, 7
        %v10305 = vsel %vm10014, %v10304, %v10303
        %10307 = vmatprep.subr.mxu0 0.0
        %10308 = vmatpush1.msra.mxu0 %v10276
        %10309 = vmatprep.subr.mxu0 0.0
        %10310 = vmatpush1.msra.mxu0 %v10277
        %10311 = vmatprep.subr.mxu0 0.0
        %10312 = vmatpush1.msra.mxu0 %v10278
        %10313 = vmatprep.subr.mxu0 0.0
        %10314 = vmatpush1.msra.mxu0 %v10279
        %10315 = vmatprep.subr.mxu0 0.0
        %10316 = vmatpush1.msra.mxu0 %v10280
        %10317 = vmatprep.subr.mxu0 0.0
        %10318 = vmatpush1.msra.mxu0 %v10281
        %10319 = vmatprep.subr.mxu0 0.0
        %10320 = vmatpush1.msra.mxu0 %v10282
        %10321 = vmatprep.subr.mxu0 0.0
        %10322 = vmatpush1.msra.mxu0 %v10283
        %10323 = vmatprep.subr.mxu0 0.0
        %10324 = vmatpush1.msra.mxu0 %v10284
        %10325 = vmatprep.subr.mxu0 0.0
        %10326 = vmatpush1.msra.mxu0 %v10285
        %10327 = vmatprep.subr.mxu0 0.0
        %10328 = vmatpush1.msra.mxu0 %v10286
        %10329 = vmatprep.subr.mxu0 0.0
        %10330 = vmatpush1.msra.mxu0 %v10287
        %10331 = vmatprep.subr.mxu0 0.0
        %10332 = vmatpush1.msra.mxu0 %v10288
        %10333 = vmatprep.subr.mxu0 0.0
        %10334 = vmatpush1.msra.mxu0 %v10289
        %10335 = vmatprep.subr.mxu0 0.0
        %10336 = vmatpush1.msra.mxu0 %v10290
        %10337 = vmatprep.subr.mxu0 0.0
        %10338 = vmatpush1.msra.mxu0 %v10291
        %10339 = vmatprep.subr.mxu0 0.0
        %10340 = vmatpush1.msra.mxu0 0.0
        %10341 = vmatprep.subr.mxu0 0.0
        %10342 = vmatpush1.msra.mxu0 0.0
        %10343 = vmatprep.subr.mxu0 0.0
        %10344 = vmatpush1.msra.mxu0 0.0
        %10345 = vmatprep.subr.mxu0 0.0
        %10346 = vmatpush1.msra.mxu0 0.0
        %10347 = vmatprep.subr.mxu0 0.0
        %10348 = vmatpush1.msra.mxu0 0.0
        %10349 = vmatprep.subr.mxu0 0.0
        %10350 = vmatpush1.msra.mxu0 0.0
        %10351 = vmatprep.subr.mxu0 0.0
        %10352 = vmatpush1.msra.mxu0 0.0
        %10353 = vmatprep.subr.mxu0 0.0
        %10354 = vmatpush1.msra.mxu0 0.0
        %10355 = vmatprep.subr.mxu0 0.0
        %10356 = vmatpush1.msra.mxu0 0.0
        %10357 = vmatprep.subr.mxu0 0.0
        %10358 = vmatpush1.msra.mxu0 0.0
        %10359 = vmatprep.subr.mxu0 0.0
        %10360 = vmatpush1.msra.mxu0 0.0
        %10361 = vmatprep.subr.mxu0 0.0
        %10362 = vmatpush1.msra.mxu0 0.0
        %10363 = vmatprep.subr.mxu0 0.0
        %10364 = vmatpush1.msra.mxu0 0.0
        %10365 = vmatprep.subr.mxu0 0.0
        %10366 = vmatpush1.msra.mxu0 0.0
        %10367 = vmatprep.subr.mxu0 0.0
        %10368 = vmatpush1.msra.mxu0 0.0
        %10369 = vmatprep.subr.mxu0 0.0
        %10370 = vmatpush1.msra.mxu0 0.0
        %10371 = vmatprep.mubr.f32.mxu0 0.0
        %10372 = vmatmul.mubr.f32.gmra.mrb[0].mxu0 %v10305
        %v10373 = vpop.f32.mrb[0].mxu0
        %v10374 = vadd.f32 0.0, %v10373
        %v10375 = vpop.f32.mrb[0].mxu0
        %10376 = vdwg.mxu0
        %v10377 = vadd.f32 %v10274, %v10374
        %v10378 = vld [vmem:[#allocation10] sm:$0x1]
        %v10380 = vlaneseq
        %v10381 = vshrl.u32 %v10380, 7
        %v10382 = vsub.s32 0, %v10381
        %v10383 = vrot.slane %v10378, %v10382
        %v10385 = vadd.f32 %v10377, %v10383
        %v10386 = vmax.f32 %v10385, 0.0
        %v10387 = vld [vmem:[#allocation11] sm:$0xff]
        %v10388 = vld [vmem:[#allocation11 + $0x8] sm:$0xff]
        %v10389 = vld [vmem:[#allocation11 + $0x10] sm:$0xff]
        %v10390 = vld [vmem:[#allocation11 + $0x18] sm:$0xff]
        %v10391 = vld [vmem:[#allocation11 + $0x20] sm:$0xff]
        %v10392 = vld [vmem:[#allocation11 + $0x28] sm:$0xff]
        %v10393 = vld [vmem:[#allocation11 + $0x30] sm:$0xff]
        %v10394 = vld [vmem:[#allocation11 + $0x38] sm:$0xff]
        %v10395 = vld [vmem:[#allocation11 + $0x40] sm:$0xff]
        %v10396 = vld [vmem:[#allocation11 + $0x48] sm:$0xff]
        %v10397 = vld [vmem:[#allocation11 + $0x50] sm:$0xff]
        %v10398 = vld [vmem:[#allocation11 + $0x58] sm:$0xff]
        %v10399 = vld [vmem:[#allocation11 + $0x60] sm:$0xff]
        %v10400 = vld [vmem:[#allocation11 + $0x68] sm:$0xff]
        %v10401 = vld [vmem:[#allocation11 + $0x70] sm:$0xff]
        %v10402 = vld [vmem:[#allocation11 + $0x78] sm:$0xff]
        %v10403 = vld [vmem:[#allocation13] sm:$0x1]
        %v10405 = vlaneseq
        %v10406 = vshrl.u32 %v10405, 7
        %v10407 = vsub.s32 0, %v10406
        %v10408 = vrot.slane %v10403, %v10407
        %10410 = vmatprep.subr.mxu0 0.0
        %10411 = vmatpush1.msra.mxu0 %v10387
        %10412 = vmatprep.subr.mxu0 0.0
        %10413 = vmatpush1.msra.mxu0 %v10388
        %10414 = vmatprep.subr.mxu0 0.0
        %10415 = vmatpush1.msra.mxu0 %v10389
        %10416 = vmatprep.subr.mxu0 0.0
        %10417 = vmatpush1.msra.mxu0 %v10390
        %10418 = vmatprep.subr.mxu0 0.0
        %10419 = vmatpush1.msra.mxu0 %v10391
        %10420 = vmatprep.subr.mxu0 0.0
        %10421 = vmatpush1.msra.mxu0 %v10392
        %10422 = vmatprep.subr.mxu0 0.0
        %10423 = vmatpush1.msra.mxu0 %v10393
        %10424 = vmatprep.subr.mxu0 0.0
        %10425 = vmatpush1.msra.mxu0 %v10394
        %10426 = vmatprep.subr.mxu0 0.0
        %10427 = vmatpush1.msra.mxu0 %v10395
        %10428 = vmatprep.subr.mxu0 0.0
        %10429 = vmatpush1.msra.mxu0 %v10396
        %10430 = vmatprep.subr.mxu0 0.0
        %10431 = vmatpush1.msra.mxu0 %v10397
        %10432 = vmatprep.subr.mxu0 0.0
        %10433 = vmatpush1.msra.mxu0 %v10398
        %10434 = vmatprep.subr.mxu0 0.0
        %10435 = vmatpush1.msra.mxu0 %v10399
        %10436 = vmatprep.subr.mxu0 0.0
        %10437 = vmatpush1.msra.mxu0 %v10400
        %10438 = vmatprep.subr.mxu0 0.0
        %10439 = vmatpush1.msra.mxu0 %v10401
        %10440 = vmatprep.subr.mxu0 0.0
        %10441 = vmatpush1.msra.mxu0 %v10402
        %10442 = vmatprep.subr.mxu0 0.0
        %10443 = vmatpush1.msra.mxu0 0.0
        %10444 = vmatprep.subr.mxu0 0.0
        %10445 = vmatpush1.msra.mxu0 0.0
        %10446 = vmatprep.subr.mxu0 0.0
        %10447 = vmatpush1.msra.mxu0 0.0
        %10448 = vmatprep.subr.mxu0 0.0
        %10449 = vmatpush1.msra.mxu0 0.0
        %10450 = vmatprep.subr.mxu0 0.0
        %10451 = vmatpush1.msra.mxu0 0.0
        %10452 = vmatprep.subr.mxu0 0.0
        %10453 = vmatpush1.msra.mxu0 0.0
        %10454 = vmatprep.subr.mxu0 0.0
        %10455 = vmatpush1.msra.mxu0 0.0
        %10456 = vmatprep.subr.mxu0 0.0
        %10457 = vmatpush1.msra.mxu0 0.0
        %10458 = vmatprep.subr.mxu0 0.0
        %10459 = vmatpush1.msra.mxu0 0.0
        %10460 = vmatprep.subr.mxu0 0.0
        %10461 = vmatpush1.msra.mxu0 0.0
        %10462 = vmatprep.subr.mxu0 0.0
        %10463 = vmatpush1.msra.mxu0 0.0
        %10464 = vmatprep.subr.mxu0 0.0
        %10465 = vmatpush1.msra.mxu0 0.0
        %10466 = vmatprep.subr.mxu0 0.0
        %10467 = vmatpush1.msra.mxu0 0.0
        %10468 = vmatprep.subr.mxu0 0.0
        %10469 = vmatpush1.msra.mxu0 0.0
        %10470 = vmatprep.subr.mxu0 0.0
        %10471 = vmatpush1.msra.mxu0 0.0
        %10472 = vmatprep.subr.mxu0 0.0
        %10473 = vmatpush1.msra.mxu0 0.0
        %10474 = vmatprep.mubr.f32.mxu0 0.0
        %10475 = vmatmul.mubr.f32.gmra.mrb[0].mxu0 %v10386
        %v10476 = vpop.f32.mrb[0].mxu0
        %v10477 = vadd.f32 %v10408, %v10476
        %v10478 = vpop.f32.mrb[0].mxu0
        %10479 = vdwg.mxu0
        %10480 = vst [vmem:[%s422] sm:$0xff] %v10477
        %s10481 = sand.u32 %s229, 1
        %s10482 = scalar_lea.sflag [#allocation4], %s10481
        %s10483 = sand.u32 %s229, 1
        %s10484 = smul.addr %s10483, 8
        %s10485 = scalar_lea.vmem [#allocation14], %s10484
        // Predicated region
        $region85: #{cnn_forward.1} parent=55 // pred_check
          %p10486 = pneg %p239
        $region86: #{cnn_forward.1} parent=55 // pred_check_branch
          %10488 = sbr.rel (%p10486) target = $region88
        $region87: #{cnn_forward.1} parent=55 // pred_region
          %s10490 = ssub.s32 128, 128
          %10491 = vsyncadd %s10482, %s10490
          %s10492 = smul.addr %s27, 128
          %s10493 = scalar_lea.hbm %s9, %s10492
          %s10495 = sshll.u32 %s10485, 4
          %s10496 = int_to_ptr.vmem [resolvable:$true] %s10495
          %10498 = dma.vmem_to_hbm [thread:$0]  %s10496, 128, %s10493, %s10482
        $region88: #{cnn_forward.1} parent=55 // pred_fallthru
          _
      $region56: #{cnn_forward.1} parent=5 // pred_fallthru
        _
      %p10499 = scmp.le.s32.totalorder 2, %s22
      // Predicated region
      $region89: #{cnn_forward.1} parent=5 // pred_check
        %p10500 = pneg %p10499
      $region90: #{cnn_forward.1} parent=5 // pred_check_branch
        %10502 = sbr.rel (%p10500) target = $region92
      $region91: #{cnn_forward.1} parent=5 // pred_region
        %s10503 = ssub.s32 %s22, 2
        // Predicated region
        $region93: #{cnn_forward.1} parent=91 // pred_check
          %p10504 = pneg %p245
        $region94: #{cnn_forward.1} parent=91 // pred_check_branch
          %10506 = sbr.rel (%p10504) target = $region96
        $region95: #{cnn_forward.1} parent=91 // pred_region
          %s10507 = sand.u32 %s230, 1
          %s10508 = scalar_lea.sflag [#allocation4], %s10507
          %s10509 = sand.u32 %s230, 1
          %s10510 = smul.addr %s10509, 8
          %s10511 = scalar_lea.vmem [#allocation14], %s10510
          %10512 = dma.done %s10508, 128
        $region96: #{cnn_forward.1} parent=91 // pred_fallthru
          _
      $region92: #{cnn_forward.1} parent=5 // pred_fallthru
        _
    $region6: #{cnn_forward.1} parent=1 // loop_footer
      %s26 = sadd.s32 1, %s22
    $region7: #{cnn_forward.1} parent=1 // loop_footer_branch
      %21 = sbr.rel target = $region3
    $region8: #{cnn_forward.1} parent=1 // loop_exit
      _
    %10513 = vsyncpa [#allocation3], 1
    %s10514 = scalar_lea.sflag [#allocation3], 1
    %10515 = vsyncpa %s10514, 1
    %10516 = vsyncpa [#allocation6], 1
    %10517 = vsyncpa [#allocation9], 1
    %10518 = vsyncpa [#allocation12], 1
    %10519 = vsyncpa [#allocation4], 1
    %s10520 = scalar_lea.sflag [#allocation4], 1
    %10521 = vsyncpa %s10520, 1

</llo_original>
